<compile_context>
chip_gen: v7x
topology: tpu7x:2x2x1
jax: 0.10.0
libtpu: 0.0.40
codegen_flags: <defaults>
</compile_context>

<pallas_src>
import jax
import jax.numpy as jnp
from jax.experimental import pallas as pl
from jax.experimental.pallas import tpu as pltpu

# Problem sizes (small, consistent with the module's image-style input).
B = 2          # batch
C = 4          # channels (odefunc dim)
H = 16
W = 16
LANES = H * W  # 256: flattened spatial -> lane axis
ROWS = 8       # slab rows (channels padded to a full sublane group)
T_ROW = 4      # slab row holding the constant-t time channel
ONE_ROW = 5    # slab row holding the constant 1.0 (bias) channel
CIN1 = C + 1   # conv1 input channels = C + time channel

N_STEPS = 8    # fixed RK4 steps from t=0 to t=1

# Lane-shift scratch: slab interior is written at lane offset OFF (128-aligned
# so the store is unmasked); per-tap reads happen at OFF + d for d in [-17, 17].
OFF = 128
PAD_LANES = 512


def _ode_block_kernel(x_ref, w1_ref, w2_ref, mask_ref, o_ref, pad_ref):
    """Fused RK4 integration of dx/dt = conv2(relu(conv1([t, x]))) for one batch.

    x_ref   : VMEM (1, ROWS, LANES)   rows 0..3 = channels (H*W on lanes), 4..7 = 0
    w1_ref  : VMEM (9, ROWS, ROWS)    conv1 per-tap packed weights (+time, +bias cols)
    w2_ref  : VMEM (9, ROWS, ROWS)    conv2 per-tap packed weights (+bias col)
    mask_ref: VMEM (9, ROWS, LANES)   per-tap SAME-padding validity masks (0/1)
    o_ref   : VMEM (1, ROWS, LANES)   state at t = 1
    pad_ref : VMEM (ROWS, PAD_LANES)  zero-bordered scratch used for lane shifts
    """
    # Zero the shift scratch once per program.  Only its interior is rewritten
    # below, so the border stays zero for the whole integration (border values
    # are masked out anyway; zeroing just avoids 0 * garbage -> NaN).
    pad_ref[...] = jnp.zeros((ROWS, PAD_LANES), jnp.float32)

    row = jax.lax.broadcasted_iota(jnp.int32, (ROWS, LANES), 0)
    is_t_row = row == T_ROW
    is_one_row = row == ONE_ROW

    def conv3x3(slab, w_ref):
        # slab: (ROWS, LANES) -> conv output (ROWS, LANES); rows >= C come out 0.
        pad_ref[:, OFF:OFF + LANES] = slab          # aligned, unmasked store
        acc = jnp.zeros((ROWS, LANES), jnp.float32)
        for kh in range(3):
            for kw in range(3):
                tap = kh * 3 + kw
                d = (kh - 1) * W + (kw - 1)
                shifted = pad_ref[:, OFF + d:OFF + d + LANES]
                masked = shifted * mask_ref[tap]    # SAME zero padding per tap
                acc = acc + jnp.dot(w_ref[tap], masked,
                                    preferred_element_type=jnp.float32)
        return acc

    def odefunc(t, y):
        # conv1 input: x channels + constant-t channel + constant-1 bias channel.
        slab1 = jnp.where(is_t_row, t, y)
        slab1 = jnp.where(is_one_row, jnp.float32(1.0), slab1)
        h = jnp.maximum(conv3x3(slab1, w1_ref), 0.0)
        # conv2 input: hidden channels + constant-1 bias channel.
        slab2 = jnp.where(is_one_row, jnp.float32(1.0), h)
        return conv3x3(slab2, w2_ref)

    dt = jnp.float32(1.0 / N_STEPS)

    def rk4_step(i, y):
        t = i.astype(jnp.float32) * dt
        k1 = odefunc(t, y)
        acc = y + (dt / 6.0) * k1
        k2 = odefunc(t + 0.5 * dt, y + (0.5 * dt) * k1)
        acc = acc + (dt / 3.0) * k2
        k3 = odefunc(t + 0.5 * dt, y + (0.5 * dt) * k2)
        acc = acc + (dt / 3.0) * k3
        k4 = odefunc(t + dt, y + dt * k3)
        return acc + (dt / 6.0) * k4

    o_ref[0] = jax.lax.fori_loop(0, N_STEPS, rk4_step, x_ref[0])


def _tap_masks():
    """(9, ROWS, LANES) 0/1 masks implementing SAME zero padding per 3x3 tap."""
    idx = jnp.arange(LANES)
    i, j = idx // W, idx % W
    ms = []
    for kh in range(3):
        for kw in range(3):
            valid = ((i + (kh - 1) >= 0) & (i + (kh - 1) < H) &
                     (j + (kw - 1) >= 0) & (j + (kw - 1) < W))
            ms.append(valid.astype(jnp.float32))
    m = jnp.stack(ms, axis=0)                       # (9, LANES)
    return jnp.broadcast_to(m[:, None, :], (9, ROWS, LANES))


def _pack_conv1(w1, b1):
    """Pack conv1 OIHW weights (C, C+1, 3, 3) + bias into (9, ROWS, ROWS).

    Reference input-channel order: channel 0 = time, channels 1..C = x.
    Slab row order: rows 0..C-1 = x, row T_ROW = time, row ONE_ROW = constant 1
    (bias is applied via the center tap only)."""
    wp = jnp.zeros((9, ROWS, ROWS), jnp.float32)
    for kh in range(3):
        for kw in range(3):
            tap = kh * 3 + kw
            wp = wp.at[tap, :C, :C].set(w1[:, 1:, kh, kw])
            wp = wp.at[tap, :C, T_ROW].set(w1[:, 0, kh, kw])
    wp = wp.at[4, :C, ONE_ROW].set(b1)              # center tap (kh=1, kw=1)
    return wp


def _pack_conv2(w2, b2):
    """Pack conv2 OIHW weights (C, C, 3, 3) + bias into (9, ROWS, ROWS)."""
    wp = jnp.zeros((9, ROWS, ROWS), jnp.float32)
    for kh in range(3):
        for kw in range(3):
            tap = kh * 3 + kw
            wp = wp.at[tap, :C, :C].set(w2[:, :, kh, kw])
    wp = wp.at[4, :C, ONE_ROW].set(b2)
    return wp


def ode_block_forward(x, w1, b1, w2, b2):
    """ODEBlock.forward: integrate dx/dt = f(t, x) from t=0 to t=1, return x(1)."""
    # Lane-dense slabs: (B, 8, 256); rows 0..3 = channels, rows 4..7 = 0.
    x_slab = jnp.concatenate(
        [x.reshape(B, C, LANES).astype(jnp.float32),
         jnp.zeros((B, ROWS - C, LANES), jnp.float32)], axis=1)

    out_slab = pl.pallas_call(
        _ode_block_kernel,
        out_shape=jax.ShapeDtypeStruct((B, ROWS, LANES), jnp.float32),
        grid=(B,),
        in_specs=[
            pl.BlockSpec((1, ROWS, LANES), lambda b: (b, 0, 0)),   # state slab
            pl.BlockSpec((9, ROWS, ROWS), lambda b: (0, 0, 0)),    # conv1 weights
            pl.BlockSpec((9, ROWS, ROWS), lambda b: (0, 0, 0)),    # conv2 weights
            pl.BlockSpec((9, ROWS, LANES), lambda b: (0, 0, 0)),   # tap masks
        ],
        out_specs=pl.BlockSpec((1, ROWS, LANES), lambda b: (b, 0, 0)),
        scratch_shapes=[pltpu.VMEM((ROWS, PAD_LANES), jnp.float32)],
        compiler_params=pltpu.CompilerParams(
            dimension_semantics=("parallel",)),
    )(x_slab, _pack_conv1(w1, b1), _pack_conv2(w2, b2), _tap_masks())

    return out_slab[:, :C, :].reshape(B, C, H, W)


# ---------------------------- pure-JAX reference ----------------------------
def _odefunc_ref(t, y, w1, b1, w2, b2):
    tt = jnp.full((y.shape[0], 1, H, W), t, jnp.float32)
    inp = jnp.concatenate([tt, y], axis=1)
    dn = ("NCHW", "OIHW", "NCHW")
    h = jax.lax.conv_general_dilated(inp, w1, (1, 1), "SAME",
                                     dimension_numbers=dn)
    h = jnp.maximum(h + b1.reshape(1, C, 1, 1), 0.0)
    out = jax.lax.conv_general_dilated(h, w2, (1, 1), "SAME",
                                       dimension_numbers=dn)
    return out + b2.reshape(1, C, 1, 1)


def ode_block_forward_ref(x, w1, b1, w2, b2, n_steps=N_STEPS):
    dt = 1.0 / n_steps
    y = x
    for i in range(n_steps):
        t = i * dt
        k1 = _odefunc_ref(t, y, w1, b1, w2, b2)
        k2 = _odefunc_ref(t + 0.5 * dt, y + 0.5 * dt * k1, w1, b1, w2, b2)
        k3 = _odefunc_ref(t + 0.5 * dt, y + 0.5 * dt * k2, w1, b1, w2, b2)
        k4 = _odefunc_ref(t + dt, y + dt * k3, w1, b1, w2, b2)
        y = y + (dt / 6.0) * (k1 + 2.0 * k2 + 2.0 * k3 + k4)
    return y


if __name__ == "__main__":
    key = jax.random.PRNGKey(0)
    k1, k2, k3, k4, kx = jax.random.split(key, 5)

    # Deterministic parameter init (shapes implied by the ConcatConv ODE func).
    w1 = jax.random.normal(k1, (C, CIN1, 3, 3), jnp.float32) * 0.1
    b1 = jax.random.normal(k2, (C,), jnp.float32) * 0.05
    w2 = jax.random.normal(k3, (C, C, 3, 3), jnp.float32) * 0.1
    b2 = jax.random.normal(k4, (C,), jnp.float32) * 0.05

    x = jax.random.normal(kx, (B, C, H, W), jnp.float32)

    out = jax.jit(ode_block_forward)(x, w1, b1, w2, b2)
    out = jax.block_until_ready(out)

    ref = ode_block_forward_ref(x, w1, b1, w2, b2)
    assert out.shape == (B, C, H, W)
    err = jnp.max(jnp.abs(out - ref))
    assert jnp.allclose(out, ref, atol=1e-4, rtol=1e-4), f"max abs err {err}"

    print("KERNEL_OK")
</pallas_src>

<mosaic_0001>
module attributes {stable_mosaic.version = 11 : i64} {
  func.func @_ode_block_kernel(%arg0: i32, %arg1: memref<1x8x256xf32, #tpu.memory_space<vmem>>, %arg2: memref<9x8x8xf32, #tpu.memory_space<vmem>>, %arg3: memref<9x8x8xf32, #tpu.memory_space<vmem>>, %arg4: memref<9x8x256xf32, #tpu.memory_space<vmem>>, %arg5: memref<1x8x256xf32, #tpu.memory_space<vmem>>, %arg6: memref<8x512xf32, #tpu.memory_space<vmem>>) attributes {dimension_semantics = [#tpu.dimension_semantics<parallel>], iteration_bounds = array<i64: 2>, scalar_prefetch = 0 : i64, scratch_operands = 1 : i64, tpu.core_type = #tpu.core_type<tc>, window_params = [{transform_indices = @transform_0, window_bounds = array<i64: 1, 8, 256>}, {pipeline_mode = #tpu.pipeline_mode<synchronous>, transform_indices = @transform_1, window_bounds = array<i64: 9, 8, 8>}, {pipeline_mode = #tpu.pipeline_mode<synchronous>, transform_indices = @transform_2, window_bounds = array<i64: 9, 8, 8>}, {pipeline_mode = #tpu.pipeline_mode<synchronous>, transform_indices = @transform_3, window_bounds = array<i64: 9, 8, 256>}, {transform_indices = @transform_4, window_bounds = array<i64: 1, 8, 256>}]} {
    %cst = arith.constant 0.000000e+00 : f32
    %0 = vector.broadcast %cst : f32 to vector<8x512xf32>
    %c0 = arith.constant 0 : index
    %c0_0 = arith.constant 0 : index
    %1 = vector.load %arg6[%c0, %c0_0] : memref<8x512xf32, #tpu.memory_space<vmem>>, vector<8x512xf32>
    tpu.vector_store %arg6[%c0, %c0_0], %0 {strides = array<i32>} : memref<8x512xf32, #tpu.memory_space<vmem>>, vector<8x512xf32>,
    %2 = tpu.iota {dimensions = array<i32: 0>} : vector<8x256xi32>
    %c4_i32 = arith.constant 4 : i32
    %3 = vector.broadcast %c4_i32 : i32 to vector<8x256xi32>
    %4 = arith.cmpi eq, %2, %3 : vector<8x256xi32>
    %c5_i32 = arith.constant 5 : i32
    %5 = vector.broadcast %c5_i32 : i32 to vector<8x256xi32>
    %6 = arith.cmpi eq, %2, %5 : vector<8x256xi32>
    %c0_1 = arith.constant 0 : index
    %c0_2 = arith.constant 0 : index
    %c0_3 = arith.constant 0 : index
    %7 = vector.load %arg1[%c0_1, %c0_2, %c0_3] : memref<1x8x256xf32, #tpu.memory_space<vmem>>, vector<1x8x256xf32>
    %8 = vector.shape_cast %7 : vector<1x8x256xf32> to vector<8x256xf32>
    %cst_4 = arith.constant 1.250000e-01 : f32
    %c0_i32 = arith.constant 0 : i32
    %c8_i32 = arith.constant 8 : i32
    %9 = arith.addi %c0_i32, %c8_i32 : i32
    %c1_i32 = arith.constant 1 : i32
    %10 = scf.for %arg7 = %c0_i32 to %9 step %c1_i32 iter_args(%arg8 = %8) -> (vector<8x256xf32>)  : i32 {
      %14 = arith.sitofp %arg7 : i32 to f32
      %15 = arith.mulf %14, %cst_4 : f32
      %16 = vector.broadcast %15 : f32 to vector<8x256xf32>
      %17 = arith.select %4, %16, %arg8 : vector<8x256xi1>, vector<8x256xf32>
      %cst_9 = arith.constant 1.000000e+00 : f32
      %18 = vector.broadcast %cst_9 : f32 to vector<8x256xf32>
      %19 = arith.select %6, %18, %17 : vector<8x256xi1>, vector<8x256xf32>
      %c0_10 = arith.constant 0 : index
      %c128 = arith.constant 128 : index
      %20 = vector.load %arg6[%c0_10, %c128] : memref<8x512xf32, #tpu.memory_space<vmem>>, vector<8x256xf32>
      tpu.vector_store %arg6[%c0_10, %c128], %19 {strides = array<i32>} : memref<8x512xf32, #tpu.memory_space<vmem>>, vector<8x256xf32>,
      %cst_11 = arith.constant 0.000000e+00 : f32
      %21 = vector.broadcast %cst_11 : f32 to vector<8x256xf32>
      %c0_12 = arith.constant 0 : index
      %c111 = arith.constant 111 : index
      %22 = vector.load %arg6[%c0_12, %c111] : memref<8x512xf32, #tpu.memory_space<vmem>>, vector<8x256xf32>
      %c0_13 = arith.constant 0 : index
      %c0_14 = arith.constant 0 : index
      %c0_15 = arith.constant 0 : index
      %23 = vector.load %arg4[%c0_13, %c0_14, %c0_15] : memref<9x8x256xf32, #tpu.memory_space<vmem>>, vector<1x8x256xf32>
      %24 = vector.shape_cast %23 : vector<1x8x256xf32> to vector<8x256xf32>
      %25 = arith.mulf %22, %24 : vector<8x256xf32>
      %c0_16 = arith.constant 0 : index
      %c0_17 = arith.constant 0 : index
      %c0_18 = arith.constant 0 : index
      %26 = vector.load %arg2[%c0_16, %c0_17, %c0_18] : memref<9x8x8xf32, #tpu.memory_space<vmem>>, vector<1x8x8xf32>
      %27 = vector.shape_cast %26 : vector<1x8x8xf32> to vector<8x8xf32>
      %cst_19 = arith.constant dense<0.000000e+00> : vector<8x256xf32>
      %28 = tpu.matmul %27, %25, %cst_19 {dimension_numbers = #tpu.dot_dimension_numbers<[1], [0], [0], [1], [0, 0, 1, 1], [], []>} : vector<8x8xf32>, vector<8x256xf32>, vector<8x256xf32> -> vector<8x256xf32>
      %29 = arith.addf %21, %28 : vector<8x256xf32>
      %c0_20 = arith.constant 0 : index
      %c112 = arith.constant 112 : index
      %30 = vector.load %arg6[%c0_20, %c112] : memref<8x512xf32, #tpu.memory_space<vmem>>, vector<8x256xf32>
      %c1 = arith.constant 1 : index
      %c0_21 = arith.constant 0 : index
      %c0_22 = arith.constant 0 : index
      %31 = vector.load %arg4[%c1, %c0_21, %c0_22] : memref<9x8x256xf32, #tpu.memory_space<vmem>>, vector<1x8x256xf32>
      %32 = vector.shape_cast %31 : vector<1x8x256xf32> to vector<8x256xf32>
      %33 = arith.mulf %30, %32 : vector<8x256xf32>
      %c1_23 = arith.constant 1 : index
      %c0_24 = arith.constant 0 : index
      %c0_25 = arith.constant 0 : index
      %34 = vector.load %arg2[%c1_23, %c0_24, %c0_25] : memref<9x8x8xf32, #tpu.memory_space<vmem>>, vector<1x8x8xf32>
      %35 = vector.shape_cast %34 : vector<1x8x8xf32> to vector<8x8xf32>
      %cst_26 = arith.constant dense<0.000000e+00> : vector<8x256xf32>
      %36 = tpu.matmul %35, %33, %cst_26 {dimension_numbers = #tpu.dot_dimension_numbers<[1], [0], [0], [1], [0, 0, 1, 1], [], []>} : vector<8x8xf32>, vector<8x256xf32>, vector<8x256xf32> -> vector<8x256xf32>
      %37 = arith.addf %29, %36 : vector<8x256xf32>
      %c0_27 = arith.constant 0 : index
      %c113 = arith.constant 113 : index
      %38 = vector.load %arg6[%c0_27, %c113] : memref<8x512xf32, #tpu.memory_space<vmem>>, vector<8x256xf32>
      %c2 = arith.constant 2 : index
      %c0_28 = arith.constant 0 : index
      %c0_29 = arith.constant 0 : index
      %39 = vector.load %arg4[%c2, %c0_28, %c0_29] : memref<9x8x256xf32, #tpu.memory_space<vmem>>, vector<1x8x256xf32>
      %40 = vector.shape_cast %39 : vector<1x8x256xf32> to vector<8x256xf32>
      %41 = arith.mulf %38, %40 : vector<8x256xf32>
      %c2_30 = arith.constant 2 : index
      %c0_31 = arith.constant 0 : index
      %c0_32 = arith.constant 0 : index
      %42 = vector.load %arg2[%c2_30, %c0_31, %c0_32] : memref<9x8x8xf32, #tpu.memory_space<vmem>>, vector<1x8x8xf32>
      %43 = vector.shape_cast %42 : vector<1x8x8xf32> to vector<8x8xf32>
      %cst_33 = arith.constant dense<0.000000e+00> : vector<8x256xf32>
      %44 = tpu.matmul %43, %41, %cst_33 {dimension_numbers = #tpu.dot_dimension_numbers<[1], [0], [0], [1], [0, 0, 1, 1], [], []>} : vector<8x8xf32>, vector<8x256xf32>, vector<8x256xf32> -> vector<8x256xf32>
      %45 = arith.addf %37, %44 : vector<8x256xf32>
      %c0_34 = arith.constant 0 : index
      %c127 = arith.constant 127 : index
      %46 = vector.load %arg6[%c0_34, %c127] : memref<8x512xf32, #tpu.memory_space<vmem>>, vector<8x256xf32>
      %c3 = arith.constant 3 : index
      %c0_35 = arith.constant 0 : index
      %c0_36 = arith.constant 0 : index
      %47 = vector.load %arg4[%c3, %c0_35, %c0_36] : memref<9x8x256xf32, #tpu.memory_space<vmem>>, vector<1x8x256xf32>
      %48 = vector.shape_cast %47 : vector<1x8x256xf32> to vector<8x256xf32>
      %49 = arith.mulf %46, %48 : vector<8x256xf32>
      %c3_37 = arith.constant 3 : index
      %c0_38 = arith.constant 0 : index
      %c0_39 = arith.constant 0 : index
      %50 = vector.load %arg2[%c3_37, %c0_38, %c0_39] : memref<9x8x8xf32, #tpu.memory_space<vmem>>, vector<1x8x8xf32>
      %51 = vector.shape_cast %50 : vector<1x8x8xf32> to vector<8x8xf32>
      %cst_40 = arith.constant dense<0.000000e+00> : vector<8x256xf32>
      %52 = tpu.matmul %51, %49, %cst_40 {dimension_numbers = #tpu.dot_dimension_numbers<[1], [0], [0], [1], [0, 0, 1, 1], [], []>} : vector<8x8xf32>, vector<8x256xf32>, vector<8x256xf32> -> vector<8x256xf32>
      %53 = arith.addf %45, %52 : vector<8x256xf32>
      %c0_41 = arith.constant 0 : index
      %c128_42 = arith.constant 128 : index
      %54 = vector.load %arg6[%c0_41, %c128_42] : memref<8x512xf32, #tpu.memory_space<vmem>>, vector<8x256xf32>
      %c4 = arith.constant 4 : index
      %c0_43 = arith.constant 0 : index
      %c0_44 = arith.constant 0 : index
      %55 = vector.load %arg4[%c4, %c0_43, %c0_44] : memref<9x8x256xf32, #tpu.memory_space<vmem>>, vector<1x8x256xf32>
      %56 = vector.shape_cast %55 : vector<1x8x256xf32> to vector<8x256xf32>
      %57 = arith.mulf %54, %56 : vector<8x256xf32>
      %c4_45 = arith.constant 4 : index
      %c0_46 = arith.constant 0 : index
      %c0_47 = arith.constant 0 : index
      %58 = vector.load %arg2[%c4_45, %c0_46, %c0_47] : memref<9x8x8xf32, #tpu.memory_space<vmem>>, vector<1x8x8xf32>
      %59 = vector.shape_cast %58 : vector<1x8x8xf32> to vector<8x8xf32>
      %cst_48 = arith.constant dense<0.000000e+00> : vector<8x256xf32>
      %60 = tpu.matmul %59, %57, %cst_48 {dimension_numbers = #tpu.dot_dimension_numbers<[1], [0], [0], [1], [0, 0, 1, 1], [], []>} : vector<8x8xf32>, vector<8x256xf32>, vector<8x256xf32> -> vector<8x256xf32>
      %61 = arith.addf %53, %60 : vector<8x256xf32>
      %c0_49 = arith.constant 0 : index
      %c129 = arith.constant 129 : index
      %62 = vector.load %arg6[%c0_49, %c129] : memref<8x512xf32, #tpu.memory_space<vmem>>, vector<8x256xf32>
      %c5 = arith.constant 5 : index
      %c0_50 = arith.constant 0 : index
      %c0_51 = arith.constant 0 : index
      %63 = vector.load %arg4[%c5, %c0_50, %c0_51] : memref<9x8x256xf32, #tpu.memory_space<vmem>>, vector<1x8x256xf32>
      %64 = vector.shape_cast %63 : vector<1x8x256xf32> to vector<8x256xf32>
      %65 = arith.mulf %62, %64 : vector<8x256xf32>
      %c5_52 = arith.constant 5 : index
      %c0_53 = arith.constant 0 : index
      %c0_54 = arith.constant 0 : index
      %66 = vector.load %arg2[%c5_52, %c0_53, %c0_54] : memref<9x8x8xf32, #tpu.memory_space<vmem>>, vector<1x8x8xf32>
      %67 = vector.shape_cast %66 : vector<1x8x8xf32> to vector<8x8xf32>
      %cst_55 = arith.constant dense<0.000000e+00> : vector<8x256xf32>
      %68 = tpu.matmul %67, %65, %cst_55 {dimension_numbers = #tpu.dot_dimension_numbers<[1], [0], [0], [1], [0, 0, 1, 1], [], []>} : vector<8x8xf32>, vector<8x256xf32>, vector<8x256xf32> -> vector<8x256xf32>
      %69 = arith.addf %61, %68 : vector<8x256xf32>
      %c0_56 = arith.constant 0 : index
      %c143 = arith.constant 143 : index
      %70 = vector.load %arg6[%c0_56, %c143] : memref<8x512xf32, #tpu.memory_space<vmem>>, vector<8x256xf32>
      %c6 = arith.constant 6 : index
      %c0_57 = arith.constant 0 : index
      %c0_58 = arith.constant 0 : index
      %71 = vector.load %arg4[%c6, %c0_57, %c0_58] : memref<9x8x256xf32, #tpu.memory_space<vmem>>, vector<1x8x256xf32>
      %72 = vector.shape_cast %71 : vector<1x8x256xf32> to vector<8x256xf32>
      %73 = arith.mulf %70, %72 : vector<8x256xf32>
      %c6_59 = arith.constant 6 : index
      %c0_60 = arith.constant 0 : index
      %c0_61 = arith.constant 0 : index
      %74 = vector.load %arg2[%c6_59, %c0_60, %c0_61] : memref<9x8x8xf32, #tpu.memory_space<vmem>>, vector<1x8x8xf32>
      %75 = vector.shape_cast %74 : vector<1x8x8xf32> to vector<8x8xf32>
      %cst_62 = arith.constant dense<0.000000e+00> : vector<8x256xf32>
      %76 = tpu.matmul %75, %73, %cst_62 {dimension_numbers = #tpu.dot_dimension_numbers<[1], [0], [0], [1], [0, 0, 1, 1], [], []>} : vector<8x8xf32>, vector<8x256xf32>, vector<8x256xf32> -> vector<8x256xf32>
      %77 = arith.addf %69, %76 : vector<8x256xf32>
      %c0_63 = arith.constant 0 : index
      %c144 = arith.constant 144 : index
      %78 = vector.load %arg6[%c0_63, %c144] : memref<8x512xf32, #tpu.memory_space<vmem>>, vector<8x256xf32>
      %c7 = arith.constant 7 : index
      %c0_64 = arith.constant 0 : index
      %c0_65 = arith.constant 0 : index
      %79 = vector.load %arg4[%c7, %c0_64, %c0_65] : memref<9x8x256xf32, #tpu.memory_space<vmem>>, vector<1x8x256xf32>
      %80 = vector.shape_cast %79 : vector<1x8x256xf32> to vector<8x256xf32>
      %81 = arith.mulf %78, %80 : vector<8x256xf32>
      %c7_66 = arith.constant 7 : index
      %c0_67 = arith.constant 0 : index
      %c0_68 = arith.constant 0 : index
      %82 = vector.load %arg2[%c7_66, %c0_67, %c0_68] : memref<9x8x8xf32, #tpu.memory_space<vmem>>, vector<1x8x8xf32>
      %83 = vector.shape_cast %82 : vector<1x8x8xf32> to vector<8x8xf32>
      %cst_69 = arith.constant dense<0.000000e+00> : vector<8x256xf32>
      %84 = tpu.matmul %83, %81, %cst_69 {dimension_numbers = #tpu.dot_dimension_numbers<[1], [0], [0], [1], [0, 0, 1, 1], [], []>} : vector<8x8xf32>, vector<8x256xf32>, vector<8x256xf32> -> vector<8x256xf32>
      %85 = arith.addf %77, %84 : vector<8x256xf32>
      %c0_70 = arith.constant 0 : index
      %c145 = arith.constant 145 : index
      %86 = vector.load %arg6[%c0_70, %c145] : memref<8x512xf32, #tpu.memory_space<vmem>>, vector<8x256xf32>
      %c8 = arith.constant 8 : index
      %c0_71 = arith.constant 0 : index
      %c0_72 = arith.constant 0 : index
      %87 = vector.load %arg4[%c8, %c0_71, %c0_72] : memref<9x8x256xf32, #tpu.memory_space<vmem>>, vector<1x8x256xf32>
      %88 = vector.shape_cast %87 : vector<1x8x256xf32> to vector<8x256xf32>
      %89 = arith.mulf %86, %88 : vector<8x256xf32>
      %c8_73 = arith.constant 8 : index
      %c0_74 = arith.constant 0 : index
      %c0_75 = arith.constant 0 : index
      %90 = vector.load %arg2[%c8_73, %c0_74, %c0_75] : memref<9x8x8xf32, #tpu.memory_space<vmem>>, vector<1x8x8xf32>
      %91 = vector.shape_cast %90 : vector<1x8x8xf32> to vector<8x8xf32>
      %cst_76 = arith.constant dense<0.000000e+00> : vector<8x256xf32>
      %92 = tpu.matmul %91, %89, %cst_76 {dimension_numbers = #tpu.dot_dimension_numbers<[1], [0], [0], [1], [0, 0, 1, 1], [], []>} : vector<8x8xf32>, vector<8x256xf32>, vector<8x256xf32> -> vector<8x256xf32>
      %93 = arith.addf %85, %92 : vector<8x256xf32>
      %cst_77 = arith.constant 0.000000e+00 : f32
      %94 = vector.broadcast %cst_77 : f32 to vector<8x256xf32>
      %95 = arith.maximumf %93, %94 : vector<8x256xf32>
      %cst_78 = arith.constant 1.000000e+00 : f32
      %96 = vector.broadcast %cst_78 : f32 to vector<8x256xf32>
      %97 = arith.select %6, %96, %95 : vector<8x256xi1>, vector<8x256xf32>
      %c0_79 = arith.constant 0 : index
      %c128_80 = arith.constant 128 : index
      %98 = vector.load %arg6[%c0_79, %c128_80] : memref<8x512xf32, #tpu.memory_space<vmem>>, vector<8x256xf32>
      tpu.vector_store %arg6[%c0_79, %c128_80], %97 {strides = array<i32>} : memref<8x512xf32, #tpu.memory_space<vmem>>, vector<8x256xf32>,
      %cst_81 = arith.constant 0.000000e+00 : f32
      %99 = vector.broadcast %cst_81 : f32 to vector<8x256xf32>
      %c0_82 = arith.constant 0 : index
      %c111_83 = arith.constant 111 : index
      %100 = vector.load %arg6[%c0_82, %c111_83] : memref<8x512xf32, #tpu.memory_space<vmem>>, vector<8x256xf32>
      %c0_84 = arith.constant 0 : index
      %c0_85 = arith.constant 0 : index
      %c0_86 = arith.constant 0 : index
      %101 = vector.load %arg4[%c0_84, %c0_85, %c0_86] : memref<9x8x256xf32, #tpu.memory_space<vmem>>, vector<1x8x256xf32>
      %102 = vector.shape_cast %101 : vector<1x8x256xf32> to vector<8x256xf32>
      %103 = arith.mulf %100, %102 : vector<8x256xf32>
      %c0_87 = arith.constant 0 : index
      %c0_88 = arith.constant 0 : index
      %c0_89 = arith.constant 0 : index
      %104 = vector.load %arg3[%c0_87, %c0_88, %c0_89] : memref<9x8x8xf32, #tpu.memory_space<vmem>>, vector<1x8x8xf32>
      %105 = vector.shape_cast %104 : vector<1x8x8xf32> to vector<8x8xf32>
      %cst_90 = arith.constant dense<0.000000e+00> : vector<8x256xf32>
      %106 = tpu.matmul %105, %103, %cst_90 {dimension_numbers = #tpu.dot_dimension_numbers<[1], [0], [0], [1], [0, 0, 1, 1], [], []>} : vector<8x8xf32>, vector<8x256xf32>, vector<8x256xf32> -> vector<8x256xf32>
      %107 = arith.addf %99, %106 : vector<8x256xf32>
      %c0_91 = arith.constant 0 : index
      %c112_92 = arith.constant 112 : index
      %108 = vector.load %arg6[%c0_91, %c112_92] : memref<8x512xf32, #tpu.memory_space<vmem>>, vector<8x256xf32>
      %c1_93 = arith.constant 1 : index
      %c0_94 = arith.constant 0 : index
      %c0_95 = arith.constant 0 : index
      %109 = vector.load %arg4[%c1_93, %c0_94, %c0_95] : memref<9x8x256xf32, #tpu.memory_space<vmem>>, vector<1x8x256xf32>
      %110 = vector.shape_cast %109 : vector<1x8x256xf32> to vector<8x256xf32>
      %111 = arith.mulf %108, %110 : vector<8x256xf32>
      %c1_96 = arith.constant 1 : index
      %c0_97 = arith.constant 0 : index
      %c0_98 = arith.constant 0 : index
      %112 = vector.load %arg3[%c1_96, %c0_97, %c0_98] : memref<9x8x8xf32, #tpu.memory_space<vmem>>, vector<1x8x8xf32>
      %113 = vector.shape_cast %112 : vector<1x8x8xf32> to vector<8x8xf32>
      %cst_99 = arith.constant dense<0.000000e+00> : vector<8x256xf32>
      %114 = tpu.matmul %113, %111, %cst_99 {dimension_numbers = #tpu.dot_dimension_numbers<[1], [0], [0], [1], [0, 0, 1, 1], [], []>} : vector<8x8xf32>, vector<8x256xf32>, vector<8x256xf32> -> vector<8x256xf32>
      %115 = arith.addf %107, %114 : vector<8x256xf32>
      %c0_100 = arith.constant 0 : index
      %c113_101 = arith.constant 113 : index
      %116 = vector.load %arg6[%c0_100, %c113_101] : memref<8x512xf32, #tpu.memory_space<vmem>>, vector<8x256xf32>
      %c2_102 = arith.constant 2 : index
      %c0_103 = arith.constant 0 : index
      %c0_104 = arith.constant 0 : index
      %117 = vector.load %arg4[%c2_102, %c0_103, %c0_104] : memref<9x8x256xf32, #tpu.memory_space<vmem>>, vector<1x8x256xf32>
      %118 = vector.shape_cast %117 : vector<1x8x256xf32> to vector<8x256xf32>
      %119 = arith.mulf %116, %118 : vector<8x256xf32>
      %c2_105 = arith.constant 2 : index
      %c0_106 = arith.constant 0 : index
      %c0_107 = arith.constant 0 : index
      %120 = vector.load %arg3[%c2_105, %c0_106, %c0_107] : memref<9x8x8xf32, #tpu.memory_space<vmem>>, vector<1x8x8xf32>
      %121 = vector.shape_cast %120 : vector<1x8x8xf32> to vector<8x8xf32>
      %cst_108 = arith.constant dense<0.000000e+00> : vector<8x256xf32>
      %122 = tpu.matmul %121, %119, %cst_108 {dimension_numbers = #tpu.dot_dimension_numbers<[1], [0], [0], [1], [0, 0, 1, 1], [], []>} : vector<8x8xf32>, vector<8x256xf32>, vector<8x256xf32> -> vector<8x256xf32>
      %123 = arith.addf %115, %122 : vector<8x256xf32>
      %c0_109 = arith.constant 0 : index
      %c127_110 = arith.constant 127 : index
      %124 = vector.load %arg6[%c0_109, %c127_110] : memref<8x512xf32, #tpu.memory_space<vmem>>, vector<8x256xf32>
      %c3_111 = arith.constant 3 : index
      %c0_112 = arith.constant 0 : index
      %c0_113 = arith.constant 0 : index
      %125 = vector.load %arg4[%c3_111, %c0_112, %c0_113] : memref<9x8x256xf32, #tpu.memory_space<vmem>>, vector<1x8x256xf32>
      %126 = vector.shape_cast %125 : vector<1x8x256xf32> to vector<8x256xf32>
      %127 = arith.mulf %124, %126 : vector<8x256xf32>
      %c3_114 = arith.constant 3 : index
      %c0_115 = arith.constant 0 : index
      %c0_116 = arith.constant 0 : index
      %128 = vector.load %arg3[%c3_114, %c0_115, %c0_116] : memref<9x8x8xf32, #tpu.memory_space<vmem>>, vector<1x8x8xf32>
      %129 = vector.shape_cast %128 : vector<1x8x8xf32> to vector<8x8xf32>
      %cst_117 = arith.constant dense<0.000000e+00> : vector<8x256xf32>
      %130 = tpu.matmul %129, %127, %cst_117 {dimension_numbers = #tpu.dot_dimension_numbers<[1], [0], [0], [1], [0, 0, 1, 1], [], []>} : vector<8x8xf32>, vector<8x256xf32>, vector<8x256xf32> -> vector<8x256xf32>
      %131 = arith.addf %123, %130 : vector<8x256xf32>
      %c0_118 = arith.constant 0 : index
      %c128_119 = arith.constant 128 : index
      %132 = vector.load %arg6[%c0_118, %c128_119] : memref<8x512xf32, #tpu.memory_space<vmem>>, vector<8x256xf32>
      %c4_120 = arith.constant 4 : index
      %c0_121 = arith.constant 0 : index
      %c0_122 = arith.constant 0 : index
      %133 = vector.load %arg4[%c4_120, %c0_121, %c0_122] : memref<9x8x256xf32, #tpu.memory_space<vmem>>, vector<1x8x256xf32>
      %134 = vector.shape_cast %133 : vector<1x8x256xf32> to vector<8x256xf32>
      %135 = arith.mulf %132, %134 : vector<8x256xf32>
      %c4_123 = arith.constant 4 : index
      %c0_124 = arith.constant 0 : index
      %c0_125 = arith.constant 0 : index
      %136 = vector.load %arg3[%c4_123, %c0_124, %c0_125] : memref<9x8x8xf32, #tpu.memory_space<vmem>>, vector<1x8x8xf32>
      %137 = vector.shape_cast %136 : vector<1x8x8xf32> to vector<8x8xf32>
      %cst_126 = arith.constant dense<0.000000e+00> : vector<8x256xf32>
      %138 = tpu.matmul %137, %135, %cst_126 {dimension_numbers = #tpu.dot_dimension_numbers<[1], [0], [0], [1], [0, 0, 1, 1], [], []>} : vector<8x8xf32>, vector<8x256xf32>, vector<8x256xf32> -> vector<8x256xf32>
      %139 = arith.addf %131, %138 : vector<8x256xf32>
      %c0_127 = arith.constant 0 : index
      %c129_128 = arith.constant 129 : index
      %140 = vector.load %arg6[%c0_127, %c129_128] : memref<8x512xf32, #tpu.memory_space<vmem>>, vector<8x256xf32>
      %c5_129 = arith.constant 5 : index
      %c0_130 = arith.constant 0 : index
      %c0_131 = arith.constant 0 : index
      %141 = vector.load %arg4[%c5_129, %c0_130, %c0_131] : memref<9x8x256xf32, #tpu.memory_space<vmem>>, vector<1x8x256xf32>
      %142 = vector.shape_cast %141 : vector<1x8x256xf32> to vector<8x256xf32>
      %143 = arith.mulf %140, %142 : vector<8x256xf32>
      %c5_132 = arith.constant 5 : index
      %c0_133 = arith.constant 0 : index
      %c0_134 = arith.constant 0 : index
      %144 = vector.load %arg3[%c5_132, %c0_133, %c0_134] : memref<9x8x8xf32, #tpu.memory_space<vmem>>, vector<1x8x8xf32>
      %145 = vector.shape_cast %144 : vector<1x8x8xf32> to vector<8x8xf32>
      %cst_135 = arith.constant dense<0.000000e+00> : vector<8x256xf32>
      %146 = tpu.matmul %145, %143, %cst_135 {dimension_numbers = #tpu.dot_dimension_numbers<[1], [0], [0], [1], [0, 0, 1, 1], [], []>} : vector<8x8xf32>, vector<8x256xf32>, vector<8x256xf32> -> vector<8x256xf32>
      %147 = arith.addf %139, %146 : vector<8x256xf32>
      %c0_136 = arith.constant 0 : index
      %c143_137 = arith.constant 143 : index
      %148 = vector.load %arg6[%c0_136, %c143_137] : memref<8x512xf32, #tpu.memory_space<vmem>>, vector<8x256xf32>
      %c6_138 = arith.constant 6 : index
      %c0_139 = arith.constant 0 : index
      %c0_140 = arith.constant 0 : index
      %149 = vector.load %arg4[%c6_138, %c0_139, %c0_140] : memref<9x8x256xf32, #tpu.memory_space<vmem>>, vector<1x8x256xf32>
      %150 = vector.shape_cast %149 : vector<1x8x256xf32> to vector<8x256xf32>
      %151 = arith.mulf %148, %150 : vector<8x256xf32>
      %c6_141 = arith.constant 6 : index
      %c0_142 = arith.constant 0 : index
      %c0_143 = arith.constant 0 : index
      %152 = vector.load %arg3[%c6_141, %c0_142, %c0_143] : memref<9x8x8xf32, #tpu.memory_space<vmem>>, vector<1x8x8xf32>
      %153 = vector.shape_cast %152 : vector<1x8x8xf32> to vector<8x8xf32>
      %cst_144 = arith.constant dense<0.000000e+00> : vector<8x256xf32>
      %154 = tpu.matmul %153, %151, %cst_144 {dimension_numbers = #tpu.dot_dimension_numbers<[1], [0], [0], [1], [0, 0, 1, 1], [], []>} : vector<8x8xf32>, vector<8x256xf32>, vector<8x256xf32> -> vector<8x256xf32>
      %155 = arith.addf %147, %154 : vector<8x256xf32>
      %c0_145 = arith.constant 0 : index
      %c144_146 = arith.constant 144 : index
      %156 = vector.load %arg6[%c0_145, %c144_146] : memref<8x512xf32, #tpu.memory_space<vmem>>, vector<8x256xf32>
      %c7_147 = arith.constant 7 : index
      %c0_148 = arith.constant 0 : index
      %c0_149 = arith.constant 0 : index
      %157 = vector.load %arg4[%c7_147, %c0_148, %c0_149] : memref<9x8x256xf32, #tpu.memory_space<vmem>>, vector<1x8x256xf32>
      %158 = vector.shape_cast %157 : vector<1x8x256xf32> to vector<8x256xf32>
      %159 = arith.mulf %156, %158 : vector<8x256xf32>
      %c7_150 = arith.constant 7 : index
      %c0_151 = arith.constant 0 : index
      %c0_152 = arith.constant 0 : index
      %160 = vector.load %arg3[%c7_150, %c0_151, %c0_152] : memref<9x8x8xf32, #tpu.memory_space<vmem>>, vector<1x8x8xf32>
      %161 = vector.shape_cast %160 : vector<1x8x8xf32> to vector<8x8xf32>
      %cst_153 = arith.constant dense<0.000000e+00> : vector<8x256xf32>
      %162 = tpu.matmul %161, %159, %cst_153 {dimension_numbers = #tpu.dot_dimension_numbers<[1], [0], [0], [1], [0, 0, 1, 1], [], []>} : vector<8x8xf32>, vector<8x256xf32>, vector<8x256xf32> -> vector<8x256xf32>
      %163 = arith.addf %155, %162 : vector<8x256xf32>
      %c0_154 = arith.constant 0 : index
      %c145_155 = arith.constant 145 : index
      %164 = vector.load %arg6[%c0_154, %c145_155] : memref<8x512xf32, #tpu.memory_space<vmem>>, vector<8x256xf32>
      %c8_156 = arith.constant 8 : index
      %c0_157 = arith.constant 0 : index
      %c0_158 = arith.constant 0 : index
      %165 = vector.load %arg4[%c8_156, %c0_157, %c0_158] : memref<9x8x256xf32, #tpu.memory_space<vmem>>, vector<1x8x256xf32>
      %166 = vector.shape_cast %165 : vector<1x8x256xf32> to vector<8x256xf32>
      %167 = arith.mulf %164, %166 : vector<8x256xf32>
      %c8_159 = arith.constant 8 : index
      %c0_160 = arith.constant 0 : index
      %c0_161 = arith.constant 0 : index
      %168 = vector.load %arg3[%c8_159, %c0_160, %c0_161] : memref<9x8x8xf32, #tpu.memory_space<vmem>>, vector<1x8x8xf32>
      %169 = vector.shape_cast %168 : vector<1x8x8xf32> to vector<8x8xf32>
      %cst_162 = arith.constant dense<0.000000e+00> : vector<8x256xf32>
      %170 = tpu.matmul %169, %167, %cst_162 {dimension_numbers = #tpu.dot_dimension_numbers<[1], [0], [0], [1], [0, 0, 1, 1], [], []>} : vector<8x8xf32>, vector<8x256xf32>, vector<8x256xf32> -> vector<8x256xf32>
      %171 = arith.addf %163, %170 : vector<8x256xf32>
      %cst_163 = arith.constant 6.000000e+00 : f32
      %172 = arith.divf %cst_4, %cst_163 : f32
      %173 = vector.broadcast %172 : f32 to vector<8x256xf32>
      %174 = arith.mulf %173, %171 : vector<8x256xf32>
      %175 = arith.addf %arg8, %174 : vector<8x256xf32>
      %cst_164 = arith.constant 5.000000e-01 : f32
      %176 = arith.mulf %cst_164, %cst_4 : f32
      %177 = arith.addf %15, %176 : f32
      %cst_165 = arith.constant 5.000000e-01 : f32
      %178 = arith.mulf %cst_165, %cst_4 : f32
      %179 = vector.broadcast %178 : f32 to vector<8x256xf32>
      %180 = arith.mulf %179, %171 : vector<8x256xf32>
      %181 = arith.addf %arg8, %180 : vector<8x256xf32>
      %182 = vector.broadcast %177 : f32 to vector<8x256xf32>
      %183 = arith.select %4, %182, %181 : vector<8x256xi1>, vector<8x256xf32>
      %cst_166 = arith.constant 1.000000e+00 : f32
      %184 = vector.broadcast %cst_166 : f32 to vector<8x256xf32>
      %185 = arith.select %6, %184, %183 : vector<8x256xi1>, vector<8x256xf32>
      %c0_167 = arith.constant 0 : index
      %c128_168 = arith.constant 128 : index
      %186 = vector.load %arg6[%c0_167, %c128_168] : memref<8x512xf32, #tpu.memory_space<vmem>>, vector<8x256xf32>
      tpu.vector_store %arg6[%c0_167, %c128_168], %185 {strides = array<i32>} : memref<8x512xf32, #tpu.memory_space<vmem>>, vector<8x256xf32>,
      %cst_169 = arith.constant 0.000000e+00 : f32
      %187 = vector.broadcast %cst_169 : f32 to vector<8x256xf32>
      %c0_170 = arith.constant 0 : index
      %c111_171 = arith.constant 111 : index
      %188 = vector.load %arg6[%c0_170, %c111_171] : memref<8x512xf32, #tpu.memory_space<vmem>>, vector<8x256xf32>
      %c0_172 = arith.constant 0 : index
      %c0_173 = arith.constant 0 : index
      %c0_174 = arith.constant 0 : index
      %189 = vector.load %arg4[%c0_172, %c0_173, %c0_174] : memref<9x8x256xf32, #tpu.memory_space<vmem>>, vector<1x8x256xf32>
      %190 = vector.shape_cast %189 : vector<1x8x256xf32> to vector<8x256xf32>
      %191 = arith.mulf %188, %190 : vector<8x256xf32>
      %c0_175 = arith.constant 0 : index
      %c0_176 = arith.constant 0 : index
      %c0_177 = arith.constant 0 : index
      %192 = vector.load %arg2[%c0_175, %c0_176, %c0_177] : memref<9x8x8xf32, #tpu.memory_space<vmem>>, vector<1x8x8xf32>
      %193 = vector.shape_cast %192 : vector<1x8x8xf32> to vector<8x8xf32>
      %cst_178 = arith.constant dense<0.000000e+00> : vector<8x256xf32>
      %194 = tpu.matmul %193, %191, %cst_178 {dimension_numbers = #tpu.dot_dimension_numbers<[1], [0], [0], [1], [0, 0, 1, 1], [], []>} : vector<8x8xf32>, vector<8x256xf32>, vector<8x256xf32> -> vector<8x256xf32>
      %195 = arith.addf %187, %194 : vector<8x256xf32>
      %c0_179 = arith.constant 0 : index
      %c112_180 = arith.constant 112 : index
      %196 = vector.load %arg6[%c0_179, %c112_180] : memref<8x512xf32, #tpu.memory_space<vmem>>, vector<8x256xf32>
      %c1_181 = arith.constant 1 : index
      %c0_182 = arith.constant 0 : index
      %c0_183 = arith.constant 0 : index
      %197 = vector.load %arg4[%c1_181, %c0_182, %c0_183] : memref<9x8x256xf32, #tpu.memory_space<vmem>>, vector<1x8x256xf32>
      %198 = vector.shape_cast %197 : vector<1x8x256xf32> to vector<8x256xf32>
      %199 = arith.mulf %196, %198 : vector<8x256xf32>
      %c1_184 = arith.constant 1 : index
      %c0_185 = arith.constant 0 : index
      %c0_186 = arith.constant 0 : index
      %200 = vector.load %arg2[%c1_184, %c0_185, %c0_186] : memref<9x8x8xf32, #tpu.memory_space<vmem>>, vector<1x8x8xf32>
      %201 = vector.shape_cast %200 : vector<1x8x8xf32> to vector<8x8xf32>
      %cst_187 = arith.constant dense<0.000000e+00> : vector<8x256xf32>
      %202 = tpu.matmul %201, %199, %cst_187 {dimension_numbers = #tpu.dot_dimension_numbers<[1], [0], [0], [1], [0, 0, 1, 1], [], []>} : vector<8x8xf32>, vector<8x256xf32>, vector<8x256xf32> -> vector<8x256xf32>
      %203 = arith.addf %195, %202 : vector<8x256xf32>
      %c0_188 = arith.constant 0 : index
      %c113_189 = arith.constant 113 : index
      %204 = vector.load %arg6[%c0_188, %c113_189] : memref<8x512xf32, #tpu.memory_space<vmem>>, vector<8x256xf32>
      %c2_190 = arith.constant 2 : index
      %c0_191 = arith.constant 0 : index
      %c0_192 = arith.constant 0 : index
      %205 = vector.load %arg4[%c2_190, %c0_191, %c0_192] : memref<9x8x256xf32, #tpu.memory_space<vmem>>, vector<1x8x256xf32>
      %206 = vector.shape_cast %205 : vector<1x8x256xf32> to vector<8x256xf32>
      %207 = arith.mulf %204, %206 : vector<8x256xf32>
      %c2_193 = arith.constant 2 : index
      %c0_194 = arith.constant 0 : index
      %c0_195 = arith.constant 0 : index
      %208 = vector.load %arg2[%c2_193, %c0_194, %c0_195] : memref<9x8x8xf32, #tpu.memory_space<vmem>>, vector<1x8x8xf32>
      %209 = vector.shape_cast %208 : vector<1x8x8xf32> to vector<8x8xf32>
      %cst_196 = arith.constant dense<0.000000e+00> : vector<8x256xf32>
      %210 = tpu.matmul %209, %207, %cst_196 {dimension_numbers = #tpu.dot_dimension_numbers<[1], [0], [0], [1], [0, 0, 1, 1], [], []>} : vector<8x8xf32>, vector<8x256xf32>, vector<8x256xf32> -> vector<8x256xf32>
      %211 = arith.addf %203, %210 : vector<8x256xf32>
      %c0_197 = arith.constant 0 : index
      %c127_198 = arith.constant 127 : index
      %212 = vector.load %arg6[%c0_197, %c127_198] : memref<8x512xf32, #tpu.memory_space<vmem>>, vector<8x256xf32>
      %c3_199 = arith.constant 3 : index
      %c0_200 = arith.constant 0 : index
      %c0_201 = arith.constant 0 : index
      %213 = vector.load %arg4[%c3_199, %c0_200, %c0_201] : memref<9x8x256xf32, #tpu.memory_space<vmem>>, vector<1x8x256xf32>
      %214 = vector.shape_cast %213 : vector<1x8x256xf32> to vector<8x256xf32>
      %215 = arith.mulf %212, %214 : vector<8x256xf32>
      %c3_202 = arith.constant 3 : index
      %c0_203 = arith.constant 0 : index
      %c0_204 = arith.constant 0 : index
      %216 = vector.load %arg2[%c3_202, %c0_203, %c0_204] : memref<9x8x8xf32, #tpu.memory_space<vmem>>, vector<1x8x8xf32>
      %217 = vector.shape_cast %216 : vector<1x8x8xf32> to vector<8x8xf32>
      %cst_205 = arith.constant dense<0.000000e+00> : vector<8x256xf32>
      %218 = tpu.matmul %217, %215, %cst_205 {dimension_numbers = #tpu.dot_dimension_numbers<[1], [0], [0], [1], [0, 0, 1, 1], [], []>} : vector<8x8xf32>, vector<8x256xf32>, vector<8x256xf32> -> vector<8x256xf32>
      %219 = arith.addf %211, %218 : vector<8x256xf32>
      %c0_206 = arith.constant 0 : index
      %c128_207 = arith.constant 128 : index
      %220 = vector.load %arg6[%c0_206, %c128_207] : memref<8x512xf32, #tpu.memory_space<vmem>>, vector<8x256xf32>
      %c4_208 = arith.constant 4 : index
      %c0_209 = arith.constant 0 : index
      %c0_210 = arith.constant 0 : index
      %221 = vector.load %arg4[%c4_208, %c0_209, %c0_210] : memref<9x8x256xf32, #tpu.memory_space<vmem>>, vector<1x8x256xf32>
      %222 = vector.shape_cast %221 : vector<1x8x256xf32> to vector<8x256xf32>
      %223 = arith.mulf %220, %222 : vector<8x256xf32>
      %c4_211 = arith.constant 4 : index
      %c0_212 = arith.constant 0 : index
      %c0_213 = arith.constant 0 : index
      %224 = vector.load %arg2[%c4_211, %c0_212, %c0_213] : memref<9x8x8xf32, #tpu.memory_space<vmem>>, vector<1x8x8xf32>
      %225 = vector.shape_cast %224 : vector<1x8x8xf32> to vector<8x8xf32>
      %cst_214 = arith.constant dense<0.000000e+00> : vector<8x256xf32>
      %226 = tpu.matmul %225, %223, %cst_214 {dimension_numbers = #tpu.dot_dimension_numbers<[1], [0], [0], [1], [0, 0, 1, 1], [], []>} : vector<8x8xf32>, vector<8x256xf32>, vector<8x256xf32> -> vector<8x256xf32>
      %227 = arith.addf %219, %226 : vector<8x256xf32>
      %c0_215 = arith.constant 0 : index
      %c129_216 = arith.constant 129 : index
      %228 = vector.load %arg6[%c0_215, %c129_216] : memref<8x512xf32, #tpu.memory_space<vmem>>, vector<8x256xf32>
      %c5_217 = arith.constant 5 : index
      %c0_218 = arith.constant 0 : index
      %c0_219 = arith.constant 0 : index
      %229 = vector.load %arg4[%c5_217, %c0_218, %c0_219] : memref<9x8x256xf32, #tpu.memory_space<vmem>>, vector<1x8x256xf32>
      %230 = vector.shape_cast %229 : vector<1x8x256xf32> to vector<8x256xf32>
      %231 = arith.mulf %228, %230 : vector<8x256xf32>
      %c5_220 = arith.constant 5 : index
      %c0_221 = arith.constant 0 : index
      %c0_222 = arith.constant 0 : index
      %232 = vector.load %arg2[%c5_220, %c0_221, %c0_222] : memref<9x8x8xf32, #tpu.memory_space<vmem>>, vector<1x8x8xf32>
      %233 = vector.shape_cast %232 : vector<1x8x8xf32> to vector<8x8xf32>
      %cst_223 = arith.constant dense<0.000000e+00> : vector<8x256xf32>
      %234 = tpu.matmul %233, %231, %cst_223 {dimension_numbers = #tpu.dot_dimension_numbers<[1], [0], [0], [1], [0, 0, 1, 1], [], []>} : vector<8x8xf32>, vector<8x256xf32>, vector<8x256xf32> -> vector<8x256xf32>
      %235 = arith.addf %227, %234 : vector<8x256xf32>
      %c0_224 = arith.constant 0 : index
      %c143_225 = arith.constant 143 : index
      %236 = vector.load %arg6[%c0_224, %c143_225] : memref<8x512xf32, #tpu.memory_space<vmem>>, vector<8x256xf32>
      %c6_226 = arith.constant 6 : index
      %c0_227 = arith.constant 0 : index
      %c0_228 = arith.constant 0 : index
      %237 = vector.load %arg4[%c6_226, %c0_227, %c0_228] : memref<9x8x256xf32, #tpu.memory_space<vmem>>, vector<1x8x256xf32>
      %238 = vector.shape_cast %237 : vector<1x8x256xf32> to vector<8x256xf32>
      %239 = arith.mulf %236, %238 : vector<8x256xf32>
      %c6_229 = arith.constant 6 : index
      %c0_230 = arith.constant 0 : index
      %c0_231 = arith.constant 0 : index
      %240 = vector.load %arg2[%c6_229, %c0_230, %c0_231] : memref<9x8x8xf32, #tpu.memory_space<vmem>>, vector<1x8x8xf32>
      %241 = vector.shape_cast %240 : vector<1x8x8xf32> to vector<8x8xf32>
      %cst_232 = arith.constant dense<0.000000e+00> : vector<8x256xf32>
      %242 = tpu.matmul %241, %239, %cst_232 {dimension_numbers = #tpu.dot_dimension_numbers<[1], [0], [0], [1], [0, 0, 1, 1], [], []>} : vector<8x8xf32>, vector<8x256xf32>, vector<8x256xf32> -> vector<8x256xf32>
      %243 = arith.addf %235, %242 : vector<8x256xf32>
      %c0_233 = arith.constant 0 : index
      %c144_234 = arith.constant 144 : index
      %244 = vector.load %arg6[%c0_233, %c144_234] : memref<8x512xf32, #tpu.memory_space<vmem>>, vector<8x256xf32>
      %c7_235 = arith.constant 7 : index
      %c0_236 = arith.constant 0 : index
      %c0_237 = arith.constant 0 : index
      %245 = vector.load %arg4[%c7_235, %c0_236, %c0_237] : memref<9x8x256xf32, #tpu.memory_space<vmem>>, vector<1x8x256xf32>
      %246 = vector.shape_cast %245 : vector<1x8x256xf32> to vector<8x256xf32>
      %247 = arith.mulf %244, %246 : vector<8x256xf32>
      %c7_238 = arith.constant 7 : index
      %c0_239 = arith.constant 0 : index
      %c0_240 = arith.constant 0 : index
      %248 = vector.load %arg2[%c7_238, %c0_239, %c0_240] : memref<9x8x8xf32, #tpu.memory_space<vmem>>, vector<1x8x8xf32>
      %249 = vector.shape_cast %248 : vector<1x8x8xf32> to vector<8x8xf32>
      %cst_241 = arith.constant dense<0.000000e+00> : vector<8x256xf32>
      %250 = tpu.matmul %249, %247, %cst_241 {dimension_numbers = #tpu.dot_dimension_numbers<[1], [0], [0], [1], [0, 0, 1, 1], [], []>} : vector<8x8xf32>, vector<8x256xf32>, vector<8x256xf32> -> vector<8x256xf32>
      %251 = arith.addf %243, %250 : vector<8x256xf32>
      %c0_242 = arith.constant 0 : index
      %c145_243 = arith.constant 145 : index
      %252 = vector.load %arg6[%c0_242, %c145_243] : memref<8x512xf32, #tpu.memory_space<vmem>>, vector<8x256xf32>
      %c8_244 = arith.constant 8 : index
      %c0_245 = arith.constant 0 : index
      %c0_246 = arith.constant 0 : index
      %253 = vector.load %arg4[%c8_244, %c0_245, %c0_246] : memref<9x8x256xf32, #tpu.memory_space<vmem>>, vector<1x8x256xf32>
      %254 = vector.shape_cast %253 : vector<1x8x256xf32> to vector<8x256xf32>
      %255 = arith.mulf %252, %254 : vector<8x256xf32>
      %c8_247 = arith.constant 8 : index
      %c0_248 = arith.constant 0 : index
      %c0_249 = arith.constant 0 : index
      %256 = vector.load %arg2[%c8_247, %c0_248, %c0_249] : memref<9x8x8xf32, #tpu.memory_space<vmem>>, vector<1x8x8xf32>
      %257 = vector.shape_cast %256 : vector<1x8x8xf32> to vector<8x8xf32>
      %cst_250 = arith.constant dense<0.000000e+00> : vector<8x256xf32>
      %258 = tpu.matmul %257, %255, %cst_250 {dimension_numbers = #tpu.dot_dimension_numbers<[1], [0], [0], [1], [0, 0, 1, 1], [], []>} : vector<8x8xf32>, vector<8x256xf32>, vector<8x256xf32> -> vector<8x256xf32>
      %259 = arith.addf %251, %258 : vector<8x256xf32>
      %cst_251 = arith.constant 0.000000e+00 : f32
      %260 = vector.broadcast %cst_251 : f32 to vector<8x256xf32>
      %261 = arith.maximumf %259, %260 : vector<8x256xf32>
      %cst_252 = arith.constant 1.000000e+00 : f32
      %262 = vector.broadcast %cst_252 : f32 to vector<8x256xf32>
      %263 = arith.select %6, %262, %261 : vector<8x256xi1>, vector<8x256xf32>
      %c0_253 = arith.constant 0 : index
      %c128_254 = arith.constant 128 : index
      %264 = vector.load %arg6[%c0_253, %c128_254] : memref<8x512xf32, #tpu.memory_space<vmem>>, vector<8x256xf32>
      tpu.vector_store %arg6[%c0_253, %c128_254], %263 {strides = array<i32>} : memref<8x512xf32, #tpu.memory_space<vmem>>, vector<8x256xf32>,
      %cst_255 = arith.constant 0.000000e+00 : f32
      %265 = vector.broadcast %cst_255 : f32 to vector<8x256xf32>
      %c0_256 = arith.constant 0 : index
      %c111_257 = arith.constant 111 : index
      %266 = vector.load %arg6[%c0_256, %c111_257] : memref<8x512xf32, #tpu.memory_space<vmem>>, vector<8x256xf32>
      %c0_258 = arith.constant 0 : index
      %c0_259 = arith.constant 0 : index
      %c0_260 = arith.constant 0 : index
      %267 = vector.load %arg4[%c0_258, %c0_259, %c0_260] : memref<9x8x256xf32, #tpu.memory_space<vmem>>, vector<1x8x256xf32>
      %268 = vector.shape_cast %267 : vector<1x8x256xf32> to vector<8x256xf32>
      %269 = arith.mulf %266, %268 : vector<8x256xf32>
      %c0_261 = arith.constant 0 : index
      %c0_262 = arith.constant 0 : index
      %c0_263 = arith.constant 0 : index
      %270 = vector.load %arg3[%c0_261, %c0_262, %c0_263] : memref<9x8x8xf32, #tpu.memory_space<vmem>>, vector<1x8x8xf32>
      %271 = vector.shape_cast %270 : vector<1x8x8xf32> to vector<8x8xf32>
      %cst_264 = arith.constant dense<0.000000e+00> : vector<8x256xf32>
      %272 = tpu.matmul %271, %269, %cst_264 {dimension_numbers = #tpu.dot_dimension_numbers<[1], [0], [0], [1], [0, 0, 1, 1], [], []>} : vector<8x8xf32>, vector<8x256xf32>, vector<8x256xf32> -> vector<8x256xf32>
      %273 = arith.addf %265, %272 : vector<8x256xf32>
      %c0_265 = arith.constant 0 : index
      %c112_266 = arith.constant 112 : index
      %274 = vector.load %arg6[%c0_265, %c112_266] : memref<8x512xf32, #tpu.memory_space<vmem>>, vector<8x256xf32>
      %c1_267 = arith.constant 1 : index
      %c0_268 = arith.constant 0 : index
      %c0_269 = arith.constant 0 : index
      %275 = vector.load %arg4[%c1_267, %c0_268, %c0_269] : memref<9x8x256xf32, #tpu.memory_space<vmem>>, vector<1x8x256xf32>
      %276 = vector.shape_cast %275 : vector<1x8x256xf32> to vector<8x256xf32>
      %277 = arith.mulf %274, %276 : vector<8x256xf32>
      %c1_270 = arith.constant 1 : index
      %c0_271 = arith.constant 0 : index
      %c0_272 = arith.constant 0 : index
      %278 = vector.load %arg3[%c1_270, %c0_271, %c0_272] : memref<9x8x8xf32, #tpu.memory_space<vmem>>, vector<1x8x8xf32>
      %279 = vector.shape_cast %278 : vector<1x8x8xf32> to vector<8x8xf32>
      %cst_273 = arith.constant dense<0.000000e+00> : vector<8x256xf32>
      %280 = tpu.matmul %279, %277, %cst_273 {dimension_numbers = #tpu.dot_dimension_numbers<[1], [0], [0], [1], [0, 0, 1, 1], [], []>} : vector<8x8xf32>, vector<8x256xf32>, vector<8x256xf32> -> vector<8x256xf32>
      %281 = arith.addf %273, %280 : vector<8x256xf32>
      %c0_274 = arith.constant 0 : index
      %c113_275 = arith.constant 113 : index
      %282 = vector.load %arg6[%c0_274, %c113_275] : memref<8x512xf32, #tpu.memory_space<vmem>>, vector<8x256xf32>
      %c2_276 = arith.constant 2 : index
      %c0_277 = arith.constant 0 : index
      %c0_278 = arith.constant 0 : index
      %283 = vector.load %arg4[%c2_276, %c0_277, %c0_278] : memref<9x8x256xf32, #tpu.memory_space<vmem>>, vector<1x8x256xf32>
      %284 = vector.shape_cast %283 : vector<1x8x256xf32> to vector<8x256xf32>
      %285 = arith.mulf %282, %284 : vector<8x256xf32>
      %c2_279 = arith.constant 2 : index
      %c0_280 = arith.constant 0 : index
      %c0_281 = arith.constant 0 : index
      %286 = vector.load %arg3[%c2_279, %c0_280, %c0_281] : memref<9x8x8xf32, #tpu.memory_space<vmem>>, vector<1x8x8xf32>
      %287 = vector.shape_cast %286 : vector<1x8x8xf32> to vector<8x8xf32>
      %cst_282 = arith.constant dense<0.000000e+00> : vector<8x256xf32>
      %288 = tpu.matmul %287, %285, %cst_282 {dimension_numbers = #tpu.dot_dimension_numbers<[1], [0], [0], [1], [0, 0, 1, 1], [], []>} : vector<8x8xf32>, vector<8x256xf32>, vector<8x256xf32> -> vector<8x256xf32>
      %289 = arith.addf %281, %288 : vector<8x256xf32>
      %c0_283 = arith.constant 0 : index
      %c127_284 = arith.constant 127 : index
      %290 = vector.load %arg6[%c0_283, %c127_284] : memref<8x512xf32, #tpu.memory_space<vmem>>, vector<8x256xf32>
      %c3_285 = arith.constant 3 : index
      %c0_286 = arith.constant 0 : index
      %c0_287 = arith.constant 0 : index
      %291 = vector.load %arg4[%c3_285, %c0_286, %c0_287] : memref<9x8x256xf32, #tpu.memory_space<vmem>>, vector<1x8x256xf32>
      %292 = vector.shape_cast %291 : vector<1x8x256xf32> to vector<8x256xf32>
      %293 = arith.mulf %290, %292 : vector<8x256xf32>
      %c3_288 = arith.constant 3 : index
      %c0_289 = arith.constant 0 : index
      %c0_290 = arith.constant 0 : index
      %294 = vector.load %arg3[%c3_288, %c0_289, %c0_290] : memref<9x8x8xf32, #tpu.memory_space<vmem>>, vector<1x8x8xf32>
      %295 = vector.shape_cast %294 : vector<1x8x8xf32> to vector<8x8xf32>
      %cst_291 = arith.constant dense<0.000000e+00> : vector<8x256xf32>
      %296 = tpu.matmul %295, %293, %cst_291 {dimension_numbers = #tpu.dot_dimension_numbers<[1], [0], [0], [1], [0, 0, 1, 1], [], []>} : vector<8x8xf32>, vector<8x256xf32>, vector<8x256xf32> -> vector<8x256xf32>
      %297 = arith.addf %289, %296 : vector<8x256xf32>
      %c0_292 = arith.constant 0 : index
      %c128_293 = arith.constant 128 : index
      %298 = vector.load %arg6[%c0_292, %c128_293] : memref<8x512xf32, #tpu.memory_space<vmem>>, vector<8x256xf32>
      %c4_294 = arith.constant 4 : index
      %c0_295 = arith.constant 0 : index
      %c0_296 = arith.constant 0 : index
      %299 = vector.load %arg4[%c4_294, %c0_295, %c0_296] : memref<9x8x256xf32, #tpu.memory_space<vmem>>, vector<1x8x256xf32>
      %300 = vector.shape_cast %299 : vector<1x8x256xf32> to vector<8x256xf32>
      %301 = arith.mulf %298, %300 : vector<8x256xf32>
      %c4_297 = arith.constant 4 : index
      %c0_298 = arith.constant 0 : index
      %c0_299 = arith.constant 0 : index
      %302 = vector.load %arg3[%c4_297, %c0_298, %c0_299] : memref<9x8x8xf32, #tpu.memory_space<vmem>>, vector<1x8x8xf32>
      %303 = vector.shape_cast %302 : vector<1x8x8xf32> to vector<8x8xf32>
      %cst_300 = arith.constant dense<0.000000e+00> : vector<8x256xf32>
      %304 = tpu.matmul %303, %301, %cst_300 {dimension_numbers = #tpu.dot_dimension_numbers<[1], [0], [0], [1], [0, 0, 1, 1], [], []>} : vector<8x8xf32>, vector<8x256xf32>, vector<8x256xf32> -> vector<8x256xf32>
      %305 = arith.addf %297, %304 : vector<8x256xf32>
      %c0_301 = arith.constant 0 : index
      %c129_302 = arith.constant 129 : index
      %306 = vector.load %arg6[%c0_301, %c129_302] : memref<8x512xf32, #tpu.memory_space<vmem>>, vector<8x256xf32>
      %c5_303 = arith.constant 5 : index
      %c0_304 = arith.constant 0 : index
      %c0_305 = arith.constant 0 : index
      %307 = vector.load %arg4[%c5_303, %c0_304, %c0_305] : memref<9x8x256xf32, #tpu.memory_space<vmem>>, vector<1x8x256xf32>
      %308 = vector.shape_cast %307 : vector<1x8x256xf32> to vector<8x256xf32>
      %309 = arith.mulf %306, %308 : vector<8x256xf32>
      %c5_306 = arith.constant 5 : index
      %c0_307 = arith.constant 0 : index
      %c0_308 = arith.constant 0 : index
      %310 = vector.load %arg3[%c5_306, %c0_307, %c0_308] : memref<9x8x8xf32, #tpu.memory_space<vmem>>, vector<1x8x8xf32>
      %311 = vector.shape_cast %310 : vector<1x8x8xf32> to vector<8x8xf32>
      %cst_309 = arith.constant dense<0.000000e+00> : vector<8x256xf32>
      %312 = tpu.matmul %311, %309, %cst_309 {dimension_numbers = #tpu.dot_dimension_numbers<[1], [0], [0], [1], [0, 0, 1, 1], [], []>} : vector<8x8xf32>, vector<8x256xf32>, vector<8x256xf32> -> vector<8x256xf32>
      %313 = arith.addf %305, %312 : vector<8x256xf32>
      %c0_310 = arith.constant 0 : index
      %c143_311 = arith.constant 143 : index
      %314 = vector.load %arg6[%c0_310, %c143_311] : memref<8x512xf32, #tpu.memory_space<vmem>>, vector<8x256xf32>
      %c6_312 = arith.constant 6 : index
      %c0_313 = arith.constant 0 : index
      %c0_314 = arith.constant 0 : index
      %315 = vector.load %arg4[%c6_312, %c0_313, %c0_314] : memref<9x8x256xf32, #tpu.memory_space<vmem>>, vector<1x8x256xf32>
      %316 = vector.shape_cast %315 : vector<1x8x256xf32> to vector<8x256xf32>
      %317 = arith.mulf %314, %316 : vector<8x256xf32>
      %c6_315 = arith.constant 6 : index
      %c0_316 = arith.constant 0 : index
      %c0_317 = arith.constant 0 : index
      %318 = vector.load %arg3[%c6_315, %c0_316, %c0_317] : memref<9x8x8xf32, #tpu.memory_space<vmem>>, vector<1x8x8xf32>
      %319 = vector.shape_cast %318 : vector<1x8x8xf32> to vector<8x8xf32>
      %cst_318 = arith.constant dense<0.000000e+00> : vector<8x256xf32>
      %320 = tpu.matmul %319, %317, %cst_318 {dimension_numbers = #tpu.dot_dimension_numbers<[1], [0], [0], [1], [0, 0, 1, 1], [], []>} : vector<8x8xf32>, vector<8x256xf32>, vector<8x256xf32> -> vector<8x256xf32>
      %321 = arith.addf %313, %320 : vector<8x256xf32>
      %c0_319 = arith.constant 0 : index
      %c144_320 = arith.constant 144 : index
      %322 = vector.load %arg6[%c0_319, %c144_320] : memref<8x512xf32, #tpu.memory_space<vmem>>, vector<8x256xf32>
      %c7_321 = arith.constant 7 : index
      %c0_322 = arith.constant 0 : index
      %c0_323 = arith.constant 0 : index
      %323 = vector.load %arg4[%c7_321, %c0_322, %c0_323] : memref<9x8x256xf32, #tpu.memory_space<vmem>>, vector<1x8x256xf32>
      %324 = vector.shape_cast %323 : vector<1x8x256xf32> to vector<8x256xf32>
      %325 = arith.mulf %322, %324 : vector<8x256xf32>
      %c7_324 = arith.constant 7 : index
      %c0_325 = arith.constant 0 : index
      %c0_326 = arith.constant 0 : index
      %326 = vector.load %arg3[%c7_324, %c0_325, %c0_326] : memref<9x8x8xf32, #tpu.memory_space<vmem>>, vector<1x8x8xf32>
      %327 = vector.shape_cast %326 : vector<1x8x8xf32> to vector<8x8xf32>
      %cst_327 = arith.constant dense<0.000000e+00> : vector<8x256xf32>
      %328 = tpu.matmul %327, %325, %cst_327 {dimension_numbers = #tpu.dot_dimension_numbers<[1], [0], [0], [1], [0, 0, 1, 1], [], []>} : vector<8x8xf32>, vector<8x256xf32>, vector<8x256xf32> -> vector<8x256xf32>
      %329 = arith.addf %321, %328 : vector<8x256xf32>
      %c0_328 = arith.constant 0 : index
      %c145_329 = arith.constant 145 : index
      %330 = vector.load %arg6[%c0_328, %c145_329] : memref<8x512xf32, #tpu.memory_space<vmem>>, vector<8x256xf32>
      %c8_330 = arith.constant 8 : index
      %c0_331 = arith.constant 0 : index
      %c0_332 = arith.constant 0 : index
      %331 = vector.load %arg4[%c8_330, %c0_331, %c0_332] : memref<9x8x256xf32, #tpu.memory_space<vmem>>, vector<1x8x256xf32>
      %332 = vector.shape_cast %331 : vector<1x8x256xf32> to vector<8x256xf32>
      %333 = arith.mulf %330, %332 : vector<8x256xf32>
      %c8_333 = arith.constant 8 : index
      %c0_334 = arith.constant 0 : index
      %c0_335 = arith.constant 0 : index
      %334 = vector.load %arg3[%c8_333, %c0_334, %c0_335] : memref<9x8x8xf32, #tpu.memory_space<vmem>>, vector<1x8x8xf32>
      %335 = vector.shape_cast %334 : vector<1x8x8xf32> to vector<8x8xf32>
      %cst_336 = arith.constant dense<0.000000e+00> : vector<8x256xf32>
      %336 = tpu.matmul %335, %333, %cst_336 {dimension_numbers = #tpu.dot_dimension_numbers<[1], [0], [0], [1], [0, 0, 1, 1], [], []>} : vector<8x8xf32>, vector<8x256xf32>, vector<8x256xf32> -> vector<8x256xf32>
      %337 = arith.addf %329, %336 : vector<8x256xf32>
      %cst_337 = arith.constant 3.000000e+00 : f32
      %338 = arith.divf %cst_4, %cst_337 : f32
      %339 = vector.broadcast %338 : f32 to vector<8x256xf32>
      %340 = arith.mulf %339, %337 : vector<8x256xf32>
      %341 = arith.addf %175, %340 : vector<8x256xf32>
      %cst_338 = arith.constant 5.000000e-01 : f32
      %342 = arith.mulf %cst_338, %cst_4 : f32
      %343 = arith.addf %15, %342 : f32
      %cst_339 = arith.constant 5.000000e-01 : f32
      %344 = arith.mulf %cst_339, %cst_4 : f32
      %345 = vector.broadcast %344 : f32 to vector<8x256xf32>
      %346 = arith.mulf %345, %337 : vector<8x256xf32>
      %347 = arith.addf %arg8, %346 : vector<8x256xf32>
      %348 = vector.broadcast %343 : f32 to vector<8x256xf32>
      %349 = arith.select %4, %348, %347 : vector<8x256xi1>, vector<8x256xf32>
      %cst_340 = arith.constant 1.000000e+00 : f32
      %350 = vector.broadcast %cst_340 : f32 to vector<8x256xf32>
      %351 = arith.select %6, %350, %349 : vector<8x256xi1>, vector<8x256xf32>
      %c0_341 = arith.constant 0 : index
      %c128_342 = arith.constant 128 : index
      %352 = vector.load %arg6[%c0_341, %c128_342] : memref<8x512xf32, #tpu.memory_space<vmem>>, vector<8x256xf32>
      tpu.vector_store %arg6[%c0_341, %c128_342], %351 {strides = array<i32>} : memref<8x512xf32, #tpu.memory_space<vmem>>, vector<8x256xf32>,
      %cst_343 = arith.constant 0.000000e+00 : f32
      %353 = vector.broadcast %cst_343 : f32 to vector<8x256xf32>
      %c0_344 = arith.constant 0 : index
      %c111_345 = arith.constant 111 : index
      %354 = vector.load %arg6[%c0_344, %c111_345] : memref<8x512xf32, #tpu.memory_space<vmem>>, vector<8x256xf32>
      %c0_346 = arith.constant 0 : index
      %c0_347 = arith.constant 0 : index
      %c0_348 = arith.constant 0 : index
      %355 = vector.load %arg4[%c0_346, %c0_347, %c0_348] : memref<9x8x256xf32, #tpu.memory_space<vmem>>, vector<1x8x256xf32>
      %356 = vector.shape_cast %355 : vector<1x8x256xf32> to vector<8x256xf32>
      %357 = arith.mulf %354, %356 : vector<8x256xf32>
      %c0_349 = arith.constant 0 : index
      %c0_350 = arith.constant 0 : index
      %c0_351 = arith.constant 0 : index
      %358 = vector.load %arg2[%c0_349, %c0_350, %c0_351] : memref<9x8x8xf32, #tpu.memory_space<vmem>>, vector<1x8x8xf32>
      %359 = vector.shape_cast %358 : vector<1x8x8xf32> to vector<8x8xf32>
      %cst_352 = arith.constant dense<0.000000e+00> : vector<8x256xf32>
      %360 = tpu.matmul %359, %357, %cst_352 {dimension_numbers = #tpu.dot_dimension_numbers<[1], [0], [0], [1], [0, 0, 1, 1], [], []>} : vector<8x8xf32>, vector<8x256xf32>, vector<8x256xf32> -> vector<8x256xf32>
      %361 = arith.addf %353, %360 : vector<8x256xf32>
      %c0_353 = arith.constant 0 : index
      %c112_354 = arith.constant 112 : index
      %362 = vector.load %arg6[%c0_353, %c112_354] : memref<8x512xf32, #tpu.memory_space<vmem>>, vector<8x256xf32>
      %c1_355 = arith.constant 1 : index
      %c0_356 = arith.constant 0 : index
      %c0_357 = arith.constant 0 : index
      %363 = vector.load %arg4[%c1_355, %c0_356, %c0_357] : memref<9x8x256xf32, #tpu.memory_space<vmem>>, vector<1x8x256xf32>
      %364 = vector.shape_cast %363 : vector<1x8x256xf32> to vector<8x256xf32>
      %365 = arith.mulf %362, %364 : vector<8x256xf32>
      %c1_358 = arith.constant 1 : index
      %c0_359 = arith.constant 0 : index
      %c0_360 = arith.constant 0 : index
      %366 = vector.load %arg2[%c1_358, %c0_359, %c0_360] : memref<9x8x8xf32, #tpu.memory_space<vmem>>, vector<1x8x8xf32>
      %367 = vector.shape_cast %366 : vector<1x8x8xf32> to vector<8x8xf32>
      %cst_361 = arith.constant dense<0.000000e+00> : vector<8x256xf32>
      %368 = tpu.matmul %367, %365, %cst_361 {dimension_numbers = #tpu.dot_dimension_numbers<[1], [0], [0], [1], [0, 0, 1, 1], [], []>} : vector<8x8xf32>, vector<8x256xf32>, vector<8x256xf32> -> vector<8x256xf32>
      %369 = arith.addf %361, %368 : vector<8x256xf32>
      %c0_362 = arith.constant 0 : index
      %c113_363 = arith.constant 113 : index
      %370 = vector.load %arg6[%c0_362, %c113_363] : memref<8x512xf32, #tpu.memory_space<vmem>>, vector<8x256xf32>
      %c2_364 = arith.constant 2 : index
      %c0_365 = arith.constant 0 : index
      %c0_366 = arith.constant 0 : index
      %371 = vector.load %arg4[%c2_364, %c0_365, %c0_366] : memref<9x8x256xf32, #tpu.memory_space<vmem>>, vector<1x8x256xf32>
      %372 = vector.shape_cast %371 : vector<1x8x256xf32> to vector<8x256xf32>
      %373 = arith.mulf %370, %372 : vector<8x256xf32>
      %c2_367 = arith.constant 2 : index
      %c0_368 = arith.constant 0 : index
      %c0_369 = arith.constant 0 : index
      %374 = vector.load %arg2[%c2_367, %c0_368, %c0_369] : memref<9x8x8xf32, #tpu.memory_space<vmem>>, vector<1x8x8xf32>
      %375 = vector.shape_cast %374 : vector<1x8x8xf32> to vector<8x8xf32>
      %cst_370 = arith.constant dense<0.000000e+00> : vector<8x256xf32>
      %376 = tpu.matmul %375, %373, %cst_370 {dimension_numbers = #tpu.dot_dimension_numbers<[1], [0], [0], [1], [0, 0, 1, 1], [], []>} : vector<8x8xf32>, vector<8x256xf32>, vector<8x256xf32> -> vector<8x256xf32>
      %377 = arith.addf %369, %376 : vector<8x256xf32>
      %c0_371 = arith.constant 0 : index
      %c127_372 = arith.constant 127 : index
      %378 = vector.load %arg6[%c0_371, %c127_372] : memref<8x512xf32, #tpu.memory_space<vmem>>, vector<8x256xf32>
      %c3_373 = arith.constant 3 : index
      %c0_374 = arith.constant 0 : index
      %c0_375 = arith.constant 0 : index
      %379 = vector.load %arg4[%c3_373, %c0_374, %c0_375] : memref<9x8x256xf32, #tpu.memory_space<vmem>>, vector<1x8x256xf32>
      %380 = vector.shape_cast %379 : vector<1x8x256xf32> to vector<8x256xf32>
      %381 = arith.mulf %378, %380 : vector<8x256xf32>
      %c3_376 = arith.constant 3 : index
      %c0_377 = arith.constant 0 : index
      %c0_378 = arith.constant 0 : index
      %382 = vector.load %arg2[%c3_376, %c0_377, %c0_378] : memref<9x8x8xf32, #tpu.memory_space<vmem>>, vector<1x8x8xf32>
      %383 = vector.shape_cast %382 : vector<1x8x8xf32> to vector<8x8xf32>
      %cst_379 = arith.constant dense<0.000000e+00> : vector<8x256xf32>
      %384 = tpu.matmul %383, %381, %cst_379 {dimension_numbers = #tpu.dot_dimension_numbers<[1], [0], [0], [1], [0, 0, 1, 1], [], []>} : vector<8x8xf32>, vector<8x256xf32>, vector<8x256xf32> -> vector<8x256xf32>
      %385 = arith.addf %377, %384 : vector<8x256xf32>
      %c0_380 = arith.constant 0 : index
      %c128_381 = arith.constant 128 : index
      %386 = vector.load %arg6[%c0_380, %c128_381] : memref<8x512xf32, #tpu.memory_space<vmem>>, vector<8x256xf32>
      %c4_382 = arith.constant 4 : index
      %c0_383 = arith.constant 0 : index
      %c0_384 = arith.constant 0 : index
      %387 = vector.load %arg4[%c4_382, %c0_383, %c0_384] : memref<9x8x256xf32, #tpu.memory_space<vmem>>, vector<1x8x256xf32>
      %388 = vector.shape_cast %387 : vector<1x8x256xf32> to vector<8x256xf32>
      %389 = arith.mulf %386, %388 : vector<8x256xf32>
      %c4_385 = arith.constant 4 : index
      %c0_386 = arith.constant 0 : index
      %c0_387 = arith.constant 0 : index
      %390 = vector.load %arg2[%c4_385, %c0_386, %c0_387] : memref<9x8x8xf32, #tpu.memory_space<vmem>>, vector<1x8x8xf32>
      %391 = vector.shape_cast %390 : vector<1x8x8xf32> to vector<8x8xf32>
      %cst_388 = arith.constant dense<0.000000e+00> : vector<8x256xf32>
      %392 = tpu.matmul %391, %389, %cst_388 {dimension_numbers = #tpu.dot_dimension_numbers<[1], [0], [0], [1], [0, 0, 1, 1], [], []>} : vector<8x8xf32>, vector<8x256xf32>, vector<8x256xf32> -> vector<8x256xf32>
      %393 = arith.addf %385, %392 : vector<8x256xf32>
      %c0_389 = arith.constant 0 : index
      %c129_390 = arith.constant 129 : index
      %394 = vector.load %arg6[%c0_389, %c129_390] : memref<8x512xf32, #tpu.memory_space<vmem>>, vector<8x256xf32>
      %c5_391 = arith.constant 5 : index
      %c0_392 = arith.constant 0 : index
      %c0_393 = arith.constant 0 : index
      %395 = vector.load %arg4[%c5_391, %c0_392, %c0_393] : memref<9x8x256xf32, #tpu.memory_space<vmem>>, vector<1x8x256xf32>
      %396 = vector.shape_cast %395 : vector<1x8x256xf32> to vector<8x256xf32>
      %397 = arith.mulf %394, %396 : vector<8x256xf32>
      %c5_394 = arith.constant 5 : index
      %c0_395 = arith.constant 0 : index
      %c0_396 = arith.constant 0 : index
      %398 = vector.load %arg2[%c5_394, %c0_395, %c0_396] : memref<9x8x8xf32, #tpu.memory_space<vmem>>, vector<1x8x8xf32>
      %399 = vector.shape_cast %398 : vector<1x8x8xf32> to vector<8x8xf32>
      %cst_397 = arith.constant dense<0.000000e+00> : vector<8x256xf32>
      %400 = tpu.matmul %399, %397, %cst_397 {dimension_numbers = #tpu.dot_dimension_numbers<[1], [0], [0], [1], [0, 0, 1, 1], [], []>} : vector<8x8xf32>, vector<8x256xf32>, vector<8x256xf32> -> vector<8x256xf32>
      %401 = arith.addf %393, %400 : vector<8x256xf32>
      %c0_398 = arith.constant 0 : index
      %c143_399 = arith.constant 143 : index
      %402 = vector.load %arg6[%c0_398, %c143_399] : memref<8x512xf32, #tpu.memory_space<vmem>>, vector<8x256xf32>
      %c6_400 = arith.constant 6 : index
      %c0_401 = arith.constant 0 : index
      %c0_402 = arith.constant 0 : index
      %403 = vector.load %arg4[%c6_400, %c0_401, %c0_402] : memref<9x8x256xf32, #tpu.memory_space<vmem>>, vector<1x8x256xf32>
      %404 = vector.shape_cast %403 : vector<1x8x256xf32> to vector<8x256xf32>
      %405 = arith.mulf %402, %404 : vector<8x256xf32>
      %c6_403 = arith.constant 6 : index
      %c0_404 = arith.constant 0 : index
      %c0_405 = arith.constant 0 : index
      %406 = vector.load %arg2[%c6_403, %c0_404, %c0_405] : memref<9x8x8xf32, #tpu.memory_space<vmem>>, vector<1x8x8xf32>
      %407 = vector.shape_cast %406 : vector<1x8x8xf32> to vector<8x8xf32>
      %cst_406 = arith.constant dense<0.000000e+00> : vector<8x256xf32>
      %408 = tpu.matmul %407, %405, %cst_406 {dimension_numbers = #tpu.dot_dimension_numbers<[1], [0], [0], [1], [0, 0, 1, 1], [], []>} : vector<8x8xf32>, vector<8x256xf32>, vector<8x256xf32> -> vector<8x256xf32>
      %409 = arith.addf %401, %408 : vector<8x256xf32>
      %c0_407 = arith.constant 0 : index
      %c144_408 = arith.constant 144 : index
      %410 = vector.load %arg6[%c0_407, %c144_408] : memref<8x512xf32, #tpu.memory_space<vmem>>, vector<8x256xf32>
      %c7_409 = arith.constant 7 : index
      %c0_410 = arith.constant 0 : index
      %c0_411 = arith.constant 0 : index
      %411 = vector.load %arg4[%c7_409, %c0_410, %c0_411] : memref<9x8x256xf32, #tpu.memory_space<vmem>>, vector<1x8x256xf32>
      %412 = vector.shape_cast %411 : vector<1x8x256xf32> to vector<8x256xf32>
      %413 = arith.mulf %410, %412 : vector<8x256xf32>
      %c7_412 = arith.constant 7 : index
      %c0_413 = arith.constant 0 : index
      %c0_414 = arith.constant 0 : index
      %414 = vector.load %arg2[%c7_412, %c0_413, %c0_414] : memref<9x8x8xf32, #tpu.memory_space<vmem>>, vector<1x8x8xf32>
      %415 = vector.shape_cast %414 : vector<1x8x8xf32> to vector<8x8xf32>
      %cst_415 = arith.constant dense<0.000000e+00> : vector<8x256xf32>
      %416 = tpu.matmul %415, %413, %cst_415 {dimension_numbers = #tpu.dot_dimension_numbers<[1], [0], [0], [1], [0, 0, 1, 1], [], []>} : vector<8x8xf32>, vector<8x256xf32>, vector<8x256xf32> -> vector<8x256xf32>
      %417 = arith.addf %409, %416 : vector<8x256xf32>
      %c0_416 = arith.constant 0 : index
      %c145_417 = arith.constant 145 : index
      %418 = vector.load %arg6[%c0_416, %c145_417] : memref<8x512xf32, #tpu.memory_space<vmem>>, vector<8x256xf32>
      %c8_418 = arith.constant 8 : index
      %c0_419 = arith.constant 0 : index
      %c0_420 = arith.constant 0 : index
      %419 = vector.load %arg4[%c8_418, %c0_419, %c0_420] : memref<9x8x256xf32, #tpu.memory_space<vmem>>, vector<1x8x256xf32>
      %420 = vector.shape_cast %419 : vector<1x8x256xf32> to vector<8x256xf32>
      %421 = arith.mulf %418, %420 : vector<8x256xf32>
      %c8_421 = arith.constant 8 : index
      %c0_422 = arith.constant 0 : index
      %c0_423 = arith.constant 0 : index
      %422 = vector.load %arg2[%c8_421, %c0_422, %c0_423] : memref<9x8x8xf32, #tpu.memory_space<vmem>>, vector<1x8x8xf32>
      %423 = vector.shape_cast %422 : vector<1x8x8xf32> to vector<8x8xf32>
      %cst_424 = arith.constant dense<0.000000e+00> : vector<8x256xf32>
      %424 = tpu.matmul %423, %421, %cst_424 {dimension_numbers = #tpu.dot_dimension_numbers<[1], [0], [0], [1], [0, 0, 1, 1], [], []>} : vector<8x8xf32>, vector<8x256xf32>, vector<8x256xf32> -> vector<8x256xf32>
      %425 = arith.addf %417, %424 : vector<8x256xf32>
      %cst_425 = arith.constant 0.000000e+00 : f32
      %426 = vector.broadcast %cst_425 : f32 to vector<8x256xf32>
      %427 = arith.maximumf %425, %426 : vector<8x256xf32>
      %cst_426 = arith.constant 1.000000e+00 : f32
      %428 = vector.broadcast %cst_426 : f32 to vector<8x256xf32>
      %429 = arith.select %6, %428, %427 : vector<8x256xi1>, vector<8x256xf32>
      %c0_427 = arith.constant 0 : index
      %c128_428 = arith.constant 128 : index
      %430 = vector.load %arg6[%c0_427, %c128_428] : memref<8x512xf32, #tpu.memory_space<vmem>>, vector<8x256xf32>
      tpu.vector_store %arg6[%c0_427, %c128_428], %429 {strides = array<i32>} : memref<8x512xf32, #tpu.memory_space<vmem>>, vector<8x256xf32>,
      %cst_429 = arith.constant 0.000000e+00 : f32
      %431 = vector.broadcast %cst_429 : f32 to vector<8x256xf32>
      %c0_430 = arith.constant 0 : index
      %c111_431 = arith.constant 111 : index
      %432 = vector.load %arg6[%c0_430, %c111_431] : memref<8x512xf32, #tpu.memory_space<vmem>>, vector<8x256xf32>
      %c0_432 = arith.constant 0 : index
      %c0_433 = arith.constant 0 : index
      %c0_434 = arith.constant 0 : index
      %433 = vector.load %arg4[%c0_432, %c0_433, %c0_434] : memref<9x8x256xf32, #tpu.memory_space<vmem>>, vector<1x8x256xf32>
      %434 = vector.shape_cast %433 : vector<1x8x256xf32> to vector<8x256xf32>
      %435 = arith.mulf %432, %434 : vector<8x256xf32>
      %c0_435 = arith.constant 0 : index
      %c0_436 = arith.constant 0 : index
      %c0_437 = arith.constant 0 : index
      %436 = vector.load %arg3[%c0_435, %c0_436, %c0_437] : memref<9x8x8xf32, #tpu.memory_space<vmem>>, vector<1x8x8xf32>
      %437 = vector.shape_cast %436 : vector<1x8x8xf32> to vector<8x8xf32>
      %cst_438 = arith.constant dense<0.000000e+00> : vector<8x256xf32>
      %438 = tpu.matmul %437, %435, %cst_438 {dimension_numbers = #tpu.dot_dimension_numbers<[1], [0], [0], [1], [0, 0, 1, 1], [], []>} : vector<8x8xf32>, vector<8x256xf32>, vector<8x256xf32> -> vector<8x256xf32>
      %439 = arith.addf %431, %438 : vector<8x256xf32>
      %c0_439 = arith.constant 0 : index
      %c112_440 = arith.constant 112 : index
      %440 = vector.load %arg6[%c0_439, %c112_440] : memref<8x512xf32, #tpu.memory_space<vmem>>, vector<8x256xf32>
      %c1_441 = arith.constant 1 : index
      %c0_442 = arith.constant 0 : index
      %c0_443 = arith.constant 0 : index
      %441 = vector.load %arg4[%c1_441, %c0_442, %c0_443] : memref<9x8x256xf32, #tpu.memory_space<vmem>>, vector<1x8x256xf32>
      %442 = vector.shape_cast %441 : vector<1x8x256xf32> to vector<8x256xf32>
      %443 = arith.mulf %440, %442 : vector<8x256xf32>
      %c1_444 = arith.constant 1 : index
      %c0_445 = arith.constant 0 : index
      %c0_446 = arith.constant 0 : index
      %444 = vector.load %arg3[%c1_444, %c0_445, %c0_446] : memref<9x8x8xf32, #tpu.memory_space<vmem>>, vector<1x8x8xf32>
      %445 = vector.shape_cast %444 : vector<1x8x8xf32> to vector<8x8xf32>
      %cst_447 = arith.constant dense<0.000000e+00> : vector<8x256xf32>
      %446 = tpu.matmul %445, %443, %cst_447 {dimension_numbers = #tpu.dot_dimension_numbers<[1], [0], [0], [1], [0, 0, 1, 1], [], []>} : vector<8x8xf32>, vector<8x256xf32>, vector<8x256xf32> -> vector<8x256xf32>
      %447 = arith.addf %439, %446 : vector<8x256xf32>
      %c0_448 = arith.constant 0 : index
      %c113_449 = arith.constant 113 : index
      %448 = vector.load %arg6[%c0_448, %c113_449] : memref<8x512xf32, #tpu.memory_space<vmem>>, vector<8x256xf32>
      %c2_450 = arith.constant 2 : index
      %c0_451 = arith.constant 0 : index
      %c0_452 = arith.constant 0 : index
      %449 = vector.load %arg4[%c2_450, %c0_451, %c0_452] : memref<9x8x256xf32, #tpu.memory_space<vmem>>, vector<1x8x256xf32>
      %450 = vector.shape_cast %449 : vector<1x8x256xf32> to vector<8x256xf32>
      %451 = arith.mulf %448, %450 : vector<8x256xf32>
      %c2_453 = arith.constant 2 : index
      %c0_454 = arith.constant 0 : index
      %c0_455 = arith.constant 0 : index
      %452 = vector.load %arg3[%c2_453, %c0_454, %c0_455] : memref<9x8x8xf32, #tpu.memory_space<vmem>>, vector<1x8x8xf32>
      %453 = vector.shape_cast %452 : vector<1x8x8xf32> to vector<8x8xf32>
      %cst_456 = arith.constant dense<0.000000e+00> : vector<8x256xf32>
      %454 = tpu.matmul %453, %451, %cst_456 {dimension_numbers = #tpu.dot_dimension_numbers<[1], [0], [0], [1], [0, 0, 1, 1], [], []>} : vector<8x8xf32>, vector<8x256xf32>, vector<8x256xf32> -> vector<8x256xf32>
      %455 = arith.addf %447, %454 : vector<8x256xf32>
      %c0_457 = arith.constant 0 : index
      %c127_458 = arith.constant 127 : index
      %456 = vector.load %arg6[%c0_457, %c127_458] : memref<8x512xf32, #tpu.memory_space<vmem>>, vector<8x256xf32>
      %c3_459 = arith.constant 3 : index
      %c0_460 = arith.constant 0 : index
      %c0_461 = arith.constant 0 : index
      %457 = vector.load %arg4[%c3_459, %c0_460, %c0_461] : memref<9x8x256xf32, #tpu.memory_space<vmem>>, vector<1x8x256xf32>
      %458 = vector.shape_cast %457 : vector<1x8x256xf32> to vector<8x256xf32>
      %459 = arith.mulf %456, %458 : vector<8x256xf32>
      %c3_462 = arith.constant 3 : index
      %c0_463 = arith.constant 0 : index
      %c0_464 = arith.constant 0 : index
      %460 = vector.load %arg3[%c3_462, %c0_463, %c0_464] : memref<9x8x8xf32, #tpu.memory_space<vmem>>, vector<1x8x8xf32>
      %461 = vector.shape_cast %460 : vector<1x8x8xf32> to vector<8x8xf32>
      %cst_465 = arith.constant dense<0.000000e+00> : vector<8x256xf32>
      %462 = tpu.matmul %461, %459, %cst_465 {dimension_numbers = #tpu.dot_dimension_numbers<[1], [0], [0], [1], [0, 0, 1, 1], [], []>} : vector<8x8xf32>, vector<8x256xf32>, vector<8x256xf32> -> vector<8x256xf32>
      %463 = arith.addf %455, %462 : vector<8x256xf32>
      %c0_466 = arith.constant 0 : index
      %c128_467 = arith.constant 128 : index
      %464 = vector.load %arg6[%c0_466, %c128_467] : memref<8x512xf32, #tpu.memory_space<vmem>>, vector<8x256xf32>
      %c4_468 = arith.constant 4 : index
      %c0_469 = arith.constant 0 : index
      %c0_470 = arith.constant 0 : index
      %465 = vector.load %arg4[%c4_468, %c0_469, %c0_470] : memref<9x8x256xf32, #tpu.memory_space<vmem>>, vector<1x8x256xf32>
      %466 = vector.shape_cast %465 : vector<1x8x256xf32> to vector<8x256xf32>
      %467 = arith.mulf %464, %466 : vector<8x256xf32>
      %c4_471 = arith.constant 4 : index
      %c0_472 = arith.constant 0 : index
      %c0_473 = arith.constant 0 : index
      %468 = vector.load %arg3[%c4_471, %c0_472, %c0_473] : memref<9x8x8xf32, #tpu.memory_space<vmem>>, vector<1x8x8xf32>
      %469 = vector.shape_cast %468 : vector<1x8x8xf32> to vector<8x8xf32>
      %cst_474 = arith.constant dense<0.000000e+00> : vector<8x256xf32>
      %470 = tpu.matmul %469, %467, %cst_474 {dimension_numbers = #tpu.dot_dimension_numbers<[1], [0], [0], [1], [0, 0, 1, 1], [], []>} : vector<8x8xf32>, vector<8x256xf32>, vector<8x256xf32> -> vector<8x256xf32>
      %471 = arith.addf %463, %470 : vector<8x256xf32>
      %c0_475 = arith.constant 0 : index
      %c129_476 = arith.constant 129 : index
      %472 = vector.load %arg6[%c0_475, %c129_476] : memref<8x512xf32, #tpu.memory_space<vmem>>, vector<8x256xf32>
      %c5_477 = arith.constant 5 : index
      %c0_478 = arith.constant 0 : index
      %c0_479 = arith.constant 0 : index
      %473 = vector.load %arg4[%c5_477, %c0_478, %c0_479] : memref<9x8x256xf32, #tpu.memory_space<vmem>>, vector<1x8x256xf32>
      %474 = vector.shape_cast %473 : vector<1x8x256xf32> to vector<8x256xf32>
      %475 = arith.mulf %472, %474 : vector<8x256xf32>
      %c5_480 = arith.constant 5 : index
      %c0_481 = arith.constant 0 : index
      %c0_482 = arith.constant 0 : index
      %476 = vector.load %arg3[%c5_480, %c0_481, %c0_482] : memref<9x8x8xf32, #tpu.memory_space<vmem>>, vector<1x8x8xf32>
      %477 = vector.shape_cast %476 : vector<1x8x8xf32> to vector<8x8xf32>
      %cst_483 = arith.constant dense<0.000000e+00> : vector<8x256xf32>
      %478 = tpu.matmul %477, %475, %cst_483 {dimension_numbers = #tpu.dot_dimension_numbers<[1], [0], [0], [1], [0, 0, 1, 1], [], []>} : vector<8x8xf32>, vector<8x256xf32>, vector<8x256xf32> -> vector<8x256xf32>
      %479 = arith.addf %471, %478 : vector<8x256xf32>
      %c0_484 = arith.constant 0 : index
      %c143_485 = arith.constant 143 : index
      %480 = vector.load %arg6[%c0_484, %c143_485] : memref<8x512xf32, #tpu.memory_space<vmem>>, vector<8x256xf32>
      %c6_486 = arith.constant 6 : index
      %c0_487 = arith.constant 0 : index
      %c0_488 = arith.constant 0 : index
      %481 = vector.load %arg4[%c6_486, %c0_487, %c0_488] : memref<9x8x256xf32, #tpu.memory_space<vmem>>, vector<1x8x256xf32>
      %482 = vector.shape_cast %481 : vector<1x8x256xf32> to vector<8x256xf32>
      %483 = arith.mulf %480, %482 : vector<8x256xf32>
      %c6_489 = arith.constant 6 : index
      %c0_490 = arith.constant 0 : index
      %c0_491 = arith.constant 0 : index
      %484 = vector.load %arg3[%c6_489, %c0_490, %c0_491] : memref<9x8x8xf32, #tpu.memory_space<vmem>>, vector<1x8x8xf32>
      %485 = vector.shape_cast %484 : vector<1x8x8xf32> to vector<8x8xf32>
      %cst_492 = arith.constant dense<0.000000e+00> : vector<8x256xf32>
      %486 = tpu.matmul %485, %483, %cst_492 {dimension_numbers = #tpu.dot_dimension_numbers<[1], [0], [0], [1], [0, 0, 1, 1], [], []>} : vector<8x8xf32>, vector<8x256xf32>, vector<8x256xf32> -> vector<8x256xf32>
      %487 = arith.addf %479, %486 : vector<8x256xf32>
      %c0_493 = arith.constant 0 : index
      %c144_494 = arith.constant 144 : index
      %488 = vector.load %arg6[%c0_493, %c144_494] : memref<8x512xf32, #tpu.memory_space<vmem>>, vector<8x256xf32>
      %c7_495 = arith.constant 7 : index
      %c0_496 = arith.constant 0 : index
      %c0_497 = arith.constant 0 : index
      %489 = vector.load %arg4[%c7_495, %c0_496, %c0_497] : memref<9x8x256xf32, #tpu.memory_space<vmem>>, vector<1x8x256xf32>
      %490 = vector.shape_cast %489 : vector<1x8x256xf32> to vector<8x256xf32>
      %491 = arith.mulf %488, %490 : vector<8x256xf32>
      %c7_498 = arith.constant 7 : index
      %c0_499 = arith.constant 0 : index
      %c0_500 = arith.constant 0 : index
      %492 = vector.load %arg3[%c7_498, %c0_499, %c0_500] : memref<9x8x8xf32, #tpu.memory_space<vmem>>, vector<1x8x8xf32>
      %493 = vector.shape_cast %492 : vector<1x8x8xf32> to vector<8x8xf32>
      %cst_501 = arith.constant dense<0.000000e+00> : vector<8x256xf32>
      %494 = tpu.matmul %493, %491, %cst_501 {dimension_numbers = #tpu.dot_dimension_numbers<[1], [0], [0], [1], [0, 0, 1, 1], [], []>} : vector<8x8xf32>, vector<8x256xf32>, vector<8x256xf32> -> vector<8x256xf32>
      %495 = arith.addf %487, %494 : vector<8x256xf32>
      %c0_502 = arith.constant 0 : index
      %c145_503 = arith.constant 145 : index
      %496 = vector.load %arg6[%c0_502, %c145_503] : memref<8x512xf32, #tpu.memory_space<vmem>>, vector<8x256xf32>
      %c8_504 = arith.constant 8 : index
      %c0_505 = arith.constant 0 : index
      %c0_506 = arith.constant 0 : index
      %497 = vector.load %arg4[%c8_504, %c0_505, %c0_506] : memref<9x8x256xf32, #tpu.memory_space<vmem>>, vector<1x8x256xf32>
      %498 = vector.shape_cast %497 : vector<1x8x256xf32> to vector<8x256xf32>
      %499 = arith.mulf %496, %498 : vector<8x256xf32>
      %c8_507 = arith.constant 8 : index
      %c0_508 = arith.constant 0 : index
      %c0_509 = arith.constant 0 : index
      %500 = vector.load %arg3[%c8_507, %c0_508, %c0_509] : memref<9x8x8xf32, #tpu.memory_space<vmem>>, vector<1x8x8xf32>
      %501 = vector.shape_cast %500 : vector<1x8x8xf32> to vector<8x8xf32>
      %cst_510 = arith.constant dense<0.000000e+00> : vector<8x256xf32>
      %502 = tpu.matmul %501, %499, %cst_510 {dimension_numbers = #tpu.dot_dimension_numbers<[1], [0], [0], [1], [0, 0, 1, 1], [], []>} : vector<8x8xf32>, vector<8x256xf32>, vector<8x256xf32> -> vector<8x256xf32>
      %503 = arith.addf %495, %502 : vector<8x256xf32>
      %cst_511 = arith.constant 3.000000e+00 : f32
      %504 = arith.divf %cst_4, %cst_511 : f32
      %505 = vector.broadcast %504 : f32 to vector<8x256xf32>
      %506 = arith.mulf %505, %503 : vector<8x256xf32>
      %507 = arith.addf %341, %506 : vector<8x256xf32>
      %508 = arith.addf %15, %cst_4 : f32
      %509 = vector.broadcast %cst_4 : f32 to vector<8x256xf32>
      %510 = arith.mulf %509, %503 : vector<8x256xf32>
      %511 = arith.addf %arg8, %510 : vector<8x256xf32>
      %512 = vector.broadcast %508 : f32 to vector<8x256xf32>
      %513 = arith.select %4, %512, %511 : vector<8x256xi1>, vector<8x256xf32>
      %cst_512 = arith.constant 1.000000e+00 : f32
      %514 = vector.broadcast %cst_512 : f32 to vector<8x256xf32>
      %515 = arith.select %6, %514, %513 : vector<8x256xi1>, vector<8x256xf32>
      %c0_513 = arith.constant 0 : index
      %c128_514 = arith.constant 128 : index
      %516 = vector.load %arg6[%c0_513, %c128_514] : memref<8x512xf32, #tpu.memory_space<vmem>>, vector<8x256xf32>
      tpu.vector_store %arg6[%c0_513, %c128_514], %515 {strides = array<i32>} : memref<8x512xf32, #tpu.memory_space<vmem>>, vector<8x256xf32>,
      %cst_515 = arith.constant 0.000000e+00 : f32
      %517 = vector.broadcast %cst_515 : f32 to vector<8x256xf32>
      %c0_516 = arith.constant 0 : index
      %c111_517 = arith.constant 111 : index
      %518 = vector.load %arg6[%c0_516, %c111_517] : memref<8x512xf32, #tpu.memory_space<vmem>>, vector<8x256xf32>
      %c0_518 = arith.constant 0 : index
      %c0_519 = arith.constant 0 : index
      %c0_520 = arith.constant 0 : index
      %519 = vector.load %arg4[%c0_518, %c0_519, %c0_520] : memref<9x8x256xf32, #tpu.memory_space<vmem>>, vector<1x8x256xf32>
      %520 = vector.shape_cast %519 : vector<1x8x256xf32> to vector<8x256xf32>
      %521 = arith.mulf %518, %520 : vector<8x256xf32>
      %c0_521 = arith.constant 0 : index
      %c0_522 = arith.constant 0 : index
      %c0_523 = arith.constant 0 : index
      %522 = vector.load %arg2[%c0_521, %c0_522, %c0_523] : memref<9x8x8xf32, #tpu.memory_space<vmem>>, vector<1x8x8xf32>
      %523 = vector.shape_cast %522 : vector<1x8x8xf32> to vector<8x8xf32>
      %cst_524 = arith.constant dense<0.000000e+00> : vector<8x256xf32>
      %524 = tpu.matmul %523, %521, %cst_524 {dimension_numbers = #tpu.dot_dimension_numbers<[1], [0], [0], [1], [0, 0, 1, 1], [], []>} : vector<8x8xf32>, vector<8x256xf32>, vector<8x256xf32> -> vector<8x256xf32>
      %525 = arith.addf %517, %524 : vector<8x256xf32>
      %c0_525 = arith.constant 0 : index
      %c112_526 = arith.constant 112 : index
      %526 = vector.load %arg6[%c0_525, %c112_526] : memref<8x512xf32, #tpu.memory_space<vmem>>, vector<8x256xf32>
      %c1_527 = arith.constant 1 : index
      %c0_528 = arith.constant 0 : index
      %c0_529 = arith.constant 0 : index
      %527 = vector.load %arg4[%c1_527, %c0_528, %c0_529] : memref<9x8x256xf32, #tpu.memory_space<vmem>>, vector<1x8x256xf32>
      %528 = vector.shape_cast %527 : vector<1x8x256xf32> to vector<8x256xf32>
      %529 = arith.mulf %526, %528 : vector<8x256xf32>
      %c1_530 = arith.constant 1 : index
      %c0_531 = arith.constant 0 : index
      %c0_532 = arith.constant 0 : index
      %530 = vector.load %arg2[%c1_530, %c0_531, %c0_532] : memref<9x8x8xf32, #tpu.memory_space<vmem>>, vector<1x8x8xf32>
      %531 = vector.shape_cast %530 : vector<1x8x8xf32> to vector<8x8xf32>
      %cst_533 = arith.constant dense<0.000000e+00> : vector<8x256xf32>
      %532 = tpu.matmul %531, %529, %cst_533 {dimension_numbers = #tpu.dot_dimension_numbers<[1], [0], [0], [1], [0, 0, 1, 1], [], []>} : vector<8x8xf32>, vector<8x256xf32>, vector<8x256xf32> -> vector<8x256xf32>
      %533 = arith.addf %525, %532 : vector<8x256xf32>
      %c0_534 = arith.constant 0 : index
      %c113_535 = arith.constant 113 : index
      %534 = vector.load %arg6[%c0_534, %c113_535] : memref<8x512xf32, #tpu.memory_space<vmem>>, vector<8x256xf32>
      %c2_536 = arith.constant 2 : index
      %c0_537 = arith.constant 0 : index
      %c0_538 = arith.constant 0 : index
      %535 = vector.load %arg4[%c2_536, %c0_537, %c0_538] : memref<9x8x256xf32, #tpu.memory_space<vmem>>, vector<1x8x256xf32>
      %536 = vector.shape_cast %535 : vector<1x8x256xf32> to vector<8x256xf32>
      %537 = arith.mulf %534, %536 : vector<8x256xf32>
      %c2_539 = arith.constant 2 : index
      %c0_540 = arith.constant 0 : index
      %c0_541 = arith.constant 0 : index
      %538 = vector.load %arg2[%c2_539, %c0_540, %c0_541] : memref<9x8x8xf32, #tpu.memory_space<vmem>>, vector<1x8x8xf32>
      %539 = vector.shape_cast %538 : vector<1x8x8xf32> to vector<8x8xf32>
      %cst_542 = arith.constant dense<0.000000e+00> : vector<8x256xf32>
      %540 = tpu.matmul %539, %537, %cst_542 {dimension_numbers = #tpu.dot_dimension_numbers<[1], [0], [0], [1], [0, 0, 1, 1], [], []>} : vector<8x8xf32>, vector<8x256xf32>, vector<8x256xf32> -> vector<8x256xf32>
      %541 = arith.addf %533, %540 : vector<8x256xf32>
      %c0_543 = arith.constant 0 : index
      %c127_544 = arith.constant 127 : index
      %542 = vector.load %arg6[%c0_543, %c127_544] : memref<8x512xf32, #tpu.memory_space<vmem>>, vector<8x256xf32>
      %c3_545 = arith.constant 3 : index
      %c0_546 = arith.constant 0 : index
      %c0_547 = arith.constant 0 : index
      %543 = vector.load %arg4[%c3_545, %c0_546, %c0_547] : memref<9x8x256xf32, #tpu.memory_space<vmem>>, vector<1x8x256xf32>
      %544 = vector.shape_cast %543 : vector<1x8x256xf32> to vector<8x256xf32>
      %545 = arith.mulf %542, %544 : vector<8x256xf32>
      %c3_548 = arith.constant 3 : index
      %c0_549 = arith.constant 0 : index
      %c0_550 = arith.constant 0 : index
      %546 = vector.load %arg2[%c3_548, %c0_549, %c0_550] : memref<9x8x8xf32, #tpu.memory_space<vmem>>, vector<1x8x8xf32>
      %547 = vector.shape_cast %546 : vector<1x8x8xf32> to vector<8x8xf32>
      %cst_551 = arith.constant dense<0.000000e+00> : vector<8x256xf32>
      %548 = tpu.matmul %547, %545, %cst_551 {dimension_numbers = #tpu.dot_dimension_numbers<[1], [0], [0], [1], [0, 0, 1, 1], [], []>} : vector<8x8xf32>, vector<8x256xf32>, vector<8x256xf32> -> vector<8x256xf32>
      %549 = arith.addf %541, %548 : vector<8x256xf32>
      %c0_552 = arith.constant 0 : index
      %c128_553 = arith.constant 128 : index
      %550 = vector.load %arg6[%c0_552, %c128_553] : memref<8x512xf32, #tpu.memory_space<vmem>>, vector<8x256xf32>
      %c4_554 = arith.constant 4 : index
      %c0_555 = arith.constant 0 : index
      %c0_556 = arith.constant 0 : index
      %551 = vector.load %arg4[%c4_554, %c0_555, %c0_556] : memref<9x8x256xf32, #tpu.memory_space<vmem>>, vector<1x8x256xf32>
      %552 = vector.shape_cast %551 : vector<1x8x256xf32> to vector<8x256xf32>
      %553 = arith.mulf %550, %552 : vector<8x256xf32>
      %c4_557 = arith.constant 4 : index
      %c0_558 = arith.constant 0 : index
      %c0_559 = arith.constant 0 : index
      %554 = vector.load %arg2[%c4_557, %c0_558, %c0_559] : memref<9x8x8xf32, #tpu.memory_space<vmem>>, vector<1x8x8xf32>
      %555 = vector.shape_cast %554 : vector<1x8x8xf32> to vector<8x8xf32>
      %cst_560 = arith.constant dense<0.000000e+00> : vector<8x256xf32>
      %556 = tpu.matmul %555, %553, %cst_560 {dimension_numbers = #tpu.dot_dimension_numbers<[1], [0], [0], [1], [0, 0, 1, 1], [], []>} : vector<8x8xf32>, vector<8x256xf32>, vector<8x256xf32> -> vector<8x256xf32>
      %557 = arith.addf %549, %556 : vector<8x256xf32>
      %c0_561 = arith.constant 0 : index
      %c129_562 = arith.constant 129 : index
      %558 = vector.load %arg6[%c0_561, %c129_562] : memref<8x512xf32, #tpu.memory_space<vmem>>, vector<8x256xf32>
      %c5_563 = arith.constant 5 : index
      %c0_564 = arith.constant 0 : index
      %c0_565 = arith.constant 0 : index
      %559 = vector.load %arg4[%c5_563, %c0_564, %c0_565] : memref<9x8x256xf32, #tpu.memory_space<vmem>>, vector<1x8x256xf32>
      %560 = vector.shape_cast %559 : vector<1x8x256xf32> to vector<8x256xf32>
      %561 = arith.mulf %558, %560 : vector<8x256xf32>
      %c5_566 = arith.constant 5 : index
      %c0_567 = arith.constant 0 : index
      %c0_568 = arith.constant 0 : index
      %562 = vector.load %arg2[%c5_566, %c0_567, %c0_568] : memref<9x8x8xf32, #tpu.memory_space<vmem>>, vector<1x8x8xf32>
      %563 = vector.shape_cast %562 : vector<1x8x8xf32> to vector<8x8xf32>
      %cst_569 = arith.constant dense<0.000000e+00> : vector<8x256xf32>
      %564 = tpu.matmul %563, %561, %cst_569 {dimension_numbers = #tpu.dot_dimension_numbers<[1], [0], [0], [1], [0, 0, 1, 1], [], []>} : vector<8x8xf32>, vector<8x256xf32>, vector<8x256xf32> -> vector<8x256xf32>
      %565 = arith.addf %557, %564 : vector<8x256xf32>
      %c0_570 = arith.constant 0 : index
      %c143_571 = arith.constant 143 : index
      %566 = vector.load %arg6[%c0_570, %c143_571] : memref<8x512xf32, #tpu.memory_space<vmem>>, vector<8x256xf32>
      %c6_572 = arith.constant 6 : index
      %c0_573 = arith.constant 0 : index
      %c0_574 = arith.constant 0 : index
      %567 = vector.load %arg4[%c6_572, %c0_573, %c0_574] : memref<9x8x256xf32, #tpu.memory_space<vmem>>, vector<1x8x256xf32>
      %568 = vector.shape_cast %567 : vector<1x8x256xf32> to vector<8x256xf32>
      %569 = arith.mulf %566, %568 : vector<8x256xf32>
      %c6_575 = arith.constant 6 : index
      %c0_576 = arith.constant 0 : index
      %c0_577 = arith.constant 0 : index
      %570 = vector.load %arg2[%c6_575, %c0_576, %c0_577] : memref<9x8x8xf32, #tpu.memory_space<vmem>>, vector<1x8x8xf32>
      %571 = vector.shape_cast %570 : vector<1x8x8xf32> to vector<8x8xf32>
      %cst_578 = arith.constant dense<0.000000e+00> : vector<8x256xf32>
      %572 = tpu.matmul %571, %569, %cst_578 {dimension_numbers = #tpu.dot_dimension_numbers<[1], [0], [0], [1], [0, 0, 1, 1], [], []>} : vector<8x8xf32>, vector<8x256xf32>, vector<8x256xf32> -> vector<8x256xf32>
      %573 = arith.addf %565, %572 : vector<8x256xf32>
      %c0_579 = arith.constant 0 : index
      %c144_580 = arith.constant 144 : index
      %574 = vector.load %arg6[%c0_579, %c144_580] : memref<8x512xf32, #tpu.memory_space<vmem>>, vector<8x256xf32>
      %c7_581 = arith.constant 7 : index
      %c0_582 = arith.constant 0 : index
      %c0_583 = arith.constant 0 : index
      %575 = vector.load %arg4[%c7_581, %c0_582, %c0_583] : memref<9x8x256xf32, #tpu.memory_space<vmem>>, vector<1x8x256xf32>
      %576 = vector.shape_cast %575 : vector<1x8x256xf32> to vector<8x256xf32>
      %577 = arith.mulf %574, %576 : vector<8x256xf32>
      %c7_584 = arith.constant 7 : index
      %c0_585 = arith.constant 0 : index
      %c0_586 = arith.constant 0 : index
      %578 = vector.load %arg2[%c7_584, %c0_585, %c0_586] : memref<9x8x8xf32, #tpu.memory_space<vmem>>, vector<1x8x8xf32>
      %579 = vector.shape_cast %578 : vector<1x8x8xf32> to vector<8x8xf32>
      %cst_587 = arith.constant dense<0.000000e+00> : vector<8x256xf32>
      %580 = tpu.matmul %579, %577, %cst_587 {dimension_numbers = #tpu.dot_dimension_numbers<[1], [0], [0], [1], [0, 0, 1, 1], [], []>} : vector<8x8xf32>, vector<8x256xf32>, vector<8x256xf32> -> vector<8x256xf32>
      %581 = arith.addf %573, %580 : vector<8x256xf32>
      %c0_588 = arith.constant 0 : index
      %c145_589 = arith.constant 145 : index
      %582 = vector.load %arg6[%c0_588, %c145_589] : memref<8x512xf32, #tpu.memory_space<vmem>>, vector<8x256xf32>
      %c8_590 = arith.constant 8 : index
      %c0_591 = arith.constant 0 : index
      %c0_592 = arith.constant 0 : index
      %583 = vector.load %arg4[%c8_590, %c0_591, %c0_592] : memref<9x8x256xf32, #tpu.memory_space<vmem>>, vector<1x8x256xf32>
      %584 = vector.shape_cast %583 : vector<1x8x256xf32> to vector<8x256xf32>
      %585 = arith.mulf %582, %584 : vector<8x256xf32>
      %c8_593 = arith.constant 8 : index
      %c0_594 = arith.constant 0 : index
      %c0_595 = arith.constant 0 : index
      %586 = vector.load %arg2[%c8_593, %c0_594, %c0_595] : memref<9x8x8xf32, #tpu.memory_space<vmem>>, vector<1x8x8xf32>
      %587 = vector.shape_cast %586 : vector<1x8x8xf32> to vector<8x8xf32>
      %cst_596 = arith.constant dense<0.000000e+00> : vector<8x256xf32>
      %588 = tpu.matmul %587, %585, %cst_596 {dimension_numbers = #tpu.dot_dimension_numbers<[1], [0], [0], [1], [0, 0, 1, 1], [], []>} : vector<8x8xf32>, vector<8x256xf32>, vector<8x256xf32> -> vector<8x256xf32>
      %589 = arith.addf %581, %588 : vector<8x256xf32>
      %cst_597 = arith.constant 0.000000e+00 : f32
      %590 = vector.broadcast %cst_597 : f32 to vector<8x256xf32>
      %591 = arith.maximumf %589, %590 : vector<8x256xf32>
      %cst_598 = arith.constant 1.000000e+00 : f32
      %592 = vector.broadcast %cst_598 : f32 to vector<8x256xf32>
      %593 = arith.select %6, %592, %591 : vector<8x256xi1>, vector<8x256xf32>
      %c0_599 = arith.constant 0 : index
      %c128_600 = arith.constant 128 : index
      %594 = vector.load %arg6[%c0_599, %c128_600] : memref<8x512xf32, #tpu.memory_space<vmem>>, vector<8x256xf32>
      tpu.vector_store %arg6[%c0_599, %c128_600], %593 {strides = array<i32>} : memref<8x512xf32, #tpu.memory_space<vmem>>, vector<8x256xf32>,
      %cst_601 = arith.constant 0.000000e+00 : f32
      %595 = vector.broadcast %cst_601 : f32 to vector<8x256xf32>
      %c0_602 = arith.constant 0 : index
      %c111_603 = arith.constant 111 : index
      %596 = vector.load %arg6[%c0_602, %c111_603] : memref<8x512xf32, #tpu.memory_space<vmem>>, vector<8x256xf32>
      %c0_604 = arith.constant 0 : index
      %c0_605 = arith.constant 0 : index
      %c0_606 = arith.constant 0 : index
      %597 = vector.load %arg4[%c0_604, %c0_605, %c0_606] : memref<9x8x256xf32, #tpu.memory_space<vmem>>, vector<1x8x256xf32>
      %598 = vector.shape_cast %597 : vector<1x8x256xf32> to vector<8x256xf32>
      %599 = arith.mulf %596, %598 : vector<8x256xf32>
      %c0_607 = arith.constant 0 : index
      %c0_608 = arith.constant 0 : index
      %c0_609 = arith.constant 0 : index
      %600 = vector.load %arg3[%c0_607, %c0_608, %c0_609] : memref<9x8x8xf32, #tpu.memory_space<vmem>>, vector<1x8x8xf32>
      %601 = vector.shape_cast %600 : vector<1x8x8xf32> to vector<8x8xf32>
      %cst_610 = arith.constant dense<0.000000e+00> : vector<8x256xf32>
      %602 = tpu.matmul %601, %599, %cst_610 {dimension_numbers = #tpu.dot_dimension_numbers<[1], [0], [0], [1], [0, 0, 1, 1], [], []>} : vector<8x8xf32>, vector<8x256xf32>, vector<8x256xf32> -> vector<8x256xf32>
      %603 = arith.addf %595, %602 : vector<8x256xf32>
      %c0_611 = arith.constant 0 : index
      %c112_612 = arith.constant 112 : index
      %604 = vector.load %arg6[%c0_611, %c112_612] : memref<8x512xf32, #tpu.memory_space<vmem>>, vector<8x256xf32>
      %c1_613 = arith.constant 1 : index
      %c0_614 = arith.constant 0 : index
      %c0_615 = arith.constant 0 : index
      %605 = vector.load %arg4[%c1_613, %c0_614, %c0_615] : memref<9x8x256xf32, #tpu.memory_space<vmem>>, vector<1x8x256xf32>
      %606 = vector.shape_cast %605 : vector<1x8x256xf32> to vector<8x256xf32>
      %607 = arith.mulf %604, %606 : vector<8x256xf32>
      %c1_616 = arith.constant 1 : index
      %c0_617 = arith.constant 0 : index
      %c0_618 = arith.constant 0 : index
      %608 = vector.load %arg3[%c1_616, %c0_617, %c0_618] : memref<9x8x8xf32, #tpu.memory_space<vmem>>, vector<1x8x8xf32>
      %609 = vector.shape_cast %608 : vector<1x8x8xf32> to vector<8x8xf32>
      %cst_619 = arith.constant dense<0.000000e+00> : vector<8x256xf32>
      %610 = tpu.matmul %609, %607, %cst_619 {dimension_numbers = #tpu.dot_dimension_numbers<[1], [0], [0], [1], [0, 0, 1, 1], [], []>} : vector<8x8xf32>, vector<8x256xf32>, vector<8x256xf32> -> vector<8x256xf32>
      %611 = arith.addf %603, %610 : vector<8x256xf32>
      %c0_620 = arith.constant 0 : index
      %c113_621 = arith.constant 113 : index
      %612 = vector.load %arg6[%c0_620, %c113_621] : memref<8x512xf32, #tpu.memory_space<vmem>>, vector<8x256xf32>
      %c2_622 = arith.constant 2 : index
      %c0_623 = arith.constant 0 : index
      %c0_624 = arith.constant 0 : index
      %613 = vector.load %arg4[%c2_622, %c0_623, %c0_624] : memref<9x8x256xf32, #tpu.memory_space<vmem>>, vector<1x8x256xf32>
      %614 = vector.shape_cast %613 : vector<1x8x256xf32> to vector<8x256xf32>
      %615 = arith.mulf %612, %614 : vector<8x256xf32>
      %c2_625 = arith.constant 2 : index
      %c0_626 = arith.constant 0 : index
      %c0_627 = arith.constant 0 : index
      %616 = vector.load %arg3[%c2_625, %c0_626, %c0_627] : memref<9x8x8xf32, #tpu.memory_space<vmem>>, vector<1x8x8xf32>
      %617 = vector.shape_cast %616 : vector<1x8x8xf32> to vector<8x8xf32>
      %cst_628 = arith.constant dense<0.000000e+00> : vector<8x256xf32>
      %618 = tpu.matmul %617, %615, %cst_628 {dimension_numbers = #tpu.dot_dimension_numbers<[1], [0], [0], [1], [0, 0, 1, 1], [], []>} : vector<8x8xf32>, vector<8x256xf32>, vector<8x256xf32> -> vector<8x256xf32>
      %619 = arith.addf %611, %618 : vector<8x256xf32>
      %c0_629 = arith.constant 0 : index
      %c127_630 = arith.constant 127 : index
      %620 = vector.load %arg6[%c0_629, %c127_630] : memref<8x512xf32, #tpu.memory_space<vmem>>, vector<8x256xf32>
      %c3_631 = arith.constant 3 : index
      %c0_632 = arith.constant 0 : index
      %c0_633 = arith.constant 0 : index
      %621 = vector.load %arg4[%c3_631, %c0_632, %c0_633] : memref<9x8x256xf32, #tpu.memory_space<vmem>>, vector<1x8x256xf32>
      %622 = vector.shape_cast %621 : vector<1x8x256xf32> to vector<8x256xf32>
      %623 = arith.mulf %620, %622 : vector<8x256xf32>
      %c3_634 = arith.constant 3 : index
      %c0_635 = arith.constant 0 : index
      %c0_636 = arith.constant 0 : index
      %624 = vector.load %arg3[%c3_634, %c0_635, %c0_636] : memref<9x8x8xf32, #tpu.memory_space<vmem>>, vector<1x8x8xf32>
      %625 = vector.shape_cast %624 : vector<1x8x8xf32> to vector<8x8xf32>
      %cst_637 = arith.constant dense<0.000000e+00> : vector<8x256xf32>
      %626 = tpu.matmul %625, %623, %cst_637 {dimension_numbers = #tpu.dot_dimension_numbers<[1], [0], [0], [1], [0, 0, 1, 1], [], []>} : vector<8x8xf32>, vector<8x256xf32>, vector<8x256xf32> -> vector<8x256xf32>
      %627 = arith.addf %619, %626 : vector<8x256xf32>
      %c0_638 = arith.constant 0 : index
      %c128_639 = arith.constant 128 : index
      %628 = vector.load %arg6[%c0_638, %c128_639] : memref<8x512xf32, #tpu.memory_space<vmem>>, vector<8x256xf32>
      %c4_640 = arith.constant 4 : index
      %c0_641 = arith.constant 0 : index
      %c0_642 = arith.constant 0 : index
      %629 = vector.load %arg4[%c4_640, %c0_641, %c0_642] : memref<9x8x256xf32, #tpu.memory_space<vmem>>, vector<1x8x256xf32>
      %630 = vector.shape_cast %629 : vector<1x8x256xf32> to vector<8x256xf32>
      %631 = arith.mulf %628, %630 : vector<8x256xf32>
      %c4_643 = arith.constant 4 : index
      %c0_644 = arith.constant 0 : index
      %c0_645 = arith.constant 0 : index
      %632 = vector.load %arg3[%c4_643, %c0_644, %c0_645] : memref<9x8x8xf32, #tpu.memory_space<vmem>>, vector<1x8x8xf32>
      %633 = vector.shape_cast %632 : vector<1x8x8xf32> to vector<8x8xf32>
      %cst_646 = arith.constant dense<0.000000e+00> : vector<8x256xf32>
      %634 = tpu.matmul %633, %631, %cst_646 {dimension_numbers = #tpu.dot_dimension_numbers<[1], [0], [0], [1], [0, 0, 1, 1], [], []>} : vector<8x8xf32>, vector<8x256xf32>, vector<8x256xf32> -> vector<8x256xf32>
      %635 = arith.addf %627, %634 : vector<8x256xf32>
      %c0_647 = arith.constant 0 : index
      %c129_648 = arith.constant 129 : index
      %636 = vector.load %arg6[%c0_647, %c129_648] : memref<8x512xf32, #tpu.memory_space<vmem>>, vector<8x256xf32>
      %c5_649 = arith.constant 5 : index
      %c0_650 = arith.constant 0 : index
      %c0_651 = arith.constant 0 : index
      %637 = vector.load %arg4[%c5_649, %c0_650, %c0_651] : memref<9x8x256xf32, #tpu.memory_space<vmem>>, vector<1x8x256xf32>
      %638 = vector.shape_cast %637 : vector<1x8x256xf32> to vector<8x256xf32>
      %639 = arith.mulf %636, %638 : vector<8x256xf32>
      %c5_652 = arith.constant 5 : index
      %c0_653 = arith.constant 0 : index
      %c0_654 = arith.constant 0 : index
      %640 = vector.load %arg3[%c5_652, %c0_653, %c0_654] : memref<9x8x8xf32, #tpu.memory_space<vmem>>, vector<1x8x8xf32>
      %641 = vector.shape_cast %640 : vector<1x8x8xf32> to vector<8x8xf32>
      %cst_655 = arith.constant dense<0.000000e+00> : vector<8x256xf32>
      %642 = tpu.matmul %641, %639, %cst_655 {dimension_numbers = #tpu.dot_dimension_numbers<[1], [0], [0], [1], [0, 0, 1, 1], [], []>} : vector<8x8xf32>, vector<8x256xf32>, vector<8x256xf32> -> vector<8x256xf32>
      %643 = arith.addf %635, %642 : vector<8x256xf32>
      %c0_656 = arith.constant 0 : index
      %c143_657 = arith.constant 143 : index
      %644 = vector.load %arg6[%c0_656, %c143_657] : memref<8x512xf32, #tpu.memory_space<vmem>>, vector<8x256xf32>
      %c6_658 = arith.constant 6 : index
      %c0_659 = arith.constant 0 : index
      %c0_660 = arith.constant 0 : index
      %645 = vector.load %arg4[%c6_658, %c0_659, %c0_660] : memref<9x8x256xf32, #tpu.memory_space<vmem>>, vector<1x8x256xf32>
      %646 = vector.shape_cast %645 : vector<1x8x256xf32> to vector<8x256xf32>
      %647 = arith.mulf %644, %646 : vector<8x256xf32>
      %c6_661 = arith.constant 6 : index
      %c0_662 = arith.constant 0 : index
      %c0_663 = arith.constant 0 : index
      %648 = vector.load %arg3[%c6_661, %c0_662, %c0_663] : memref<9x8x8xf32, #tpu.memory_space<vmem>>, vector<1x8x8xf32>
      %649 = vector.shape_cast %648 : vector<1x8x8xf32> to vector<8x8xf32>
      %cst_664 = arith.constant dense<0.000000e+00> : vector<8x256xf32>
      %650 = tpu.matmul %649, %647, %cst_664 {dimension_numbers = #tpu.dot_dimension_numbers<[1], [0], [0], [1], [0, 0, 1, 1], [], []>} : vector<8x8xf32>, vector<8x256xf32>, vector<8x256xf32> -> vector<8x256xf32>
      %651 = arith.addf %643, %650 : vector<8x256xf32>
      %c0_665 = arith.constant 0 : index
      %c144_666 = arith.constant 144 : index
      %652 = vector.load %arg6[%c0_665, %c144_666] : memref<8x512xf32, #tpu.memory_space<vmem>>, vector<8x256xf32>
      %c7_667 = arith.constant 7 : index
      %c0_668 = arith.constant 0 : index
      %c0_669 = arith.constant 0 : index
      %653 = vector.load %arg4[%c7_667, %c0_668, %c0_669] : memref<9x8x256xf32, #tpu.memory_space<vmem>>, vector<1x8x256xf32>
      %654 = vector.shape_cast %653 : vector<1x8x256xf32> to vector<8x256xf32>
      %655 = arith.mulf %652, %654 : vector<8x256xf32>
      %c7_670 = arith.constant 7 : index
      %c0_671 = arith.constant 0 : index
      %c0_672 = arith.constant 0 : index
      %656 = vector.load %arg3[%c7_670, %c0_671, %c0_672] : memref<9x8x8xf32, #tpu.memory_space<vmem>>, vector<1x8x8xf32>
      %657 = vector.shape_cast %656 : vector<1x8x8xf32> to vector<8x8xf32>
      %cst_673 = arith.constant dense<0.000000e+00> : vector<8x256xf32>
      %658 = tpu.matmul %657, %655, %cst_673 {dimension_numbers = #tpu.dot_dimension_numbers<[1], [0], [0], [1], [0, 0, 1, 1], [], []>} : vector<8x8xf32>, vector<8x256xf32>, vector<8x256xf32> -> vector<8x256xf32>
      %659 = arith.addf %651, %658 : vector<8x256xf32>
      %c0_674 = arith.constant 0 : index
      %c145_675 = arith.constant 145 : index
      %660 = vector.load %arg6[%c0_674, %c145_675] : memref<8x512xf32, #tpu.memory_space<vmem>>, vector<8x256xf32>
      %c8_676 = arith.constant 8 : index
      %c0_677 = arith.constant 0 : index
      %c0_678 = arith.constant 0 : index
      %661 = vector.load %arg4[%c8_676, %c0_677, %c0_678] : memref<9x8x256xf32, #tpu.memory_space<vmem>>, vector<1x8x256xf32>
      %662 = vector.shape_cast %661 : vector<1x8x256xf32> to vector<8x256xf32>
      %663 = arith.mulf %660, %662 : vector<8x256xf32>
      %c8_679 = arith.constant 8 : index
      %c0_680 = arith.constant 0 : index
      %c0_681 = arith.constant 0 : index
      %664 = vector.load %arg3[%c8_679, %c0_680, %c0_681] : memref<9x8x8xf32, #tpu.memory_space<vmem>>, vector<1x8x8xf32>
      %665 = vector.shape_cast %664 : vector<1x8x8xf32> to vector<8x8xf32>
      %cst_682 = arith.constant dense<0.000000e+00> : vector<8x256xf32>
      %666 = tpu.matmul %665, %663, %cst_682 {dimension_numbers = #tpu.dot_dimension_numbers<[1], [0], [0], [1], [0, 0, 1, 1], [], []>} : vector<8x8xf32>, vector<8x256xf32>, vector<8x256xf32> -> vector<8x256xf32>
      %667 = arith.addf %659, %666 : vector<8x256xf32>
      %cst_683 = arith.constant 6.000000e+00 : f32
      %668 = arith.divf %cst_4, %cst_683 : f32
      %669 = vector.broadcast %668 : f32 to vector<8x256xf32>
      %670 = arith.mulf %669, %667 : vector<8x256xf32>
      %671 = arith.addf %507, %670 : vector<8x256xf32>
      scf.yield %671 : vector<8x256xf32>
    }
    %c8_i32_5 = arith.constant 8 : i32
    %c0_6 = arith.constant 0 : index
    %c0_7 = arith.constant 0 : index
    %c0_8 = arith.constant 0 : index
    %11 = vector.load %arg5[%c0_6, %c0_7, %c0_8] : memref<1x8x256xf32, #tpu.memory_space<vmem>>, vector<1x8x256xf32>
    %12 = vector.shape_cast %11 : vector<1x8x256xf32> to vector<8x256xf32>
    %13 = vector.shape_cast %10 : vector<8x256xf32> to vector<1x8x256xf32>
    tpu.vector_store %arg5[%c0_6, %c0_7, %c0_8], %13 {strides = array<i32>} : memref<1x8x256xf32, #tpu.memory_space<vmem>>, vector<1x8x256xf32>,
    return
  }
  func.func @transform_0(%arg0: i32) -> (i32, i32, i32) {
    %c0_i32 = arith.constant 0 : i32
    %c0_i32_0 = arith.constant 0 : i32
    %c0_i32_1 = arith.constant 0 : i32
    return %arg0, %c0_i32, %c0_i32_0 : i32, i32, i32
  }
  func.func @transform_1(%arg0: i32) -> (i32, i32, i32) {
    %c0_i32 = arith.constant 0 : i32
    %c0_i32_0 = arith.constant 0 : i32
    %c0_i32_1 = arith.constant 0 : i32
    %c0_i32_2 = arith.constant 0 : i32
    return %c0_i32, %c0_i32_0, %c0_i32_1 : i32, i32, i32
  }
  func.func @transform_2(%arg0: i32) -> (i32, i32, i32) {
    %c0_i32 = arith.constant 0 : i32
    %c0_i32_0 = arith.constant 0 : i32
    %c0_i32_1 = arith.constant 0 : i32
    %c0_i32_2 = arith.constant 0 : i32
    return %c0_i32, %c0_i32_0, %c0_i32_1 : i32, i32, i32
  }
  func.func @transform_3(%arg0: i32) -> (i32, i32, i32) {
    %c0_i32 = arith.constant 0 : i32
    %c0_i32_0 = arith.constant 0 : i32
    %c0_i32_1 = arith.constant 0 : i32
    %c0_i32_2 = arith.constant 0 : i32
    return %c0_i32, %c0_i32_0, %c0_i32_1 : i32, i32, i32
  }
  func.func @transform_4(%arg0: i32) -> (i32, i32, i32) {
    %c0_i32 = arith.constant 0 : i32
    %c0_i32_0 = arith.constant 0 : i32
    %c0_i32_1 = arith.constant 0 : i32
    return %arg0, %c0_i32, %c0_i32_0 : i32, i32, i32
  }
}

</mosaic_0001>

<llo_original>
// kernel: ode_block_forward.1
$region0: #{ode_block_forward.1}
  #allocation0 [shape = 'u32[]', space=smem, size = 0x4, offset = 0x4, fixed_abs, tag = 'smem constant byte address 0x4 - core index']
  #allocation1 [shape = 'u32[144,128]{1,0:T(1,128)}', space=vmem, size = 0x12000, scoped, tag = 'internal scratch']
  #allocation2 [shape = 'f32[8,512]{1,0:T(8,128)}', space=vmem, size = 0x4000, scoped, tag = 'scratch operand']
  %s0 = inlined_call_operand.vmem [shape: f32[2,8,256], index: 0, kind: input, shape index: {}]
  %s1 = inlined_call_operand.vmem [shape: f32[9,8,8], index: 1, kind: input, shape index: {}]
  %s2 = inlined_call_operand.vmem [shape: f32[9,8,8], index: 2, kind: input, shape index: {}]
  %s3 = inlined_call_operand.vmem [shape: f32[9,8,256], index: 3, kind: input, shape index: {}]
  %s4 = inlined_call_operand.vmem [shape: f32[2,8,256], index: 4, kind: output, shape index: {}]
  %s5 = sld [smem:[#allocation0]]
  $region56: #{ode_block_forward.1} parent=0
    _
  %s7 = ssub.s32 1, %s5
  %s8 = scalar_select 0, %s7, %s5
  loop: start=0, step=1, limit=4
  $region2: #{ode_block_forward.1} parent=0 // loop_pre_header
    _
  $region3: #{ode_block_forward.1} parent=0 // loop_header
    %s10 = sphi 0, %s14
    %p11 = scmp.ge.s32.totalorder %s10, 4
    %s20 = sphi 0, %s22
    %s23 = sphi 0, %s20
    %s24 = sphi 0, %s23
    %s40 = sphi 0, %s24
    %s44 = sphi 0, %s44
    %s46 = sphi 0, %s44
    %s47 = sphi 0, %s46
    %s61 = sphi 0, %s47
    %s65 = sphi 0, %s65
    %s67 = sphi 0, %s65
    %s68 = sphi 0, %s67
    %s82 = sphi 0, %s68
    %s86 = sphi 0, %s86
    %s88 = sphi 0, %s86
    %s89 = sphi 0, %s88
    %s103 = sphi 0, %s89
    %s109 = sphi 0, %s111
    %s112 = sphi 0, %s109
    %s113 = sphi 0, %s112
    %s129 = sphi 0, %s113
  $region4: #{ode_block_forward.1} parent=0 // loop_header_branch
    %13 = sbr.rel (%p11) target = $region8
  $region5: #{ode_block_forward.1} parent=0 // loop_body
    %s15 = ssub.s32 %s10, 1
    %s16 = ssub.s32 %s10, 2
    %s17 = sadd.s32 %s10, 1
    %s18 = ssub.s32 %s10, %s17
    %p19 = scmp.eq.s32.totalorder %s18, 0
    %s21 = sadd.s32 %s20, 1
    %s22 = scalar_select %p19, %s20, %s21
    %p25 = pneg %p19
    %p26 = scmp.eq.s32.totalorder %s10, 1
    %p27 = por %p25, %p26
    %p28 = scmp.ne.s32.totalorder %s20, %s23
    %p29 = scmp.eq.s32.totalorder %s10, 0
    %p30 = por %p28, %p29
    %p31 = scmp.ne.s32.totalorder %s20, %s23
    %p32 = scmp.eq.s32.totalorder %s15, 1
    %p33 = por %p31, %p32
    %p34 = scmp.ne.s32.totalorder %s23, %s24
    %p35 = scmp.eq.s32.totalorder %s15, 0
    %p36 = por %p34, %p35
    %p37 = scmp.ne.s32.totalorder %s23, %s24
    %p38 = scmp.eq.s32.totalorder %s16, 1
    %p39 = por %p37, %p38
    %p41 = scmp.ne.s32.totalorder %s24, %s40
    %p42 = scmp.eq.s32.totalorder %s16, 0
    %p43 = por %p41, %p42
    %s45 = sadd.s32 %s44, 1
    %p48 = scmp.eq.s32.totalorder %s10, 1
    %p49 = scmp.ne.s32.totalorder %s44, %s46
    %p50 = scmp.eq.s32.totalorder %s10, 0
    %p51 = por %p49, %p50
    %p52 = scmp.ne.s32.totalorder %s44, %s46
    %p53 = scmp.eq.s32.totalorder %s15, 1
    %p54 = por %p52, %p53
    %p55 = scmp.ne.s32.totalorder %s46, %s47
    %p56 = scmp.eq.s32.totalorder %s15, 0
    %p57 = por %p55, %p56
    %p58 = scmp.ne.s32.totalorder %s46, %s47
    %p59 = scmp.eq.s32.totalorder %s16, 1
    %p60 = por %p58, %p59
    %p62 = scmp.ne.s32.totalorder %s47, %s61
    %p63 = scmp.eq.s32.totalorder %s16, 0
    %p64 = por %p62, %p63
    %s66 = sadd.s32 %s65, 1
    %p69 = scmp.eq.s32.totalorder %s10, 1
    %p70 = scmp.ne.s32.totalorder %s65, %s67
    %p71 = scmp.eq.s32.totalorder %s10, 0
    %p72 = por %p70, %p71
    %p73 = scmp.ne.s32.totalorder %s65, %s67
    %p74 = scmp.eq.s32.totalorder %s15, 1
    %p75 = por %p73, %p74
    %p76 = scmp.ne.s32.totalorder %s67, %s68
    %p77 = scmp.eq.s32.totalorder %s15, 0
    %p78 = por %p76, %p77
    %p79 = scmp.ne.s32.totalorder %s67, %s68
    %p80 = scmp.eq.s32.totalorder %s16, 1
    %p81 = por %p79, %p80
    %p83 = scmp.ne.s32.totalorder %s68, %s82
    %p84 = scmp.eq.s32.totalorder %s16, 0
    %p85 = por %p83, %p84
    %s87 = sadd.s32 %s86, 1
    %p90 = scmp.eq.s32.totalorder %s10, 1
    %p91 = scmp.ne.s32.totalorder %s86, %s88
    %p92 = scmp.eq.s32.totalorder %s10, 0
    %p93 = por %p91, %p92
    %p94 = scmp.ne.s32.totalorder %s86, %s88
    %p95 = scmp.eq.s32.totalorder %s15, 1
    %p96 = por %p94, %p95
    %p97 = scmp.ne.s32.totalorder %s88, %s89
    %p98 = scmp.eq.s32.totalorder %s15, 0
    %p99 = por %p97, %p98
    %p100 = scmp.ne.s32.totalorder %s88, %s89
    %p101 = scmp.eq.s32.totalorder %s16, 1
    %p102 = por %p100, %p101
    %p104 = scmp.ne.s32.totalorder %s89, %s103
    %p105 = scmp.eq.s32.totalorder %s16, 0
    %p106 = por %p104, %p105
    %s107 = ssub.s32 %s10, %s17
    %p108 = scmp.eq.s32.totalorder %s107, 0
    %s110 = sadd.s32 %s109, 1
    %s111 = scalar_select %p108, %s109, %s110
    %p114 = pneg %p108
    %p115 = scmp.eq.s32.totalorder %s10, 1
    %p116 = por %p114, %p115
    %p117 = scmp.ne.s32.totalorder %s109, %s112
    %p118 = scmp.eq.s32.totalorder %s10, 0
    %p119 = por %p117, %p118
    %p120 = scmp.ne.s32.totalorder %s109, %s112
    %p121 = scmp.eq.s32.totalorder %s15, 1
    %p122 = por %p120, %p121
    %p123 = scmp.ne.s32.totalorder %s112, %s113
    %p124 = scmp.eq.s32.totalorder %s15, 0
    %p125 = por %p123, %p124
    %p126 = scmp.ne.s32.totalorder %s112, %s113
    %p127 = scmp.eq.s32.totalorder %s16, 1
    %p128 = por %p126, %p127
    %p130 = scmp.ne.s32.totalorder %s113, %s129
    %p131 = scmp.eq.s32.totalorder %s16, 0
    %p132 = por %p130, %p131
    %p133 = scmp.le.s32.totalorder 1, %s10
    %p134 = scmp.lt.s32.totalorder %s10, 3
    %p135 = pnand %p133, %p134
    %p136 = pneg %p135
    // Predicated region
    $region9: #{ode_block_forward.1} parent=5 // pred_check
      _
    $region10: #{ode_block_forward.1} parent=5 // pred_check_branch
      %138 = sbr.rel (%p135) target = $region12
    $region11: #{ode_block_forward.1} parent=5 // pred_region
      %s139 = ssub.s32 %s10, 1
      // Predicated region
      $region13: #{ode_block_forward.1} parent=11 // pred_check
        %p140 = pneg %p57
      $region14: #{ode_block_forward.1} parent=11 // pred_check_branch
        %142 = sbr.rel (%p140) target = $region16
      $region15: #{ode_block_forward.1} parent=11 // pred_region
        _
      $region16: #{ode_block_forward.1} parent=11 // pred_fallthru
        _
      // Predicated region
      $region17: #{ode_block_forward.1} parent=11 // pred_check
        %p143 = pneg %p78
      $region18: #{ode_block_forward.1} parent=11 // pred_check_branch
        %145 = sbr.rel (%p143) target = $region20
      $region19: #{ode_block_forward.1} parent=11 // pred_region
        _
      $region20: #{ode_block_forward.1} parent=11 // pred_fallthru
        _
      // Predicated region
      $region21: #{ode_block_forward.1} parent=11 // pred_check
        %p146 = pneg %p99
      $region22: #{ode_block_forward.1} parent=11 // pred_check_branch
        %148 = sbr.rel (%p146) target = $region24
      $region23: #{ode_block_forward.1} parent=11 // pred_region
        _
      $region24: #{ode_block_forward.1} parent=11 // pred_fallthru
        _
    $region12: #{ode_block_forward.1} parent=5 // pred_fallthru
      _
    %p149 = scmp.lt.s32.totalorder %s10, 2
    // Predicated region
    $region25: #{ode_block_forward.1} parent=5 // pred_check
      %p150 = pneg %p149
    $region26: #{ode_block_forward.1} parent=5 // pred_check_branch
      %152 = sbr.rel (%p150) target = $region28
    $region27: #{ode_block_forward.1} parent=5 // pred_region
      // Predicated region
      $region29: #{ode_block_forward.1} parent=27 // pred_check
        %p153 = pneg %p30
      $region30: #{ode_block_forward.1} parent=27 // pred_check_branch
        %155 = sbr.rel (%p153) target = $region32
      $region31: #{ode_block_forward.1} parent=27 // pred_region
        %p156 = scmp.lt.s32.totalorder %s10, 1
        %s157 = scalar_select %p156, %s10, 1
        %s158 = smul.addr %s157, 2
        %s159 = smul.addr %s158, 8
        %s160 = scalar_lea.vmem %s0, %s159
      $region32: #{ode_block_forward.1} parent=27 // pred_fallthru
        _
    $region28: #{ode_block_forward.1} parent=5 // pred_fallthru
      _
    %p161 = scmp.le.s32.totalorder 1, %s10
    %p162 = scmp.lt.s32.totalorder %s10, 3
    %p163 = pnand %p161, %p162
    %p164 = pneg %p163
    // Predicated region
    $region33: #{ode_block_forward.1} parent=5 // pred_check
      _
    $region34: #{ode_block_forward.1} parent=5 // pred_check_branch
      %166 = sbr.rel (%p163) target = $region36
    $region35: #{ode_block_forward.1} parent=5 // pred_region
      %s167 = ssub.s32 %s10, 1
      %p168 = scmp.lt.s32.totalorder %s15, 1
      %s169 = scalar_select %p168, %s15, 1
      %s170 = smul.addr %s169, 2
      %s171 = smul.addr %s170, 8
      %s172 = scalar_lea.vmem %s0, %s171
      %p173 = pneg %p36
      %p174 = pneg %p33
      %p175 = pneg %p57
      %p176 = pneg %p54
      %p177 = pneg %p78
      %p178 = pneg %p75
      %p179 = pneg %p99
      %p180 = pneg %p96
      %p181 = pneg %p125
      %p182 = pneg %p122
      %p183 = scmp.lt.s32.totalorder %s15, 1
      %s184 = scalar_select %p183, %s15, 1
      %s185 = smul.addr %s184, 2
      %s186 = smul.addr %s185, 8
      %s187 = scalar_lea.vmem %s4, %s186
      %p188 = scmp.lt.s32.totalorder %s15, 1
      %s189 = scalar_select %p188, %s15, 1
      %s190 = smul.addr %s189, 2
      %s191 = smul.addr %s190, 8
      %s192 = scalar_lea.vmem %s0, %s191
      %p193 = scmp.lt.s32.totalorder %s15, 1
      %s194 = scalar_select %p193, %s15, 1
      %s195 = smul.addr %s194, 2
      %s196 = smul.addr %s195, 8
      %s197 = scalar_lea.vmem %s4, %s196
      %198 = vst [vmem:[#allocation2] sm:$0xff] 0.0
      %199 = vst [vmem:[#allocation2 + $0x8] sm:$0xff] 0.0
      %200 = vst [vmem:[#allocation2 + $0x10] sm:$0xff] 0.0
      %201 = vst [vmem:[#allocation2 + $0x18] sm:$0xff] 0.0
      %v202 = vlaneseq
      %v203 = vshrl.u32 %v202, 7
      %vm204 = vcmp.eq.s32.totalorder %v203, 4
      %vm205 = vcmp.eq.s32.totalorder %v203, 5
      %v206 = vld [vmem:[%s192] sm:$0xff]
      %v207 = vld [vmem:[%s192 + $0x8] sm:$0xff]
      loop: start=0, step=1, limit=8
      $region37: #{ode_block_forward.1} parent=35 // loop_pre_header
        _
      $region38: #{ode_block_forward.1} parent=35 // loop_header
        %s209 = sphi 0, %s213
        %p210 = scmp.ge.s32.totalorder %s209, 8
        %v214 = vphi %v206, %v7714
        %v215 = vphi %v207, %v7715
      $region39: #{ode_block_forward.1} parent=35 // loop_header_branch
        %212 = sbr.rel (%p210) target = $region43
      $region40: #{ode_block_forward.1} parent=35 // loop_body
        %s216 = scvt.s32.f32 %s209
        %s217 = smul.f32 %s216, 0.125
        %v218 = vstv %s217
        %v219 = vsel %vm204, %v218, %v214
        %v220 = vsel %vm204, %v218, %v215
        %v221 = vsel %vm205, 1.0, %v219
        %v222 = vsel %vm205, 1.0, %v220
        %223 = vst [vmem:[#allocation2 + $0x8] sm:$0xff] %v221
        %224 = vst [vmem:[#allocation2 + $0x10] sm:$0xff] %v222
        %v225 = vld [vmem:[#allocation2] sm:$0xff]
        %v226 = vld [vmem:[#allocation2 + $0x8] sm:$0xff]
        %v227 = vld [vmem:[#allocation2 + $0x10] sm:$0xff]
        %v228 = vld [vmem:[%s3] sm:$0xff]
        %v229 = vld [vmem:[%s3 + $0x8] sm:$0xff]
        %232 = vrot.lane.b32.xlu0 %v228, 111
        %v233 = vpop.permute.xlu0 %232
        %234 = vrot.lane.b32.xlu0 %v229, 111
        %v235 = vpop.permute.xlu0 %234
        %vm236 = vcmask 908288
        %v237 = vsel %vm236, %v233, %v235
        %v241 = vmul.f32 %v225, %v233
        %v242 = vmul.f32 %v226, %v237
        %v243 = vmul.f32 %v227, %v235
        %v244 = vld [vmem:[%s1] sm:$0xff]
        %s245 = scalar_lea.vmem %s3, 16
        %v246 = vld [vmem:[%s245] sm:$0xff]
        %v247 = vld [vmem:[%s245 + $0x8] sm:$0xff]
        %250 = vrot.lane.b32.xlu0 %v246, 112
        %v251 = vpop.permute.xlu0 %250
        %252 = vrot.lane.b32.xlu0 %v247, 112
        %v253 = vpop.permute.xlu0 %252
        %vm254 = vcmask 916480
        %v255 = vsel %vm254, %v251, %v253
        %v259 = vmul.f32 %v225, %v251
        %v260 = vmul.f32 %v226, %v255
        %v261 = vmul.f32 %v227, %v253
        %s262 = scalar_lea.vmem %s1, 8
        %v263 = vld [vmem:[%s262] sm:$0xff]
        %267 = vrot.lane.b32.xlu0 %v259, 16
        %v268 = vpop.permute.xlu0 %267
        %269 = vrot.lane.b32.xlu0 %v260, 16
        %v270 = vpop.permute.xlu0 %269
        %271 = vrot.lane.b32.xlu0 %v261, 16
        %v272 = vpop.permute.xlu0 %271
        %vm273 = vcmask 130048
        %v274 = vsel %vm273, %v268, %v270
        %v275 = vsel %vm273, %v270, %v272
        %vm278 = vcmask 64512
        %v280 = vsel %vm278, %v263, 0
        %282 = vmatprep.subr.mxu0 %v275
        %283 = vmatpush1.msra.mxu0 %v274
        %284 = vmatprep.subr.mxu0 0.0
        %285 = vmatpush1.msra.mxu0 0.0
        %286 = vmatprep.subr.mxu0 0.0
        %287 = vmatpush1.msra.mxu0 0.0
        %288 = vmatprep.subr.mxu0 0.0
        %289 = vmatpush1.msra.mxu0 0.0
        %290 = vmatprep.subr.mxu0 0.0
        %291 = vmatpush1.msra.mxu0 0.0
        %292 = vmatprep.subr.mxu0 0.0
        %293 = vmatpush1.msra.mxu0 0.0
        %294 = vmatprep.subr.mxu0 0.0
        %295 = vmatpush1.msra.mxu0 0.0
        %296 = vmatprep.subr.mxu0 0.0
        %297 = vmatpush1.msra.mxu0 0.0
        %298 = vmatprep.subr.mxu0 0.0
        %299 = vmatpush1.msra.mxu0 0.0
        %300 = vmatprep.subr.mxu0 0.0
        %301 = vmatpush1.msra.mxu0 0.0
        %302 = vmatprep.subr.mxu0 0.0
        %303 = vmatpush1.msra.mxu0 0.0
        %304 = vmatprep.subr.mxu0 0.0
        %305 = vmatpush1.msra.mxu0 0.0
        %306 = vmatprep.subr.mxu0 0.0
        %307 = vmatpush1.msra.mxu0 0.0
        %308 = vmatprep.subr.mxu0 0.0
        %309 = vmatpush1.msra.mxu0 0.0
        %310 = vmatprep.subr.mxu0 0.0
        %311 = vmatpush1.msra.mxu0 0.0
        %312 = vmatprep.subr.mxu0 0.0
        %313 = vmatpush1.msra.mxu0 0.0
        %314 = vmatprep.subr.mxu0 0.0
        %315 = vmatpush1.msra.mxu0 0.0
        %316 = vmatprep.subr.mxu0 0.0
        %317 = vmatpush1.msra.mxu0 0.0
        %318 = vmatprep.subr.mxu0 0.0
        %319 = vmatpush1.msra.mxu0 0.0
        %320 = vmatprep.subr.mxu0 0.0
        %321 = vmatpush1.msra.mxu0 0.0
        %322 = vmatprep.subr.mxu0 0.0
        %323 = vmatpush1.msra.mxu0 0.0
        %324 = vmatprep.subr.mxu0 0.0
        %325 = vmatpush1.msra.mxu0 0.0
        %326 = vmatprep.subr.mxu0 0.0
        %327 = vmatpush1.msra.mxu0 0.0
        %328 = vmatprep.subr.mxu0 0.0
        %329 = vmatpush1.msra.mxu0 0.0
        %330 = vmatprep.subr.mxu0 0.0
        %331 = vmatpush1.msra.mxu0 0.0
        %332 = vmatprep.subr.mxu0 0.0
        %333 = vmatpush1.msra.mxu0 0.0
        %334 = vmatprep.subr.mxu0 0.0
        %335 = vmatpush1.msra.mxu0 0.0
        %336 = vmatprep.subr.mxu0 0.0
        %337 = vmatpush1.msra.mxu0 0.0
        %338 = vmatprep.subr.mxu0 0.0
        %339 = vmatpush1.msra.mxu0 0.0
        %340 = vmatprep.subr.mxu0 0.0
        %341 = vmatpush1.msra.mxu0 0.0
        %342 = vmatprep.subr.mxu0 0.0
        %343 = vmatpush1.msra.mxu0 0.0
        %344 = vmatprep.subr.mxu0 0.0
        %345 = vmatpush1.msra.mxu0 0.0
        %346 = vmatprep.mubr.f32.mxu0 0.0
        %347 = vmatmul.mubr.f32.gmra.mrb[0].mxu0 %v280
        %v348 = vpop.f32.mrb[0].mxu0
        %v349 = vadd.f32 0.0, %v348
        %v350 = vpop.f32.mrb[0].mxu0
        %v351 = vadd.f32 0.0, %v350
        %352 = vdwg.mxu0
        %356 = vrot.lane.b32.xlu0 %v241, 17
        %v357 = vpop.permute.xlu0 %356
        %358 = vrot.lane.b32.xlu0 %v242, 17
        %v359 = vpop.permute.xlu0 %358
        %360 = vrot.lane.b32.xlu0 %v243, 17
        %v361 = vpop.permute.xlu0 %360
        %vm362 = vcmask 138240
        %v363 = vsel %vm362, %v357, %v359
        %v364 = vsel %vm362, %v359, %v361
        %v368 = vsel %vm278, %v244, 0
        %370 = vmatprep.subr.mxu0 %v364
        %371 = vmatpush1.msra.mxu0 %v363
        %372 = vmatprep.subr.mxu0 0.0
        %373 = vmatpush1.msra.mxu0 0.0
        %374 = vmatprep.subr.mxu0 0.0
        %375 = vmatpush1.msra.mxu0 0.0
        %376 = vmatprep.subr.mxu0 0.0
        %377 = vmatpush1.msra.mxu0 0.0
        %378 = vmatprep.subr.mxu0 0.0
        %379 = vmatpush1.msra.mxu0 0.0
        %380 = vmatprep.subr.mxu0 0.0
        %381 = vmatpush1.msra.mxu0 0.0
        %382 = vmatprep.subr.mxu0 0.0
        %383 = vmatpush1.msra.mxu0 0.0
        %384 = vmatprep.subr.mxu0 0.0
        %385 = vmatpush1.msra.mxu0 0.0
        %386 = vmatprep.subr.mxu0 0.0
        %387 = vmatpush1.msra.mxu0 0.0
        %388 = vmatprep.subr.mxu0 0.0
        %389 = vmatpush1.msra.mxu0 0.0
        %390 = vmatprep.subr.mxu0 0.0
        %391 = vmatpush1.msra.mxu0 0.0
        %392 = vmatprep.subr.mxu0 0.0
        %393 = vmatpush1.msra.mxu0 0.0
        %394 = vmatprep.subr.mxu0 0.0
        %395 = vmatpush1.msra.mxu0 0.0
        %396 = vmatprep.subr.mxu0 0.0
        %397 = vmatpush1.msra.mxu0 0.0
        %398 = vmatprep.subr.mxu0 0.0
        %399 = vmatpush1.msra.mxu0 0.0
        %400 = vmatprep.subr.mxu0 0.0
        %401 = vmatpush1.msra.mxu0 0.0
        %402 = vmatprep.subr.mxu0 0.0
        %403 = vmatpush1.msra.mxu0 0.0
        %404 = vmatprep.subr.mxu0 0.0
        %405 = vmatpush1.msra.mxu0 0.0
        %406 = vmatprep.subr.mxu0 0.0
        %407 = vmatpush1.msra.mxu0 0.0
        %408 = vmatprep.subr.mxu0 0.0
        %409 = vmatpush1.msra.mxu0 0.0
        %410 = vmatprep.subr.mxu0 0.0
        %411 = vmatpush1.msra.mxu0 0.0
        %412 = vmatprep.subr.mxu0 0.0
        %413 = vmatpush1.msra.mxu0 0.0
        %414 = vmatprep.subr.mxu0 0.0
        %415 = vmatpush1.msra.mxu0 0.0
        %416 = vmatprep.subr.mxu0 0.0
        %417 = vmatpush1.msra.mxu0 0.0
        %418 = vmatprep.subr.mxu0 0.0
        %419 = vmatpush1.msra.mxu0 0.0
        %420 = vmatprep.subr.mxu0 0.0
        %421 = vmatpush1.msra.mxu0 0.0
        %422 = vmatprep.subr.mxu0 0.0
        %423 = vmatpush1.msra.mxu0 0.0
        %424 = vmatprep.subr.mxu0 0.0
        %425 = vmatpush1.msra.mxu0 0.0
        %426 = vmatprep.subr.mxu0 0.0
        %427 = vmatpush1.msra.mxu0 0.0
        %428 = vmatprep.subr.mxu0 0.0
        %429 = vmatpush1.msra.mxu0 0.0
        %430 = vmatprep.subr.mxu0 0.0
        %431 = vmatpush1.msra.mxu0 0.0
        %432 = vmatprep.subr.mxu0 0.0
        %433 = vmatpush1.msra.mxu0 0.0
        %434 = vmatprep.mubr.f32.mxu0 0.0
        %435 = vmatmul.mubr.f32.gmra.mrb[0].mxu0 %v368
        %v436 = vpop.f32.mrb[0].mxu0
        %v437 = vadd.f32 %v349, %v436
        %v438 = vpop.f32.mrb[0].mxu0
        %v439 = vadd.f32 %v351, %v438
        %440 = vdwg.mxu0
        %s441 = scalar_lea.vmem %s3, 32
        %v442 = vld [vmem:[%s441] sm:$0xff]
        %v443 = vld [vmem:[%s441 + $0x8] sm:$0xff]
        %446 = vrot.lane.b32.xlu0 %v442, 113
        %v447 = vpop.permute.xlu0 %446
        %448 = vrot.lane.b32.xlu0 %v443, 113
        %v449 = vpop.permute.xlu0 %448
        %vm450 = vcmask 924672
        %v451 = vsel %vm450, %v447, %v449
        %v455 = vmul.f32 %v225, %v447
        %v456 = vmul.f32 %v226, %v451
        %v457 = vmul.f32 %v227, %v449
        %s458 = scalar_lea.vmem %s1, 16
        %v459 = vld [vmem:[%s458] sm:$0xff]
        %463 = vrot.lane.b32.xlu0 %v455, 15
        %v464 = vpop.permute.xlu0 %463
        %465 = vrot.lane.b32.xlu0 %v456, 15
        %v466 = vpop.permute.xlu0 %465
        %467 = vrot.lane.b32.xlu0 %v457, 15
        %v468 = vpop.permute.xlu0 %467
        %vm469 = vcmask 121856
        %v470 = vsel %vm469, %v464, %v466
        %v471 = vsel %vm469, %v466, %v468
        %v475 = vsel %vm278, %v459, 0
        %477 = vmatprep.subr.mxu0 %v471
        %478 = vmatpush1.msra.mxu0 %v470
        %479 = vmatprep.subr.mxu0 0.0
        %480 = vmatpush1.msra.mxu0 0.0
        %481 = vmatprep.subr.mxu0 0.0
        %482 = vmatpush1.msra.mxu0 0.0
        %483 = vmatprep.subr.mxu0 0.0
        %484 = vmatpush1.msra.mxu0 0.0
        %485 = vmatprep.subr.mxu0 0.0
        %486 = vmatpush1.msra.mxu0 0.0
        %487 = vmatprep.subr.mxu0 0.0
        %488 = vmatpush1.msra.mxu0 0.0
        %489 = vmatprep.subr.mxu0 0.0
        %490 = vmatpush1.msra.mxu0 0.0
        %491 = vmatprep.subr.mxu0 0.0
        %492 = vmatpush1.msra.mxu0 0.0
        %493 = vmatprep.subr.mxu0 0.0
        %494 = vmatpush1.msra.mxu0 0.0
        %495 = vmatprep.subr.mxu0 0.0
        %496 = vmatpush1.msra.mxu0 0.0
        %497 = vmatprep.subr.mxu0 0.0
        %498 = vmatpush1.msra.mxu0 0.0
        %499 = vmatprep.subr.mxu0 0.0
        %500 = vmatpush1.msra.mxu0 0.0
        %501 = vmatprep.subr.mxu0 0.0
        %502 = vmatpush1.msra.mxu0 0.0
        %503 = vmatprep.subr.mxu0 0.0
        %504 = vmatpush1.msra.mxu0 0.0
        %505 = vmatprep.subr.mxu0 0.0
        %506 = vmatpush1.msra.mxu0 0.0
        %507 = vmatprep.subr.mxu0 0.0
        %508 = vmatpush1.msra.mxu0 0.0
        %509 = vmatprep.subr.mxu0 0.0
        %510 = vmatpush1.msra.mxu0 0.0
        %511 = vmatprep.subr.mxu0 0.0
        %512 = vmatpush1.msra.mxu0 0.0
        %513 = vmatprep.subr.mxu0 0.0
        %514 = vmatpush1.msra.mxu0 0.0
        %515 = vmatprep.subr.mxu0 0.0
        %516 = vmatpush1.msra.mxu0 0.0
        %517 = vmatprep.subr.mxu0 0.0
        %518 = vmatpush1.msra.mxu0 0.0
        %519 = vmatprep.subr.mxu0 0.0
        %520 = vmatpush1.msra.mxu0 0.0
        %521 = vmatprep.subr.mxu0 0.0
        %522 = vmatpush1.msra.mxu0 0.0
        %523 = vmatprep.subr.mxu0 0.0
        %524 = vmatpush1.msra.mxu0 0.0
        %525 = vmatprep.subr.mxu0 0.0
        %526 = vmatpush1.msra.mxu0 0.0
        %527 = vmatprep.subr.mxu0 0.0
        %528 = vmatpush1.msra.mxu0 0.0
        %529 = vmatprep.subr.mxu0 0.0
        %530 = vmatpush1.msra.mxu0 0.0
        %531 = vmatprep.subr.mxu0 0.0
        %532 = vmatpush1.msra.mxu0 0.0
        %533 = vmatprep.subr.mxu0 0.0
        %534 = vmatpush1.msra.mxu0 0.0
        %535 = vmatprep.subr.mxu0 0.0
        %536 = vmatpush1.msra.mxu0 0.0
        %537 = vmatprep.subr.mxu0 0.0
        %538 = vmatpush1.msra.mxu0 0.0
        %539 = vmatprep.subr.mxu0 0.0
        %540 = vmatpush1.msra.mxu0 0.0
        %541 = vmatprep.mubr.f32.mxu0 0.0
        %542 = vmatmul.mubr.f32.gmra.mrb[0].mxu0 %v475
        %v543 = vpop.f32.mrb[0].mxu0
        %v544 = vadd.f32 0.0, %v543
        %v545 = vpop.f32.mrb[0].mxu0
        %v546 = vadd.f32 0.0, %v545
        %547 = vdwg.mxu0
        %v548 = vadd.f32 %v437, %v544
        %v549 = vadd.f32 %v439, %v546
        %s550 = scalar_lea.vmem %s3, 48
        %v551 = vld [vmem:[%s550] sm:$0xff]
        %v552 = vld [vmem:[%s550 + $0x8] sm:$0xff]
        %555 = vrot.lane.b32.xlu0 %v551, 127
        %v556 = vpop.permute.xlu0 %555
        %557 = vrot.lane.b32.xlu0 %v552, 127
        %v558 = vpop.permute.xlu0 %557
        %vm559 = vcmask 1039360
        %v560 = vsel %vm559, %v556, %v558
        %v564 = vmul.f32 %v225, %v556
        %v565 = vmul.f32 %v226, %v560
        %v566 = vmul.f32 %v227, %v558
        %s567 = scalar_lea.vmem %s1, 24
        %v568 = vld [vmem:[%s567] sm:$0xff]
        %572 = vrot.lane.b32.xlu0 %v564, 1
        %v573 = vpop.permute.xlu0 %572
        %574 = vrot.lane.b32.xlu0 %v565, 1
        %v575 = vpop.permute.xlu0 %574
        %576 = vrot.lane.b32.xlu0 %v566, 1
        %v577 = vpop.permute.xlu0 %576
        %vm578 = vcmask 7168
        %v579 = vsel %vm578, %v573, %v575
        %v580 = vsel %vm578, %v575, %v577
        %v584 = vsel %vm278, %v568, 0
        %586 = vmatprep.subr.mxu0 %v580
        %587 = vmatpush1.msra.mxu0 %v579
        %588 = vmatprep.subr.mxu0 0.0
        %589 = vmatpush1.msra.mxu0 0.0
        %590 = vmatprep.subr.mxu0 0.0
        %591 = vmatpush1.msra.mxu0 0.0
        %592 = vmatprep.subr.mxu0 0.0
        %593 = vmatpush1.msra.mxu0 0.0
        %594 = vmatprep.subr.mxu0 0.0
        %595 = vmatpush1.msra.mxu0 0.0
        %596 = vmatprep.subr.mxu0 0.0
        %597 = vmatpush1.msra.mxu0 0.0
        %598 = vmatprep.subr.mxu0 0.0
        %599 = vmatpush1.msra.mxu0 0.0
        %600 = vmatprep.subr.mxu0 0.0
        %601 = vmatpush1.msra.mxu0 0.0
        %602 = vmatprep.subr.mxu0 0.0
        %603 = vmatpush1.msra.mxu0 0.0
        %604 = vmatprep.subr.mxu0 0.0
        %605 = vmatpush1.msra.mxu0 0.0
        %606 = vmatprep.subr.mxu0 0.0
        %607 = vmatpush1.msra.mxu0 0.0
        %608 = vmatprep.subr.mxu0 0.0
        %609 = vmatpush1.msra.mxu0 0.0
        %610 = vmatprep.subr.mxu0 0.0
        %611 = vmatpush1.msra.mxu0 0.0
        %612 = vmatprep.subr.mxu0 0.0
        %613 = vmatpush1.msra.mxu0 0.0
        %614 = vmatprep.subr.mxu0 0.0
        %615 = vmatpush1.msra.mxu0 0.0
        %616 = vmatprep.subr.mxu0 0.0
        %617 = vmatpush1.msra.mxu0 0.0
        %618 = vmatprep.subr.mxu0 0.0
        %619 = vmatpush1.msra.mxu0 0.0
        %620 = vmatprep.subr.mxu0 0.0
        %621 = vmatpush1.msra.mxu0 0.0
        %622 = vmatprep.subr.mxu0 0.0
        %623 = vmatpush1.msra.mxu0 0.0
        %624 = vmatprep.subr.mxu0 0.0
        %625 = vmatpush1.msra.mxu0 0.0
        %626 = vmatprep.subr.mxu0 0.0
        %627 = vmatpush1.msra.mxu0 0.0
        %628 = vmatprep.subr.mxu0 0.0
        %629 = vmatpush1.msra.mxu0 0.0
        %630 = vmatprep.subr.mxu0 0.0
        %631 = vmatpush1.msra.mxu0 0.0
        %632 = vmatprep.subr.mxu0 0.0
        %633 = vmatpush1.msra.mxu0 0.0
        %634 = vmatprep.subr.mxu0 0.0
        %635 = vmatpush1.msra.mxu0 0.0
        %636 = vmatprep.subr.mxu0 0.0
        %637 = vmatpush1.msra.mxu0 0.0
        %638 = vmatprep.subr.mxu0 0.0
        %639 = vmatpush1.msra.mxu0 0.0
        %640 = vmatprep.subr.mxu0 0.0
        %641 = vmatpush1.msra.mxu0 0.0
        %642 = vmatprep.subr.mxu0 0.0
        %643 = vmatpush1.msra.mxu0 0.0
        %644 = vmatprep.subr.mxu0 0.0
        %645 = vmatpush1.msra.mxu0 0.0
        %646 = vmatprep.subr.mxu0 0.0
        %647 = vmatpush1.msra.mxu0 0.0
        %648 = vmatprep.subr.mxu0 0.0
        %649 = vmatpush1.msra.mxu0 0.0
        %650 = vmatprep.mubr.f32.mxu0 0.0
        %651 = vmatmul.mubr.f32.gmra.mrb[0].mxu0 %v584
        %v652 = vpop.f32.mrb[0].mxu0
        %v653 = vadd.f32 0.0, %v652
        %v654 = vpop.f32.mrb[0].mxu0
        %v655 = vadd.f32 0.0, %v654
        %656 = vdwg.mxu0
        %v657 = vadd.f32 %v548, %v653
        %v658 = vadd.f32 %v549, %v655
        %s659 = scalar_lea.vmem %s3, 64
        %v660 = vld [vmem:[%s659] sm:$0xff]
        %v661 = vld [vmem:[%s659 + $0x8] sm:$0xff]
        %v662 = vmul.f32 %v226, %v660
        %v663 = vmul.f32 %v227, %v661
        %s664 = scalar_lea.vmem %s1, 32
        %v665 = vld [vmem:[%s664] sm:$0xff]
        %v667 = vsel %vm278, %v665, 0
        %669 = vmatprep.subr.mxu0 %v663
        %670 = vmatpush1.msra.mxu0 %v662
        %671 = vmatprep.subr.mxu0 0.0
        %672 = vmatpush1.msra.mxu0 0.0
        %673 = vmatprep.subr.mxu0 0.0
        %674 = vmatpush1.msra.mxu0 0.0
        %675 = vmatprep.subr.mxu0 0.0
        %676 = vmatpush1.msra.mxu0 0.0
        %677 = vmatprep.subr.mxu0 0.0
        %678 = vmatpush1.msra.mxu0 0.0
        %679 = vmatprep.subr.mxu0 0.0
        %680 = vmatpush1.msra.mxu0 0.0
        %681 = vmatprep.subr.mxu0 0.0
        %682 = vmatpush1.msra.mxu0 0.0
        %683 = vmatprep.subr.mxu0 0.0
        %684 = vmatpush1.msra.mxu0 0.0
        %685 = vmatprep.subr.mxu0 0.0
        %686 = vmatpush1.msra.mxu0 0.0
        %687 = vmatprep.subr.mxu0 0.0
        %688 = vmatpush1.msra.mxu0 0.0
        %689 = vmatprep.subr.mxu0 0.0
        %690 = vmatpush1.msra.mxu0 0.0
        %691 = vmatprep.subr.mxu0 0.0
        %692 = vmatpush1.msra.mxu0 0.0
        %693 = vmatprep.subr.mxu0 0.0
        %694 = vmatpush1.msra.mxu0 0.0
        %695 = vmatprep.subr.mxu0 0.0
        %696 = vmatpush1.msra.mxu0 0.0
        %697 = vmatprep.subr.mxu0 0.0
        %698 = vmatpush1.msra.mxu0 0.0
        %699 = vmatprep.subr.mxu0 0.0
        %700 = vmatpush1.msra.mxu0 0.0
        %701 = vmatprep.subr.mxu0 0.0
        %702 = vmatpush1.msra.mxu0 0.0
        %703 = vmatprep.subr.mxu0 0.0
        %704 = vmatpush1.msra.mxu0 0.0
        %705 = vmatprep.subr.mxu0 0.0
        %706 = vmatpush1.msra.mxu0 0.0
        %707 = vmatprep.subr.mxu0 0.0
        %708 = vmatpush1.msra.mxu0 0.0
        %709 = vmatprep.subr.mxu0 0.0
        %710 = vmatpush1.msra.mxu0 0.0
        %711 = vmatprep.subr.mxu0 0.0
        %712 = vmatpush1.msra.mxu0 0.0
        %713 = vmatprep.subr.mxu0 0.0
        %714 = vmatpush1.msra.mxu0 0.0
        %715 = vmatprep.subr.mxu0 0.0
        %716 = vmatpush1.msra.mxu0 0.0
        %717 = vmatprep.subr.mxu0 0.0
        %718 = vmatpush1.msra.mxu0 0.0
        %719 = vmatprep.subr.mxu0 0.0
        %720 = vmatpush1.msra.mxu0 0.0
        %721 = vmatprep.subr.mxu0 0.0
        %722 = vmatpush1.msra.mxu0 0.0
        %723 = vmatprep.subr.mxu0 0.0
        %724 = vmatpush1.msra.mxu0 0.0
        %725 = vmatprep.subr.mxu0 0.0
        %726 = vmatpush1.msra.mxu0 0.0
        %727 = vmatprep.subr.mxu0 0.0
        %728 = vmatpush1.msra.mxu0 0.0
        %729 = vmatprep.subr.mxu0 0.0
        %730 = vmatpush1.msra.mxu0 0.0
        %731 = vmatprep.subr.mxu0 0.0
        %732 = vmatpush1.msra.mxu0 0.0
        %733 = vmatprep.mubr.f32.mxu0 0.0
        %734 = vmatmul.mubr.f32.gmra.mrb[0].mxu0 %v667
        %v735 = vpop.f32.mrb[0].mxu0
        %v736 = vadd.f32 0.0, %v735
        %v737 = vpop.f32.mrb[0].mxu0
        %v738 = vadd.f32 0.0, %v737
        %739 = vdwg.mxu0
        %v740 = vadd.f32 %v657, %v736
        %v741 = vadd.f32 %v658, %v738
        %v742 = vld [vmem:[#allocation2 + $0x8] sm:$0xff]
        %v743 = vld [vmem:[#allocation2 + $0x10] sm:$0xff]
        %v744 = vld [vmem:[#allocation2 + $0x18] sm:$0xff]
        %s745 = scalar_lea.vmem %s3, 80
        %v746 = vld [vmem:[%s745] sm:$0xff]
        %v747 = vld [vmem:[%s745 + $0x8] sm:$0xff]
        %750 = vrot.lane.b32.xlu0 %v746, 1
        %v751 = vpop.permute.xlu0 %750
        %752 = vrot.lane.b32.xlu0 %v747, 1
        %v753 = vpop.permute.xlu0 %752
        %v754 = vsel %vm578, %v751, %v753
        %v758 = vmul.f32 %v742, %v751
        %v759 = vmul.f32 %v743, %v754
        %v760 = vmul.f32 %v744, %v753
        %s761 = scalar_lea.vmem %s1, 40
        %v762 = vld [vmem:[%s761] sm:$0xff]
        %766 = vrot.lane.b32.xlu0 %v758, 127
        %v767 = vpop.permute.xlu0 %766
        %768 = vrot.lane.b32.xlu0 %v759, 127
        %v769 = vpop.permute.xlu0 %768
        %770 = vrot.lane.b32.xlu0 %v760, 127
        %v771 = vpop.permute.xlu0 %770
        %v772 = vsel %vm559, %v767, %v769
        %v773 = vsel %vm559, %v769, %v771
        %v777 = vsel %vm278, %v762, 0
        %779 = vmatprep.subr.mxu0 %v773
        %780 = vmatpush1.msra.mxu0 %v772
        %781 = vmatprep.subr.mxu0 0.0
        %782 = vmatpush1.msra.mxu0 0.0
        %783 = vmatprep.subr.mxu0 0.0
        %784 = vmatpush1.msra.mxu0 0.0
        %785 = vmatprep.subr.mxu0 0.0
        %786 = vmatpush1.msra.mxu0 0.0
        %787 = vmatprep.subr.mxu0 0.0
        %788 = vmatpush1.msra.mxu0 0.0
        %789 = vmatprep.subr.mxu0 0.0
        %790 = vmatpush1.msra.mxu0 0.0
        %791 = vmatprep.subr.mxu0 0.0
        %792 = vmatpush1.msra.mxu0 0.0
        %793 = vmatprep.subr.mxu0 0.0
        %794 = vmatpush1.msra.mxu0 0.0
        %795 = vmatprep.subr.mxu0 0.0
        %796 = vmatpush1.msra.mxu0 0.0
        %797 = vmatprep.subr.mxu0 0.0
        %798 = vmatpush1.msra.mxu0 0.0
        %799 = vmatprep.subr.mxu0 0.0
        %800 = vmatpush1.msra.mxu0 0.0
        %801 = vmatprep.subr.mxu0 0.0
        %802 = vmatpush1.msra.mxu0 0.0
        %803 = vmatprep.subr.mxu0 0.0
        %804 = vmatpush1.msra.mxu0 0.0
        %805 = vmatprep.subr.mxu0 0.0
        %806 = vmatpush1.msra.mxu0 0.0
        %807 = vmatprep.subr.mxu0 0.0
        %808 = vmatpush1.msra.mxu0 0.0
        %809 = vmatprep.subr.mxu0 0.0
        %810 = vmatpush1.msra.mxu0 0.0
        %811 = vmatprep.subr.mxu0 0.0
        %812 = vmatpush1.msra.mxu0 0.0
        %813 = vmatprep.subr.mxu0 0.0
        %814 = vmatpush1.msra.mxu0 0.0
        %815 = vmatprep.subr.mxu0 0.0
        %816 = vmatpush1.msra.mxu0 0.0
        %817 = vmatprep.subr.mxu0 0.0
        %818 = vmatpush1.msra.mxu0 0.0
        %819 = vmatprep.subr.mxu0 0.0
        %820 = vmatpush1.msra.mxu0 0.0
        %821 = vmatprep.subr.mxu0 0.0
        %822 = vmatpush1.msra.mxu0 0.0
        %823 = vmatprep.subr.mxu0 0.0
        %824 = vmatpush1.msra.mxu0 0.0
        %825 = vmatprep.subr.mxu0 0.0
        %826 = vmatpush1.msra.mxu0 0.0
        %827 = vmatprep.subr.mxu0 0.0
        %828 = vmatpush1.msra.mxu0 0.0
        %829 = vmatprep.subr.mxu0 0.0
        %830 = vmatpush1.msra.mxu0 0.0
        %831 = vmatprep.subr.mxu0 0.0
        %832 = vmatpush1.msra.mxu0 0.0
        %833 = vmatprep.subr.mxu0 0.0
        %834 = vmatpush1.msra.mxu0 0.0
        %835 = vmatprep.subr.mxu0 0.0
        %836 = vmatpush1.msra.mxu0 0.0
        %837 = vmatprep.subr.mxu0 0.0
        %838 = vmatpush1.msra.mxu0 0.0
        %839 = vmatprep.subr.mxu0 0.0
        %840 = vmatpush1.msra.mxu0 0.0
        %841 = vmatprep.subr.mxu0 0.0
        %842 = vmatpush1.msra.mxu0 0.0
        %843 = vmatprep.mubr.f32.mxu0 0.0
        %844 = vmatmul.mubr.f32.gmra.mrb[0].mxu0 %v777
        %v845 = vpop.f32.mrb[0].mxu0
        %v846 = vadd.f32 0.0, %v845
        %v847 = vpop.f32.mrb[0].mxu0
        %v848 = vadd.f32 0.0, %v847
        %849 = vdwg.mxu0
        %v850 = vadd.f32 %v740, %v846
        %v851 = vadd.f32 %v741, %v848
        %s852 = scalar_lea.vmem %s3, 96
        %v853 = vld [vmem:[%s852] sm:$0xff]
        %v854 = vld [vmem:[%s852 + $0x8] sm:$0xff]
        %857 = vrot.lane.b32.xlu0 %v853, 15
        %v858 = vpop.permute.xlu0 %857
        %859 = vrot.lane.b32.xlu0 %v854, 15
        %v860 = vpop.permute.xlu0 %859
        %v861 = vsel %vm469, %v858, %v860
        %v865 = vmul.f32 %v742, %v858
        %v866 = vmul.f32 %v743, %v861
        %v867 = vmul.f32 %v744, %v860
        %s868 = scalar_lea.vmem %s1, 48
        %v869 = vld [vmem:[%s868] sm:$0xff]
        %873 = vrot.lane.b32.xlu0 %v865, 113
        %v874 = vpop.permute.xlu0 %873
        %875 = vrot.lane.b32.xlu0 %v866, 113
        %v876 = vpop.permute.xlu0 %875
        %877 = vrot.lane.b32.xlu0 %v867, 113
        %v878 = vpop.permute.xlu0 %877
        %v879 = vsel %vm450, %v874, %v876
        %v880 = vsel %vm450, %v876, %v878
        %v884 = vsel %vm278, %v869, 0
        %886 = vmatprep.subr.mxu0 %v880
        %887 = vmatpush1.msra.mxu0 %v879
        %888 = vmatprep.subr.mxu0 0.0
        %889 = vmatpush1.msra.mxu0 0.0
        %890 = vmatprep.subr.mxu0 0.0
        %891 = vmatpush1.msra.mxu0 0.0
        %892 = vmatprep.subr.mxu0 0.0
        %893 = vmatpush1.msra.mxu0 0.0
        %894 = vmatprep.subr.mxu0 0.0
        %895 = vmatpush1.msra.mxu0 0.0
        %896 = vmatprep.subr.mxu0 0.0
        %897 = vmatpush1.msra.mxu0 0.0
        %898 = vmatprep.subr.mxu0 0.0
        %899 = vmatpush1.msra.mxu0 0.0
        %900 = vmatprep.subr.mxu0 0.0
        %901 = vmatpush1.msra.mxu0 0.0
        %902 = vmatprep.subr.mxu0 0.0
        %903 = vmatpush1.msra.mxu0 0.0
        %904 = vmatprep.subr.mxu0 0.0
        %905 = vmatpush1.msra.mxu0 0.0
        %906 = vmatprep.subr.mxu0 0.0
        %907 = vmatpush1.msra.mxu0 0.0
        %908 = vmatprep.subr.mxu0 0.0
        %909 = vmatpush1.msra.mxu0 0.0
        %910 = vmatprep.subr.mxu0 0.0
        %911 = vmatpush1.msra.mxu0 0.0
        %912 = vmatprep.subr.mxu0 0.0
        %913 = vmatpush1.msra.mxu0 0.0
        %914 = vmatprep.subr.mxu0 0.0
        %915 = vmatpush1.msra.mxu0 0.0
        %916 = vmatprep.subr.mxu0 0.0
        %917 = vmatpush1.msra.mxu0 0.0
        %918 = vmatprep.subr.mxu0 0.0
        %919 = vmatpush1.msra.mxu0 0.0
        %920 = vmatprep.subr.mxu0 0.0
        %921 = vmatpush1.msra.mxu0 0.0
        %922 = vmatprep.subr.mxu0 0.0
        %923 = vmatpush1.msra.mxu0 0.0
        %924 = vmatprep.subr.mxu0 0.0
        %925 = vmatpush1.msra.mxu0 0.0
        %926 = vmatprep.subr.mxu0 0.0
        %927 = vmatpush1.msra.mxu0 0.0
        %928 = vmatprep.subr.mxu0 0.0
        %929 = vmatpush1.msra.mxu0 0.0
        %930 = vmatprep.subr.mxu0 0.0
        %931 = vmatpush1.msra.mxu0 0.0
        %932 = vmatprep.subr.mxu0 0.0
        %933 = vmatpush1.msra.mxu0 0.0
        %934 = vmatprep.subr.mxu0 0.0
        %935 = vmatpush1.msra.mxu0 0.0
        %936 = vmatprep.subr.mxu0 0.0
        %937 = vmatpush1.msra.mxu0 0.0
        %938 = vmatprep.subr.mxu0 0.0
        %939 = vmatpush1.msra.mxu0 0.0
        %940 = vmatprep.subr.mxu0 0.0
        %941 = vmatpush1.msra.mxu0 0.0
        %942 = vmatprep.subr.mxu0 0.0
        %943 = vmatpush1.msra.mxu0 0.0
        %944 = vmatprep.subr.mxu0 0.0
        %945 = vmatpush1.msra.mxu0 0.0
        %946 = vmatprep.subr.mxu0 0.0
        %947 = vmatpush1.msra.mxu0 0.0
        %948 = vmatprep.subr.mxu0 0.0
        %949 = vmatpush1.msra.mxu0 0.0
        %950 = vmatprep.mubr.f32.mxu0 0.0
        %951 = vmatmul.mubr.f32.gmra.mrb[0].mxu0 %v884
        %v952 = vpop.f32.mrb[0].mxu0
        %v953 = vadd.f32 0.0, %v952
        %v954 = vpop.f32.mrb[0].mxu0
        %v955 = vadd.f32 0.0, %v954
        %956 = vdwg.mxu0
        %v957 = vadd.f32 %v850, %v953
        %v958 = vadd.f32 %v851, %v955
        %s959 = scalar_lea.vmem %s3, 112
        %v960 = vld [vmem:[%s959] sm:$0xff]
        %v961 = vld [vmem:[%s959 + $0x8] sm:$0xff]
        %964 = vrot.lane.b32.xlu0 %v960, 16
        %v965 = vpop.permute.xlu0 %964
        %966 = vrot.lane.b32.xlu0 %v961, 16
        %v967 = vpop.permute.xlu0 %966
        %v968 = vsel %vm273, %v965, %v967
        %v972 = vmul.f32 %v742, %v965
        %v973 = vmul.f32 %v743, %v968
        %v974 = vmul.f32 %v744, %v967
        %s975 = scalar_lea.vmem %s1, 56
        %v976 = vld [vmem:[%s975] sm:$0xff]
        %980 = vrot.lane.b32.xlu0 %v972, 112
        %v981 = vpop.permute.xlu0 %980
        %982 = vrot.lane.b32.xlu0 %v973, 112
        %v983 = vpop.permute.xlu0 %982
        %984 = vrot.lane.b32.xlu0 %v974, 112
        %v985 = vpop.permute.xlu0 %984
        %v986 = vsel %vm254, %v981, %v983
        %v987 = vsel %vm254, %v983, %v985
        %v991 = vsel %vm278, %v976, 0
        %993 = vmatprep.subr.mxu0 %v987
        %994 = vmatpush1.msra.mxu0 %v986
        %995 = vmatprep.subr.mxu0 0.0
        %996 = vmatpush1.msra.mxu0 0.0
        %997 = vmatprep.subr.mxu0 0.0
        %998 = vmatpush1.msra.mxu0 0.0
        %999 = vmatprep.subr.mxu0 0.0
        %1000 = vmatpush1.msra.mxu0 0.0
        %1001 = vmatprep.subr.mxu0 0.0
        %1002 = vmatpush1.msra.mxu0 0.0
        %1003 = vmatprep.subr.mxu0 0.0
        %1004 = vmatpush1.msra.mxu0 0.0
        %1005 = vmatprep.subr.mxu0 0.0
        %1006 = vmatpush1.msra.mxu0 0.0
        %1007 = vmatprep.subr.mxu0 0.0
        %1008 = vmatpush1.msra.mxu0 0.0
        %1009 = vmatprep.subr.mxu0 0.0
        %1010 = vmatpush1.msra.mxu0 0.0
        %1011 = vmatprep.subr.mxu0 0.0
        %1012 = vmatpush1.msra.mxu0 0.0
        %1013 = vmatprep.subr.mxu0 0.0
        %1014 = vmatpush1.msra.mxu0 0.0
        %1015 = vmatprep.subr.mxu0 0.0
        %1016 = vmatpush1.msra.mxu0 0.0
        %1017 = vmatprep.subr.mxu0 0.0
        %1018 = vmatpush1.msra.mxu0 0.0
        %1019 = vmatprep.subr.mxu0 0.0
        %1020 = vmatpush1.msra.mxu0 0.0
        %1021 = vmatprep.subr.mxu0 0.0
        %1022 = vmatpush1.msra.mxu0 0.0
        %1023 = vmatprep.subr.mxu0 0.0
        %1024 = vmatpush1.msra.mxu0 0.0
        %1025 = vmatprep.subr.mxu0 0.0
        %1026 = vmatpush1.msra.mxu0 0.0
        %1027 = vmatprep.subr.mxu0 0.0
        %1028 = vmatpush1.msra.mxu0 0.0
        %1029 = vmatprep.subr.mxu0 0.0
        %1030 = vmatpush1.msra.mxu0 0.0
        %1031 = vmatprep.subr.mxu0 0.0
        %1032 = vmatpush1.msra.mxu0 0.0
        %1033 = vmatprep.subr.mxu0 0.0
        %1034 = vmatpush1.msra.mxu0 0.0
        %1035 = vmatprep.subr.mxu0 0.0
        %1036 = vmatpush1.msra.mxu0 0.0
        %1037 = vmatprep.subr.mxu0 0.0
        %1038 = vmatpush1.msra.mxu0 0.0
        %1039 = vmatprep.subr.mxu0 0.0
        %1040 = vmatpush1.msra.mxu0 0.0
        %1041 = vmatprep.subr.mxu0 0.0
        %1042 = vmatpush1.msra.mxu0 0.0
        %1043 = vmatprep.subr.mxu0 0.0
        %1044 = vmatpush1.msra.mxu0 0.0
        %1045 = vmatprep.subr.mxu0 0.0
        %1046 = vmatpush1.msra.mxu0 0.0
        %1047 = vmatprep.subr.mxu0 0.0
        %1048 = vmatpush1.msra.mxu0 0.0
        %1049 = vmatprep.subr.mxu0 0.0
        %1050 = vmatpush1.msra.mxu0 0.0
        %1051 = vmatprep.subr.mxu0 0.0
        %1052 = vmatpush1.msra.mxu0 0.0
        %1053 = vmatprep.subr.mxu0 0.0
        %1054 = vmatpush1.msra.mxu0 0.0
        %1055 = vmatprep.subr.mxu0 0.0
        %1056 = vmatpush1.msra.mxu0 0.0
        %1057 = vmatprep.mubr.f32.mxu0 0.0
        %1058 = vmatmul.mubr.f32.gmra.mrb[0].mxu0 %v991
        %v1059 = vpop.f32.mrb[0].mxu0
        %v1060 = vadd.f32 0.0, %v1059
        %v1061 = vpop.f32.mrb[0].mxu0
        %v1062 = vadd.f32 0.0, %v1061
        %1063 = vdwg.mxu0
        %v1064 = vadd.f32 %v957, %v1060
        %v1065 = vadd.f32 %v958, %v1062
        %s1066 = scalar_lea.vmem %s3, 128
        %v1067 = vld [vmem:[%s1066] sm:$0xff]
        %v1068 = vld [vmem:[%s1066 + $0x8] sm:$0xff]
        %1071 = vrot.lane.b32.xlu0 %v1067, 17
        %v1072 = vpop.permute.xlu0 %1071
        %1073 = vrot.lane.b32.xlu0 %v1068, 17
        %v1074 = vpop.permute.xlu0 %1073
        %v1075 = vsel %vm362, %v1072, %v1074
        %v1079 = vmul.f32 %v742, %v1072
        %v1080 = vmul.f32 %v743, %v1075
        %v1081 = vmul.f32 %v744, %v1074
        %s1082 = scalar_lea.vmem %s1, 64
        %v1083 = vld [vmem:[%s1082] sm:$0xff]
        %1087 = vrot.lane.b32.xlu0 %v1079, 111
        %v1088 = vpop.permute.xlu0 %1087
        %1089 = vrot.lane.b32.xlu0 %v1080, 111
        %v1090 = vpop.permute.xlu0 %1089
        %1091 = vrot.lane.b32.xlu0 %v1081, 111
        %v1092 = vpop.permute.xlu0 %1091
        %v1093 = vsel %vm236, %v1088, %v1090
        %v1094 = vsel %vm236, %v1090, %v1092
        %v1098 = vsel %vm278, %v1083, 0
        %1100 = vmatprep.subr.mxu0 %v1094
        %1101 = vmatpush1.msra.mxu0 %v1093
        %1102 = vmatprep.subr.mxu0 0.0
        %1103 = vmatpush1.msra.mxu0 0.0
        %1104 = vmatprep.subr.mxu0 0.0
        %1105 = vmatpush1.msra.mxu0 0.0
        %1106 = vmatprep.subr.mxu0 0.0
        %1107 = vmatpush1.msra.mxu0 0.0
        %1108 = vmatprep.subr.mxu0 0.0
        %1109 = vmatpush1.msra.mxu0 0.0
        %1110 = vmatprep.subr.mxu0 0.0
        %1111 = vmatpush1.msra.mxu0 0.0
        %1112 = vmatprep.subr.mxu0 0.0
        %1113 = vmatpush1.msra.mxu0 0.0
        %1114 = vmatprep.subr.mxu0 0.0
        %1115 = vmatpush1.msra.mxu0 0.0
        %1116 = vmatprep.subr.mxu0 0.0
        %1117 = vmatpush1.msra.mxu0 0.0
        %1118 = vmatprep.subr.mxu0 0.0
        %1119 = vmatpush1.msra.mxu0 0.0
        %1120 = vmatprep.subr.mxu0 0.0
        %1121 = vmatpush1.msra.mxu0 0.0
        %1122 = vmatprep.subr.mxu0 0.0
        %1123 = vmatpush1.msra.mxu0 0.0
        %1124 = vmatprep.subr.mxu0 0.0
        %1125 = vmatpush1.msra.mxu0 0.0
        %1126 = vmatprep.subr.mxu0 0.0
        %1127 = vmatpush1.msra.mxu0 0.0
        %1128 = vmatprep.subr.mxu0 0.0
        %1129 = vmatpush1.msra.mxu0 0.0
        %1130 = vmatprep.subr.mxu0 0.0
        %1131 = vmatpush1.msra.mxu0 0.0
        %1132 = vmatprep.subr.mxu0 0.0
        %1133 = vmatpush1.msra.mxu0 0.0
        %1134 = vmatprep.subr.mxu0 0.0
        %1135 = vmatpush1.msra.mxu0 0.0
        %1136 = vmatprep.subr.mxu0 0.0
        %1137 = vmatpush1.msra.mxu0 0.0
        %1138 = vmatprep.subr.mxu0 0.0
        %1139 = vmatpush1.msra.mxu0 0.0
        %1140 = vmatprep.subr.mxu0 0.0
        %1141 = vmatpush1.msra.mxu0 0.0
        %1142 = vmatprep.subr.mxu0 0.0
        %1143 = vmatpush1.msra.mxu0 0.0
        %1144 = vmatprep.subr.mxu0 0.0
        %1145 = vmatpush1.msra.mxu0 0.0
        %1146 = vmatprep.subr.mxu0 0.0
        %1147 = vmatpush1.msra.mxu0 0.0
        %1148 = vmatprep.subr.mxu0 0.0
        %1149 = vmatpush1.msra.mxu0 0.0
        %1150 = vmatprep.subr.mxu0 0.0
        %1151 = vmatpush1.msra.mxu0 0.0
        %1152 = vmatprep.subr.mxu0 0.0
        %1153 = vmatpush1.msra.mxu0 0.0
        %1154 = vmatprep.subr.mxu0 0.0
        %1155 = vmatpush1.msra.mxu0 0.0
        %1156 = vmatprep.subr.mxu0 0.0
        %1157 = vmatpush1.msra.mxu0 0.0
        %1158 = vmatprep.subr.mxu0 0.0
        %1159 = vmatpush1.msra.mxu0 0.0
        %1160 = vmatprep.subr.mxu0 0.0
        %1161 = vmatpush1.msra.mxu0 0.0
        %1162 = vmatprep.subr.mxu0 0.0
        %1163 = vmatpush1.msra.mxu0 0.0
        %1164 = vmatprep.mubr.f32.mxu0 0.0
        %1165 = vmatmul.mubr.f32.gmra.mrb[0].mxu0 %v1098
        %v1166 = vpop.f32.mrb[0].mxu0
        %v1167 = vadd.f32 0.0, %v1166
        %v1168 = vpop.f32.mrb[0].mxu0
        %v1169 = vadd.f32 0.0, %v1168
        %1170 = vdwg.mxu0
        %v1171 = vadd.f32 %v1064, %v1167
        %v1172 = vadd.f32 %v1065, %v1169
        %v1173 = vmax.f32 %v1171, 0.0
        %v1174 = vmax.f32 %v1172, 0.0
        %v1175 = vsel %vm205, 1.0, %v1173
        %v1176 = vsel %vm205, 1.0, %v1174
        %1177 = vst [vmem:[#allocation2 + $0x8] sm:$0xff] %v1175
        %1178 = vst [vmem:[#allocation2 + $0x10] sm:$0xff] %v1176
        %v1179 = vld [vmem:[#allocation2] sm:$0xff]
        %v1180 = vld [vmem:[#allocation2 + $0x8] sm:$0xff]
        %v1181 = vld [vmem:[#allocation2 + $0x10] sm:$0xff]
        %v1182 = vld [vmem:[%s3] sm:$0xff]
        %v1183 = vld [vmem:[%s3 + $0x8] sm:$0xff]
        %1186 = vrot.lane.b32.xlu0 %v1182, 111
        %v1187 = vpop.permute.xlu0 %1186
        %1188 = vrot.lane.b32.xlu0 %v1183, 111
        %v1189 = vpop.permute.xlu0 %1188
        %v1190 = vsel %vm236, %v1187, %v1189
        %v1194 = vmul.f32 %v1179, %v1187
        %v1195 = vmul.f32 %v1180, %v1190
        %v1196 = vmul.f32 %v1181, %v1189
        %v1197 = vld [vmem:[%s2] sm:$0xff]
        %v1198 = vld [vmem:[%s245] sm:$0xff]
        %v1199 = vld [vmem:[%s245 + $0x8] sm:$0xff]
        %1202 = vrot.lane.b32.xlu0 %v1198, 112
        %v1203 = vpop.permute.xlu0 %1202
        %1204 = vrot.lane.b32.xlu0 %v1199, 112
        %v1205 = vpop.permute.xlu0 %1204
        %v1206 = vsel %vm254, %v1203, %v1205
        %v1210 = vmul.f32 %v1179, %v1203
        %v1211 = vmul.f32 %v1180, %v1206
        %v1212 = vmul.f32 %v1181, %v1205
        %s1213 = scalar_lea.vmem %s2, 8
        %v1214 = vld [vmem:[%s1213] sm:$0xff]
        %1218 = vrot.lane.b32.xlu0 %v1210, 16
        %v1219 = vpop.permute.xlu0 %1218
        %1220 = vrot.lane.b32.xlu0 %v1211, 16
        %v1221 = vpop.permute.xlu0 %1220
        %1222 = vrot.lane.b32.xlu0 %v1212, 16
        %v1223 = vpop.permute.xlu0 %1222
        %v1224 = vsel %vm273, %v1219, %v1221
        %v1225 = vsel %vm273, %v1221, %v1223
        %v1229 = vsel %vm278, %v1214, 0
        %1231 = vmatprep.subr.mxu0 %v1225
        %1232 = vmatpush1.msra.mxu0 %v1224
        %1233 = vmatprep.subr.mxu0 0.0
        %1234 = vmatpush1.msra.mxu0 0.0
        %1235 = vmatprep.subr.mxu0 0.0
        %1236 = vmatpush1.msra.mxu0 0.0
        %1237 = vmatprep.subr.mxu0 0.0
        %1238 = vmatpush1.msra.mxu0 0.0
        %1239 = vmatprep.subr.mxu0 0.0
        %1240 = vmatpush1.msra.mxu0 0.0
        %1241 = vmatprep.subr.mxu0 0.0
        %1242 = vmatpush1.msra.mxu0 0.0
        %1243 = vmatprep.subr.mxu0 0.0
        %1244 = vmatpush1.msra.mxu0 0.0
        %1245 = vmatprep.subr.mxu0 0.0
        %1246 = vmatpush1.msra.mxu0 0.0
        %1247 = vmatprep.subr.mxu0 0.0
        %1248 = vmatpush1.msra.mxu0 0.0
        %1249 = vmatprep.subr.mxu0 0.0
        %1250 = vmatpush1.msra.mxu0 0.0
        %1251 = vmatprep.subr.mxu0 0.0
        %1252 = vmatpush1.msra.mxu0 0.0
        %1253 = vmatprep.subr.mxu0 0.0
        %1254 = vmatpush1.msra.mxu0 0.0
        %1255 = vmatprep.subr.mxu0 0.0
        %1256 = vmatpush1.msra.mxu0 0.0
        %1257 = vmatprep.subr.mxu0 0.0
        %1258 = vmatpush1.msra.mxu0 0.0
        %1259 = vmatprep.subr.mxu0 0.0
        %1260 = vmatpush1.msra.mxu0 0.0
        %1261 = vmatprep.subr.mxu0 0.0
        %1262 = vmatpush1.msra.mxu0 0.0
        %1263 = vmatprep.subr.mxu0 0.0
        %1264 = vmatpush1.msra.mxu0 0.0
        %1265 = vmatprep.subr.mxu0 0.0
        %1266 = vmatpush1.msra.mxu0 0.0
        %1267 = vmatprep.subr.mxu0 0.0
        %1268 = vmatpush1.msra.mxu0 0.0
        %1269 = vmatprep.subr.mxu0 0.0
        %1270 = vmatpush1.msra.mxu0 0.0
        %1271 = vmatprep.subr.mxu0 0.0
        %1272 = vmatpush1.msra.mxu0 0.0
        %1273 = vmatprep.subr.mxu0 0.0
        %1274 = vmatpush1.msra.mxu0 0.0
        %1275 = vmatprep.subr.mxu0 0.0
        %1276 = vmatpush1.msra.mxu0 0.0
        %1277 = vmatprep.subr.mxu0 0.0
        %1278 = vmatpush1.msra.mxu0 0.0
        %1279 = vmatprep.subr.mxu0 0.0
        %1280 = vmatpush1.msra.mxu0 0.0
        %1281 = vmatprep.subr.mxu0 0.0
        %1282 = vmatpush1.msra.mxu0 0.0
        %1283 = vmatprep.subr.mxu0 0.0
        %1284 = vmatpush1.msra.mxu0 0.0
        %1285 = vmatprep.subr.mxu0 0.0
        %1286 = vmatpush1.msra.mxu0 0.0
        %1287 = vmatprep.subr.mxu0 0.0
        %1288 = vmatpush1.msra.mxu0 0.0
        %1289 = vmatprep.subr.mxu0 0.0
        %1290 = vmatpush1.msra.mxu0 0.0
        %1291 = vmatprep.subr.mxu0 0.0
        %1292 = vmatpush1.msra.mxu0 0.0
        %1293 = vmatprep.subr.mxu0 0.0
        %1294 = vmatpush1.msra.mxu0 0.0
        %1295 = vmatprep.mubr.f32.mxu0 0.0
        %1296 = vmatmul.mubr.f32.gmra.mrb[0].mxu0 %v1229
        %v1297 = vpop.f32.mrb[0].mxu0
        %v1298 = vadd.f32 0.0, %v1297
        %v1299 = vpop.f32.mrb[0].mxu0
        %v1300 = vadd.f32 0.0, %v1299
        %1301 = vdwg.mxu0
        %1305 = vrot.lane.b32.xlu0 %v1194, 17
        %v1306 = vpop.permute.xlu0 %1305
        %1307 = vrot.lane.b32.xlu0 %v1195, 17
        %v1308 = vpop.permute.xlu0 %1307
        %1309 = vrot.lane.b32.xlu0 %v1196, 17
        %v1310 = vpop.permute.xlu0 %1309
        %v1311 = vsel %vm362, %v1306, %v1308
        %v1312 = vsel %vm362, %v1308, %v1310
        %v1316 = vsel %vm278, %v1197, 0
        %1318 = vmatprep.subr.mxu0 %v1312
        %1319 = vmatpush1.msra.mxu0 %v1311
        %1320 = vmatprep.subr.mxu0 0.0
        %1321 = vmatpush1.msra.mxu0 0.0
        %1322 = vmatprep.subr.mxu0 0.0
        %1323 = vmatpush1.msra.mxu0 0.0
        %1324 = vmatprep.subr.mxu0 0.0
        %1325 = vmatpush1.msra.mxu0 0.0
        %1326 = vmatprep.subr.mxu0 0.0
        %1327 = vmatpush1.msra.mxu0 0.0
        %1328 = vmatprep.subr.mxu0 0.0
        %1329 = vmatpush1.msra.mxu0 0.0
        %1330 = vmatprep.subr.mxu0 0.0
        %1331 = vmatpush1.msra.mxu0 0.0
        %1332 = vmatprep.subr.mxu0 0.0
        %1333 = vmatpush1.msra.mxu0 0.0
        %1334 = vmatprep.subr.mxu0 0.0
        %1335 = vmatpush1.msra.mxu0 0.0
        %1336 = vmatprep.subr.mxu0 0.0
        %1337 = vmatpush1.msra.mxu0 0.0
        %1338 = vmatprep.subr.mxu0 0.0
        %1339 = vmatpush1.msra.mxu0 0.0
        %1340 = vmatprep.subr.mxu0 0.0
        %1341 = vmatpush1.msra.mxu0 0.0
        %1342 = vmatprep.subr.mxu0 0.0
        %1343 = vmatpush1.msra.mxu0 0.0
        %1344 = vmatprep.subr.mxu0 0.0
        %1345 = vmatpush1.msra.mxu0 0.0
        %1346 = vmatprep.subr.mxu0 0.0
        %1347 = vmatpush1.msra.mxu0 0.0
        %1348 = vmatprep.subr.mxu0 0.0
        %1349 = vmatpush1.msra.mxu0 0.0
        %1350 = vmatprep.subr.mxu0 0.0
        %1351 = vmatpush1.msra.mxu0 0.0
        %1352 = vmatprep.subr.mxu0 0.0
        %1353 = vmatpush1.msra.mxu0 0.0
        %1354 = vmatprep.subr.mxu0 0.0
        %1355 = vmatpush1.msra.mxu0 0.0
        %1356 = vmatprep.subr.mxu0 0.0
        %1357 = vmatpush1.msra.mxu0 0.0
        %1358 = vmatprep.subr.mxu0 0.0
        %1359 = vmatpush1.msra.mxu0 0.0
        %1360 = vmatprep.subr.mxu0 0.0
        %1361 = vmatpush1.msra.mxu0 0.0
        %1362 = vmatprep.subr.mxu0 0.0
        %1363 = vmatpush1.msra.mxu0 0.0
        %1364 = vmatprep.subr.mxu0 0.0
        %1365 = vmatpush1.msra.mxu0 0.0
        %1366 = vmatprep.subr.mxu0 0.0
        %1367 = vmatpush1.msra.mxu0 0.0
        %1368 = vmatprep.subr.mxu0 0.0
        %1369 = vmatpush1.msra.mxu0 0.0
        %1370 = vmatprep.subr.mxu0 0.0
        %1371 = vmatpush1.msra.mxu0 0.0
        %1372 = vmatprep.subr.mxu0 0.0
        %1373 = vmatpush1.msra.mxu0 0.0
        %1374 = vmatprep.subr.mxu0 0.0
        %1375 = vmatpush1.msra.mxu0 0.0
        %1376 = vmatprep.subr.mxu0 0.0
        %1377 = vmatpush1.msra.mxu0 0.0
        %1378 = vmatprep.subr.mxu0 0.0
        %1379 = vmatpush1.msra.mxu0 0.0
        %1380 = vmatprep.subr.mxu0 0.0
        %1381 = vmatpush1.msra.mxu0 0.0
        %1382 = vmatprep.mubr.f32.mxu0 0.0
        %1383 = vmatmul.mubr.f32.gmra.mrb[0].mxu0 %v1316
        %v1384 = vpop.f32.mrb[0].mxu0
        %v1385 = vadd.f32 %v1298, %v1384
        %v1386 = vpop.f32.mrb[0].mxu0
        %v1387 = vadd.f32 %v1300, %v1386
        %1388 = vdwg.mxu0
        %v1389 = vld [vmem:[%s441] sm:$0xff]
        %v1390 = vld [vmem:[%s441 + $0x8] sm:$0xff]
        %1393 = vrot.lane.b32.xlu0 %v1389, 113
        %v1394 = vpop.permute.xlu0 %1393
        %1395 = vrot.lane.b32.xlu0 %v1390, 113
        %v1396 = vpop.permute.xlu0 %1395
        %v1397 = vsel %vm450, %v1394, %v1396
        %v1401 = vmul.f32 %v1179, %v1394
        %v1402 = vmul.f32 %v1180, %v1397
        %v1403 = vmul.f32 %v1181, %v1396
        %s1404 = scalar_lea.vmem %s2, 16
        %v1405 = vld [vmem:[%s1404] sm:$0xff]
        %1409 = vrot.lane.b32.xlu0 %v1401, 15
        %v1410 = vpop.permute.xlu0 %1409
        %1411 = vrot.lane.b32.xlu0 %v1402, 15
        %v1412 = vpop.permute.xlu0 %1411
        %1413 = vrot.lane.b32.xlu0 %v1403, 15
        %v1414 = vpop.permute.xlu0 %1413
        %v1415 = vsel %vm469, %v1410, %v1412
        %v1416 = vsel %vm469, %v1412, %v1414
        %v1420 = vsel %vm278, %v1405, 0
        %1422 = vmatprep.subr.mxu0 %v1416
        %1423 = vmatpush1.msra.mxu0 %v1415
        %1424 = vmatprep.subr.mxu0 0.0
        %1425 = vmatpush1.msra.mxu0 0.0
        %1426 = vmatprep.subr.mxu0 0.0
        %1427 = vmatpush1.msra.mxu0 0.0
        %1428 = vmatprep.subr.mxu0 0.0
        %1429 = vmatpush1.msra.mxu0 0.0
        %1430 = vmatprep.subr.mxu0 0.0
        %1431 = vmatpush1.msra.mxu0 0.0
        %1432 = vmatprep.subr.mxu0 0.0
        %1433 = vmatpush1.msra.mxu0 0.0
        %1434 = vmatprep.subr.mxu0 0.0
        %1435 = vmatpush1.msra.mxu0 0.0
        %1436 = vmatprep.subr.mxu0 0.0
        %1437 = vmatpush1.msra.mxu0 0.0
        %1438 = vmatprep.subr.mxu0 0.0
        %1439 = vmatpush1.msra.mxu0 0.0
        %1440 = vmatprep.subr.mxu0 0.0
        %1441 = vmatpush1.msra.mxu0 0.0
        %1442 = vmatprep.subr.mxu0 0.0
        %1443 = vmatpush1.msra.mxu0 0.0
        %1444 = vmatprep.subr.mxu0 0.0
        %1445 = vmatpush1.msra.mxu0 0.0
        %1446 = vmatprep.subr.mxu0 0.0
        %1447 = vmatpush1.msra.mxu0 0.0
        %1448 = vmatprep.subr.mxu0 0.0
        %1449 = vmatpush1.msra.mxu0 0.0
        %1450 = vmatprep.subr.mxu0 0.0
        %1451 = vmatpush1.msra.mxu0 0.0
        %1452 = vmatprep.subr.mxu0 0.0
        %1453 = vmatpush1.msra.mxu0 0.0
        %1454 = vmatprep.subr.mxu0 0.0
        %1455 = vmatpush1.msra.mxu0 0.0
        %1456 = vmatprep.subr.mxu0 0.0
        %1457 = vmatpush1.msra.mxu0 0.0
        %1458 = vmatprep.subr.mxu0 0.0
        %1459 = vmatpush1.msra.mxu0 0.0
        %1460 = vmatprep.subr.mxu0 0.0
        %1461 = vmatpush1.msra.mxu0 0.0
        %1462 = vmatprep.subr.mxu0 0.0
        %1463 = vmatpush1.msra.mxu0 0.0
        %1464 = vmatprep.subr.mxu0 0.0
        %1465 = vmatpush1.msra.mxu0 0.0
        %1466 = vmatprep.subr.mxu0 0.0
        %1467 = vmatpush1.msra.mxu0 0.0
        %1468 = vmatprep.subr.mxu0 0.0
        %1469 = vmatpush1.msra.mxu0 0.0
        %1470 = vmatprep.subr.mxu0 0.0
        %1471 = vmatpush1.msra.mxu0 0.0
        %1472 = vmatprep.subr.mxu0 0.0
        %1473 = vmatpush1.msra.mxu0 0.0
        %1474 = vmatprep.subr.mxu0 0.0
        %1475 = vmatpush1.msra.mxu0 0.0
        %1476 = vmatprep.subr.mxu0 0.0
        %1477 = vmatpush1.msra.mxu0 0.0
        %1478 = vmatprep.subr.mxu0 0.0
        %1479 = vmatpush1.msra.mxu0 0.0
        %1480 = vmatprep.subr.mxu0 0.0
        %1481 = vmatpush1.msra.mxu0 0.0
        %1482 = vmatprep.subr.mxu0 0.0
        %1483 = vmatpush1.msra.mxu0 0.0
        %1484 = vmatprep.subr.mxu0 0.0
        %1485 = vmatpush1.msra.mxu0 0.0
        %1486 = vmatprep.mubr.f32.mxu0 0.0
        %1487 = vmatmul.mubr.f32.gmra.mrb[0].mxu0 %v1420
        %v1488 = vpop.f32.mrb[0].mxu0
        %v1489 = vadd.f32 0.0, %v1488
        %v1490 = vpop.f32.mrb[0].mxu0
        %v1491 = vadd.f32 0.0, %v1490
        %1492 = vdwg.mxu0
        %v1493 = vadd.f32 %v1385, %v1489
        %v1494 = vadd.f32 %v1387, %v1491
        %v1495 = vld [vmem:[%s550] sm:$0xff]
        %v1496 = vld [vmem:[%s550 + $0x8] sm:$0xff]
        %1499 = vrot.lane.b32.xlu0 %v1495, 127
        %v1500 = vpop.permute.xlu0 %1499
        %1501 = vrot.lane.b32.xlu0 %v1496, 127
        %v1502 = vpop.permute.xlu0 %1501
        %v1503 = vsel %vm559, %v1500, %v1502
        %v1507 = vmul.f32 %v1179, %v1500
        %v1508 = vmul.f32 %v1180, %v1503
        %v1509 = vmul.f32 %v1181, %v1502
        %s1510 = scalar_lea.vmem %s2, 24
        %v1511 = vld [vmem:[%s1510] sm:$0xff]
        %1515 = vrot.lane.b32.xlu0 %v1507, 1
        %v1516 = vpop.permute.xlu0 %1515
        %1517 = vrot.lane.b32.xlu0 %v1508, 1
        %v1518 = vpop.permute.xlu0 %1517
        %1519 = vrot.lane.b32.xlu0 %v1509, 1
        %v1520 = vpop.permute.xlu0 %1519
        %v1521 = vsel %vm578, %v1516, %v1518
        %v1522 = vsel %vm578, %v1518, %v1520
        %v1526 = vsel %vm278, %v1511, 0
        %1528 = vmatprep.subr.mxu0 %v1522
        %1529 = vmatpush1.msra.mxu0 %v1521
        %1530 = vmatprep.subr.mxu0 0.0
        %1531 = vmatpush1.msra.mxu0 0.0
        %1532 = vmatprep.subr.mxu0 0.0
        %1533 = vmatpush1.msra.mxu0 0.0
        %1534 = vmatprep.subr.mxu0 0.0
        %1535 = vmatpush1.msra.mxu0 0.0
        %1536 = vmatprep.subr.mxu0 0.0
        %1537 = vmatpush1.msra.mxu0 0.0
        %1538 = vmatprep.subr.mxu0 0.0
        %1539 = vmatpush1.msra.mxu0 0.0
        %1540 = vmatprep.subr.mxu0 0.0
        %1541 = vmatpush1.msra.mxu0 0.0
        %1542 = vmatprep.subr.mxu0 0.0
        %1543 = vmatpush1.msra.mxu0 0.0
        %1544 = vmatprep.subr.mxu0 0.0
        %1545 = vmatpush1.msra.mxu0 0.0
        %1546 = vmatprep.subr.mxu0 0.0
        %1547 = vmatpush1.msra.mxu0 0.0
        %1548 = vmatprep.subr.mxu0 0.0
        %1549 = vmatpush1.msra.mxu0 0.0
        %1550 = vmatprep.subr.mxu0 0.0
        %1551 = vmatpush1.msra.mxu0 0.0
        %1552 = vmatprep.subr.mxu0 0.0
        %1553 = vmatpush1.msra.mxu0 0.0
        %1554 = vmatprep.subr.mxu0 0.0
        %1555 = vmatpush1.msra.mxu0 0.0
        %1556 = vmatprep.subr.mxu0 0.0
        %1557 = vmatpush1.msra.mxu0 0.0
        %1558 = vmatprep.subr.mxu0 0.0
        %1559 = vmatpush1.msra.mxu0 0.0
        %1560 = vmatprep.subr.mxu0 0.0
        %1561 = vmatpush1.msra.mxu0 0.0
        %1562 = vmatprep.subr.mxu0 0.0
        %1563 = vmatpush1.msra.mxu0 0.0
        %1564 = vmatprep.subr.mxu0 0.0
        %1565 = vmatpush1.msra.mxu0 0.0
        %1566 = vmatprep.subr.mxu0 0.0
        %1567 = vmatpush1.msra.mxu0 0.0
        %1568 = vmatprep.subr.mxu0 0.0
        %1569 = vmatpush1.msra.mxu0 0.0
        %1570 = vmatprep.subr.mxu0 0.0
        %1571 = vmatpush1.msra.mxu0 0.0
        %1572 = vmatprep.subr.mxu0 0.0
        %1573 = vmatpush1.msra.mxu0 0.0
        %1574 = vmatprep.subr.mxu0 0.0
        %1575 = vmatpush1.msra.mxu0 0.0
        %1576 = vmatprep.subr.mxu0 0.0
        %1577 = vmatpush1.msra.mxu0 0.0
        %1578 = vmatprep.subr.mxu0 0.0
        %1579 = vmatpush1.msra.mxu0 0.0
        %1580 = vmatprep.subr.mxu0 0.0
        %1581 = vmatpush1.msra.mxu0 0.0
        %1582 = vmatprep.subr.mxu0 0.0
        %1583 = vmatpush1.msra.mxu0 0.0
        %1584 = vmatprep.subr.mxu0 0.0
        %1585 = vmatpush1.msra.mxu0 0.0
        %1586 = vmatprep.subr.mxu0 0.0
        %1587 = vmatpush1.msra.mxu0 0.0
        %1588 = vmatprep.subr.mxu0 0.0
        %1589 = vmatpush1.msra.mxu0 0.0
        %1590 = vmatprep.subr.mxu0 0.0
        %1591 = vmatpush1.msra.mxu0 0.0
        %1592 = vmatprep.mubr.f32.mxu0 0.0
        %1593 = vmatmul.mubr.f32.gmra.mrb[0].mxu0 %v1526
        %v1594 = vpop.f32.mrb[0].mxu0
        %v1595 = vadd.f32 0.0, %v1594
        %v1596 = vpop.f32.mrb[0].mxu0
        %v1597 = vadd.f32 0.0, %v1596
        %1598 = vdwg.mxu0
        %v1599 = vadd.f32 %v1493, %v1595
        %v1600 = vadd.f32 %v1494, %v1597
        %v1601 = vld [vmem:[%s659] sm:$0xff]
        %v1602 = vld [vmem:[%s659 + $0x8] sm:$0xff]
        %v1603 = vmul.f32 %v1180, %v1601
        %v1604 = vmul.f32 %v1181, %v1602
        %s1605 = scalar_lea.vmem %s2, 32
        %v1606 = vld [vmem:[%s1605] sm:$0xff]
        %v1608 = vsel %vm278, %v1606, 0
        %1610 = vmatprep.subr.mxu0 %v1604
        %1611 = vmatpush1.msra.mxu0 %v1603
        %1612 = vmatprep.subr.mxu0 0.0
        %1613 = vmatpush1.msra.mxu0 0.0
        %1614 = vmatprep.subr.mxu0 0.0
        %1615 = vmatpush1.msra.mxu0 0.0
        %1616 = vmatprep.subr.mxu0 0.0
        %1617 = vmatpush1.msra.mxu0 0.0
        %1618 = vmatprep.subr.mxu0 0.0
        %1619 = vmatpush1.msra.mxu0 0.0
        %1620 = vmatprep.subr.mxu0 0.0
        %1621 = vmatpush1.msra.mxu0 0.0
        %1622 = vmatprep.subr.mxu0 0.0
        %1623 = vmatpush1.msra.mxu0 0.0
        %1624 = vmatprep.subr.mxu0 0.0
        %1625 = vmatpush1.msra.mxu0 0.0
        %1626 = vmatprep.subr.mxu0 0.0
        %1627 = vmatpush1.msra.mxu0 0.0
        %1628 = vmatprep.subr.mxu0 0.0
        %1629 = vmatpush1.msra.mxu0 0.0
        %1630 = vmatprep.subr.mxu0 0.0
        %1631 = vmatpush1.msra.mxu0 0.0
        %1632 = vmatprep.subr.mxu0 0.0
        %1633 = vmatpush1.msra.mxu0 0.0
        %1634 = vmatprep.subr.mxu0 0.0
        %1635 = vmatpush1.msra.mxu0 0.0
        %1636 = vmatprep.subr.mxu0 0.0
        %1637 = vmatpush1.msra.mxu0 0.0
        %1638 = vmatprep.subr.mxu0 0.0
        %1639 = vmatpush1.msra.mxu0 0.0
        %1640 = vmatprep.subr.mxu0 0.0
        %1641 = vmatpush1.msra.mxu0 0.0
        %1642 = vmatprep.subr.mxu0 0.0
        %1643 = vmatpush1.msra.mxu0 0.0
        %1644 = vmatprep.subr.mxu0 0.0
        %1645 = vmatpush1.msra.mxu0 0.0
        %1646 = vmatprep.subr.mxu0 0.0
        %1647 = vmatpush1.msra.mxu0 0.0
        %1648 = vmatprep.subr.mxu0 0.0
        %1649 = vmatpush1.msra.mxu0 0.0
        %1650 = vmatprep.subr.mxu0 0.0
        %1651 = vmatpush1.msra.mxu0 0.0
        %1652 = vmatprep.subr.mxu0 0.0
        %1653 = vmatpush1.msra.mxu0 0.0
        %1654 = vmatprep.subr.mxu0 0.0
        %1655 = vmatpush1.msra.mxu0 0.0
        %1656 = vmatprep.subr.mxu0 0.0
        %1657 = vmatpush1.msra.mxu0 0.0
        %1658 = vmatprep.subr.mxu0 0.0
        %1659 = vmatpush1.msra.mxu0 0.0
        %1660 = vmatprep.subr.mxu0 0.0
        %1661 = vmatpush1.msra.mxu0 0.0
        %1662 = vmatprep.subr.mxu0 0.0
        %1663 = vmatpush1.msra.mxu0 0.0
        %1664 = vmatprep.subr.mxu0 0.0
        %1665 = vmatpush1.msra.mxu0 0.0
        %1666 = vmatprep.subr.mxu0 0.0
        %1667 = vmatpush1.msra.mxu0 0.0
        %1668 = vmatprep.subr.mxu0 0.0
        %1669 = vmatpush1.msra.mxu0 0.0
        %1670 = vmatprep.subr.mxu0 0.0
        %1671 = vmatpush1.msra.mxu0 0.0
        %1672 = vmatprep.subr.mxu0 0.0
        %1673 = vmatpush1.msra.mxu0 0.0
        %1674 = vmatprep.mubr.f32.mxu0 0.0
        %1675 = vmatmul.mubr.f32.gmra.mrb[0].mxu0 %v1608
        %v1676 = vpop.f32.mrb[0].mxu0
        %v1677 = vadd.f32 0.0, %v1676
        %v1678 = vpop.f32.mrb[0].mxu0
        %v1679 = vadd.f32 0.0, %v1678
        %1680 = vdwg.mxu0
        %v1681 = vadd.f32 %v1599, %v1677
        %v1682 = vadd.f32 %v1600, %v1679
        %v1683 = vld [vmem:[#allocation2 + $0x8] sm:$0xff]
        %v1684 = vld [vmem:[#allocation2 + $0x10] sm:$0xff]
        %v1685 = vld [vmem:[#allocation2 + $0x18] sm:$0xff]
        %v1686 = vld [vmem:[%s745] sm:$0xff]
        %v1687 = vld [vmem:[%s745 + $0x8] sm:$0xff]
        %1690 = vrot.lane.b32.xlu0 %v1686, 1
        %v1691 = vpop.permute.xlu0 %1690
        %1692 = vrot.lane.b32.xlu0 %v1687, 1
        %v1693 = vpop.permute.xlu0 %1692
        %v1694 = vsel %vm578, %v1691, %v1693
        %v1698 = vmul.f32 %v1683, %v1691
        %v1699 = vmul.f32 %v1684, %v1694
        %v1700 = vmul.f32 %v1685, %v1693
        %s1701 = scalar_lea.vmem %s2, 40
        %v1702 = vld [vmem:[%s1701] sm:$0xff]
        %1706 = vrot.lane.b32.xlu0 %v1698, 127
        %v1707 = vpop.permute.xlu0 %1706
        %1708 = vrot.lane.b32.xlu0 %v1699, 127
        %v1709 = vpop.permute.xlu0 %1708
        %1710 = vrot.lane.b32.xlu0 %v1700, 127
        %v1711 = vpop.permute.xlu0 %1710
        %v1712 = vsel %vm559, %v1707, %v1709
        %v1713 = vsel %vm559, %v1709, %v1711
        %v1717 = vsel %vm278, %v1702, 0
        %1719 = vmatprep.subr.mxu0 %v1713
        %1720 = vmatpush1.msra.mxu0 %v1712
        %1721 = vmatprep.subr.mxu0 0.0
        %1722 = vmatpush1.msra.mxu0 0.0
        %1723 = vmatprep.subr.mxu0 0.0
        %1724 = vmatpush1.msra.mxu0 0.0
        %1725 = vmatprep.subr.mxu0 0.0
        %1726 = vmatpush1.msra.mxu0 0.0
        %1727 = vmatprep.subr.mxu0 0.0
        %1728 = vmatpush1.msra.mxu0 0.0
        %1729 = vmatprep.subr.mxu0 0.0
        %1730 = vmatpush1.msra.mxu0 0.0
        %1731 = vmatprep.subr.mxu0 0.0
        %1732 = vmatpush1.msra.mxu0 0.0
        %1733 = vmatprep.subr.mxu0 0.0
        %1734 = vmatpush1.msra.mxu0 0.0
        %1735 = vmatprep.subr.mxu0 0.0
        %1736 = vmatpush1.msra.mxu0 0.0
        %1737 = vmatprep.subr.mxu0 0.0
        %1738 = vmatpush1.msra.mxu0 0.0
        %1739 = vmatprep.subr.mxu0 0.0
        %1740 = vmatpush1.msra.mxu0 0.0
        %1741 = vmatprep.subr.mxu0 0.0
        %1742 = vmatpush1.msra.mxu0 0.0
        %1743 = vmatprep.subr.mxu0 0.0
        %1744 = vmatpush1.msra.mxu0 0.0
        %1745 = vmatprep.subr.mxu0 0.0
        %1746 = vmatpush1.msra.mxu0 0.0
        %1747 = vmatprep.subr.mxu0 0.0
        %1748 = vmatpush1.msra.mxu0 0.0
        %1749 = vmatprep.subr.mxu0 0.0
        %1750 = vmatpush1.msra.mxu0 0.0
        %1751 = vmatprep.subr.mxu0 0.0
        %1752 = vmatpush1.msra.mxu0 0.0
        %1753 = vmatprep.subr.mxu0 0.0
        %1754 = vmatpush1.msra.mxu0 0.0
        %1755 = vmatprep.subr.mxu0 0.0
        %1756 = vmatpush1.msra.mxu0 0.0
        %1757 = vmatprep.subr.mxu0 0.0
        %1758 = vmatpush1.msra.mxu0 0.0
        %1759 = vmatprep.subr.mxu0 0.0
        %1760 = vmatpush1.msra.mxu0 0.0
        %1761 = vmatprep.subr.mxu0 0.0
        %1762 = vmatpush1.msra.mxu0 0.0
        %1763 = vmatprep.subr.mxu0 0.0
        %1764 = vmatpush1.msra.mxu0 0.0
        %1765 = vmatprep.subr.mxu0 0.0
        %1766 = vmatpush1.msra.mxu0 0.0
        %1767 = vmatprep.subr.mxu0 0.0
        %1768 = vmatpush1.msra.mxu0 0.0
        %1769 = vmatprep.subr.mxu0 0.0
        %1770 = vmatpush1.msra.mxu0 0.0
        %1771 = vmatprep.subr.mxu0 0.0
        %1772 = vmatpush1.msra.mxu0 0.0
        %1773 = vmatprep.subr.mxu0 0.0
        %1774 = vmatpush1.msra.mxu0 0.0
        %1775 = vmatprep.subr.mxu0 0.0
        %1776 = vmatpush1.msra.mxu0 0.0
        %1777 = vmatprep.subr.mxu0 0.0
        %1778 = vmatpush1.msra.mxu0 0.0
        %1779 = vmatprep.subr.mxu0 0.0
        %1780 = vmatpush1.msra.mxu0 0.0
        %1781 = vmatprep.subr.mxu0 0.0
        %1782 = vmatpush1.msra.mxu0 0.0
        %1783 = vmatprep.mubr.f32.mxu0 0.0
        %1784 = vmatmul.mubr.f32.gmra.mrb[0].mxu0 %v1717
        %v1785 = vpop.f32.mrb[0].mxu0
        %v1786 = vadd.f32 0.0, %v1785
        %v1787 = vpop.f32.mrb[0].mxu0
        %v1788 = vadd.f32 0.0, %v1787
        %1789 = vdwg.mxu0
        %v1790 = vadd.f32 %v1681, %v1786
        %v1791 = vadd.f32 %v1682, %v1788
        %v1792 = vld [vmem:[%s852] sm:$0xff]
        %v1793 = vld [vmem:[%s852 + $0x8] sm:$0xff]
        %1796 = vrot.lane.b32.xlu0 %v1792, 15
        %v1797 = vpop.permute.xlu0 %1796
        %1798 = vrot.lane.b32.xlu0 %v1793, 15
        %v1799 = vpop.permute.xlu0 %1798
        %v1800 = vsel %vm469, %v1797, %v1799
        %v1804 = vmul.f32 %v1683, %v1797
        %v1805 = vmul.f32 %v1684, %v1800
        %v1806 = vmul.f32 %v1685, %v1799
        %s1807 = scalar_lea.vmem %s2, 48
        %v1808 = vld [vmem:[%s1807] sm:$0xff]
        %1812 = vrot.lane.b32.xlu0 %v1804, 113
        %v1813 = vpop.permute.xlu0 %1812
        %1814 = vrot.lane.b32.xlu0 %v1805, 113
        %v1815 = vpop.permute.xlu0 %1814
        %1816 = vrot.lane.b32.xlu0 %v1806, 113
        %v1817 = vpop.permute.xlu0 %1816
        %v1818 = vsel %vm450, %v1813, %v1815
        %v1819 = vsel %vm450, %v1815, %v1817
        %v1823 = vsel %vm278, %v1808, 0
        %1825 = vmatprep.subr.mxu0 %v1819
        %1826 = vmatpush1.msra.mxu0 %v1818
        %1827 = vmatprep.subr.mxu0 0.0
        %1828 = vmatpush1.msra.mxu0 0.0
        %1829 = vmatprep.subr.mxu0 0.0
        %1830 = vmatpush1.msra.mxu0 0.0
        %1831 = vmatprep.subr.mxu0 0.0
        %1832 = vmatpush1.msra.mxu0 0.0
        %1833 = vmatprep.subr.mxu0 0.0
        %1834 = vmatpush1.msra.mxu0 0.0
        %1835 = vmatprep.subr.mxu0 0.0
        %1836 = vmatpush1.msra.mxu0 0.0
        %1837 = vmatprep.subr.mxu0 0.0
        %1838 = vmatpush1.msra.mxu0 0.0
        %1839 = vmatprep.subr.mxu0 0.0
        %1840 = vmatpush1.msra.mxu0 0.0
        %1841 = vmatprep.subr.mxu0 0.0
        %1842 = vmatpush1.msra.mxu0 0.0
        %1843 = vmatprep.subr.mxu0 0.0
        %1844 = vmatpush1.msra.mxu0 0.0
        %1845 = vmatprep.subr.mxu0 0.0
        %1846 = vmatpush1.msra.mxu0 0.0
        %1847 = vmatprep.subr.mxu0 0.0
        %1848 = vmatpush1.msra.mxu0 0.0
        %1849 = vmatprep.subr.mxu0 0.0
        %1850 = vmatpush1.msra.mxu0 0.0
        %1851 = vmatprep.subr.mxu0 0.0
        %1852 = vmatpush1.msra.mxu0 0.0
        %1853 = vmatprep.subr.mxu0 0.0
        %1854 = vmatpush1.msra.mxu0 0.0
        %1855 = vmatprep.subr.mxu0 0.0
        %1856 = vmatpush1.msra.mxu0 0.0
        %1857 = vmatprep.subr.mxu0 0.0
        %1858 = vmatpush1.msra.mxu0 0.0
        %1859 = vmatprep.subr.mxu0 0.0
        %1860 = vmatpush1.msra.mxu0 0.0
        %1861 = vmatprep.subr.mxu0 0.0
        %1862 = vmatpush1.msra.mxu0 0.0
        %1863 = vmatprep.subr.mxu0 0.0
        %1864 = vmatpush1.msra.mxu0 0.0
        %1865 = vmatprep.subr.mxu0 0.0
        %1866 = vmatpush1.msra.mxu0 0.0
        %1867 = vmatprep.subr.mxu0 0.0
        %1868 = vmatpush1.msra.mxu0 0.0
        %1869 = vmatprep.subr.mxu0 0.0
        %1870 = vmatpush1.msra.mxu0 0.0
        %1871 = vmatprep.subr.mxu0 0.0
        %1872 = vmatpush1.msra.mxu0 0.0
        %1873 = vmatprep.subr.mxu0 0.0
        %1874 = vmatpush1.msra.mxu0 0.0
        %1875 = vmatprep.subr.mxu0 0.0
        %1876 = vmatpush1.msra.mxu0 0.0
        %1877 = vmatprep.subr.mxu0 0.0
        %1878 = vmatpush1.msra.mxu0 0.0
        %1879 = vmatprep.subr.mxu0 0.0
        %1880 = vmatpush1.msra.mxu0 0.0
        %1881 = vmatprep.subr.mxu0 0.0
        %1882 = vmatpush1.msra.mxu0 0.0
        %1883 = vmatprep.subr.mxu0 0.0
        %1884 = vmatpush1.msra.mxu0 0.0
        %1885 = vmatprep.subr.mxu0 0.0
        %1886 = vmatpush1.msra.mxu0 0.0
        %1887 = vmatprep.subr.mxu0 0.0
        %1888 = vmatpush1.msra.mxu0 0.0
        %1889 = vmatprep.mubr.f32.mxu0 0.0
        %1890 = vmatmul.mubr.f32.gmra.mrb[0].mxu0 %v1823
        %v1891 = vpop.f32.mrb[0].mxu0
        %v1892 = vadd.f32 0.0, %v1891
        %v1893 = vpop.f32.mrb[0].mxu0
        %v1894 = vadd.f32 0.0, %v1893
        %1895 = vdwg.mxu0
        %v1896 = vadd.f32 %v1790, %v1892
        %v1897 = vadd.f32 %v1791, %v1894
        %v1898 = vld [vmem:[%s959] sm:$0xff]
        %v1899 = vld [vmem:[%s959 + $0x8] sm:$0xff]
        %1902 = vrot.lane.b32.xlu0 %v1898, 16
        %v1903 = vpop.permute.xlu0 %1902
        %1904 = vrot.lane.b32.xlu0 %v1899, 16
        %v1905 = vpop.permute.xlu0 %1904
        %v1906 = vsel %vm273, %v1903, %v1905
        %v1910 = vmul.f32 %v1683, %v1903
        %v1911 = vmul.f32 %v1684, %v1906
        %v1912 = vmul.f32 %v1685, %v1905
        %s1913 = scalar_lea.vmem %s2, 56
        %v1914 = vld [vmem:[%s1913] sm:$0xff]
        %1918 = vrot.lane.b32.xlu0 %v1910, 112
        %v1919 = vpop.permute.xlu0 %1918
        %1920 = vrot.lane.b32.xlu0 %v1911, 112
        %v1921 = vpop.permute.xlu0 %1920
        %1922 = vrot.lane.b32.xlu0 %v1912, 112
        %v1923 = vpop.permute.xlu0 %1922
        %v1924 = vsel %vm254, %v1919, %v1921
        %v1925 = vsel %vm254, %v1921, %v1923
        %v1929 = vsel %vm278, %v1914, 0
        %1931 = vmatprep.subr.mxu0 %v1925
        %1932 = vmatpush1.msra.mxu0 %v1924
        %1933 = vmatprep.subr.mxu0 0.0
        %1934 = vmatpush1.msra.mxu0 0.0
        %1935 = vmatprep.subr.mxu0 0.0
        %1936 = vmatpush1.msra.mxu0 0.0
        %1937 = vmatprep.subr.mxu0 0.0
        %1938 = vmatpush1.msra.mxu0 0.0
        %1939 = vmatprep.subr.mxu0 0.0
        %1940 = vmatpush1.msra.mxu0 0.0
        %1941 = vmatprep.subr.mxu0 0.0
        %1942 = vmatpush1.msra.mxu0 0.0
        %1943 = vmatprep.subr.mxu0 0.0
        %1944 = vmatpush1.msra.mxu0 0.0
        %1945 = vmatprep.subr.mxu0 0.0
        %1946 = vmatpush1.msra.mxu0 0.0
        %1947 = vmatprep.subr.mxu0 0.0
        %1948 = vmatpush1.msra.mxu0 0.0
        %1949 = vmatprep.subr.mxu0 0.0
        %1950 = vmatpush1.msra.mxu0 0.0
        %1951 = vmatprep.subr.mxu0 0.0
        %1952 = vmatpush1.msra.mxu0 0.0
        %1953 = vmatprep.subr.mxu0 0.0
        %1954 = vmatpush1.msra.mxu0 0.0
        %1955 = vmatprep.subr.mxu0 0.0
        %1956 = vmatpush1.msra.mxu0 0.0
        %1957 = vmatprep.subr.mxu0 0.0
        %1958 = vmatpush1.msra.mxu0 0.0
        %1959 = vmatprep.subr.mxu0 0.0
        %1960 = vmatpush1.msra.mxu0 0.0
        %1961 = vmatprep.subr.mxu0 0.0
        %1962 = vmatpush1.msra.mxu0 0.0
        %1963 = vmatprep.subr.mxu0 0.0
        %1964 = vmatpush1.msra.mxu0 0.0
        %1965 = vmatprep.subr.mxu0 0.0
        %1966 = vmatpush1.msra.mxu0 0.0
        %1967 = vmatprep.subr.mxu0 0.0
        %1968 = vmatpush1.msra.mxu0 0.0
        %1969 = vmatprep.subr.mxu0 0.0
        %1970 = vmatpush1.msra.mxu0 0.0
        %1971 = vmatprep.subr.mxu0 0.0
        %1972 = vmatpush1.msra.mxu0 0.0
        %1973 = vmatprep.subr.mxu0 0.0
        %1974 = vmatpush1.msra.mxu0 0.0
        %1975 = vmatprep.subr.mxu0 0.0
        %1976 = vmatpush1.msra.mxu0 0.0
        %1977 = vmatprep.subr.mxu0 0.0
        %1978 = vmatpush1.msra.mxu0 0.0
        %1979 = vmatprep.subr.mxu0 0.0
        %1980 = vmatpush1.msra.mxu0 0.0
        %1981 = vmatprep.subr.mxu0 0.0
        %1982 = vmatpush1.msra.mxu0 0.0
        %1983 = vmatprep.subr.mxu0 0.0
        %1984 = vmatpush1.msra.mxu0 0.0
        %1985 = vmatprep.subr.mxu0 0.0
        %1986 = vmatpush1.msra.mxu0 0.0
        %1987 = vmatprep.subr.mxu0 0.0
        %1988 = vmatpush1.msra.mxu0 0.0
        %1989 = vmatprep.subr.mxu0 0.0
        %1990 = vmatpush1.msra.mxu0 0.0
        %1991 = vmatprep.subr.mxu0 0.0
        %1992 = vmatpush1.msra.mxu0 0.0
        %1993 = vmatprep.subr.mxu0 0.0
        %1994 = vmatpush1.msra.mxu0 0.0
        %1995 = vmatprep.mubr.f32.mxu0 0.0
        %1996 = vmatmul.mubr.f32.gmra.mrb[0].mxu0 %v1929
        %v1997 = vpop.f32.mrb[0].mxu0
        %v1998 = vadd.f32 0.0, %v1997
        %v1999 = vpop.f32.mrb[0].mxu0
        %v2000 = vadd.f32 0.0, %v1999
        %2001 = vdwg.mxu0
        %v2002 = vadd.f32 %v1896, %v1998
        %v2003 = vadd.f32 %v1897, %v2000
        %v2004 = vld [vmem:[%s1066] sm:$0xff]
        %v2005 = vld [vmem:[%s1066 + $0x8] sm:$0xff]
        %2008 = vrot.lane.b32.xlu0 %v2004, 17
        %v2009 = vpop.permute.xlu0 %2008
        %2010 = vrot.lane.b32.xlu0 %v2005, 17
        %v2011 = vpop.permute.xlu0 %2010
        %v2012 = vsel %vm362, %v2009, %v2011
        %v2016 = vmul.f32 %v1683, %v2009
        %v2017 = vmul.f32 %v1684, %v2012
        %v2018 = vmul.f32 %v1685, %v2011
        %s2019 = scalar_lea.vmem %s2, 64
        %v2020 = vld [vmem:[%s2019] sm:$0xff]
        %2024 = vrot.lane.b32.xlu0 %v2016, 111
        %v2025 = vpop.permute.xlu0 %2024
        %2026 = vrot.lane.b32.xlu0 %v2017, 111
        %v2027 = vpop.permute.xlu0 %2026
        %2028 = vrot.lane.b32.xlu0 %v2018, 111
        %v2029 = vpop.permute.xlu0 %2028
        %v2030 = vsel %vm236, %v2025, %v2027
        %v2031 = vsel %vm236, %v2027, %v2029
        %v2035 = vsel %vm278, %v2020, 0
        %2037 = vmatprep.subr.mxu0 %v2031
        %2038 = vmatpush1.msra.mxu0 %v2030
        %2039 = vmatprep.subr.mxu0 0.0
        %2040 = vmatpush1.msra.mxu0 0.0
        %2041 = vmatprep.subr.mxu0 0.0
        %2042 = vmatpush1.msra.mxu0 0.0
        %2043 = vmatprep.subr.mxu0 0.0
        %2044 = vmatpush1.msra.mxu0 0.0
        %2045 = vmatprep.subr.mxu0 0.0
        %2046 = vmatpush1.msra.mxu0 0.0
        %2047 = vmatprep.subr.mxu0 0.0
        %2048 = vmatpush1.msra.mxu0 0.0
        %2049 = vmatprep.subr.mxu0 0.0
        %2050 = vmatpush1.msra.mxu0 0.0
        %2051 = vmatprep.subr.mxu0 0.0
        %2052 = vmatpush1.msra.mxu0 0.0
        %2053 = vmatprep.subr.mxu0 0.0
        %2054 = vmatpush1.msra.mxu0 0.0
        %2055 = vmatprep.subr.mxu0 0.0
        %2056 = vmatpush1.msra.mxu0 0.0
        %2057 = vmatprep.subr.mxu0 0.0
        %2058 = vmatpush1.msra.mxu0 0.0
        %2059 = vmatprep.subr.mxu0 0.0
        %2060 = vmatpush1.msra.mxu0 0.0
        %2061 = vmatprep.subr.mxu0 0.0
        %2062 = vmatpush1.msra.mxu0 0.0
        %2063 = vmatprep.subr.mxu0 0.0
        %2064 = vmatpush1.msra.mxu0 0.0
        %2065 = vmatprep.subr.mxu0 0.0
        %2066 = vmatpush1.msra.mxu0 0.0
        %2067 = vmatprep.subr.mxu0 0.0
        %2068 = vmatpush1.msra.mxu0 0.0
        %2069 = vmatprep.subr.mxu0 0.0
        %2070 = vmatpush1.msra.mxu0 0.0
        %2071 = vmatprep.subr.mxu0 0.0
        %2072 = vmatpush1.msra.mxu0 0.0
        %2073 = vmatprep.subr.mxu0 0.0
        %2074 = vmatpush1.msra.mxu0 0.0
        %2075 = vmatprep.subr.mxu0 0.0
        %2076 = vmatpush1.msra.mxu0 0.0
        %2077 = vmatprep.subr.mxu0 0.0
        %2078 = vmatpush1.msra.mxu0 0.0
        %2079 = vmatprep.subr.mxu0 0.0
        %2080 = vmatpush1.msra.mxu0 0.0
        %2081 = vmatprep.subr.mxu0 0.0
        %2082 = vmatpush1.msra.mxu0 0.0
        %2083 = vmatprep.subr.mxu0 0.0
        %2084 = vmatpush1.msra.mxu0 0.0
        %2085 = vmatprep.subr.mxu0 0.0
        %2086 = vmatpush1.msra.mxu0 0.0
        %2087 = vmatprep.subr.mxu0 0.0
        %2088 = vmatpush1.msra.mxu0 0.0
        %2089 = vmatprep.subr.mxu0 0.0
        %2090 = vmatpush1.msra.mxu0 0.0
        %2091 = vmatprep.subr.mxu0 0.0
        %2092 = vmatpush1.msra.mxu0 0.0
        %2093 = vmatprep.subr.mxu0 0.0
        %2094 = vmatpush1.msra.mxu0 0.0
        %2095 = vmatprep.subr.mxu0 0.0
        %2096 = vmatpush1.msra.mxu0 0.0
        %2097 = vmatprep.subr.mxu0 0.0
        %2098 = vmatpush1.msra.mxu0 0.0
        %2099 = vmatprep.subr.mxu0 0.0
        %2100 = vmatpush1.msra.mxu0 0.0
        %2101 = vmatprep.mubr.f32.mxu0 0.0
        %2102 = vmatmul.mubr.f32.gmra.mrb[0].mxu0 %v2035
        %v2103 = vpop.f32.mrb[0].mxu0
        %v2104 = vadd.f32 0.0, %v2103
        %v2105 = vpop.f32.mrb[0].mxu0
        %v2106 = vadd.f32 0.0, %v2105
        %2107 = vdwg.mxu0
        %v2108 = vadd.f32 %v2002, %v2104
        %v2109 = vadd.f32 %v2003, %v2106
        %v2110 = vmul.f32 %v2108, 0.020833334
        %v2111 = vmul.f32 %v2109, 0.020833334
        %v2112 = vadd.f32 %v214, %v2110
        %v2113 = vadd.f32 %v215, %v2111
        %s2114 = sadd.f32 %s217, 0.0625
        %v2115 = vmul.f32 %v2108, 0.0625
        %v2116 = vmul.f32 %v2109, 0.0625
        %v2117 = vadd.f32 %v214, %v2115
        %v2118 = vadd.f32 %v215, %v2116
        %v2119 = vstv %s2114
        %v2120 = vsel %vm204, %v2119, %v2117
        %v2121 = vsel %vm204, %v2119, %v2118
        %v2122 = vsel %vm205, 1.0, %v2120
        %v2123 = vsel %vm205, 1.0, %v2121
        %2124 = vst [vmem:[#allocation2 + $0x8] sm:$0xff] %v2122
        %2125 = vst [vmem:[#allocation2 + $0x10] sm:$0xff] %v2123
        %v2126 = vld [vmem:[#allocation2] sm:$0xff]
        %v2127 = vld [vmem:[#allocation2 + $0x8] sm:$0xff]
        %v2128 = vld [vmem:[#allocation2 + $0x10] sm:$0xff]
        %v2129 = vld [vmem:[%s3] sm:$0xff]
        %v2130 = vld [vmem:[%s3 + $0x8] sm:$0xff]
        %2133 = vrot.lane.b32.xlu0 %v2129, 111
        %v2134 = vpop.permute.xlu0 %2133
        %2135 = vrot.lane.b32.xlu0 %v2130, 111
        %v2136 = vpop.permute.xlu0 %2135
        %v2137 = vsel %vm236, %v2134, %v2136
        %v2141 = vmul.f32 %v2126, %v2134
        %v2142 = vmul.f32 %v2127, %v2137
        %v2143 = vmul.f32 %v2128, %v2136
        %v2144 = vld [vmem:[%s1] sm:$0xff]
        %v2145 = vld [vmem:[%s245] sm:$0xff]
        %v2146 = vld [vmem:[%s245 + $0x8] sm:$0xff]
        %2149 = vrot.lane.b32.xlu0 %v2145, 112
        %v2150 = vpop.permute.xlu0 %2149
        %2151 = vrot.lane.b32.xlu0 %v2146, 112
        %v2152 = vpop.permute.xlu0 %2151
        %v2153 = vsel %vm254, %v2150, %v2152
        %v2157 = vmul.f32 %v2126, %v2150
        %v2158 = vmul.f32 %v2127, %v2153
        %v2159 = vmul.f32 %v2128, %v2152
        %v2160 = vld [vmem:[%s262] sm:$0xff]
        %2164 = vrot.lane.b32.xlu0 %v2157, 16
        %v2165 = vpop.permute.xlu0 %2164
        %2166 = vrot.lane.b32.xlu0 %v2158, 16
        %v2167 = vpop.permute.xlu0 %2166
        %2168 = vrot.lane.b32.xlu0 %v2159, 16
        %v2169 = vpop.permute.xlu0 %2168
        %v2170 = vsel %vm273, %v2165, %v2167
        %v2171 = vsel %vm273, %v2167, %v2169
        %v2175 = vsel %vm278, %v2160, 0
        %2177 = vmatprep.subr.mxu0 %v2171
        %2178 = vmatpush1.msra.mxu0 %v2170
        %2179 = vmatprep.subr.mxu0 0.0
        %2180 = vmatpush1.msra.mxu0 0.0
        %2181 = vmatprep.subr.mxu0 0.0
        %2182 = vmatpush1.msra.mxu0 0.0
        %2183 = vmatprep.subr.mxu0 0.0
        %2184 = vmatpush1.msra.mxu0 0.0
        %2185 = vmatprep.subr.mxu0 0.0
        %2186 = vmatpush1.msra.mxu0 0.0
        %2187 = vmatprep.subr.mxu0 0.0
        %2188 = vmatpush1.msra.mxu0 0.0
        %2189 = vmatprep.subr.mxu0 0.0
        %2190 = vmatpush1.msra.mxu0 0.0
        %2191 = vmatprep.subr.mxu0 0.0
        %2192 = vmatpush1.msra.mxu0 0.0
        %2193 = vmatprep.subr.mxu0 0.0
        %2194 = vmatpush1.msra.mxu0 0.0
        %2195 = vmatprep.subr.mxu0 0.0
        %2196 = vmatpush1.msra.mxu0 0.0
        %2197 = vmatprep.subr.mxu0 0.0
        %2198 = vmatpush1.msra.mxu0 0.0
        %2199 = vmatprep.subr.mxu0 0.0
        %2200 = vmatpush1.msra.mxu0 0.0
        %2201 = vmatprep.subr.mxu0 0.0
        %2202 = vmatpush1.msra.mxu0 0.0
        %2203 = vmatprep.subr.mxu0 0.0
        %2204 = vmatpush1.msra.mxu0 0.0
        %2205 = vmatprep.subr.mxu0 0.0
        %2206 = vmatpush1.msra.mxu0 0.0
        %2207 = vmatprep.subr.mxu0 0.0
        %2208 = vmatpush1.msra.mxu0 0.0
        %2209 = vmatprep.subr.mxu0 0.0
        %2210 = vmatpush1.msra.mxu0 0.0
        %2211 = vmatprep.subr.mxu0 0.0
        %2212 = vmatpush1.msra.mxu0 0.0
        %2213 = vmatprep.subr.mxu0 0.0
        %2214 = vmatpush1.msra.mxu0 0.0
        %2215 = vmatprep.subr.mxu0 0.0
        %2216 = vmatpush1.msra.mxu0 0.0
        %2217 = vmatprep.subr.mxu0 0.0
        %2218 = vmatpush1.msra.mxu0 0.0
        %2219 = vmatprep.subr.mxu0 0.0
        %2220 = vmatpush1.msra.mxu0 0.0
        %2221 = vmatprep.subr.mxu0 0.0
        %2222 = vmatpush1.msra.mxu0 0.0
        %2223 = vmatprep.subr.mxu0 0.0
        %2224 = vmatpush1.msra.mxu0 0.0
        %2225 = vmatprep.subr.mxu0 0.0
        %2226 = vmatpush1.msra.mxu0 0.0
        %2227 = vmatprep.subr.mxu0 0.0
        %2228 = vmatpush1.msra.mxu0 0.0
        %2229 = vmatprep.subr.mxu0 0.0
        %2230 = vmatpush1.msra.mxu0 0.0
        %2231 = vmatprep.subr.mxu0 0.0
        %2232 = vmatpush1.msra.mxu0 0.0
        %2233 = vmatprep.subr.mxu0 0.0
        %2234 = vmatpush1.msra.mxu0 0.0
        %2235 = vmatprep.subr.mxu0 0.0
        %2236 = vmatpush1.msra.mxu0 0.0
        %2237 = vmatprep.subr.mxu0 0.0
        %2238 = vmatpush1.msra.mxu0 0.0
        %2239 = vmatprep.subr.mxu0 0.0
        %2240 = vmatpush1.msra.mxu0 0.0
        %2241 = vmatprep.mubr.f32.mxu0 0.0
        %2242 = vmatmul.mubr.f32.gmra.mrb[0].mxu0 %v2175
        %v2243 = vpop.f32.mrb[0].mxu0
        %v2244 = vadd.f32 0.0, %v2243
        %v2245 = vpop.f32.mrb[0].mxu0
        %v2246 = vadd.f32 0.0, %v2245
        %2247 = vdwg.mxu0
        %2251 = vrot.lane.b32.xlu0 %v2141, 17
        %v2252 = vpop.permute.xlu0 %2251
        %2253 = vrot.lane.b32.xlu0 %v2142, 17
        %v2254 = vpop.permute.xlu0 %2253
        %2255 = vrot.lane.b32.xlu0 %v2143, 17
        %v2256 = vpop.permute.xlu0 %2255
        %v2257 = vsel %vm362, %v2252, %v2254
        %v2258 = vsel %vm362, %v2254, %v2256
        %v2262 = vsel %vm278, %v2144, 0
        %2264 = vmatprep.subr.mxu0 %v2258
        %2265 = vmatpush1.msra.mxu0 %v2257
        %2266 = vmatprep.subr.mxu0 0.0
        %2267 = vmatpush1.msra.mxu0 0.0
        %2268 = vmatprep.subr.mxu0 0.0
        %2269 = vmatpush1.msra.mxu0 0.0
        %2270 = vmatprep.subr.mxu0 0.0
        %2271 = vmatpush1.msra.mxu0 0.0
        %2272 = vmatprep.subr.mxu0 0.0
        %2273 = vmatpush1.msra.mxu0 0.0
        %2274 = vmatprep.subr.mxu0 0.0
        %2275 = vmatpush1.msra.mxu0 0.0
        %2276 = vmatprep.subr.mxu0 0.0
        %2277 = vmatpush1.msra.mxu0 0.0
        %2278 = vmatprep.subr.mxu0 0.0
        %2279 = vmatpush1.msra.mxu0 0.0
        %2280 = vmatprep.subr.mxu0 0.0
        %2281 = vmatpush1.msra.mxu0 0.0
        %2282 = vmatprep.subr.mxu0 0.0
        %2283 = vmatpush1.msra.mxu0 0.0
        %2284 = vmatprep.subr.mxu0 0.0
        %2285 = vmatpush1.msra.mxu0 0.0
        %2286 = vmatprep.subr.mxu0 0.0
        %2287 = vmatpush1.msra.mxu0 0.0
        %2288 = vmatprep.subr.mxu0 0.0
        %2289 = vmatpush1.msra.mxu0 0.0
        %2290 = vmatprep.subr.mxu0 0.0
        %2291 = vmatpush1.msra.mxu0 0.0
        %2292 = vmatprep.subr.mxu0 0.0
        %2293 = vmatpush1.msra.mxu0 0.0
        %2294 = vmatprep.subr.mxu0 0.0
        %2295 = vmatpush1.msra.mxu0 0.0
        %2296 = vmatprep.subr.mxu0 0.0
        %2297 = vmatpush1.msra.mxu0 0.0
        %2298 = vmatprep.subr.mxu0 0.0
        %2299 = vmatpush1.msra.mxu0 0.0
        %2300 = vmatprep.subr.mxu0 0.0
        %2301 = vmatpush1.msra.mxu0 0.0
        %2302 = vmatprep.subr.mxu0 0.0
        %2303 = vmatpush1.msra.mxu0 0.0
        %2304 = vmatprep.subr.mxu0 0.0
        %2305 = vmatpush1.msra.mxu0 0.0
        %2306 = vmatprep.subr.mxu0 0.0
        %2307 = vmatpush1.msra.mxu0 0.0
        %2308 = vmatprep.subr.mxu0 0.0
        %2309 = vmatpush1.msra.mxu0 0.0
        %2310 = vmatprep.subr.mxu0 0.0
        %2311 = vmatpush1.msra.mxu0 0.0
        %2312 = vmatprep.subr.mxu0 0.0
        %2313 = vmatpush1.msra.mxu0 0.0
        %2314 = vmatprep.subr.mxu0 0.0
        %2315 = vmatpush1.msra.mxu0 0.0
        %2316 = vmatprep.subr.mxu0 0.0
        %2317 = vmatpush1.msra.mxu0 0.0
        %2318 = vmatprep.subr.mxu0 0.0
        %2319 = vmatpush1.msra.mxu0 0.0
        %2320 = vmatprep.subr.mxu0 0.0
        %2321 = vmatpush1.msra.mxu0 0.0
        %2322 = vmatprep.subr.mxu0 0.0
        %2323 = vmatpush1.msra.mxu0 0.0
        %2324 = vmatprep.subr.mxu0 0.0
        %2325 = vmatpush1.msra.mxu0 0.0
        %2326 = vmatprep.subr.mxu0 0.0
        %2327 = vmatpush1.msra.mxu0 0.0
        %2328 = vmatprep.mubr.f32.mxu0 0.0
        %2329 = vmatmul.mubr.f32.gmra.mrb[0].mxu0 %v2262
        %v2330 = vpop.f32.mrb[0].mxu0
        %v2331 = vadd.f32 %v2244, %v2330
        %v2332 = vpop.f32.mrb[0].mxu0
        %v2333 = vadd.f32 %v2246, %v2332
        %2334 = vdwg.mxu0
        %v2335 = vld [vmem:[%s441] sm:$0xff]
        %v2336 = vld [vmem:[%s441 + $0x8] sm:$0xff]
        %2339 = vrot.lane.b32.xlu0 %v2335, 113
        %v2340 = vpop.permute.xlu0 %2339
        %2341 = vrot.lane.b32.xlu0 %v2336, 113
        %v2342 = vpop.permute.xlu0 %2341
        %v2343 = vsel %vm450, %v2340, %v2342
        %v2347 = vmul.f32 %v2126, %v2340
        %v2348 = vmul.f32 %v2127, %v2343
        %v2349 = vmul.f32 %v2128, %v2342
        %v2350 = vld [vmem:[%s458] sm:$0xff]
        %2354 = vrot.lane.b32.xlu0 %v2347, 15
        %v2355 = vpop.permute.xlu0 %2354
        %2356 = vrot.lane.b32.xlu0 %v2348, 15
        %v2357 = vpop.permute.xlu0 %2356
        %2358 = vrot.lane.b32.xlu0 %v2349, 15
        %v2359 = vpop.permute.xlu0 %2358
        %v2360 = vsel %vm469, %v2355, %v2357
        %v2361 = vsel %vm469, %v2357, %v2359
        %v2365 = vsel %vm278, %v2350, 0
        %2367 = vmatprep.subr.mxu0 %v2361
        %2368 = vmatpush1.msra.mxu0 %v2360
        %2369 = vmatprep.subr.mxu0 0.0
        %2370 = vmatpush1.msra.mxu0 0.0
        %2371 = vmatprep.subr.mxu0 0.0
        %2372 = vmatpush1.msra.mxu0 0.0
        %2373 = vmatprep.subr.mxu0 0.0
        %2374 = vmatpush1.msra.mxu0 0.0
        %2375 = vmatprep.subr.mxu0 0.0
        %2376 = vmatpush1.msra.mxu0 0.0
        %2377 = vmatprep.subr.mxu0 0.0
        %2378 = vmatpush1.msra.mxu0 0.0
        %2379 = vmatprep.subr.mxu0 0.0
        %2380 = vmatpush1.msra.mxu0 0.0
        %2381 = vmatprep.subr.mxu0 0.0
        %2382 = vmatpush1.msra.mxu0 0.0
        %2383 = vmatprep.subr.mxu0 0.0
        %2384 = vmatpush1.msra.mxu0 0.0
        %2385 = vmatprep.subr.mxu0 0.0
        %2386 = vmatpush1.msra.mxu0 0.0
        %2387 = vmatprep.subr.mxu0 0.0
        %2388 = vmatpush1.msra.mxu0 0.0
        %2389 = vmatprep.subr.mxu0 0.0
        %2390 = vmatpush1.msra.mxu0 0.0
        %2391 = vmatprep.subr.mxu0 0.0
        %2392 = vmatpush1.msra.mxu0 0.0
        %2393 = vmatprep.subr.mxu0 0.0
        %2394 = vmatpush1.msra.mxu0 0.0
        %2395 = vmatprep.subr.mxu0 0.0
        %2396 = vmatpush1.msra.mxu0 0.0
        %2397 = vmatprep.subr.mxu0 0.0
        %2398 = vmatpush1.msra.mxu0 0.0
        %2399 = vmatprep.subr.mxu0 0.0
        %2400 = vmatpush1.msra.mxu0 0.0
        %2401 = vmatprep.subr.mxu0 0.0
        %2402 = vmatpush1.msra.mxu0 0.0
        %2403 = vmatprep.subr.mxu0 0.0
        %2404 = vmatpush1.msra.mxu0 0.0
        %2405 = vmatprep.subr.mxu0 0.0
        %2406 = vmatpush1.msra.mxu0 0.0
        %2407 = vmatprep.subr.mxu0 0.0
        %2408 = vmatpush1.msra.mxu0 0.0
        %2409 = vmatprep.subr.mxu0 0.0
        %2410 = vmatpush1.msra.mxu0 0.0
        %2411 = vmatprep.subr.mxu0 0.0
        %2412 = vmatpush1.msra.mxu0 0.0
        %2413 = vmatprep.subr.mxu0 0.0
        %2414 = vmatpush1.msra.mxu0 0.0
        %2415 = vmatprep.subr.mxu0 0.0
        %2416 = vmatpush1.msra.mxu0 0.0
        %2417 = vmatprep.subr.mxu0 0.0
        %2418 = vmatpush1.msra.mxu0 0.0
        %2419 = vmatprep.subr.mxu0 0.0
        %2420 = vmatpush1.msra.mxu0 0.0
        %2421 = vmatprep.subr.mxu0 0.0
        %2422 = vmatpush1.msra.mxu0 0.0
        %2423 = vmatprep.subr.mxu0 0.0
        %2424 = vmatpush1.msra.mxu0 0.0
        %2425 = vmatprep.subr.mxu0 0.0
        %2426 = vmatpush1.msra.mxu0 0.0
        %2427 = vmatprep.subr.mxu0 0.0
        %2428 = vmatpush1.msra.mxu0 0.0
        %2429 = vmatprep.subr.mxu0 0.0
        %2430 = vmatpush1.msra.mxu0 0.0
        %2431 = vmatprep.mubr.f32.mxu0 0.0
        %2432 = vmatmul.mubr.f32.gmra.mrb[0].mxu0 %v2365
        %v2433 = vpop.f32.mrb[0].mxu0
        %v2434 = vadd.f32 0.0, %v2433
        %v2435 = vpop.f32.mrb[0].mxu0
        %v2436 = vadd.f32 0.0, %v2435
        %2437 = vdwg.mxu0
        %v2438 = vadd.f32 %v2331, %v2434
        %v2439 = vadd.f32 %v2333, %v2436
        %v2440 = vld [vmem:[%s550] sm:$0xff]
        %v2441 = vld [vmem:[%s550 + $0x8] sm:$0xff]
        %2444 = vrot.lane.b32.xlu0 %v2440, 127
        %v2445 = vpop.permute.xlu0 %2444
        %2446 = vrot.lane.b32.xlu0 %v2441, 127
        %v2447 = vpop.permute.xlu0 %2446
        %v2448 = vsel %vm559, %v2445, %v2447
        %v2452 = vmul.f32 %v2126, %v2445
        %v2453 = vmul.f32 %v2127, %v2448
        %v2454 = vmul.f32 %v2128, %v2447
        %v2455 = vld [vmem:[%s567] sm:$0xff]
        %2459 = vrot.lane.b32.xlu0 %v2452, 1
        %v2460 = vpop.permute.xlu0 %2459
        %2461 = vrot.lane.b32.xlu0 %v2453, 1
        %v2462 = vpop.permute.xlu0 %2461
        %2463 = vrot.lane.b32.xlu0 %v2454, 1
        %v2464 = vpop.permute.xlu0 %2463
        %v2465 = vsel %vm578, %v2460, %v2462
        %v2466 = vsel %vm578, %v2462, %v2464
        %v2470 = vsel %vm278, %v2455, 0
        %2472 = vmatprep.subr.mxu0 %v2466
        %2473 = vmatpush1.msra.mxu0 %v2465
        %2474 = vmatprep.subr.mxu0 0.0
        %2475 = vmatpush1.msra.mxu0 0.0
        %2476 = vmatprep.subr.mxu0 0.0
        %2477 = vmatpush1.msra.mxu0 0.0
        %2478 = vmatprep.subr.mxu0 0.0
        %2479 = vmatpush1.msra.mxu0 0.0
        %2480 = vmatprep.subr.mxu0 0.0
        %2481 = vmatpush1.msra.mxu0 0.0
        %2482 = vmatprep.subr.mxu0 0.0
        %2483 = vmatpush1.msra.mxu0 0.0
        %2484 = vmatprep.subr.mxu0 0.0
        %2485 = vmatpush1.msra.mxu0 0.0
        %2486 = vmatprep.subr.mxu0 0.0
        %2487 = vmatpush1.msra.mxu0 0.0
        %2488 = vmatprep.subr.mxu0 0.0
        %2489 = vmatpush1.msra.mxu0 0.0
        %2490 = vmatprep.subr.mxu0 0.0
        %2491 = vmatpush1.msra.mxu0 0.0
        %2492 = vmatprep.subr.mxu0 0.0
        %2493 = vmatpush1.msra.mxu0 0.0
        %2494 = vmatprep.subr.mxu0 0.0
        %2495 = vmatpush1.msra.mxu0 0.0
        %2496 = vmatprep.subr.mxu0 0.0
        %2497 = vmatpush1.msra.mxu0 0.0
        %2498 = vmatprep.subr.mxu0 0.0
        %2499 = vmatpush1.msra.mxu0 0.0
        %2500 = vmatprep.subr.mxu0 0.0
        %2501 = vmatpush1.msra.mxu0 0.0
        %2502 = vmatprep.subr.mxu0 0.0
        %2503 = vmatpush1.msra.mxu0 0.0
        %2504 = vmatprep.subr.mxu0 0.0
        %2505 = vmatpush1.msra.mxu0 0.0
        %2506 = vmatprep.subr.mxu0 0.0
        %2507 = vmatpush1.msra.mxu0 0.0
        %2508 = vmatprep.subr.mxu0 0.0
        %2509 = vmatpush1.msra.mxu0 0.0
        %2510 = vmatprep.subr.mxu0 0.0
        %2511 = vmatpush1.msra.mxu0 0.0
        %2512 = vmatprep.subr.mxu0 0.0
        %2513 = vmatpush1.msra.mxu0 0.0
        %2514 = vmatprep.subr.mxu0 0.0
        %2515 = vmatpush1.msra.mxu0 0.0
        %2516 = vmatprep.subr.mxu0 0.0
        %2517 = vmatpush1.msra.mxu0 0.0
        %2518 = vmatprep.subr.mxu0 0.0
        %2519 = vmatpush1.msra.mxu0 0.0
        %2520 = vmatprep.subr.mxu0 0.0
        %2521 = vmatpush1.msra.mxu0 0.0
        %2522 = vmatprep.subr.mxu0 0.0
        %2523 = vmatpush1.msra.mxu0 0.0
        %2524 = vmatprep.subr.mxu0 0.0
        %2525 = vmatpush1.msra.mxu0 0.0
        %2526 = vmatprep.subr.mxu0 0.0
        %2527 = vmatpush1.msra.mxu0 0.0
        %2528 = vmatprep.subr.mxu0 0.0
        %2529 = vmatpush1.msra.mxu0 0.0
        %2530 = vmatprep.subr.mxu0 0.0
        %2531 = vmatpush1.msra.mxu0 0.0
        %2532 = vmatprep.subr.mxu0 0.0
        %2533 = vmatpush1.msra.mxu0 0.0
        %2534 = vmatprep.subr.mxu0 0.0
        %2535 = vmatpush1.msra.mxu0 0.0
        %2536 = vmatprep.mubr.f32.mxu0 0.0
        %2537 = vmatmul.mubr.f32.gmra.mrb[0].mxu0 %v2470
        %v2538 = vpop.f32.mrb[0].mxu0
        %v2539 = vadd.f32 0.0, %v2538
        %v2540 = vpop.f32.mrb[0].mxu0
        %v2541 = vadd.f32 0.0, %v2540
        %2542 = vdwg.mxu0
        %v2543 = vadd.f32 %v2438, %v2539
        %v2544 = vadd.f32 %v2439, %v2541
        %v2545 = vld [vmem:[%s659] sm:$0xff]
        %v2546 = vld [vmem:[%s659 + $0x8] sm:$0xff]
        %v2547 = vmul.f32 %v2127, %v2545
        %v2548 = vmul.f32 %v2128, %v2546
        %v2549 = vld [vmem:[%s664] sm:$0xff]
        %v2551 = vsel %vm278, %v2549, 0
        %2553 = vmatprep.subr.mxu0 %v2548
        %2554 = vmatpush1.msra.mxu0 %v2547
        %2555 = vmatprep.subr.mxu0 0.0
        %2556 = vmatpush1.msra.mxu0 0.0
        %2557 = vmatprep.subr.mxu0 0.0
        %2558 = vmatpush1.msra.mxu0 0.0
        %2559 = vmatprep.subr.mxu0 0.0
        %2560 = vmatpush1.msra.mxu0 0.0
        %2561 = vmatprep.subr.mxu0 0.0
        %2562 = vmatpush1.msra.mxu0 0.0
        %2563 = vmatprep.subr.mxu0 0.0
        %2564 = vmatpush1.msra.mxu0 0.0
        %2565 = vmatprep.subr.mxu0 0.0
        %2566 = vmatpush1.msra.mxu0 0.0
        %2567 = vmatprep.subr.mxu0 0.0
        %2568 = vmatpush1.msra.mxu0 0.0
        %2569 = vmatprep.subr.mxu0 0.0
        %2570 = vmatpush1.msra.mxu0 0.0
        %2571 = vmatprep.subr.mxu0 0.0
        %2572 = vmatpush1.msra.mxu0 0.0
        %2573 = vmatprep.subr.mxu0 0.0
        %2574 = vmatpush1.msra.mxu0 0.0
        %2575 = vmatprep.subr.mxu0 0.0
        %2576 = vmatpush1.msra.mxu0 0.0
        %2577 = vmatprep.subr.mxu0 0.0
        %2578 = vmatpush1.msra.mxu0 0.0
        %2579 = vmatprep.subr.mxu0 0.0
        %2580 = vmatpush1.msra.mxu0 0.0
        %2581 = vmatprep.subr.mxu0 0.0
        %2582 = vmatpush1.msra.mxu0 0.0
        %2583 = vmatprep.subr.mxu0 0.0
        %2584 = vmatpush1.msra.mxu0 0.0
        %2585 = vmatprep.subr.mxu0 0.0
        %2586 = vmatpush1.msra.mxu0 0.0
        %2587 = vmatprep.subr.mxu0 0.0
        %2588 = vmatpush1.msra.mxu0 0.0
        %2589 = vmatprep.subr.mxu0 0.0
        %2590 = vmatpush1.msra.mxu0 0.0
        %2591 = vmatprep.subr.mxu0 0.0
        %2592 = vmatpush1.msra.mxu0 0.0
        %2593 = vmatprep.subr.mxu0 0.0
        %2594 = vmatpush1.msra.mxu0 0.0
        %2595 = vmatprep.subr.mxu0 0.0
        %2596 = vmatpush1.msra.mxu0 0.0
        %2597 = vmatprep.subr.mxu0 0.0
        %2598 = vmatpush1.msra.mxu0 0.0
        %2599 = vmatprep.subr.mxu0 0.0
        %2600 = vmatpush1.msra.mxu0 0.0
        %2601 = vmatprep.subr.mxu0 0.0
        %2602 = vmatpush1.msra.mxu0 0.0
        %2603 = vmatprep.subr.mxu0 0.0
        %2604 = vmatpush1.msra.mxu0 0.0
        %2605 = vmatprep.subr.mxu0 0.0
        %2606 = vmatpush1.msra.mxu0 0.0
        %2607 = vmatprep.subr.mxu0 0.0
        %2608 = vmatpush1.msra.mxu0 0.0
        %2609 = vmatprep.subr.mxu0 0.0
        %2610 = vmatpush1.msra.mxu0 0.0
        %2611 = vmatprep.subr.mxu0 0.0
        %2612 = vmatpush1.msra.mxu0 0.0
        %2613 = vmatprep.subr.mxu0 0.0
        %2614 = vmatpush1.msra.mxu0 0.0
        %2615 = vmatprep.subr.mxu0 0.0
        %2616 = vmatpush1.msra.mxu0 0.0
        %2617 = vmatprep.mubr.f32.mxu0 0.0
        %2618 = vmatmul.mubr.f32.gmra.mrb[0].mxu0 %v2551
        %v2619 = vpop.f32.mrb[0].mxu0
        %v2620 = vadd.f32 0.0, %v2619
        %v2621 = vpop.f32.mrb[0].mxu0
        %v2622 = vadd.f32 0.0, %v2621
        %2623 = vdwg.mxu0
        %v2624 = vadd.f32 %v2543, %v2620
        %v2625 = vadd.f32 %v2544, %v2622
        %v2626 = vld [vmem:[#allocation2 + $0x8] sm:$0xff]
        %v2627 = vld [vmem:[#allocation2 + $0x10] sm:$0xff]
        %v2628 = vld [vmem:[#allocation2 + $0x18] sm:$0xff]
        %v2629 = vld [vmem:[%s745] sm:$0xff]
        %v2630 = vld [vmem:[%s745 + $0x8] sm:$0xff]
        %2633 = vrot.lane.b32.xlu0 %v2629, 1
        %v2634 = vpop.permute.xlu0 %2633
        %2635 = vrot.lane.b32.xlu0 %v2630, 1
        %v2636 = vpop.permute.xlu0 %2635
        %v2637 = vsel %vm578, %v2634, %v2636
        %v2641 = vmul.f32 %v2626, %v2634
        %v2642 = vmul.f32 %v2627, %v2637
        %v2643 = vmul.f32 %v2628, %v2636
        %v2644 = vld [vmem:[%s761] sm:$0xff]
        %2648 = vrot.lane.b32.xlu0 %v2641, 127
        %v2649 = vpop.permute.xlu0 %2648
        %2650 = vrot.lane.b32.xlu0 %v2642, 127
        %v2651 = vpop.permute.xlu0 %2650
        %2652 = vrot.lane.b32.xlu0 %v2643, 127
        %v2653 = vpop.permute.xlu0 %2652
        %v2654 = vsel %vm559, %v2649, %v2651
        %v2655 = vsel %vm559, %v2651, %v2653
        %v2659 = vsel %vm278, %v2644, 0
        %2661 = vmatprep.subr.mxu0 %v2655
        %2662 = vmatpush1.msra.mxu0 %v2654
        %2663 = vmatprep.subr.mxu0 0.0
        %2664 = vmatpush1.msra.mxu0 0.0
        %2665 = vmatprep.subr.mxu0 0.0
        %2666 = vmatpush1.msra.mxu0 0.0
        %2667 = vmatprep.subr.mxu0 0.0
        %2668 = vmatpush1.msra.mxu0 0.0
        %2669 = vmatprep.subr.mxu0 0.0
        %2670 = vmatpush1.msra.mxu0 0.0
        %2671 = vmatprep.subr.mxu0 0.0
        %2672 = vmatpush1.msra.mxu0 0.0
        %2673 = vmatprep.subr.mxu0 0.0
        %2674 = vmatpush1.msra.mxu0 0.0
        %2675 = vmatprep.subr.mxu0 0.0
        %2676 = vmatpush1.msra.mxu0 0.0
        %2677 = vmatprep.subr.mxu0 0.0
        %2678 = vmatpush1.msra.mxu0 0.0
        %2679 = vmatprep.subr.mxu0 0.0
        %2680 = vmatpush1.msra.mxu0 0.0
        %2681 = vmatprep.subr.mxu0 0.0
        %2682 = vmatpush1.msra.mxu0 0.0
        %2683 = vmatprep.subr.mxu0 0.0
        %2684 = vmatpush1.msra.mxu0 0.0
        %2685 = vmatprep.subr.mxu0 0.0
        %2686 = vmatpush1.msra.mxu0 0.0
        %2687 = vmatprep.subr.mxu0 0.0
        %2688 = vmatpush1.msra.mxu0 0.0
        %2689 = vmatprep.subr.mxu0 0.0
        %2690 = vmatpush1.msra.mxu0 0.0
        %2691 = vmatprep.subr.mxu0 0.0
        %2692 = vmatpush1.msra.mxu0 0.0
        %2693 = vmatprep.subr.mxu0 0.0
        %2694 = vmatpush1.msra.mxu0 0.0
        %2695 = vmatprep.subr.mxu0 0.0
        %2696 = vmatpush1.msra.mxu0 0.0
        %2697 = vmatprep.subr.mxu0 0.0
        %2698 = vmatpush1.msra.mxu0 0.0
        %2699 = vmatprep.subr.mxu0 0.0
        %2700 = vmatpush1.msra.mxu0 0.0
        %2701 = vmatprep.subr.mxu0 0.0
        %2702 = vmatpush1.msra.mxu0 0.0
        %2703 = vmatprep.subr.mxu0 0.0
        %2704 = vmatpush1.msra.mxu0 0.0
        %2705 = vmatprep.subr.mxu0 0.0
        %2706 = vmatpush1.msra.mxu0 0.0
        %2707 = vmatprep.subr.mxu0 0.0
        %2708 = vmatpush1.msra.mxu0 0.0
        %2709 = vmatprep.subr.mxu0 0.0
        %2710 = vmatpush1.msra.mxu0 0.0
        %2711 = vmatprep.subr.mxu0 0.0
        %2712 = vmatpush1.msra.mxu0 0.0
        %2713 = vmatprep.subr.mxu0 0.0
        %2714 = vmatpush1.msra.mxu0 0.0
        %2715 = vmatprep.subr.mxu0 0.0
        %2716 = vmatpush1.msra.mxu0 0.0
        %2717 = vmatprep.subr.mxu0 0.0
        %2718 = vmatpush1.msra.mxu0 0.0
        %2719 = vmatprep.subr.mxu0 0.0
        %2720 = vmatpush1.msra.mxu0 0.0
        %2721 = vmatprep.subr.mxu0 0.0
        %2722 = vmatpush1.msra.mxu0 0.0
        %2723 = vmatprep.subr.mxu0 0.0
        %2724 = vmatpush1.msra.mxu0 0.0
        %2725 = vmatprep.mubr.f32.mxu0 0.0
        %2726 = vmatmul.mubr.f32.gmra.mrb[0].mxu0 %v2659
        %v2727 = vpop.f32.mrb[0].mxu0
        %v2728 = vadd.f32 0.0, %v2727
        %v2729 = vpop.f32.mrb[0].mxu0
        %v2730 = vadd.f32 0.0, %v2729
        %2731 = vdwg.mxu0
        %v2732 = vadd.f32 %v2624, %v2728
        %v2733 = vadd.f32 %v2625, %v2730
        %v2734 = vld [vmem:[%s852] sm:$0xff]
        %v2735 = vld [vmem:[%s852 + $0x8] sm:$0xff]
        %2738 = vrot.lane.b32.xlu0 %v2734, 15
        %v2739 = vpop.permute.xlu0 %2738
        %2740 = vrot.lane.b32.xlu0 %v2735, 15
        %v2741 = vpop.permute.xlu0 %2740
        %v2742 = vsel %vm469, %v2739, %v2741
        %v2746 = vmul.f32 %v2626, %v2739
        %v2747 = vmul.f32 %v2627, %v2742
        %v2748 = vmul.f32 %v2628, %v2741
        %v2749 = vld [vmem:[%s868] sm:$0xff]
        %2753 = vrot.lane.b32.xlu0 %v2746, 113
        %v2754 = vpop.permute.xlu0 %2753
        %2755 = vrot.lane.b32.xlu0 %v2747, 113
        %v2756 = vpop.permute.xlu0 %2755
        %2757 = vrot.lane.b32.xlu0 %v2748, 113
        %v2758 = vpop.permute.xlu0 %2757
        %v2759 = vsel %vm450, %v2754, %v2756
        %v2760 = vsel %vm450, %v2756, %v2758
        %v2764 = vsel %vm278, %v2749, 0
        %2766 = vmatprep.subr.mxu0 %v2760
        %2767 = vmatpush1.msra.mxu0 %v2759
        %2768 = vmatprep.subr.mxu0 0.0
        %2769 = vmatpush1.msra.mxu0 0.0
        %2770 = vmatprep.subr.mxu0 0.0
        %2771 = vmatpush1.msra.mxu0 0.0
        %2772 = vmatprep.subr.mxu0 0.0
        %2773 = vmatpush1.msra.mxu0 0.0
        %2774 = vmatprep.subr.mxu0 0.0
        %2775 = vmatpush1.msra.mxu0 0.0
        %2776 = vmatprep.subr.mxu0 0.0
        %2777 = vmatpush1.msra.mxu0 0.0
        %2778 = vmatprep.subr.mxu0 0.0
        %2779 = vmatpush1.msra.mxu0 0.0
        %2780 = vmatprep.subr.mxu0 0.0
        %2781 = vmatpush1.msra.mxu0 0.0
        %2782 = vmatprep.subr.mxu0 0.0
        %2783 = vmatpush1.msra.mxu0 0.0
        %2784 = vmatprep.subr.mxu0 0.0
        %2785 = vmatpush1.msra.mxu0 0.0
        %2786 = vmatprep.subr.mxu0 0.0
        %2787 = vmatpush1.msra.mxu0 0.0
        %2788 = vmatprep.subr.mxu0 0.0
        %2789 = vmatpush1.msra.mxu0 0.0
        %2790 = vmatprep.subr.mxu0 0.0
        %2791 = vmatpush1.msra.mxu0 0.0
        %2792 = vmatprep.subr.mxu0 0.0
        %2793 = vmatpush1.msra.mxu0 0.0
        %2794 = vmatprep.subr.mxu0 0.0
        %2795 = vmatpush1.msra.mxu0 0.0
        %2796 = vmatprep.subr.mxu0 0.0
        %2797 = vmatpush1.msra.mxu0 0.0
        %2798 = vmatprep.subr.mxu0 0.0
        %2799 = vmatpush1.msra.mxu0 0.0
        %2800 = vmatprep.subr.mxu0 0.0
        %2801 = vmatpush1.msra.mxu0 0.0
        %2802 = vmatprep.subr.mxu0 0.0
        %2803 = vmatpush1.msra.mxu0 0.0
        %2804 = vmatprep.subr.mxu0 0.0
        %2805 = vmatpush1.msra.mxu0 0.0
        %2806 = vmatprep.subr.mxu0 0.0
        %2807 = vmatpush1.msra.mxu0 0.0
        %2808 = vmatprep.subr.mxu0 0.0
        %2809 = vmatpush1.msra.mxu0 0.0
        %2810 = vmatprep.subr.mxu0 0.0
        %2811 = vmatpush1.msra.mxu0 0.0
        %2812 = vmatprep.subr.mxu0 0.0
        %2813 = vmatpush1.msra.mxu0 0.0
        %2814 = vmatprep.subr.mxu0 0.0
        %2815 = vmatpush1.msra.mxu0 0.0
        %2816 = vmatprep.subr.mxu0 0.0
        %2817 = vmatpush1.msra.mxu0 0.0
        %2818 = vmatprep.subr.mxu0 0.0
        %2819 = vmatpush1.msra.mxu0 0.0
        %2820 = vmatprep.subr.mxu0 0.0
        %2821 = vmatpush1.msra.mxu0 0.0
        %2822 = vmatprep.subr.mxu0 0.0
        %2823 = vmatpush1.msra.mxu0 0.0
        %2824 = vmatprep.subr.mxu0 0.0
        %2825 = vmatpush1.msra.mxu0 0.0
        %2826 = vmatprep.subr.mxu0 0.0
        %2827 = vmatpush1.msra.mxu0 0.0
        %2828 = vmatprep.subr.mxu0 0.0
        %2829 = vmatpush1.msra.mxu0 0.0
        %2830 = vmatprep.mubr.f32.mxu0 0.0
        %2831 = vmatmul.mubr.f32.gmra.mrb[0].mxu0 %v2764
        %v2832 = vpop.f32.mrb[0].mxu0
        %v2833 = vadd.f32 0.0, %v2832
        %v2834 = vpop.f32.mrb[0].mxu0
        %v2835 = vadd.f32 0.0, %v2834
        %2836 = vdwg.mxu0
        %v2837 = vadd.f32 %v2732, %v2833
        %v2838 = vadd.f32 %v2733, %v2835
        %v2839 = vld [vmem:[%s959] sm:$0xff]
        %v2840 = vld [vmem:[%s959 + $0x8] sm:$0xff]
        %2843 = vrot.lane.b32.xlu0 %v2839, 16
        %v2844 = vpop.permute.xlu0 %2843
        %2845 = vrot.lane.b32.xlu0 %v2840, 16
        %v2846 = vpop.permute.xlu0 %2845
        %v2847 = vsel %vm273, %v2844, %v2846
        %v2851 = vmul.f32 %v2626, %v2844
        %v2852 = vmul.f32 %v2627, %v2847
        %v2853 = vmul.f32 %v2628, %v2846
        %v2854 = vld [vmem:[%s975] sm:$0xff]
        %2858 = vrot.lane.b32.xlu0 %v2851, 112
        %v2859 = vpop.permute.xlu0 %2858
        %2860 = vrot.lane.b32.xlu0 %v2852, 112
        %v2861 = vpop.permute.xlu0 %2860
        %2862 = vrot.lane.b32.xlu0 %v2853, 112
        %v2863 = vpop.permute.xlu0 %2862
        %v2864 = vsel %vm254, %v2859, %v2861
        %v2865 = vsel %vm254, %v2861, %v2863
        %v2869 = vsel %vm278, %v2854, 0
        %2871 = vmatprep.subr.mxu0 %v2865
        %2872 = vmatpush1.msra.mxu0 %v2864
        %2873 = vmatprep.subr.mxu0 0.0
        %2874 = vmatpush1.msra.mxu0 0.0
        %2875 = vmatprep.subr.mxu0 0.0
        %2876 = vmatpush1.msra.mxu0 0.0
        %2877 = vmatprep.subr.mxu0 0.0
        %2878 = vmatpush1.msra.mxu0 0.0
        %2879 = vmatprep.subr.mxu0 0.0
        %2880 = vmatpush1.msra.mxu0 0.0
        %2881 = vmatprep.subr.mxu0 0.0
        %2882 = vmatpush1.msra.mxu0 0.0
        %2883 = vmatprep.subr.mxu0 0.0
        %2884 = vmatpush1.msra.mxu0 0.0
        %2885 = vmatprep.subr.mxu0 0.0
        %2886 = vmatpush1.msra.mxu0 0.0
        %2887 = vmatprep.subr.mxu0 0.0
        %2888 = vmatpush1.msra.mxu0 0.0
        %2889 = vmatprep.subr.mxu0 0.0
        %2890 = vmatpush1.msra.mxu0 0.0
        %2891 = vmatprep.subr.mxu0 0.0
        %2892 = vmatpush1.msra.mxu0 0.0
        %2893 = vmatprep.subr.mxu0 0.0
        %2894 = vmatpush1.msra.mxu0 0.0
        %2895 = vmatprep.subr.mxu0 0.0
        %2896 = vmatpush1.msra.mxu0 0.0
        %2897 = vmatprep.subr.mxu0 0.0
        %2898 = vmatpush1.msra.mxu0 0.0
        %2899 = vmatprep.subr.mxu0 0.0
        %2900 = vmatpush1.msra.mxu0 0.0
        %2901 = vmatprep.subr.mxu0 0.0
        %2902 = vmatpush1.msra.mxu0 0.0
        %2903 = vmatprep.subr.mxu0 0.0
        %2904 = vmatpush1.msra.mxu0 0.0
        %2905 = vmatprep.subr.mxu0 0.0
        %2906 = vmatpush1.msra.mxu0 0.0
        %2907 = vmatprep.subr.mxu0 0.0
        %2908 = vmatpush1.msra.mxu0 0.0
        %2909 = vmatprep.subr.mxu0 0.0
        %2910 = vmatpush1.msra.mxu0 0.0
        %2911 = vmatprep.subr.mxu0 0.0
        %2912 = vmatpush1.msra.mxu0 0.0
        %2913 = vmatprep.subr.mxu0 0.0
        %2914 = vmatpush1.msra.mxu0 0.0
        %2915 = vmatprep.subr.mxu0 0.0
        %2916 = vmatpush1.msra.mxu0 0.0
        %2917 = vmatprep.subr.mxu0 0.0
        %2918 = vmatpush1.msra.mxu0 0.0
        %2919 = vmatprep.subr.mxu0 0.0
        %2920 = vmatpush1.msra.mxu0 0.0
        %2921 = vmatprep.subr.mxu0 0.0
        %2922 = vmatpush1.msra.mxu0 0.0
        %2923 = vmatprep.subr.mxu0 0.0
        %2924 = vmatpush1.msra.mxu0 0.0
        %2925 = vmatprep.subr.mxu0 0.0
        %2926 = vmatpush1.msra.mxu0 0.0
        %2927 = vmatprep.subr.mxu0 0.0
        %2928 = vmatpush1.msra.mxu0 0.0
        %2929 = vmatprep.subr.mxu0 0.0
        %2930 = vmatpush1.msra.mxu0 0.0
        %2931 = vmatprep.subr.mxu0 0.0
        %2932 = vmatpush1.msra.mxu0 0.0
        %2933 = vmatprep.subr.mxu0 0.0
        %2934 = vmatpush1.msra.mxu0 0.0
        %2935 = vmatprep.mubr.f32.mxu0 0.0
        %2936 = vmatmul.mubr.f32.gmra.mrb[0].mxu0 %v2869
        %v2937 = vpop.f32.mrb[0].mxu0
        %v2938 = vadd.f32 0.0, %v2937
        %v2939 = vpop.f32.mrb[0].mxu0
        %v2940 = vadd.f32 0.0, %v2939
        %2941 = vdwg.mxu0
        %v2942 = vadd.f32 %v2837, %v2938
        %v2943 = vadd.f32 %v2838, %v2940
        %v2944 = vld [vmem:[%s1066] sm:$0xff]
        %v2945 = vld [vmem:[%s1066 + $0x8] sm:$0xff]
        %2948 = vrot.lane.b32.xlu0 %v2944, 17
        %v2949 = vpop.permute.xlu0 %2948
        %2950 = vrot.lane.b32.xlu0 %v2945, 17
        %v2951 = vpop.permute.xlu0 %2950
        %v2952 = vsel %vm362, %v2949, %v2951
        %v2956 = vmul.f32 %v2626, %v2949
        %v2957 = vmul.f32 %v2627, %v2952
        %v2958 = vmul.f32 %v2628, %v2951
        %v2959 = vld [vmem:[%s1082] sm:$0xff]
        %2963 = vrot.lane.b32.xlu0 %v2956, 111
        %v2964 = vpop.permute.xlu0 %2963
        %2965 = vrot.lane.b32.xlu0 %v2957, 111
        %v2966 = vpop.permute.xlu0 %2965
        %2967 = vrot.lane.b32.xlu0 %v2958, 111
        %v2968 = vpop.permute.xlu0 %2967
        %v2969 = vsel %vm236, %v2964, %v2966
        %v2970 = vsel %vm236, %v2966, %v2968
        %v2974 = vsel %vm278, %v2959, 0
        %2976 = vmatprep.subr.mxu0 %v2970
        %2977 = vmatpush1.msra.mxu0 %v2969
        %2978 = vmatprep.subr.mxu0 0.0
        %2979 = vmatpush1.msra.mxu0 0.0
        %2980 = vmatprep.subr.mxu0 0.0
        %2981 = vmatpush1.msra.mxu0 0.0
        %2982 = vmatprep.subr.mxu0 0.0
        %2983 = vmatpush1.msra.mxu0 0.0
        %2984 = vmatprep.subr.mxu0 0.0
        %2985 = vmatpush1.msra.mxu0 0.0
        %2986 = vmatprep.subr.mxu0 0.0
        %2987 = vmatpush1.msra.mxu0 0.0
        %2988 = vmatprep.subr.mxu0 0.0
        %2989 = vmatpush1.msra.mxu0 0.0
        %2990 = vmatprep.subr.mxu0 0.0
        %2991 = vmatpush1.msra.mxu0 0.0
        %2992 = vmatprep.subr.mxu0 0.0
        %2993 = vmatpush1.msra.mxu0 0.0
        %2994 = vmatprep.subr.mxu0 0.0
        %2995 = vmatpush1.msra.mxu0 0.0
        %2996 = vmatprep.subr.mxu0 0.0
        %2997 = vmatpush1.msra.mxu0 0.0
        %2998 = vmatprep.subr.mxu0 0.0
        %2999 = vmatpush1.msra.mxu0 0.0
        %3000 = vmatprep.subr.mxu0 0.0
        %3001 = vmatpush1.msra.mxu0 0.0
        %3002 = vmatprep.subr.mxu0 0.0
        %3003 = vmatpush1.msra.mxu0 0.0
        %3004 = vmatprep.subr.mxu0 0.0
        %3005 = vmatpush1.msra.mxu0 0.0
        %3006 = vmatprep.subr.mxu0 0.0
        %3007 = vmatpush1.msra.mxu0 0.0
        %3008 = vmatprep.subr.mxu0 0.0
        %3009 = vmatpush1.msra.mxu0 0.0
        %3010 = vmatprep.subr.mxu0 0.0
        %3011 = vmatpush1.msra.mxu0 0.0
        %3012 = vmatprep.subr.mxu0 0.0
        %3013 = vmatpush1.msra.mxu0 0.0
        %3014 = vmatprep.subr.mxu0 0.0
        %3015 = vmatpush1.msra.mxu0 0.0
        %3016 = vmatprep.subr.mxu0 0.0
        %3017 = vmatpush1.msra.mxu0 0.0
        %3018 = vmatprep.subr.mxu0 0.0
        %3019 = vmatpush1.msra.mxu0 0.0
        %3020 = vmatprep.subr.mxu0 0.0
        %3021 = vmatpush1.msra.mxu0 0.0
        %3022 = vmatprep.subr.mxu0 0.0
        %3023 = vmatpush1.msra.mxu0 0.0
        %3024 = vmatprep.subr.mxu0 0.0
        %3025 = vmatpush1.msra.mxu0 0.0
        %3026 = vmatprep.subr.mxu0 0.0
        %3027 = vmatpush1.msra.mxu0 0.0
        %3028 = vmatprep.subr.mxu0 0.0
        %3029 = vmatpush1.msra.mxu0 0.0
        %3030 = vmatprep.subr.mxu0 0.0
        %3031 = vmatpush1.msra.mxu0 0.0
        %3032 = vmatprep.subr.mxu0 0.0
        %3033 = vmatpush1.msra.mxu0 0.0
        %3034 = vmatprep.subr.mxu0 0.0
        %3035 = vmatpush1.msra.mxu0 0.0
        %3036 = vmatprep.subr.mxu0 0.0
        %3037 = vmatpush1.msra.mxu0 0.0
        %3038 = vmatprep.subr.mxu0 0.0
        %3039 = vmatpush1.msra.mxu0 0.0
        %3040 = vmatprep.mubr.f32.mxu0 0.0
        %3041 = vmatmul.mubr.f32.gmra.mrb[0].mxu0 %v2974
        %v3042 = vpop.f32.mrb[0].mxu0
        %v3043 = vadd.f32 0.0, %v3042
        %v3044 = vpop.f32.mrb[0].mxu0
        %v3045 = vadd.f32 0.0, %v3044
        %3046 = vdwg.mxu0
        %v3047 = vadd.f32 %v2942, %v3043
        %v3048 = vadd.f32 %v2943, %v3045
        %v3049 = vmax.f32 %v3047, 0.0
        %v3050 = vmax.f32 %v3048, 0.0
        %v3051 = vsel %vm205, 1.0, %v3049
        %v3052 = vsel %vm205, 1.0, %v3050
        %3053 = vst [vmem:[#allocation2 + $0x8] sm:$0xff] %v3051
        %3054 = vst [vmem:[#allocation2 + $0x10] sm:$0xff] %v3052
        %v3055 = vld [vmem:[#allocation2] sm:$0xff]
        %v3056 = vld [vmem:[#allocation2 + $0x8] sm:$0xff]
        %v3057 = vld [vmem:[#allocation2 + $0x10] sm:$0xff]
        %v3058 = vld [vmem:[%s3] sm:$0xff]
        %v3059 = vld [vmem:[%s3 + $0x8] sm:$0xff]
        %3062 = vrot.lane.b32.xlu0 %v3058, 111
        %v3063 = vpop.permute.xlu0 %3062
        %3064 = vrot.lane.b32.xlu0 %v3059, 111
        %v3065 = vpop.permute.xlu0 %3064
        %v3066 = vsel %vm236, %v3063, %v3065
        %v3070 = vmul.f32 %v3055, %v3063
        %v3071 = vmul.f32 %v3056, %v3066
        %v3072 = vmul.f32 %v3057, %v3065
        %v3073 = vld [vmem:[%s2] sm:$0xff]
        %v3074 = vld [vmem:[%s245] sm:$0xff]
        %v3075 = vld [vmem:[%s245 + $0x8] sm:$0xff]
        %3078 = vrot.lane.b32.xlu0 %v3074, 112
        %v3079 = vpop.permute.xlu0 %3078
        %3080 = vrot.lane.b32.xlu0 %v3075, 112
        %v3081 = vpop.permute.xlu0 %3080
        %v3082 = vsel %vm254, %v3079, %v3081
        %v3086 = vmul.f32 %v3055, %v3079
        %v3087 = vmul.f32 %v3056, %v3082
        %v3088 = vmul.f32 %v3057, %v3081
        %v3089 = vld [vmem:[%s1213] sm:$0xff]
        %3093 = vrot.lane.b32.xlu0 %v3086, 16
        %v3094 = vpop.permute.xlu0 %3093
        %3095 = vrot.lane.b32.xlu0 %v3087, 16
        %v3096 = vpop.permute.xlu0 %3095
        %3097 = vrot.lane.b32.xlu0 %v3088, 16
        %v3098 = vpop.permute.xlu0 %3097
        %v3099 = vsel %vm273, %v3094, %v3096
        %v3100 = vsel %vm273, %v3096, %v3098
        %v3104 = vsel %vm278, %v3089, 0
        %3106 = vmatprep.subr.mxu0 %v3100
        %3107 = vmatpush1.msra.mxu0 %v3099
        %3108 = vmatprep.subr.mxu0 0.0
        %3109 = vmatpush1.msra.mxu0 0.0
        %3110 = vmatprep.subr.mxu0 0.0
        %3111 = vmatpush1.msra.mxu0 0.0
        %3112 = vmatprep.subr.mxu0 0.0
        %3113 = vmatpush1.msra.mxu0 0.0
        %3114 = vmatprep.subr.mxu0 0.0
        %3115 = vmatpush1.msra.mxu0 0.0
        %3116 = vmatprep.subr.mxu0 0.0
        %3117 = vmatpush1.msra.mxu0 0.0
        %3118 = vmatprep.subr.mxu0 0.0
        %3119 = vmatpush1.msra.mxu0 0.0
        %3120 = vmatprep.subr.mxu0 0.0
        %3121 = vmatpush1.msra.mxu0 0.0
        %3122 = vmatprep.subr.mxu0 0.0
        %3123 = vmatpush1.msra.mxu0 0.0
        %3124 = vmatprep.subr.mxu0 0.0
        %3125 = vmatpush1.msra.mxu0 0.0
        %3126 = vmatprep.subr.mxu0 0.0
        %3127 = vmatpush1.msra.mxu0 0.0
        %3128 = vmatprep.subr.mxu0 0.0
        %3129 = vmatpush1.msra.mxu0 0.0
        %3130 = vmatprep.subr.mxu0 0.0
        %3131 = vmatpush1.msra.mxu0 0.0
        %3132 = vmatprep.subr.mxu0 0.0
        %3133 = vmatpush1.msra.mxu0 0.0
        %3134 = vmatprep.subr.mxu0 0.0
        %3135 = vmatpush1.msra.mxu0 0.0
        %3136 = vmatprep.subr.mxu0 0.0
        %3137 = vmatpush1.msra.mxu0 0.0
        %3138 = vmatprep.subr.mxu0 0.0
        %3139 = vmatpush1.msra.mxu0 0.0
        %3140 = vmatprep.subr.mxu0 0.0
        %3141 = vmatpush1.msra.mxu0 0.0
        %3142 = vmatprep.subr.mxu0 0.0
        %3143 = vmatpush1.msra.mxu0 0.0
        %3144 = vmatprep.subr.mxu0 0.0
        %3145 = vmatpush1.msra.mxu0 0.0
        %3146 = vmatprep.subr.mxu0 0.0
        %3147 = vmatpush1.msra.mxu0 0.0
        %3148 = vmatprep.subr.mxu0 0.0
        %3149 = vmatpush1.msra.mxu0 0.0
        %3150 = vmatprep.subr.mxu0 0.0
        %3151 = vmatpush1.msra.mxu0 0.0
        %3152 = vmatprep.subr.mxu0 0.0
        %3153 = vmatpush1.msra.mxu0 0.0
        %3154 = vmatprep.subr.mxu0 0.0
        %3155 = vmatpush1.msra.mxu0 0.0
        %3156 = vmatprep.subr.mxu0 0.0
        %3157 = vmatpush1.msra.mxu0 0.0
        %3158 = vmatprep.subr.mxu0 0.0
        %3159 = vmatpush1.msra.mxu0 0.0
        %3160 = vmatprep.subr.mxu0 0.0
        %3161 = vmatpush1.msra.mxu0 0.0
        %3162 = vmatprep.subr.mxu0 0.0
        %3163 = vmatpush1.msra.mxu0 0.0
        %3164 = vmatprep.subr.mxu0 0.0
        %3165 = vmatpush1.msra.mxu0 0.0
        %3166 = vmatprep.subr.mxu0 0.0
        %3167 = vmatpush1.msra.mxu0 0.0
        %3168 = vmatprep.subr.mxu0 0.0
        %3169 = vmatpush1.msra.mxu0 0.0
        %3170 = vmatprep.mubr.f32.mxu0 0.0
        %3171 = vmatmul.mubr.f32.gmra.mrb[0].mxu0 %v3104
        %v3172 = vpop.f32.mrb[0].mxu0
        %v3173 = vadd.f32 0.0, %v3172
        %v3174 = vpop.f32.mrb[0].mxu0
        %v3175 = vadd.f32 0.0, %v3174
        %3176 = vdwg.mxu0
        %3180 = vrot.lane.b32.xlu0 %v3070, 17
        %v3181 = vpop.permute.xlu0 %3180
        %3182 = vrot.lane.b32.xlu0 %v3071, 17
        %v3183 = vpop.permute.xlu0 %3182
        %3184 = vrot.lane.b32.xlu0 %v3072, 17
        %v3185 = vpop.permute.xlu0 %3184
        %v3186 = vsel %vm362, %v3181, %v3183
        %v3187 = vsel %vm362, %v3183, %v3185
        %v3191 = vsel %vm278, %v3073, 0
        %3193 = vmatprep.subr.mxu0 %v3187
        %3194 = vmatpush1.msra.mxu0 %v3186
        %3195 = vmatprep.subr.mxu0 0.0
        %3196 = vmatpush1.msra.mxu0 0.0
        %3197 = vmatprep.subr.mxu0 0.0
        %3198 = vmatpush1.msra.mxu0 0.0
        %3199 = vmatprep.subr.mxu0 0.0
        %3200 = vmatpush1.msra.mxu0 0.0
        %3201 = vmatprep.subr.mxu0 0.0
        %3202 = vmatpush1.msra.mxu0 0.0
        %3203 = vmatprep.subr.mxu0 0.0
        %3204 = vmatpush1.msra.mxu0 0.0
        %3205 = vmatprep.subr.mxu0 0.0
        %3206 = vmatpush1.msra.mxu0 0.0
        %3207 = vmatprep.subr.mxu0 0.0
        %3208 = vmatpush1.msra.mxu0 0.0
        %3209 = vmatprep.subr.mxu0 0.0
        %3210 = vmatpush1.msra.mxu0 0.0
        %3211 = vmatprep.subr.mxu0 0.0
        %3212 = vmatpush1.msra.mxu0 0.0
        %3213 = vmatprep.subr.mxu0 0.0
        %3214 = vmatpush1.msra.mxu0 0.0
        %3215 = vmatprep.subr.mxu0 0.0
        %3216 = vmatpush1.msra.mxu0 0.0
        %3217 = vmatprep.subr.mxu0 0.0
        %3218 = vmatpush1.msra.mxu0 0.0
        %3219 = vmatprep.subr.mxu0 0.0
        %3220 = vmatpush1.msra.mxu0 0.0
        %3221 = vmatprep.subr.mxu0 0.0
        %3222 = vmatpush1.msra.mxu0 0.0
        %3223 = vmatprep.subr.mxu0 0.0
        %3224 = vmatpush1.msra.mxu0 0.0
        %3225 = vmatprep.subr.mxu0 0.0
        %3226 = vmatpush1.msra.mxu0 0.0
        %3227 = vmatprep.subr.mxu0 0.0
        %3228 = vmatpush1.msra.mxu0 0.0
        %3229 = vmatprep.subr.mxu0 0.0
        %3230 = vmatpush1.msra.mxu0 0.0
        %3231 = vmatprep.subr.mxu0 0.0
        %3232 = vmatpush1.msra.mxu0 0.0
        %3233 = vmatprep.subr.mxu0 0.0
        %3234 = vmatpush1.msra.mxu0 0.0
        %3235 = vmatprep.subr.mxu0 0.0
        %3236 = vmatpush1.msra.mxu0 0.0
        %3237 = vmatprep.subr.mxu0 0.0
        %3238 = vmatpush1.msra.mxu0 0.0
        %3239 = vmatprep.subr.mxu0 0.0
        %3240 = vmatpush1.msra.mxu0 0.0
        %3241 = vmatprep.subr.mxu0 0.0
        %3242 = vmatpush1.msra.mxu0 0.0
        %3243 = vmatprep.subr.mxu0 0.0
        %3244 = vmatpush1.msra.mxu0 0.0
        %3245 = vmatprep.subr.mxu0 0.0
        %3246 = vmatpush1.msra.mxu0 0.0
        %3247 = vmatprep.subr.mxu0 0.0
        %3248 = vmatpush1.msra.mxu0 0.0
        %3249 = vmatprep.subr.mxu0 0.0
        %3250 = vmatpush1.msra.mxu0 0.0
        %3251 = vmatprep.subr.mxu0 0.0
        %3252 = vmatpush1.msra.mxu0 0.0
        %3253 = vmatprep.subr.mxu0 0.0
        %3254 = vmatpush1.msra.mxu0 0.0
        %3255 = vmatprep.subr.mxu0 0.0
        %3256 = vmatpush1.msra.mxu0 0.0
        %3257 = vmatprep.mubr.f32.mxu0 0.0
        %3258 = vmatmul.mubr.f32.gmra.mrb[0].mxu0 %v3191
        %v3259 = vpop.f32.mrb[0].mxu0
        %v3260 = vadd.f32 %v3173, %v3259
        %v3261 = vpop.f32.mrb[0].mxu0
        %v3262 = vadd.f32 %v3175, %v3261
        %3263 = vdwg.mxu0
        %v3264 = vld [vmem:[%s441] sm:$0xff]
        %v3265 = vld [vmem:[%s441 + $0x8] sm:$0xff]
        %3268 = vrot.lane.b32.xlu0 %v3264, 113
        %v3269 = vpop.permute.xlu0 %3268
        %3270 = vrot.lane.b32.xlu0 %v3265, 113
        %v3271 = vpop.permute.xlu0 %3270
        %v3272 = vsel %vm450, %v3269, %v3271
        %v3276 = vmul.f32 %v3055, %v3269
        %v3277 = vmul.f32 %v3056, %v3272
        %v3278 = vmul.f32 %v3057, %v3271
        %v3279 = vld [vmem:[%s1404] sm:$0xff]
        %3283 = vrot.lane.b32.xlu0 %v3276, 15
        %v3284 = vpop.permute.xlu0 %3283
        %3285 = vrot.lane.b32.xlu0 %v3277, 15
        %v3286 = vpop.permute.xlu0 %3285
        %3287 = vrot.lane.b32.xlu0 %v3278, 15
        %v3288 = vpop.permute.xlu0 %3287
        %v3289 = vsel %vm469, %v3284, %v3286
        %v3290 = vsel %vm469, %v3286, %v3288
        %v3294 = vsel %vm278, %v3279, 0
        %3296 = vmatprep.subr.mxu0 %v3290
        %3297 = vmatpush1.msra.mxu0 %v3289
        %3298 = vmatprep.subr.mxu0 0.0
        %3299 = vmatpush1.msra.mxu0 0.0
        %3300 = vmatprep.subr.mxu0 0.0
        %3301 = vmatpush1.msra.mxu0 0.0
        %3302 = vmatprep.subr.mxu0 0.0
        %3303 = vmatpush1.msra.mxu0 0.0
        %3304 = vmatprep.subr.mxu0 0.0
        %3305 = vmatpush1.msra.mxu0 0.0
        %3306 = vmatprep.subr.mxu0 0.0
        %3307 = vmatpush1.msra.mxu0 0.0
        %3308 = vmatprep.subr.mxu0 0.0
        %3309 = vmatpush1.msra.mxu0 0.0
        %3310 = vmatprep.subr.mxu0 0.0
        %3311 = vmatpush1.msra.mxu0 0.0
        %3312 = vmatprep.subr.mxu0 0.0
        %3313 = vmatpush1.msra.mxu0 0.0
        %3314 = vmatprep.subr.mxu0 0.0
        %3315 = vmatpush1.msra.mxu0 0.0
        %3316 = vmatprep.subr.mxu0 0.0
        %3317 = vmatpush1.msra.mxu0 0.0
        %3318 = vmatprep.subr.mxu0 0.0
        %3319 = vmatpush1.msra.mxu0 0.0
        %3320 = vmatprep.subr.mxu0 0.0
        %3321 = vmatpush1.msra.mxu0 0.0
        %3322 = vmatprep.subr.mxu0 0.0
        %3323 = vmatpush1.msra.mxu0 0.0
        %3324 = vmatprep.subr.mxu0 0.0
        %3325 = vmatpush1.msra.mxu0 0.0
        %3326 = vmatprep.subr.mxu0 0.0
        %3327 = vmatpush1.msra.mxu0 0.0
        %3328 = vmatprep.subr.mxu0 0.0
        %3329 = vmatpush1.msra.mxu0 0.0
        %3330 = vmatprep.subr.mxu0 0.0
        %3331 = vmatpush1.msra.mxu0 0.0
        %3332 = vmatprep.subr.mxu0 0.0
        %3333 = vmatpush1.msra.mxu0 0.0
        %3334 = vmatprep.subr.mxu0 0.0
        %3335 = vmatpush1.msra.mxu0 0.0
        %3336 = vmatprep.subr.mxu0 0.0
        %3337 = vmatpush1.msra.mxu0 0.0
        %3338 = vmatprep.subr.mxu0 0.0
        %3339 = vmatpush1.msra.mxu0 0.0
        %3340 = vmatprep.subr.mxu0 0.0
        %3341 = vmatpush1.msra.mxu0 0.0
        %3342 = vmatprep.subr.mxu0 0.0
        %3343 = vmatpush1.msra.mxu0 0.0
        %3344 = vmatprep.subr.mxu0 0.0
        %3345 = vmatpush1.msra.mxu0 0.0
        %3346 = vmatprep.subr.mxu0 0.0
        %3347 = vmatpush1.msra.mxu0 0.0
        %3348 = vmatprep.subr.mxu0 0.0
        %3349 = vmatpush1.msra.mxu0 0.0
        %3350 = vmatprep.subr.mxu0 0.0
        %3351 = vmatpush1.msra.mxu0 0.0
        %3352 = vmatprep.subr.mxu0 0.0
        %3353 = vmatpush1.msra.mxu0 0.0
        %3354 = vmatprep.subr.mxu0 0.0
        %3355 = vmatpush1.msra.mxu0 0.0
        %3356 = vmatprep.subr.mxu0 0.0
        %3357 = vmatpush1.msra.mxu0 0.0
        %3358 = vmatprep.subr.mxu0 0.0
        %3359 = vmatpush1.msra.mxu0 0.0
        %3360 = vmatprep.mubr.f32.mxu0 0.0
        %3361 = vmatmul.mubr.f32.gmra.mrb[0].mxu0 %v3294
        %v3362 = vpop.f32.mrb[0].mxu0
        %v3363 = vadd.f32 0.0, %v3362
        %v3364 = vpop.f32.mrb[0].mxu0
        %v3365 = vadd.f32 0.0, %v3364
        %3366 = vdwg.mxu0
        %v3367 = vadd.f32 %v3260, %v3363
        %v3368 = vadd.f32 %v3262, %v3365
        %v3369 = vld [vmem:[%s550] sm:$0xff]
        %v3370 = vld [vmem:[%s550 + $0x8] sm:$0xff]
        %3373 = vrot.lane.b32.xlu0 %v3369, 127
        %v3374 = vpop.permute.xlu0 %3373
        %3375 = vrot.lane.b32.xlu0 %v3370, 127
        %v3376 = vpop.permute.xlu0 %3375
        %v3377 = vsel %vm559, %v3374, %v3376
        %v3381 = vmul.f32 %v3055, %v3374
        %v3382 = vmul.f32 %v3056, %v3377
        %v3383 = vmul.f32 %v3057, %v3376
        %v3384 = vld [vmem:[%s1510] sm:$0xff]
        %3388 = vrot.lane.b32.xlu0 %v3381, 1
        %v3389 = vpop.permute.xlu0 %3388
        %3390 = vrot.lane.b32.xlu0 %v3382, 1
        %v3391 = vpop.permute.xlu0 %3390
        %3392 = vrot.lane.b32.xlu0 %v3383, 1
        %v3393 = vpop.permute.xlu0 %3392
        %v3394 = vsel %vm578, %v3389, %v3391
        %v3395 = vsel %vm578, %v3391, %v3393
        %v3399 = vsel %vm278, %v3384, 0
        %3401 = vmatprep.subr.mxu0 %v3395
        %3402 = vmatpush1.msra.mxu0 %v3394
        %3403 = vmatprep.subr.mxu0 0.0
        %3404 = vmatpush1.msra.mxu0 0.0
        %3405 = vmatprep.subr.mxu0 0.0
        %3406 = vmatpush1.msra.mxu0 0.0
        %3407 = vmatprep.subr.mxu0 0.0
        %3408 = vmatpush1.msra.mxu0 0.0
        %3409 = vmatprep.subr.mxu0 0.0
        %3410 = vmatpush1.msra.mxu0 0.0
        %3411 = vmatprep.subr.mxu0 0.0
        %3412 = vmatpush1.msra.mxu0 0.0
        %3413 = vmatprep.subr.mxu0 0.0
        %3414 = vmatpush1.msra.mxu0 0.0
        %3415 = vmatprep.subr.mxu0 0.0
        %3416 = vmatpush1.msra.mxu0 0.0
        %3417 = vmatprep.subr.mxu0 0.0
        %3418 = vmatpush1.msra.mxu0 0.0
        %3419 = vmatprep.subr.mxu0 0.0
        %3420 = vmatpush1.msra.mxu0 0.0
        %3421 = vmatprep.subr.mxu0 0.0
        %3422 = vmatpush1.msra.mxu0 0.0
        %3423 = vmatprep.subr.mxu0 0.0
        %3424 = vmatpush1.msra.mxu0 0.0
        %3425 = vmatprep.subr.mxu0 0.0
        %3426 = vmatpush1.msra.mxu0 0.0
        %3427 = vmatprep.subr.mxu0 0.0
        %3428 = vmatpush1.msra.mxu0 0.0
        %3429 = vmatprep.subr.mxu0 0.0
        %3430 = vmatpush1.msra.mxu0 0.0
        %3431 = vmatprep.subr.mxu0 0.0
        %3432 = vmatpush1.msra.mxu0 0.0
        %3433 = vmatprep.subr.mxu0 0.0
        %3434 = vmatpush1.msra.mxu0 0.0
        %3435 = vmatprep.subr.mxu0 0.0
        %3436 = vmatpush1.msra.mxu0 0.0
        %3437 = vmatprep.subr.mxu0 0.0
        %3438 = vmatpush1.msra.mxu0 0.0
        %3439 = vmatprep.subr.mxu0 0.0
        %3440 = vmatpush1.msra.mxu0 0.0
        %3441 = vmatprep.subr.mxu0 0.0
        %3442 = vmatpush1.msra.mxu0 0.0
        %3443 = vmatprep.subr.mxu0 0.0
        %3444 = vmatpush1.msra.mxu0 0.0
        %3445 = vmatprep.subr.mxu0 0.0
        %3446 = vmatpush1.msra.mxu0 0.0
        %3447 = vmatprep.subr.mxu0 0.0
        %3448 = vmatpush1.msra.mxu0 0.0
        %3449 = vmatprep.subr.mxu0 0.0
        %3450 = vmatpush1.msra.mxu0 0.0
        %3451 = vmatprep.subr.mxu0 0.0
        %3452 = vmatpush1.msra.mxu0 0.0
        %3453 = vmatprep.subr.mxu0 0.0
        %3454 = vmatpush1.msra.mxu0 0.0
        %3455 = vmatprep.subr.mxu0 0.0
        %3456 = vmatpush1.msra.mxu0 0.0
        %3457 = vmatprep.subr.mxu0 0.0
        %3458 = vmatpush1.msra.mxu0 0.0
        %3459 = vmatprep.subr.mxu0 0.0
        %3460 = vmatpush1.msra.mxu0 0.0
        %3461 = vmatprep.subr.mxu0 0.0
        %3462 = vmatpush1.msra.mxu0 0.0
        %3463 = vmatprep.subr.mxu0 0.0
        %3464 = vmatpush1.msra.mxu0 0.0
        %3465 = vmatprep.mubr.f32.mxu0 0.0
        %3466 = vmatmul.mubr.f32.gmra.mrb[0].mxu0 %v3399
        %v3467 = vpop.f32.mrb[0].mxu0
        %v3468 = vadd.f32 0.0, %v3467
        %v3469 = vpop.f32.mrb[0].mxu0
        %v3470 = vadd.f32 0.0, %v3469
        %3471 = vdwg.mxu0
        %v3472 = vadd.f32 %v3367, %v3468
        %v3473 = vadd.f32 %v3368, %v3470
        %v3474 = vld [vmem:[%s659] sm:$0xff]
        %v3475 = vld [vmem:[%s659 + $0x8] sm:$0xff]
        %v3476 = vmul.f32 %v3056, %v3474
        %v3477 = vmul.f32 %v3057, %v3475
        %v3478 = vld [vmem:[%s1605] sm:$0xff]
        %v3480 = vsel %vm278, %v3478, 0
        %3482 = vmatprep.subr.mxu0 %v3477
        %3483 = vmatpush1.msra.mxu0 %v3476
        %3484 = vmatprep.subr.mxu0 0.0
        %3485 = vmatpush1.msra.mxu0 0.0
        %3486 = vmatprep.subr.mxu0 0.0
        %3487 = vmatpush1.msra.mxu0 0.0
        %3488 = vmatprep.subr.mxu0 0.0
        %3489 = vmatpush1.msra.mxu0 0.0
        %3490 = vmatprep.subr.mxu0 0.0
        %3491 = vmatpush1.msra.mxu0 0.0
        %3492 = vmatprep.subr.mxu0 0.0
        %3493 = vmatpush1.msra.mxu0 0.0
        %3494 = vmatprep.subr.mxu0 0.0
        %3495 = vmatpush1.msra.mxu0 0.0
        %3496 = vmatprep.subr.mxu0 0.0
        %3497 = vmatpush1.msra.mxu0 0.0
        %3498 = vmatprep.subr.mxu0 0.0
        %3499 = vmatpush1.msra.mxu0 0.0
        %3500 = vmatprep.subr.mxu0 0.0
        %3501 = vmatpush1.msra.mxu0 0.0
        %3502 = vmatprep.subr.mxu0 0.0
        %3503 = vmatpush1.msra.mxu0 0.0
        %3504 = vmatprep.subr.mxu0 0.0
        %3505 = vmatpush1.msra.mxu0 0.0
        %3506 = vmatprep.subr.mxu0 0.0
        %3507 = vmatpush1.msra.mxu0 0.0
        %3508 = vmatprep.subr.mxu0 0.0
        %3509 = vmatpush1.msra.mxu0 0.0
        %3510 = vmatprep.subr.mxu0 0.0
        %3511 = vmatpush1.msra.mxu0 0.0
        %3512 = vmatprep.subr.mxu0 0.0
        %3513 = vmatpush1.msra.mxu0 0.0
        %3514 = vmatprep.subr.mxu0 0.0
        %3515 = vmatpush1.msra.mxu0 0.0
        %3516 = vmatprep.subr.mxu0 0.0
        %3517 = vmatpush1.msra.mxu0 0.0
        %3518 = vmatprep.subr.mxu0 0.0
        %3519 = vmatpush1.msra.mxu0 0.0
        %3520 = vmatprep.subr.mxu0 0.0
        %3521 = vmatpush1.msra.mxu0 0.0
        %3522 = vmatprep.subr.mxu0 0.0
        %3523 = vmatpush1.msra.mxu0 0.0
        %3524 = vmatprep.subr.mxu0 0.0
        %3525 = vmatpush1.msra.mxu0 0.0
        %3526 = vmatprep.subr.mxu0 0.0
        %3527 = vmatpush1.msra.mxu0 0.0
        %3528 = vmatprep.subr.mxu0 0.0
        %3529 = vmatpush1.msra.mxu0 0.0
        %3530 = vmatprep.subr.mxu0 0.0
        %3531 = vmatpush1.msra.mxu0 0.0
        %3532 = vmatprep.subr.mxu0 0.0
        %3533 = vmatpush1.msra.mxu0 0.0
        %3534 = vmatprep.subr.mxu0 0.0
        %3535 = vmatpush1.msra.mxu0 0.0
        %3536 = vmatprep.subr.mxu0 0.0
        %3537 = vmatpush1.msra.mxu0 0.0
        %3538 = vmatprep.subr.mxu0 0.0
        %3539 = vmatpush1.msra.mxu0 0.0
        %3540 = vmatprep.subr.mxu0 0.0
        %3541 = vmatpush1.msra.mxu0 0.0
        %3542 = vmatprep.subr.mxu0 0.0
        %3543 = vmatpush1.msra.mxu0 0.0
        %3544 = vmatprep.subr.mxu0 0.0
        %3545 = vmatpush1.msra.mxu0 0.0
        %3546 = vmatprep.mubr.f32.mxu0 0.0
        %3547 = vmatmul.mubr.f32.gmra.mrb[0].mxu0 %v3480
        %v3548 = vpop.f32.mrb[0].mxu0
        %v3549 = vadd.f32 0.0, %v3548
        %v3550 = vpop.f32.mrb[0].mxu0
        %v3551 = vadd.f32 0.0, %v3550
        %3552 = vdwg.mxu0
        %v3553 = vadd.f32 %v3472, %v3549
        %v3554 = vadd.f32 %v3473, %v3551
        %v3555 = vld [vmem:[#allocation2 + $0x8] sm:$0xff]
        %v3556 = vld [vmem:[#allocation2 + $0x10] sm:$0xff]
        %v3557 = vld [vmem:[#allocation2 + $0x18] sm:$0xff]
        %v3558 = vld [vmem:[%s745] sm:$0xff]
        %v3559 = vld [vmem:[%s745 + $0x8] sm:$0xff]
        %3562 = vrot.lane.b32.xlu0 %v3558, 1
        %v3563 = vpop.permute.xlu0 %3562
        %3564 = vrot.lane.b32.xlu0 %v3559, 1
        %v3565 = vpop.permute.xlu0 %3564
        %v3566 = vsel %vm578, %v3563, %v3565
        %v3570 = vmul.f32 %v3555, %v3563
        %v3571 = vmul.f32 %v3556, %v3566
        %v3572 = vmul.f32 %v3557, %v3565
        %v3573 = vld [vmem:[%s1701] sm:$0xff]
        %3577 = vrot.lane.b32.xlu0 %v3570, 127
        %v3578 = vpop.permute.xlu0 %3577
        %3579 = vrot.lane.b32.xlu0 %v3571, 127
        %v3580 = vpop.permute.xlu0 %3579
        %3581 = vrot.lane.b32.xlu0 %v3572, 127
        %v3582 = vpop.permute.xlu0 %3581
        %v3583 = vsel %vm559, %v3578, %v3580
        %v3584 = vsel %vm559, %v3580, %v3582
        %v3588 = vsel %vm278, %v3573, 0
        %3590 = vmatprep.subr.mxu0 %v3584
        %3591 = vmatpush1.msra.mxu0 %v3583
        %3592 = vmatprep.subr.mxu0 0.0
        %3593 = vmatpush1.msra.mxu0 0.0
        %3594 = vmatprep.subr.mxu0 0.0
        %3595 = vmatpush1.msra.mxu0 0.0
        %3596 = vmatprep.subr.mxu0 0.0
        %3597 = vmatpush1.msra.mxu0 0.0
        %3598 = vmatprep.subr.mxu0 0.0
        %3599 = vmatpush1.msra.mxu0 0.0
        %3600 = vmatprep.subr.mxu0 0.0
        %3601 = vmatpush1.msra.mxu0 0.0
        %3602 = vmatprep.subr.mxu0 0.0
        %3603 = vmatpush1.msra.mxu0 0.0
        %3604 = vmatprep.subr.mxu0 0.0
        %3605 = vmatpush1.msra.mxu0 0.0
        %3606 = vmatprep.subr.mxu0 0.0
        %3607 = vmatpush1.msra.mxu0 0.0
        %3608 = vmatprep.subr.mxu0 0.0
        %3609 = vmatpush1.msra.mxu0 0.0
        %3610 = vmatprep.subr.mxu0 0.0
        %3611 = vmatpush1.msra.mxu0 0.0
        %3612 = vmatprep.subr.mxu0 0.0
        %3613 = vmatpush1.msra.mxu0 0.0
        %3614 = vmatprep.subr.mxu0 0.0
        %3615 = vmatpush1.msra.mxu0 0.0
        %3616 = vmatprep.subr.mxu0 0.0
        %3617 = vmatpush1.msra.mxu0 0.0
        %3618 = vmatprep.subr.mxu0 0.0
        %3619 = vmatpush1.msra.mxu0 0.0
        %3620 = vmatprep.subr.mxu0 0.0
        %3621 = vmatpush1.msra.mxu0 0.0
        %3622 = vmatprep.subr.mxu0 0.0
        %3623 = vmatpush1.msra.mxu0 0.0
        %3624 = vmatprep.subr.mxu0 0.0
        %3625 = vmatpush1.msra.mxu0 0.0
        %3626 = vmatprep.subr.mxu0 0.0
        %3627 = vmatpush1.msra.mxu0 0.0
        %3628 = vmatprep.subr.mxu0 0.0
        %3629 = vmatpush1.msra.mxu0 0.0
        %3630 = vmatprep.subr.mxu0 0.0
        %3631 = vmatpush1.msra.mxu0 0.0
        %3632 = vmatprep.subr.mxu0 0.0
        %3633 = vmatpush1.msra.mxu0 0.0
        %3634 = vmatprep.subr.mxu0 0.0
        %3635 = vmatpush1.msra.mxu0 0.0
        %3636 = vmatprep.subr.mxu0 0.0
        %3637 = vmatpush1.msra.mxu0 0.0
        %3638 = vmatprep.subr.mxu0 0.0
        %3639 = vmatpush1.msra.mxu0 0.0
        %3640 = vmatprep.subr.mxu0 0.0
        %3641 = vmatpush1.msra.mxu0 0.0
        %3642 = vmatprep.subr.mxu0 0.0
        %3643 = vmatpush1.msra.mxu0 0.0
        %3644 = vmatprep.subr.mxu0 0.0
        %3645 = vmatpush1.msra.mxu0 0.0
        %3646 = vmatprep.subr.mxu0 0.0
        %3647 = vmatpush1.msra.mxu0 0.0
        %3648 = vmatprep.subr.mxu0 0.0
        %3649 = vmatpush1.msra.mxu0 0.0
        %3650 = vmatprep.subr.mxu0 0.0
        %3651 = vmatpush1.msra.mxu0 0.0
        %3652 = vmatprep.subr.mxu0 0.0
        %3653 = vmatpush1.msra.mxu0 0.0
        %3654 = vmatprep.mubr.f32.mxu0 0.0
        %3655 = vmatmul.mubr.f32.gmra.mrb[0].mxu0 %v3588
        %v3656 = vpop.f32.mrb[0].mxu0
        %v3657 = vadd.f32 0.0, %v3656
        %v3658 = vpop.f32.mrb[0].mxu0
        %v3659 = vadd.f32 0.0, %v3658
        %3660 = vdwg.mxu0
        %v3661 = vadd.f32 %v3553, %v3657
        %v3662 = vadd.f32 %v3554, %v3659
        %v3663 = vld [vmem:[%s852] sm:$0xff]
        %v3664 = vld [vmem:[%s852 + $0x8] sm:$0xff]
        %3667 = vrot.lane.b32.xlu0 %v3663, 15
        %v3668 = vpop.permute.xlu0 %3667
        %3669 = vrot.lane.b32.xlu0 %v3664, 15
        %v3670 = vpop.permute.xlu0 %3669
        %v3671 = vsel %vm469, %v3668, %v3670
        %v3675 = vmul.f32 %v3555, %v3668
        %v3676 = vmul.f32 %v3556, %v3671
        %v3677 = vmul.f32 %v3557, %v3670
        %v3678 = vld [vmem:[%s1807] sm:$0xff]
        %3682 = vrot.lane.b32.xlu0 %v3675, 113
        %v3683 = vpop.permute.xlu0 %3682
        %3684 = vrot.lane.b32.xlu0 %v3676, 113
        %v3685 = vpop.permute.xlu0 %3684
        %3686 = vrot.lane.b32.xlu0 %v3677, 113
        %v3687 = vpop.permute.xlu0 %3686
        %v3688 = vsel %vm450, %v3683, %v3685
        %v3689 = vsel %vm450, %v3685, %v3687
        %v3693 = vsel %vm278, %v3678, 0
        %3695 = vmatprep.subr.mxu0 %v3689
        %3696 = vmatpush1.msra.mxu0 %v3688
        %3697 = vmatprep.subr.mxu0 0.0
        %3698 = vmatpush1.msra.mxu0 0.0
        %3699 = vmatprep.subr.mxu0 0.0
        %3700 = vmatpush1.msra.mxu0 0.0
        %3701 = vmatprep.subr.mxu0 0.0
        %3702 = vmatpush1.msra.mxu0 0.0
        %3703 = vmatprep.subr.mxu0 0.0
        %3704 = vmatpush1.msra.mxu0 0.0
        %3705 = vmatprep.subr.mxu0 0.0
        %3706 = vmatpush1.msra.mxu0 0.0
        %3707 = vmatprep.subr.mxu0 0.0
        %3708 = vmatpush1.msra.mxu0 0.0
        %3709 = vmatprep.subr.mxu0 0.0
        %3710 = vmatpush1.msra.mxu0 0.0
        %3711 = vmatprep.subr.mxu0 0.0
        %3712 = vmatpush1.msra.mxu0 0.0
        %3713 = vmatprep.subr.mxu0 0.0
        %3714 = vmatpush1.msra.mxu0 0.0
        %3715 = vmatprep.subr.mxu0 0.0
        %3716 = vmatpush1.msra.mxu0 0.0
        %3717 = vmatprep.subr.mxu0 0.0
        %3718 = vmatpush1.msra.mxu0 0.0
        %3719 = vmatprep.subr.mxu0 0.0
        %3720 = vmatpush1.msra.mxu0 0.0
        %3721 = vmatprep.subr.mxu0 0.0
        %3722 = vmatpush1.msra.mxu0 0.0
        %3723 = vmatprep.subr.mxu0 0.0
        %3724 = vmatpush1.msra.mxu0 0.0
        %3725 = vmatprep.subr.mxu0 0.0
        %3726 = vmatpush1.msra.mxu0 0.0
        %3727 = vmatprep.subr.mxu0 0.0
        %3728 = vmatpush1.msra.mxu0 0.0
        %3729 = vmatprep.subr.mxu0 0.0
        %3730 = vmatpush1.msra.mxu0 0.0
        %3731 = vmatprep.subr.mxu0 0.0
        %3732 = vmatpush1.msra.mxu0 0.0
        %3733 = vmatprep.subr.mxu0 0.0
        %3734 = vmatpush1.msra.mxu0 0.0
        %3735 = vmatprep.subr.mxu0 0.0
        %3736 = vmatpush1.msra.mxu0 0.0
        %3737 = vmatprep.subr.mxu0 0.0
        %3738 = vmatpush1.msra.mxu0 0.0
        %3739 = vmatprep.subr.mxu0 0.0
        %3740 = vmatpush1.msra.mxu0 0.0
        %3741 = vmatprep.subr.mxu0 0.0
        %3742 = vmatpush1.msra.mxu0 0.0
        %3743 = vmatprep.subr.mxu0 0.0
        %3744 = vmatpush1.msra.mxu0 0.0
        %3745 = vmatprep.subr.mxu0 0.0
        %3746 = vmatpush1.msra.mxu0 0.0
        %3747 = vmatprep.subr.mxu0 0.0
        %3748 = vmatpush1.msra.mxu0 0.0
        %3749 = vmatprep.subr.mxu0 0.0
        %3750 = vmatpush1.msra.mxu0 0.0
        %3751 = vmatprep.subr.mxu0 0.0
        %3752 = vmatpush1.msra.mxu0 0.0
        %3753 = vmatprep.subr.mxu0 0.0
        %3754 = vmatpush1.msra.mxu0 0.0
        %3755 = vmatprep.subr.mxu0 0.0
        %3756 = vmatpush1.msra.mxu0 0.0
        %3757 = vmatprep.subr.mxu0 0.0
        %3758 = vmatpush1.msra.mxu0 0.0
        %3759 = vmatprep.mubr.f32.mxu0 0.0
        %3760 = vmatmul.mubr.f32.gmra.mrb[0].mxu0 %v3693
        %v3761 = vpop.f32.mrb[0].mxu0
        %v3762 = vadd.f32 0.0, %v3761
        %v3763 = vpop.f32.mrb[0].mxu0
        %v3764 = vadd.f32 0.0, %v3763
        %3765 = vdwg.mxu0
        %v3766 = vadd.f32 %v3661, %v3762
        %v3767 = vadd.f32 %v3662, %v3764
        %v3768 = vld [vmem:[%s959] sm:$0xff]
        %v3769 = vld [vmem:[%s959 + $0x8] sm:$0xff]
        %3772 = vrot.lane.b32.xlu0 %v3768, 16
        %v3773 = vpop.permute.xlu0 %3772
        %3774 = vrot.lane.b32.xlu0 %v3769, 16
        %v3775 = vpop.permute.xlu0 %3774
        %v3776 = vsel %vm273, %v3773, %v3775
        %v3780 = vmul.f32 %v3555, %v3773
        %v3781 = vmul.f32 %v3556, %v3776
        %v3782 = vmul.f32 %v3557, %v3775
        %v3783 = vld [vmem:[%s1913] sm:$0xff]
        %3787 = vrot.lane.b32.xlu0 %v3780, 112
        %v3788 = vpop.permute.xlu0 %3787
        %3789 = vrot.lane.b32.xlu0 %v3781, 112
        %v3790 = vpop.permute.xlu0 %3789
        %3791 = vrot.lane.b32.xlu0 %v3782, 112
        %v3792 = vpop.permute.xlu0 %3791
        %v3793 = vsel %vm254, %v3788, %v3790
        %v3794 = vsel %vm254, %v3790, %v3792
        %v3798 = vsel %vm278, %v3783, 0
        %3800 = vmatprep.subr.mxu0 %v3794
        %3801 = vmatpush1.msra.mxu0 %v3793
        %3802 = vmatprep.subr.mxu0 0.0
        %3803 = vmatpush1.msra.mxu0 0.0
        %3804 = vmatprep.subr.mxu0 0.0
        %3805 = vmatpush1.msra.mxu0 0.0
        %3806 = vmatprep.subr.mxu0 0.0
        %3807 = vmatpush1.msra.mxu0 0.0
        %3808 = vmatprep.subr.mxu0 0.0
        %3809 = vmatpush1.msra.mxu0 0.0
        %3810 = vmatprep.subr.mxu0 0.0
        %3811 = vmatpush1.msra.mxu0 0.0
        %3812 = vmatprep.subr.mxu0 0.0
        %3813 = vmatpush1.msra.mxu0 0.0
        %3814 = vmatprep.subr.mxu0 0.0
        %3815 = vmatpush1.msra.mxu0 0.0
        %3816 = vmatprep.subr.mxu0 0.0
        %3817 = vmatpush1.msra.mxu0 0.0
        %3818 = vmatprep.subr.mxu0 0.0
        %3819 = vmatpush1.msra.mxu0 0.0
        %3820 = vmatprep.subr.mxu0 0.0
        %3821 = vmatpush1.msra.mxu0 0.0
        %3822 = vmatprep.subr.mxu0 0.0
        %3823 = vmatpush1.msra.mxu0 0.0
        %3824 = vmatprep.subr.mxu0 0.0
        %3825 = vmatpush1.msra.mxu0 0.0
        %3826 = vmatprep.subr.mxu0 0.0
        %3827 = vmatpush1.msra.mxu0 0.0
        %3828 = vmatprep.subr.mxu0 0.0
        %3829 = vmatpush1.msra.mxu0 0.0
        %3830 = vmatprep.subr.mxu0 0.0
        %3831 = vmatpush1.msra.mxu0 0.0
        %3832 = vmatprep.subr.mxu0 0.0
        %3833 = vmatpush1.msra.mxu0 0.0
        %3834 = vmatprep.subr.mxu0 0.0
        %3835 = vmatpush1.msra.mxu0 0.0
        %3836 = vmatprep.subr.mxu0 0.0
        %3837 = vmatpush1.msra.mxu0 0.0
        %3838 = vmatprep.subr.mxu0 0.0
        %3839 = vmatpush1.msra.mxu0 0.0
        %3840 = vmatprep.subr.mxu0 0.0
        %3841 = vmatpush1.msra.mxu0 0.0
        %3842 = vmatprep.subr.mxu0 0.0
        %3843 = vmatpush1.msra.mxu0 0.0
        %3844 = vmatprep.subr.mxu0 0.0
        %3845 = vmatpush1.msra.mxu0 0.0
        %3846 = vmatprep.subr.mxu0 0.0
        %3847 = vmatpush1.msra.mxu0 0.0
        %3848 = vmatprep.subr.mxu0 0.0
        %3849 = vmatpush1.msra.mxu0 0.0
        %3850 = vmatprep.subr.mxu0 0.0
        %3851 = vmatpush1.msra.mxu0 0.0
        %3852 = vmatprep.subr.mxu0 0.0
        %3853 = vmatpush1.msra.mxu0 0.0
        %3854 = vmatprep.subr.mxu0 0.0
        %3855 = vmatpush1.msra.mxu0 0.0
        %3856 = vmatprep.subr.mxu0 0.0
        %3857 = vmatpush1.msra.mxu0 0.0
        %3858 = vmatprep.subr.mxu0 0.0
        %3859 = vmatpush1.msra.mxu0 0.0
        %3860 = vmatprep.subr.mxu0 0.0
        %3861 = vmatpush1.msra.mxu0 0.0
        %3862 = vmatprep.subr.mxu0 0.0
        %3863 = vmatpush1.msra.mxu0 0.0
        %3864 = vmatprep.mubr.f32.mxu0 0.0
        %3865 = vmatmul.mubr.f32.gmra.mrb[0].mxu0 %v3798
        %v3866 = vpop.f32.mrb[0].mxu0
        %v3867 = vadd.f32 0.0, %v3866
        %v3868 = vpop.f32.mrb[0].mxu0
        %v3869 = vadd.f32 0.0, %v3868
        %3870 = vdwg.mxu0
        %v3871 = vadd.f32 %v3766, %v3867
        %v3872 = vadd.f32 %v3767, %v3869
        %v3873 = vld [vmem:[%s1066] sm:$0xff]
        %v3874 = vld [vmem:[%s1066 + $0x8] sm:$0xff]
        %3877 = vrot.lane.b32.xlu0 %v3873, 17
        %v3878 = vpop.permute.xlu0 %3877
        %3879 = vrot.lane.b32.xlu0 %v3874, 17
        %v3880 = vpop.permute.xlu0 %3879
        %v3881 = vsel %vm362, %v3878, %v3880
        %v3885 = vmul.f32 %v3555, %v3878
        %v3886 = vmul.f32 %v3556, %v3881
        %v3887 = vmul.f32 %v3557, %v3880
        %v3888 = vld [vmem:[%s2019] sm:$0xff]
        %3892 = vrot.lane.b32.xlu0 %v3885, 111
        %v3893 = vpop.permute.xlu0 %3892
        %3894 = vrot.lane.b32.xlu0 %v3886, 111
        %v3895 = vpop.permute.xlu0 %3894
        %3896 = vrot.lane.b32.xlu0 %v3887, 111
        %v3897 = vpop.permute.xlu0 %3896
        %v3898 = vsel %vm236, %v3893, %v3895
        %v3899 = vsel %vm236, %v3895, %v3897
        %v3903 = vsel %vm278, %v3888, 0
        %3905 = vmatprep.subr.mxu0 %v3899
        %3906 = vmatpush1.msra.mxu0 %v3898
        %3907 = vmatprep.subr.mxu0 0.0
        %3908 = vmatpush1.msra.mxu0 0.0
        %3909 = vmatprep.subr.mxu0 0.0
        %3910 = vmatpush1.msra.mxu0 0.0
        %3911 = vmatprep.subr.mxu0 0.0
        %3912 = vmatpush1.msra.mxu0 0.0
        %3913 = vmatprep.subr.mxu0 0.0
        %3914 = vmatpush1.msra.mxu0 0.0
        %3915 = vmatprep.subr.mxu0 0.0
        %3916 = vmatpush1.msra.mxu0 0.0
        %3917 = vmatprep.subr.mxu0 0.0
        %3918 = vmatpush1.msra.mxu0 0.0
        %3919 = vmatprep.subr.mxu0 0.0
        %3920 = vmatpush1.msra.mxu0 0.0
        %3921 = vmatprep.subr.mxu0 0.0
        %3922 = vmatpush1.msra.mxu0 0.0
        %3923 = vmatprep.subr.mxu0 0.0
        %3924 = vmatpush1.msra.mxu0 0.0
        %3925 = vmatprep.subr.mxu0 0.0
        %3926 = vmatpush1.msra.mxu0 0.0
        %3927 = vmatprep.subr.mxu0 0.0
        %3928 = vmatpush1.msra.mxu0 0.0
        %3929 = vmatprep.subr.mxu0 0.0
        %3930 = vmatpush1.msra.mxu0 0.0
        %3931 = vmatprep.subr.mxu0 0.0
        %3932 = vmatpush1.msra.mxu0 0.0
        %3933 = vmatprep.subr.mxu0 0.0
        %3934 = vmatpush1.msra.mxu0 0.0
        %3935 = vmatprep.subr.mxu0 0.0
        %3936 = vmatpush1.msra.mxu0 0.0
        %3937 = vmatprep.subr.mxu0 0.0
        %3938 = vmatpush1.msra.mxu0 0.0
        %3939 = vmatprep.subr.mxu0 0.0
        %3940 = vmatpush1.msra.mxu0 0.0
        %3941 = vmatprep.subr.mxu0 0.0
        %3942 = vmatpush1.msra.mxu0 0.0
        %3943 = vmatprep.subr.mxu0 0.0
        %3944 = vmatpush1.msra.mxu0 0.0
        %3945 = vmatprep.subr.mxu0 0.0
        %3946 = vmatpush1.msra.mxu0 0.0
        %3947 = vmatprep.subr.mxu0 0.0
        %3948 = vmatpush1.msra.mxu0 0.0
        %3949 = vmatprep.subr.mxu0 0.0
        %3950 = vmatpush1.msra.mxu0 0.0
        %3951 = vmatprep.subr.mxu0 0.0
        %3952 = vmatpush1.msra.mxu0 0.0
        %3953 = vmatprep.subr.mxu0 0.0
        %3954 = vmatpush1.msra.mxu0 0.0
        %3955 = vmatprep.subr.mxu0 0.0
        %3956 = vmatpush1.msra.mxu0 0.0
        %3957 = vmatprep.subr.mxu0 0.0
        %3958 = vmatpush1.msra.mxu0 0.0
        %3959 = vmatprep.subr.mxu0 0.0
        %3960 = vmatpush1.msra.mxu0 0.0
        %3961 = vmatprep.subr.mxu0 0.0
        %3962 = vmatpush1.msra.mxu0 0.0
        %3963 = vmatprep.subr.mxu0 0.0
        %3964 = vmatpush1.msra.mxu0 0.0
        %3965 = vmatprep.subr.mxu0 0.0
        %3966 = vmatpush1.msra.mxu0 0.0
        %3967 = vmatprep.subr.mxu0 0.0
        %3968 = vmatpush1.msra.mxu0 0.0
        %3969 = vmatprep.mubr.f32.mxu0 0.0
        %3970 = vmatmul.mubr.f32.gmra.mrb[0].mxu0 %v3903
        %v3971 = vpop.f32.mrb[0].mxu0
        %v3972 = vadd.f32 0.0, %v3971
        %v3973 = vpop.f32.mrb[0].mxu0
        %v3974 = vadd.f32 0.0, %v3973
        %3975 = vdwg.mxu0
        %v3976 = vadd.f32 %v3871, %v3972
        %v3977 = vadd.f32 %v3872, %v3974
        %v3978 = vmul.f32 %v3976, 0.041666668
        %v3979 = vmul.f32 %v3977, 0.041666668
        %v3980 = vadd.f32 %v2112, %v3978
        %v3981 = vadd.f32 %v2113, %v3979
        %v3982 = vmul.f32 %v3976, 0.0625
        %v3983 = vmul.f32 %v3977, 0.0625
        %v3984 = vadd.f32 %v214, %v3982
        %v3985 = vadd.f32 %v215, %v3983
        %v3986 = vsel %vm204, %v2119, %v3984
        %v3987 = vsel %vm204, %v2119, %v3985
        %v3988 = vsel %vm205, 1.0, %v3986
        %v3989 = vsel %vm205, 1.0, %v3987
        %3990 = vst [vmem:[#allocation2 + $0x8] sm:$0xff] %v3988
        %3991 = vst [vmem:[#allocation2 + $0x10] sm:$0xff] %v3989
        %v3992 = vld [vmem:[#allocation2] sm:$0xff]
        %v3993 = vld [vmem:[#allocation2 + $0x8] sm:$0xff]
        %v3994 = vld [vmem:[#allocation2 + $0x10] sm:$0xff]
        %v3995 = vld [vmem:[%s3] sm:$0xff]
        %v3996 = vld [vmem:[%s3 + $0x8] sm:$0xff]
        %3999 = vrot.lane.b32.xlu0 %v3995, 111
        %v4000 = vpop.permute.xlu0 %3999
        %4001 = vrot.lane.b32.xlu0 %v3996, 111
        %v4002 = vpop.permute.xlu0 %4001
        %v4003 = vsel %vm236, %v4000, %v4002
        %v4007 = vmul.f32 %v3992, %v4000
        %v4008 = vmul.f32 %v3993, %v4003
        %v4009 = vmul.f32 %v3994, %v4002
        %v4010 = vld [vmem:[%s1] sm:$0xff]
        %v4011 = vld [vmem:[%s245] sm:$0xff]
        %v4012 = vld [vmem:[%s245 + $0x8] sm:$0xff]
        %4015 = vrot.lane.b32.xlu0 %v4011, 112
        %v4016 = vpop.permute.xlu0 %4015
        %4017 = vrot.lane.b32.xlu0 %v4012, 112
        %v4018 = vpop.permute.xlu0 %4017
        %v4019 = vsel %vm254, %v4016, %v4018
        %v4023 = vmul.f32 %v3992, %v4016
        %v4024 = vmul.f32 %v3993, %v4019
        %v4025 = vmul.f32 %v3994, %v4018
        %v4026 = vld [vmem:[%s262] sm:$0xff]
        %4030 = vrot.lane.b32.xlu0 %v4023, 16
        %v4031 = vpop.permute.xlu0 %4030
        %4032 = vrot.lane.b32.xlu0 %v4024, 16
        %v4033 = vpop.permute.xlu0 %4032
        %4034 = vrot.lane.b32.xlu0 %v4025, 16
        %v4035 = vpop.permute.xlu0 %4034
        %v4036 = vsel %vm273, %v4031, %v4033
        %v4037 = vsel %vm273, %v4033, %v4035
        %v4041 = vsel %vm278, %v4026, 0
        %4043 = vmatprep.subr.mxu0 %v4037
        %4044 = vmatpush1.msra.mxu0 %v4036
        %4045 = vmatprep.subr.mxu0 0.0
        %4046 = vmatpush1.msra.mxu0 0.0
        %4047 = vmatprep.subr.mxu0 0.0
        %4048 = vmatpush1.msra.mxu0 0.0
        %4049 = vmatprep.subr.mxu0 0.0
        %4050 = vmatpush1.msra.mxu0 0.0
        %4051 = vmatprep.subr.mxu0 0.0
        %4052 = vmatpush1.msra.mxu0 0.0
        %4053 = vmatprep.subr.mxu0 0.0
        %4054 = vmatpush1.msra.mxu0 0.0
        %4055 = vmatprep.subr.mxu0 0.0
        %4056 = vmatpush1.msra.mxu0 0.0
        %4057 = vmatprep.subr.mxu0 0.0
        %4058 = vmatpush1.msra.mxu0 0.0
        %4059 = vmatprep.subr.mxu0 0.0
        %4060 = vmatpush1.msra.mxu0 0.0
        %4061 = vmatprep.subr.mxu0 0.0
        %4062 = vmatpush1.msra.mxu0 0.0
        %4063 = vmatprep.subr.mxu0 0.0
        %4064 = vmatpush1.msra.mxu0 0.0
        %4065 = vmatprep.subr.mxu0 0.0
        %4066 = vmatpush1.msra.mxu0 0.0
        %4067 = vmatprep.subr.mxu0 0.0
        %4068 = vmatpush1.msra.mxu0 0.0
        %4069 = vmatprep.subr.mxu0 0.0
        %4070 = vmatpush1.msra.mxu0 0.0
        %4071 = vmatprep.subr.mxu0 0.0
        %4072 = vmatpush1.msra.mxu0 0.0
        %4073 = vmatprep.subr.mxu0 0.0
        %4074 = vmatpush1.msra.mxu0 0.0
        %4075 = vmatprep.subr.mxu0 0.0
        %4076 = vmatpush1.msra.mxu0 0.0
        %4077 = vmatprep.subr.mxu0 0.0
        %4078 = vmatpush1.msra.mxu0 0.0
        %4079 = vmatprep.subr.mxu0 0.0
        %4080 = vmatpush1.msra.mxu0 0.0
        %4081 = vmatprep.subr.mxu0 0.0
        %4082 = vmatpush1.msra.mxu0 0.0
        %4083 = vmatprep.subr.mxu0 0.0
        %4084 = vmatpush1.msra.mxu0 0.0
        %4085 = vmatprep.subr.mxu0 0.0
        %4086 = vmatpush1.msra.mxu0 0.0
        %4087 = vmatprep.subr.mxu0 0.0
        %4088 = vmatpush1.msra.mxu0 0.0
        %4089 = vmatprep.subr.mxu0 0.0
        %4090 = vmatpush1.msra.mxu0 0.0
        %4091 = vmatprep.subr.mxu0 0.0
        %4092 = vmatpush1.msra.mxu0 0.0
        %4093 = vmatprep.subr.mxu0 0.0
        %4094 = vmatpush1.msra.mxu0 0.0
        %4095 = vmatprep.subr.mxu0 0.0
        %4096 = vmatpush1.msra.mxu0 0.0
        %4097 = vmatprep.subr.mxu0 0.0
        %4098 = vmatpush1.msra.mxu0 0.0
        %4099 = vmatprep.subr.mxu0 0.0
        %4100 = vmatpush1.msra.mxu0 0.0
        %4101 = vmatprep.subr.mxu0 0.0
        %4102 = vmatpush1.msra.mxu0 0.0
        %4103 = vmatprep.subr.mxu0 0.0
        %4104 = vmatpush1.msra.mxu0 0.0
        %4105 = vmatprep.subr.mxu0 0.0
        %4106 = vmatpush1.msra.mxu0 0.0
        %4107 = vmatprep.mubr.f32.mxu0 0.0
        %4108 = vmatmul.mubr.f32.gmra.mrb[0].mxu0 %v4041
        %v4109 = vpop.f32.mrb[0].mxu0
        %v4110 = vadd.f32 0.0, %v4109
        %v4111 = vpop.f32.mrb[0].mxu0
        %v4112 = vadd.f32 0.0, %v4111
        %4113 = vdwg.mxu0
        %4117 = vrot.lane.b32.xlu0 %v4007, 17
        %v4118 = vpop.permute.xlu0 %4117
        %4119 = vrot.lane.b32.xlu0 %v4008, 17
        %v4120 = vpop.permute.xlu0 %4119
        %4121 = vrot.lane.b32.xlu0 %v4009, 17
        %v4122 = vpop.permute.xlu0 %4121
        %v4123 = vsel %vm362, %v4118, %v4120
        %v4124 = vsel %vm362, %v4120, %v4122
        %v4128 = vsel %vm278, %v4010, 0
        %4130 = vmatprep.subr.mxu0 %v4124
        %4131 = vmatpush1.msra.mxu0 %v4123
        %4132 = vmatprep.subr.mxu0 0.0
        %4133 = vmatpush1.msra.mxu0 0.0
        %4134 = vmatprep.subr.mxu0 0.0
        %4135 = vmatpush1.msra.mxu0 0.0
        %4136 = vmatprep.subr.mxu0 0.0
        %4137 = vmatpush1.msra.mxu0 0.0
        %4138 = vmatprep.subr.mxu0 0.0
        %4139 = vmatpush1.msra.mxu0 0.0
        %4140 = vmatprep.subr.mxu0 0.0
        %4141 = vmatpush1.msra.mxu0 0.0
        %4142 = vmatprep.subr.mxu0 0.0
        %4143 = vmatpush1.msra.mxu0 0.0
        %4144 = vmatprep.subr.mxu0 0.0
        %4145 = vmatpush1.msra.mxu0 0.0
        %4146 = vmatprep.subr.mxu0 0.0
        %4147 = vmatpush1.msra.mxu0 0.0
        %4148 = vmatprep.subr.mxu0 0.0
        %4149 = vmatpush1.msra.mxu0 0.0
        %4150 = vmatprep.subr.mxu0 0.0
        %4151 = vmatpush1.msra.mxu0 0.0
        %4152 = vmatprep.subr.mxu0 0.0
        %4153 = vmatpush1.msra.mxu0 0.0
        %4154 = vmatprep.subr.mxu0 0.0
        %4155 = vmatpush1.msra.mxu0 0.0
        %4156 = vmatprep.subr.mxu0 0.0
        %4157 = vmatpush1.msra.mxu0 0.0
        %4158 = vmatprep.subr.mxu0 0.0
        %4159 = vmatpush1.msra.mxu0 0.0
        %4160 = vmatprep.subr.mxu0 0.0
        %4161 = vmatpush1.msra.mxu0 0.0
        %4162 = vmatprep.subr.mxu0 0.0
        %4163 = vmatpush1.msra.mxu0 0.0
        %4164 = vmatprep.subr.mxu0 0.0
        %4165 = vmatpush1.msra.mxu0 0.0
        %4166 = vmatprep.subr.mxu0 0.0
        %4167 = vmatpush1.msra.mxu0 0.0
        %4168 = vmatprep.subr.mxu0 0.0
        %4169 = vmatpush1.msra.mxu0 0.0
        %4170 = vmatprep.subr.mxu0 0.0
        %4171 = vmatpush1.msra.mxu0 0.0
        %4172 = vmatprep.subr.mxu0 0.0
        %4173 = vmatpush1.msra.mxu0 0.0
        %4174 = vmatprep.subr.mxu0 0.0
        %4175 = vmatpush1.msra.mxu0 0.0
        %4176 = vmatprep.subr.mxu0 0.0
        %4177 = vmatpush1.msra.mxu0 0.0
        %4178 = vmatprep.subr.mxu0 0.0
        %4179 = vmatpush1.msra.mxu0 0.0
        %4180 = vmatprep.subr.mxu0 0.0
        %4181 = vmatpush1.msra.mxu0 0.0
        %4182 = vmatprep.subr.mxu0 0.0
        %4183 = vmatpush1.msra.mxu0 0.0
        %4184 = vmatprep.subr.mxu0 0.0
        %4185 = vmatpush1.msra.mxu0 0.0
        %4186 = vmatprep.subr.mxu0 0.0
        %4187 = vmatpush1.msra.mxu0 0.0
        %4188 = vmatprep.subr.mxu0 0.0
        %4189 = vmatpush1.msra.mxu0 0.0
        %4190 = vmatprep.subr.mxu0 0.0
        %4191 = vmatpush1.msra.mxu0 0.0
        %4192 = vmatprep.subr.mxu0 0.0
        %4193 = vmatpush1.msra.mxu0 0.0
        %4194 = vmatprep.mubr.f32.mxu0 0.0
        %4195 = vmatmul.mubr.f32.gmra.mrb[0].mxu0 %v4128
        %v4196 = vpop.f32.mrb[0].mxu0
        %v4197 = vadd.f32 %v4110, %v4196
        %v4198 = vpop.f32.mrb[0].mxu0
        %v4199 = vadd.f32 %v4112, %v4198
        %4200 = vdwg.mxu0
        %v4201 = vld [vmem:[%s441] sm:$0xff]
        %v4202 = vld [vmem:[%s441 + $0x8] sm:$0xff]
        %4205 = vrot.lane.b32.xlu0 %v4201, 113
        %v4206 = vpop.permute.xlu0 %4205
        %4207 = vrot.lane.b32.xlu0 %v4202, 113
        %v4208 = vpop.permute.xlu0 %4207
        %v4209 = vsel %vm450, %v4206, %v4208
        %v4213 = vmul.f32 %v3992, %v4206
        %v4214 = vmul.f32 %v3993, %v4209
        %v4215 = vmul.f32 %v3994, %v4208
        %v4216 = vld [vmem:[%s458] sm:$0xff]
        %4220 = vrot.lane.b32.xlu0 %v4213, 15
        %v4221 = vpop.permute.xlu0 %4220
        %4222 = vrot.lane.b32.xlu0 %v4214, 15
        %v4223 = vpop.permute.xlu0 %4222
        %4224 = vrot.lane.b32.xlu0 %v4215, 15
        %v4225 = vpop.permute.xlu0 %4224
        %v4226 = vsel %vm469, %v4221, %v4223
        %v4227 = vsel %vm469, %v4223, %v4225
        %v4231 = vsel %vm278, %v4216, 0
        %4233 = vmatprep.subr.mxu0 %v4227
        %4234 = vmatpush1.msra.mxu0 %v4226
        %4235 = vmatprep.subr.mxu0 0.0
        %4236 = vmatpush1.msra.mxu0 0.0
        %4237 = vmatprep.subr.mxu0 0.0
        %4238 = vmatpush1.msra.mxu0 0.0
        %4239 = vmatprep.subr.mxu0 0.0
        %4240 = vmatpush1.msra.mxu0 0.0
        %4241 = vmatprep.subr.mxu0 0.0
        %4242 = vmatpush1.msra.mxu0 0.0
        %4243 = vmatprep.subr.mxu0 0.0
        %4244 = vmatpush1.msra.mxu0 0.0
        %4245 = vmatprep.subr.mxu0 0.0
        %4246 = vmatpush1.msra.mxu0 0.0
        %4247 = vmatprep.subr.mxu0 0.0
        %4248 = vmatpush1.msra.mxu0 0.0
        %4249 = vmatprep.subr.mxu0 0.0
        %4250 = vmatpush1.msra.mxu0 0.0
        %4251 = vmatprep.subr.mxu0 0.0
        %4252 = vmatpush1.msra.mxu0 0.0
        %4253 = vmatprep.subr.mxu0 0.0
        %4254 = vmatpush1.msra.mxu0 0.0
        %4255 = vmatprep.subr.mxu0 0.0
        %4256 = vmatpush1.msra.mxu0 0.0
        %4257 = vmatprep.subr.mxu0 0.0
        %4258 = vmatpush1.msra.mxu0 0.0
        %4259 = vmatprep.subr.mxu0 0.0
        %4260 = vmatpush1.msra.mxu0 0.0
        %4261 = vmatprep.subr.mxu0 0.0
        %4262 = vmatpush1.msra.mxu0 0.0
        %4263 = vmatprep.subr.mxu0 0.0
        %4264 = vmatpush1.msra.mxu0 0.0
        %4265 = vmatprep.subr.mxu0 0.0
        %4266 = vmatpush1.msra.mxu0 0.0
        %4267 = vmatprep.subr.mxu0 0.0
        %4268 = vmatpush1.msra.mxu0 0.0
        %4269 = vmatprep.subr.mxu0 0.0
        %4270 = vmatpush1.msra.mxu0 0.0
        %4271 = vmatprep.subr.mxu0 0.0
        %4272 = vmatpush1.msra.mxu0 0.0
        %4273 = vmatprep.subr.mxu0 0.0
        %4274 = vmatpush1.msra.mxu0 0.0
        %4275 = vmatprep.subr.mxu0 0.0
        %4276 = vmatpush1.msra.mxu0 0.0
        %4277 = vmatprep.subr.mxu0 0.0
        %4278 = vmatpush1.msra.mxu0 0.0
        %4279 = vmatprep.subr.mxu0 0.0
        %4280 = vmatpush1.msra.mxu0 0.0
        %4281 = vmatprep.subr.mxu0 0.0
        %4282 = vmatpush1.msra.mxu0 0.0
        %4283 = vmatprep.subr.mxu0 0.0
        %4284 = vmatpush1.msra.mxu0 0.0
        %4285 = vmatprep.subr.mxu0 0.0
        %4286 = vmatpush1.msra.mxu0 0.0
        %4287 = vmatprep.subr.mxu0 0.0
        %4288 = vmatpush1.msra.mxu0 0.0
        %4289 = vmatprep.subr.mxu0 0.0
        %4290 = vmatpush1.msra.mxu0 0.0
        %4291 = vmatprep.subr.mxu0 0.0
        %4292 = vmatpush1.msra.mxu0 0.0
        %4293 = vmatprep.subr.mxu0 0.0
        %4294 = vmatpush1.msra.mxu0 0.0
        %4295 = vmatprep.subr.mxu0 0.0
        %4296 = vmatpush1.msra.mxu0 0.0
        %4297 = vmatprep.mubr.f32.mxu0 0.0
        %4298 = vmatmul.mubr.f32.gmra.mrb[0].mxu0 %v4231
        %v4299 = vpop.f32.mrb[0].mxu0
        %v4300 = vadd.f32 0.0, %v4299
        %v4301 = vpop.f32.mrb[0].mxu0
        %v4302 = vadd.f32 0.0, %v4301
        %4303 = vdwg.mxu0
        %v4304 = vadd.f32 %v4197, %v4300
        %v4305 = vadd.f32 %v4199, %v4302
        %v4306 = vld [vmem:[%s550] sm:$0xff]
        %v4307 = vld [vmem:[%s550 + $0x8] sm:$0xff]
        %4310 = vrot.lane.b32.xlu0 %v4306, 127
        %v4311 = vpop.permute.xlu0 %4310
        %4312 = vrot.lane.b32.xlu0 %v4307, 127
        %v4313 = vpop.permute.xlu0 %4312
        %v4314 = vsel %vm559, %v4311, %v4313
        %v4318 = vmul.f32 %v3992, %v4311
        %v4319 = vmul.f32 %v3993, %v4314
        %v4320 = vmul.f32 %v3994, %v4313
        %v4321 = vld [vmem:[%s567] sm:$0xff]
        %4325 = vrot.lane.b32.xlu0 %v4318, 1
        %v4326 = vpop.permute.xlu0 %4325
        %4327 = vrot.lane.b32.xlu0 %v4319, 1
        %v4328 = vpop.permute.xlu0 %4327
        %4329 = vrot.lane.b32.xlu0 %v4320, 1
        %v4330 = vpop.permute.xlu0 %4329
        %v4331 = vsel %vm578, %v4326, %v4328
        %v4332 = vsel %vm578, %v4328, %v4330
        %v4336 = vsel %vm278, %v4321, 0
        %4338 = vmatprep.subr.mxu0 %v4332
        %4339 = vmatpush1.msra.mxu0 %v4331
        %4340 = vmatprep.subr.mxu0 0.0
        %4341 = vmatpush1.msra.mxu0 0.0
        %4342 = vmatprep.subr.mxu0 0.0
        %4343 = vmatpush1.msra.mxu0 0.0
        %4344 = vmatprep.subr.mxu0 0.0
        %4345 = vmatpush1.msra.mxu0 0.0
        %4346 = vmatprep.subr.mxu0 0.0
        %4347 = vmatpush1.msra.mxu0 0.0
        %4348 = vmatprep.subr.mxu0 0.0
        %4349 = vmatpush1.msra.mxu0 0.0
        %4350 = vmatprep.subr.mxu0 0.0
        %4351 = vmatpush1.msra.mxu0 0.0
        %4352 = vmatprep.subr.mxu0 0.0
        %4353 = vmatpush1.msra.mxu0 0.0
        %4354 = vmatprep.subr.mxu0 0.0
        %4355 = vmatpush1.msra.mxu0 0.0
        %4356 = vmatprep.subr.mxu0 0.0
        %4357 = vmatpush1.msra.mxu0 0.0
        %4358 = vmatprep.subr.mxu0 0.0
        %4359 = vmatpush1.msra.mxu0 0.0
        %4360 = vmatprep.subr.mxu0 0.0
        %4361 = vmatpush1.msra.mxu0 0.0
        %4362 = vmatprep.subr.mxu0 0.0
        %4363 = vmatpush1.msra.mxu0 0.0
        %4364 = vmatprep.subr.mxu0 0.0
        %4365 = vmatpush1.msra.mxu0 0.0
        %4366 = vmatprep.subr.mxu0 0.0
        %4367 = vmatpush1.msra.mxu0 0.0
        %4368 = vmatprep.subr.mxu0 0.0
        %4369 = vmatpush1.msra.mxu0 0.0
        %4370 = vmatprep.subr.mxu0 0.0
        %4371 = vmatpush1.msra.mxu0 0.0
        %4372 = vmatprep.subr.mxu0 0.0
        %4373 = vmatpush1.msra.mxu0 0.0
        %4374 = vmatprep.subr.mxu0 0.0
        %4375 = vmatpush1.msra.mxu0 0.0
        %4376 = vmatprep.subr.mxu0 0.0
        %4377 = vmatpush1.msra.mxu0 0.0
        %4378 = vmatprep.subr.mxu0 0.0
        %4379 = vmatpush1.msra.mxu0 0.0
        %4380 = vmatprep.subr.mxu0 0.0
        %4381 = vmatpush1.msra.mxu0 0.0
        %4382 = vmatprep.subr.mxu0 0.0
        %4383 = vmatpush1.msra.mxu0 0.0
        %4384 = vmatprep.subr.mxu0 0.0
        %4385 = vmatpush1.msra.mxu0 0.0
        %4386 = vmatprep.subr.mxu0 0.0
        %4387 = vmatpush1.msra.mxu0 0.0
        %4388 = vmatprep.subr.mxu0 0.0
        %4389 = vmatpush1.msra.mxu0 0.0
        %4390 = vmatprep.subr.mxu0 0.0
        %4391 = vmatpush1.msra.mxu0 0.0
        %4392 = vmatprep.subr.mxu0 0.0
        %4393 = vmatpush1.msra.mxu0 0.0
        %4394 = vmatprep.subr.mxu0 0.0
        %4395 = vmatpush1.msra.mxu0 0.0
        %4396 = vmatprep.subr.mxu0 0.0
        %4397 = vmatpush1.msra.mxu0 0.0
        %4398 = vmatprep.subr.mxu0 0.0
        %4399 = vmatpush1.msra.mxu0 0.0
        %4400 = vmatprep.subr.mxu0 0.0
        %4401 = vmatpush1.msra.mxu0 0.0
        %4402 = vmatprep.mubr.f32.mxu0 0.0
        %4403 = vmatmul.mubr.f32.gmra.mrb[0].mxu0 %v4336
        %v4404 = vpop.f32.mrb[0].mxu0
        %v4405 = vadd.f32 0.0, %v4404
        %v4406 = vpop.f32.mrb[0].mxu0
        %v4407 = vadd.f32 0.0, %v4406
        %4408 = vdwg.mxu0
        %v4409 = vadd.f32 %v4304, %v4405
        %v4410 = vadd.f32 %v4305, %v4407
        %v4411 = vld [vmem:[%s659] sm:$0xff]
        %v4412 = vld [vmem:[%s659 + $0x8] sm:$0xff]
        %v4413 = vmul.f32 %v3993, %v4411
        %v4414 = vmul.f32 %v3994, %v4412
        %v4415 = vld [vmem:[%s664] sm:$0xff]
        %v4417 = vsel %vm278, %v4415, 0
        %4419 = vmatprep.subr.mxu0 %v4414
        %4420 = vmatpush1.msra.mxu0 %v4413
        %4421 = vmatprep.subr.mxu0 0.0
        %4422 = vmatpush1.msra.mxu0 0.0
        %4423 = vmatprep.subr.mxu0 0.0
        %4424 = vmatpush1.msra.mxu0 0.0
        %4425 = vmatprep.subr.mxu0 0.0
        %4426 = vmatpush1.msra.mxu0 0.0
        %4427 = vmatprep.subr.mxu0 0.0
        %4428 = vmatpush1.msra.mxu0 0.0
        %4429 = vmatprep.subr.mxu0 0.0
        %4430 = vmatpush1.msra.mxu0 0.0
        %4431 = vmatprep.subr.mxu0 0.0
        %4432 = vmatpush1.msra.mxu0 0.0
        %4433 = vmatprep.subr.mxu0 0.0
        %4434 = vmatpush1.msra.mxu0 0.0
        %4435 = vmatprep.subr.mxu0 0.0
        %4436 = vmatpush1.msra.mxu0 0.0
        %4437 = vmatprep.subr.mxu0 0.0
        %4438 = vmatpush1.msra.mxu0 0.0
        %4439 = vmatprep.subr.mxu0 0.0
        %4440 = vmatpush1.msra.mxu0 0.0
        %4441 = vmatprep.subr.mxu0 0.0
        %4442 = vmatpush1.msra.mxu0 0.0
        %4443 = vmatprep.subr.mxu0 0.0
        %4444 = vmatpush1.msra.mxu0 0.0
        %4445 = vmatprep.subr.mxu0 0.0
        %4446 = vmatpush1.msra.mxu0 0.0
        %4447 = vmatprep.subr.mxu0 0.0
        %4448 = vmatpush1.msra.mxu0 0.0
        %4449 = vmatprep.subr.mxu0 0.0
        %4450 = vmatpush1.msra.mxu0 0.0
        %4451 = vmatprep.subr.mxu0 0.0
        %4452 = vmatpush1.msra.mxu0 0.0
        %4453 = vmatprep.subr.mxu0 0.0
        %4454 = vmatpush1.msra.mxu0 0.0
        %4455 = vmatprep.subr.mxu0 0.0
        %4456 = vmatpush1.msra.mxu0 0.0
        %4457 = vmatprep.subr.mxu0 0.0
        %4458 = vmatpush1.msra.mxu0 0.0
        %4459 = vmatprep.subr.mxu0 0.0
        %4460 = vmatpush1.msra.mxu0 0.0
        %4461 = vmatprep.subr.mxu0 0.0
        %4462 = vmatpush1.msra.mxu0 0.0
        %4463 = vmatprep.subr.mxu0 0.0
        %4464 = vmatpush1.msra.mxu0 0.0
        %4465 = vmatprep.subr.mxu0 0.0
        %4466 = vmatpush1.msra.mxu0 0.0
        %4467 = vmatprep.subr.mxu0 0.0
        %4468 = vmatpush1.msra.mxu0 0.0
        %4469 = vmatprep.subr.mxu0 0.0
        %4470 = vmatpush1.msra.mxu0 0.0
        %4471 = vmatprep.subr.mxu0 0.0
        %4472 = vmatpush1.msra.mxu0 0.0
        %4473 = vmatprep.subr.mxu0 0.0
        %4474 = vmatpush1.msra.mxu0 0.0
        %4475 = vmatprep.subr.mxu0 0.0
        %4476 = vmatpush1.msra.mxu0 0.0
        %4477 = vmatprep.subr.mxu0 0.0
        %4478 = vmatpush1.msra.mxu0 0.0
        %4479 = vmatprep.subr.mxu0 0.0
        %4480 = vmatpush1.msra.mxu0 0.0
        %4481 = vmatprep.subr.mxu0 0.0
        %4482 = vmatpush1.msra.mxu0 0.0
        %4483 = vmatprep.mubr.f32.mxu0 0.0
        %4484 = vmatmul.mubr.f32.gmra.mrb[0].mxu0 %v4417
        %v4485 = vpop.f32.mrb[0].mxu0
        %v4486 = vadd.f32 0.0, %v4485
        %v4487 = vpop.f32.mrb[0].mxu0
        %v4488 = vadd.f32 0.0, %v4487
        %4489 = vdwg.mxu0
        %v4490 = vadd.f32 %v4409, %v4486
        %v4491 = vadd.f32 %v4410, %v4488
        %v4492 = vld [vmem:[#allocation2 + $0x8] sm:$0xff]
        %v4493 = vld [vmem:[#allocation2 + $0x10] sm:$0xff]
        %v4494 = vld [vmem:[#allocation2 + $0x18] sm:$0xff]
        %v4495 = vld [vmem:[%s745] sm:$0xff]
        %v4496 = vld [vmem:[%s745 + $0x8] sm:$0xff]
        %4499 = vrot.lane.b32.xlu0 %v4495, 1
        %v4500 = vpop.permute.xlu0 %4499
        %4501 = vrot.lane.b32.xlu0 %v4496, 1
        %v4502 = vpop.permute.xlu0 %4501
        %v4503 = vsel %vm578, %v4500, %v4502
        %v4507 = vmul.f32 %v4492, %v4500
        %v4508 = vmul.f32 %v4493, %v4503
        %v4509 = vmul.f32 %v4494, %v4502
        %v4510 = vld [vmem:[%s761] sm:$0xff]
        %4514 = vrot.lane.b32.xlu0 %v4507, 127
        %v4515 = vpop.permute.xlu0 %4514
        %4516 = vrot.lane.b32.xlu0 %v4508, 127
        %v4517 = vpop.permute.xlu0 %4516
        %4518 = vrot.lane.b32.xlu0 %v4509, 127
        %v4519 = vpop.permute.xlu0 %4518
        %v4520 = vsel %vm559, %v4515, %v4517
        %v4521 = vsel %vm559, %v4517, %v4519
        %v4525 = vsel %vm278, %v4510, 0
        %4527 = vmatprep.subr.mxu0 %v4521
        %4528 = vmatpush1.msra.mxu0 %v4520
        %4529 = vmatprep.subr.mxu0 0.0
        %4530 = vmatpush1.msra.mxu0 0.0
        %4531 = vmatprep.subr.mxu0 0.0
        %4532 = vmatpush1.msra.mxu0 0.0
        %4533 = vmatprep.subr.mxu0 0.0
        %4534 = vmatpush1.msra.mxu0 0.0
        %4535 = vmatprep.subr.mxu0 0.0
        %4536 = vmatpush1.msra.mxu0 0.0
        %4537 = vmatprep.subr.mxu0 0.0
        %4538 = vmatpush1.msra.mxu0 0.0
        %4539 = vmatprep.subr.mxu0 0.0
        %4540 = vmatpush1.msra.mxu0 0.0
        %4541 = vmatprep.subr.mxu0 0.0
        %4542 = vmatpush1.msra.mxu0 0.0
        %4543 = vmatprep.subr.mxu0 0.0
        %4544 = vmatpush1.msra.mxu0 0.0
        %4545 = vmatprep.subr.mxu0 0.0
        %4546 = vmatpush1.msra.mxu0 0.0
        %4547 = vmatprep.subr.mxu0 0.0
        %4548 = vmatpush1.msra.mxu0 0.0
        %4549 = vmatprep.subr.mxu0 0.0
        %4550 = vmatpush1.msra.mxu0 0.0
        %4551 = vmatprep.subr.mxu0 0.0
        %4552 = vmatpush1.msra.mxu0 0.0
        %4553 = vmatprep.subr.mxu0 0.0
        %4554 = vmatpush1.msra.mxu0 0.0
        %4555 = vmatprep.subr.mxu0 0.0
        %4556 = vmatpush1.msra.mxu0 0.0
        %4557 = vmatprep.subr.mxu0 0.0
        %4558 = vmatpush1.msra.mxu0 0.0
        %4559 = vmatprep.subr.mxu0 0.0
        %4560 = vmatpush1.msra.mxu0 0.0
        %4561 = vmatprep.subr.mxu0 0.0
        %4562 = vmatpush1.msra.mxu0 0.0
        %4563 = vmatprep.subr.mxu0 0.0
        %4564 = vmatpush1.msra.mxu0 0.0
        %4565 = vmatprep.subr.mxu0 0.0
        %4566 = vmatpush1.msra.mxu0 0.0
        %4567 = vmatprep.subr.mxu0 0.0
        %4568 = vmatpush1.msra.mxu0 0.0
        %4569 = vmatprep.subr.mxu0 0.0
        %4570 = vmatpush1.msra.mxu0 0.0
        %4571 = vmatprep.subr.mxu0 0.0
        %4572 = vmatpush1.msra.mxu0 0.0
        %4573 = vmatprep.subr.mxu0 0.0
        %4574 = vmatpush1.msra.mxu0 0.0
        %4575 = vmatprep.subr.mxu0 0.0
        %4576 = vmatpush1.msra.mxu0 0.0
        %4577 = vmatprep.subr.mxu0 0.0
        %4578 = vmatpush1.msra.mxu0 0.0
        %4579 = vmatprep.subr.mxu0 0.0
        %4580 = vmatpush1.msra.mxu0 0.0
        %4581 = vmatprep.subr.mxu0 0.0
        %4582 = vmatpush1.msra.mxu0 0.0
        %4583 = vmatprep.subr.mxu0 0.0
        %4584 = vmatpush1.msra.mxu0 0.0
        %4585 = vmatprep.subr.mxu0 0.0
        %4586 = vmatpush1.msra.mxu0 0.0
        %4587 = vmatprep.subr.mxu0 0.0
        %4588 = vmatpush1.msra.mxu0 0.0
        %4589 = vmatprep.subr.mxu0 0.0
        %4590 = vmatpush1.msra.mxu0 0.0
        %4591 = vmatprep.mubr.f32.mxu0 0.0
        %4592 = vmatmul.mubr.f32.gmra.mrb[0].mxu0 %v4525
        %v4593 = vpop.f32.mrb[0].mxu0
        %v4594 = vadd.f32 0.0, %v4593
        %v4595 = vpop.f32.mrb[0].mxu0
        %v4596 = vadd.f32 0.0, %v4595
        %4597 = vdwg.mxu0
        %v4598 = vadd.f32 %v4490, %v4594
        %v4599 = vadd.f32 %v4491, %v4596
        %v4600 = vld [vmem:[%s852] sm:$0xff]
        %v4601 = vld [vmem:[%s852 + $0x8] sm:$0xff]
        %4604 = vrot.lane.b32.xlu0 %v4600, 15
        %v4605 = vpop.permute.xlu0 %4604
        %4606 = vrot.lane.b32.xlu0 %v4601, 15
        %v4607 = vpop.permute.xlu0 %4606
        %v4608 = vsel %vm469, %v4605, %v4607
        %v4612 = vmul.f32 %v4492, %v4605
        %v4613 = vmul.f32 %v4493, %v4608
        %v4614 = vmul.f32 %v4494, %v4607
        %v4615 = vld [vmem:[%s868] sm:$0xff]
        %4619 = vrot.lane.b32.xlu0 %v4612, 113
        %v4620 = vpop.permute.xlu0 %4619
        %4621 = vrot.lane.b32.xlu0 %v4613, 113
        %v4622 = vpop.permute.xlu0 %4621
        %4623 = vrot.lane.b32.xlu0 %v4614, 113
        %v4624 = vpop.permute.xlu0 %4623
        %v4625 = vsel %vm450, %v4620, %v4622
        %v4626 = vsel %vm450, %v4622, %v4624
        %v4630 = vsel %vm278, %v4615, 0
        %4632 = vmatprep.subr.mxu0 %v4626
        %4633 = vmatpush1.msra.mxu0 %v4625
        %4634 = vmatprep.subr.mxu0 0.0
        %4635 = vmatpush1.msra.mxu0 0.0
        %4636 = vmatprep.subr.mxu0 0.0
        %4637 = vmatpush1.msra.mxu0 0.0
        %4638 = vmatprep.subr.mxu0 0.0
        %4639 = vmatpush1.msra.mxu0 0.0
        %4640 = vmatprep.subr.mxu0 0.0
        %4641 = vmatpush1.msra.mxu0 0.0
        %4642 = vmatprep.subr.mxu0 0.0
        %4643 = vmatpush1.msra.mxu0 0.0
        %4644 = vmatprep.subr.mxu0 0.0
        %4645 = vmatpush1.msra.mxu0 0.0
        %4646 = vmatprep.subr.mxu0 0.0
        %4647 = vmatpush1.msra.mxu0 0.0
        %4648 = vmatprep.subr.mxu0 0.0
        %4649 = vmatpush1.msra.mxu0 0.0
        %4650 = vmatprep.subr.mxu0 0.0
        %4651 = vmatpush1.msra.mxu0 0.0
        %4652 = vmatprep.subr.mxu0 0.0
        %4653 = vmatpush1.msra.mxu0 0.0
        %4654 = vmatprep.subr.mxu0 0.0
        %4655 = vmatpush1.msra.mxu0 0.0
        %4656 = vmatprep.subr.mxu0 0.0
        %4657 = vmatpush1.msra.mxu0 0.0
        %4658 = vmatprep.subr.mxu0 0.0
        %4659 = vmatpush1.msra.mxu0 0.0
        %4660 = vmatprep.subr.mxu0 0.0
        %4661 = vmatpush1.msra.mxu0 0.0
        %4662 = vmatprep.subr.mxu0 0.0
        %4663 = vmatpush1.msra.mxu0 0.0
        %4664 = vmatprep.subr.mxu0 0.0
        %4665 = vmatpush1.msra.mxu0 0.0
        %4666 = vmatprep.subr.mxu0 0.0
        %4667 = vmatpush1.msra.mxu0 0.0
        %4668 = vmatprep.subr.mxu0 0.0
        %4669 = vmatpush1.msra.mxu0 0.0
        %4670 = vmatprep.subr.mxu0 0.0
        %4671 = vmatpush1.msra.mxu0 0.0
        %4672 = vmatprep.subr.mxu0 0.0
        %4673 = vmatpush1.msra.mxu0 0.0
        %4674 = vmatprep.subr.mxu0 0.0
        %4675 = vmatpush1.msra.mxu0 0.0
        %4676 = vmatprep.subr.mxu0 0.0
        %4677 = vmatpush1.msra.mxu0 0.0
        %4678 = vmatprep.subr.mxu0 0.0
        %4679 = vmatpush1.msra.mxu0 0.0
        %4680 = vmatprep.subr.mxu0 0.0
        %4681 = vmatpush1.msra.mxu0 0.0
        %4682 = vmatprep.subr.mxu0 0.0
        %4683 = vmatpush1.msra.mxu0 0.0
        %4684 = vmatprep.subr.mxu0 0.0
        %4685 = vmatpush1.msra.mxu0 0.0
        %4686 = vmatprep.subr.mxu0 0.0
        %4687 = vmatpush1.msra.mxu0 0.0
        %4688 = vmatprep.subr.mxu0 0.0
        %4689 = vmatpush1.msra.mxu0 0.0
        %4690 = vmatprep.subr.mxu0 0.0
        %4691 = vmatpush1.msra.mxu0 0.0
        %4692 = vmatprep.subr.mxu0 0.0
        %4693 = vmatpush1.msra.mxu0 0.0
        %4694 = vmatprep.subr.mxu0 0.0
        %4695 = vmatpush1.msra.mxu0 0.0
        %4696 = vmatprep.mubr.f32.mxu0 0.0
        %4697 = vmatmul.mubr.f32.gmra.mrb[0].mxu0 %v4630
        %v4698 = vpop.f32.mrb[0].mxu0
        %v4699 = vadd.f32 0.0, %v4698
        %v4700 = vpop.f32.mrb[0].mxu0
        %v4701 = vadd.f32 0.0, %v4700
        %4702 = vdwg.mxu0
        %v4703 = vadd.f32 %v4598, %v4699
        %v4704 = vadd.f32 %v4599, %v4701
        %v4705 = vld [vmem:[%s959] sm:$0xff]
        %v4706 = vld [vmem:[%s959 + $0x8] sm:$0xff]
        %4709 = vrot.lane.b32.xlu0 %v4705, 16
        %v4710 = vpop.permute.xlu0 %4709
        %4711 = vrot.lane.b32.xlu0 %v4706, 16
        %v4712 = vpop.permute.xlu0 %4711
        %v4713 = vsel %vm273, %v4710, %v4712
        %v4717 = vmul.f32 %v4492, %v4710
        %v4718 = vmul.f32 %v4493, %v4713
        %v4719 = vmul.f32 %v4494, %v4712
        %v4720 = vld [vmem:[%s975] sm:$0xff]
        %4724 = vrot.lane.b32.xlu0 %v4717, 112
        %v4725 = vpop.permute.xlu0 %4724
        %4726 = vrot.lane.b32.xlu0 %v4718, 112
        %v4727 = vpop.permute.xlu0 %4726
        %4728 = vrot.lane.b32.xlu0 %v4719, 112
        %v4729 = vpop.permute.xlu0 %4728
        %v4730 = vsel %vm254, %v4725, %v4727
        %v4731 = vsel %vm254, %v4727, %v4729
        %v4735 = vsel %vm278, %v4720, 0
        %4737 = vmatprep.subr.mxu0 %v4731
        %4738 = vmatpush1.msra.mxu0 %v4730
        %4739 = vmatprep.subr.mxu0 0.0
        %4740 = vmatpush1.msra.mxu0 0.0
        %4741 = vmatprep.subr.mxu0 0.0
        %4742 = vmatpush1.msra.mxu0 0.0
        %4743 = vmatprep.subr.mxu0 0.0
        %4744 = vmatpush1.msra.mxu0 0.0
        %4745 = vmatprep.subr.mxu0 0.0
        %4746 = vmatpush1.msra.mxu0 0.0
        %4747 = vmatprep.subr.mxu0 0.0
        %4748 = vmatpush1.msra.mxu0 0.0
        %4749 = vmatprep.subr.mxu0 0.0
        %4750 = vmatpush1.msra.mxu0 0.0
        %4751 = vmatprep.subr.mxu0 0.0
        %4752 = vmatpush1.msra.mxu0 0.0
        %4753 = vmatprep.subr.mxu0 0.0
        %4754 = vmatpush1.msra.mxu0 0.0
        %4755 = vmatprep.subr.mxu0 0.0
        %4756 = vmatpush1.msra.mxu0 0.0
        %4757 = vmatprep.subr.mxu0 0.0
        %4758 = vmatpush1.msra.mxu0 0.0
        %4759 = vmatprep.subr.mxu0 0.0
        %4760 = vmatpush1.msra.mxu0 0.0
        %4761 = vmatprep.subr.mxu0 0.0
        %4762 = vmatpush1.msra.mxu0 0.0
        %4763 = vmatprep.subr.mxu0 0.0
        %4764 = vmatpush1.msra.mxu0 0.0
        %4765 = vmatprep.subr.mxu0 0.0
        %4766 = vmatpush1.msra.mxu0 0.0
        %4767 = vmatprep.subr.mxu0 0.0
        %4768 = vmatpush1.msra.mxu0 0.0
        %4769 = vmatprep.subr.mxu0 0.0
        %4770 = vmatpush1.msra.mxu0 0.0
        %4771 = vmatprep.subr.mxu0 0.0
        %4772 = vmatpush1.msra.mxu0 0.0
        %4773 = vmatprep.subr.mxu0 0.0
        %4774 = vmatpush1.msra.mxu0 0.0
        %4775 = vmatprep.subr.mxu0 0.0
        %4776 = vmatpush1.msra.mxu0 0.0
        %4777 = vmatprep.subr.mxu0 0.0
        %4778 = vmatpush1.msra.mxu0 0.0
        %4779 = vmatprep.subr.mxu0 0.0
        %4780 = vmatpush1.msra.mxu0 0.0
        %4781 = vmatprep.subr.mxu0 0.0
        %4782 = vmatpush1.msra.mxu0 0.0
        %4783 = vmatprep.subr.mxu0 0.0
        %4784 = vmatpush1.msra.mxu0 0.0
        %4785 = vmatprep.subr.mxu0 0.0
        %4786 = vmatpush1.msra.mxu0 0.0
        %4787 = vmatprep.subr.mxu0 0.0
        %4788 = vmatpush1.msra.mxu0 0.0
        %4789 = vmatprep.subr.mxu0 0.0
        %4790 = vmatpush1.msra.mxu0 0.0
        %4791 = vmatprep.subr.mxu0 0.0
        %4792 = vmatpush1.msra.mxu0 0.0
        %4793 = vmatprep.subr.mxu0 0.0
        %4794 = vmatpush1.msra.mxu0 0.0
        %4795 = vmatprep.subr.mxu0 0.0
        %4796 = vmatpush1.msra.mxu0 0.0
        %4797 = vmatprep.subr.mxu0 0.0
        %4798 = vmatpush1.msra.mxu0 0.0
        %4799 = vmatprep.subr.mxu0 0.0
        %4800 = vmatpush1.msra.mxu0 0.0
        %4801 = vmatprep.mubr.f32.mxu0 0.0
        %4802 = vmatmul.mubr.f32.gmra.mrb[0].mxu0 %v4735
        %v4803 = vpop.f32.mrb[0].mxu0
        %v4804 = vadd.f32 0.0, %v4803
        %v4805 = vpop.f32.mrb[0].mxu0
        %v4806 = vadd.f32 0.0, %v4805
        %4807 = vdwg.mxu0
        %v4808 = vadd.f32 %v4703, %v4804
        %v4809 = vadd.f32 %v4704, %v4806
        %v4810 = vld [vmem:[%s1066] sm:$0xff]
        %v4811 = vld [vmem:[%s1066 + $0x8] sm:$0xff]
        %4814 = vrot.lane.b32.xlu0 %v4810, 17
        %v4815 = vpop.permute.xlu0 %4814
        %4816 = vrot.lane.b32.xlu0 %v4811, 17
        %v4817 = vpop.permute.xlu0 %4816
        %v4818 = vsel %vm362, %v4815, %v4817
        %v4822 = vmul.f32 %v4492, %v4815
        %v4823 = vmul.f32 %v4493, %v4818
        %v4824 = vmul.f32 %v4494, %v4817
        %v4825 = vld [vmem:[%s1082] sm:$0xff]
        %4829 = vrot.lane.b32.xlu0 %v4822, 111
        %v4830 = vpop.permute.xlu0 %4829
        %4831 = vrot.lane.b32.xlu0 %v4823, 111
        %v4832 = vpop.permute.xlu0 %4831
        %4833 = vrot.lane.b32.xlu0 %v4824, 111
        %v4834 = vpop.permute.xlu0 %4833
        %v4835 = vsel %vm236, %v4830, %v4832
        %v4836 = vsel %vm236, %v4832, %v4834
        %v4840 = vsel %vm278, %v4825, 0
        %4842 = vmatprep.subr.mxu0 %v4836
        %4843 = vmatpush1.msra.mxu0 %v4835
        %4844 = vmatprep.subr.mxu0 0.0
        %4845 = vmatpush1.msra.mxu0 0.0
        %4846 = vmatprep.subr.mxu0 0.0
        %4847 = vmatpush1.msra.mxu0 0.0
        %4848 = vmatprep.subr.mxu0 0.0
        %4849 = vmatpush1.msra.mxu0 0.0
        %4850 = vmatprep.subr.mxu0 0.0
        %4851 = vmatpush1.msra.mxu0 0.0
        %4852 = vmatprep.subr.mxu0 0.0
        %4853 = vmatpush1.msra.mxu0 0.0
        %4854 = vmatprep.subr.mxu0 0.0
        %4855 = vmatpush1.msra.mxu0 0.0
        %4856 = vmatprep.subr.mxu0 0.0
        %4857 = vmatpush1.msra.mxu0 0.0
        %4858 = vmatprep.subr.mxu0 0.0
        %4859 = vmatpush1.msra.mxu0 0.0
        %4860 = vmatprep.subr.mxu0 0.0
        %4861 = vmatpush1.msra.mxu0 0.0
        %4862 = vmatprep.subr.mxu0 0.0
        %4863 = vmatpush1.msra.mxu0 0.0
        %4864 = vmatprep.subr.mxu0 0.0
        %4865 = vmatpush1.msra.mxu0 0.0
        %4866 = vmatprep.subr.mxu0 0.0
        %4867 = vmatpush1.msra.mxu0 0.0
        %4868 = vmatprep.subr.mxu0 0.0
        %4869 = vmatpush1.msra.mxu0 0.0
        %4870 = vmatprep.subr.mxu0 0.0
        %4871 = vmatpush1.msra.mxu0 0.0
        %4872 = vmatprep.subr.mxu0 0.0
        %4873 = vmatpush1.msra.mxu0 0.0
        %4874 = vmatprep.subr.mxu0 0.0
        %4875 = vmatpush1.msra.mxu0 0.0
        %4876 = vmatprep.subr.mxu0 0.0
        %4877 = vmatpush1.msra.mxu0 0.0
        %4878 = vmatprep.subr.mxu0 0.0
        %4879 = vmatpush1.msra.mxu0 0.0
        %4880 = vmatprep.subr.mxu0 0.0
        %4881 = vmatpush1.msra.mxu0 0.0
        %4882 = vmatprep.subr.mxu0 0.0
        %4883 = vmatpush1.msra.mxu0 0.0
        %4884 = vmatprep.subr.mxu0 0.0
        %4885 = vmatpush1.msra.mxu0 0.0
        %4886 = vmatprep.subr.mxu0 0.0
        %4887 = vmatpush1.msra.mxu0 0.0
        %4888 = vmatprep.subr.mxu0 0.0
        %4889 = vmatpush1.msra.mxu0 0.0
        %4890 = vmatprep.subr.mxu0 0.0
        %4891 = vmatpush1.msra.mxu0 0.0
        %4892 = vmatprep.subr.mxu0 0.0
        %4893 = vmatpush1.msra.mxu0 0.0
        %4894 = vmatprep.subr.mxu0 0.0
        %4895 = vmatpush1.msra.mxu0 0.0
        %4896 = vmatprep.subr.mxu0 0.0
        %4897 = vmatpush1.msra.mxu0 0.0
        %4898 = vmatprep.subr.mxu0 0.0
        %4899 = vmatpush1.msra.mxu0 0.0
        %4900 = vmatprep.subr.mxu0 0.0
        %4901 = vmatpush1.msra.mxu0 0.0
        %4902 = vmatprep.subr.mxu0 0.0
        %4903 = vmatpush1.msra.mxu0 0.0
        %4904 = vmatprep.subr.mxu0 0.0
        %4905 = vmatpush1.msra.mxu0 0.0
        %4906 = vmatprep.mubr.f32.mxu0 0.0
        %4907 = vmatmul.mubr.f32.gmra.mrb[0].mxu0 %v4840
        %v4908 = vpop.f32.mrb[0].mxu0
        %v4909 = vadd.f32 0.0, %v4908
        %v4910 = vpop.f32.mrb[0].mxu0
        %v4911 = vadd.f32 0.0, %v4910
        %4912 = vdwg.mxu0
        %v4913 = vadd.f32 %v4808, %v4909
        %v4914 = vadd.f32 %v4809, %v4911
        %v4915 = vmax.f32 %v4913, 0.0
        %v4916 = vmax.f32 %v4914, 0.0
        %v4917 = vsel %vm205, 1.0, %v4915
        %v4918 = vsel %vm205, 1.0, %v4916
        %4919 = vst [vmem:[#allocation2 + $0x8] sm:$0xff] %v4917
        %4920 = vst [vmem:[#allocation2 + $0x10] sm:$0xff] %v4918
        %v4921 = vld [vmem:[#allocation2] sm:$0xff]
        %v4922 = vld [vmem:[#allocation2 + $0x8] sm:$0xff]
        %v4923 = vld [vmem:[#allocation2 + $0x10] sm:$0xff]
        %v4924 = vld [vmem:[%s3] sm:$0xff]
        %v4925 = vld [vmem:[%s3 + $0x8] sm:$0xff]
        %4928 = vrot.lane.b32.xlu0 %v4924, 111
        %v4929 = vpop.permute.xlu0 %4928
        %4930 = vrot.lane.b32.xlu0 %v4925, 111
        %v4931 = vpop.permute.xlu0 %4930
        %v4932 = vsel %vm236, %v4929, %v4931
        %v4936 = vmul.f32 %v4921, %v4929
        %v4937 = vmul.f32 %v4922, %v4932
        %v4938 = vmul.f32 %v4923, %v4931
        %v4939 = vld [vmem:[%s2] sm:$0xff]
        %v4940 = vld [vmem:[%s245] sm:$0xff]
        %v4941 = vld [vmem:[%s245 + $0x8] sm:$0xff]
        %4944 = vrot.lane.b32.xlu0 %v4940, 112
        %v4945 = vpop.permute.xlu0 %4944
        %4946 = vrot.lane.b32.xlu0 %v4941, 112
        %v4947 = vpop.permute.xlu0 %4946
        %v4948 = vsel %vm254, %v4945, %v4947
        %v4952 = vmul.f32 %v4921, %v4945
        %v4953 = vmul.f32 %v4922, %v4948
        %v4954 = vmul.f32 %v4923, %v4947
        %v4955 = vld [vmem:[%s1213] sm:$0xff]
        %4959 = vrot.lane.b32.xlu0 %v4952, 16
        %v4960 = vpop.permute.xlu0 %4959
        %4961 = vrot.lane.b32.xlu0 %v4953, 16
        %v4962 = vpop.permute.xlu0 %4961
        %4963 = vrot.lane.b32.xlu0 %v4954, 16
        %v4964 = vpop.permute.xlu0 %4963
        %v4965 = vsel %vm273, %v4960, %v4962
        %v4966 = vsel %vm273, %v4962, %v4964
        %v4970 = vsel %vm278, %v4955, 0
        %4972 = vmatprep.subr.mxu0 %v4966
        %4973 = vmatpush1.msra.mxu0 %v4965
        %4974 = vmatprep.subr.mxu0 0.0
        %4975 = vmatpush1.msra.mxu0 0.0
        %4976 = vmatprep.subr.mxu0 0.0
        %4977 = vmatpush1.msra.mxu0 0.0
        %4978 = vmatprep.subr.mxu0 0.0
        %4979 = vmatpush1.msra.mxu0 0.0
        %4980 = vmatprep.subr.mxu0 0.0
        %4981 = vmatpush1.msra.mxu0 0.0
        %4982 = vmatprep.subr.mxu0 0.0
        %4983 = vmatpush1.msra.mxu0 0.0
        %4984 = vmatprep.subr.mxu0 0.0
        %4985 = vmatpush1.msra.mxu0 0.0
        %4986 = vmatprep.subr.mxu0 0.0
        %4987 = vmatpush1.msra.mxu0 0.0
        %4988 = vmatprep.subr.mxu0 0.0
        %4989 = vmatpush1.msra.mxu0 0.0
        %4990 = vmatprep.subr.mxu0 0.0
        %4991 = vmatpush1.msra.mxu0 0.0
        %4992 = vmatprep.subr.mxu0 0.0
        %4993 = vmatpush1.msra.mxu0 0.0
        %4994 = vmatprep.subr.mxu0 0.0
        %4995 = vmatpush1.msra.mxu0 0.0
        %4996 = vmatprep.subr.mxu0 0.0
        %4997 = vmatpush1.msra.mxu0 0.0
        %4998 = vmatprep.subr.mxu0 0.0
        %4999 = vmatpush1.msra.mxu0 0.0
        %5000 = vmatprep.subr.mxu0 0.0
        %5001 = vmatpush1.msra.mxu0 0.0
        %5002 = vmatprep.subr.mxu0 0.0
        %5003 = vmatpush1.msra.mxu0 0.0
        %5004 = vmatprep.subr.mxu0 0.0
        %5005 = vmatpush1.msra.mxu0 0.0
        %5006 = vmatprep.subr.mxu0 0.0
        %5007 = vmatpush1.msra.mxu0 0.0
        %5008 = vmatprep.subr.mxu0 0.0
        %5009 = vmatpush1.msra.mxu0 0.0
        %5010 = vmatprep.subr.mxu0 0.0
        %5011 = vmatpush1.msra.mxu0 0.0
        %5012 = vmatprep.subr.mxu0 0.0
        %5013 = vmatpush1.msra.mxu0 0.0
        %5014 = vmatprep.subr.mxu0 0.0
        %5015 = vmatpush1.msra.mxu0 0.0
        %5016 = vmatprep.subr.mxu0 0.0
        %5017 = vmatpush1.msra.mxu0 0.0
        %5018 = vmatprep.subr.mxu0 0.0
        %5019 = vmatpush1.msra.mxu0 0.0
        %5020 = vmatprep.subr.mxu0 0.0
        %5021 = vmatpush1.msra.mxu0 0.0
        %5022 = vmatprep.subr.mxu0 0.0
        %5023 = vmatpush1.msra.mxu0 0.0
        %5024 = vmatprep.subr.mxu0 0.0
        %5025 = vmatpush1.msra.mxu0 0.0
        %5026 = vmatprep.subr.mxu0 0.0
        %5027 = vmatpush1.msra.mxu0 0.0
        %5028 = vmatprep.subr.mxu0 0.0
        %5029 = vmatpush1.msra.mxu0 0.0
        %5030 = vmatprep.subr.mxu0 0.0
        %5031 = vmatpush1.msra.mxu0 0.0
        %5032 = vmatprep.subr.mxu0 0.0
        %5033 = vmatpush1.msra.mxu0 0.0
        %5034 = vmatprep.subr.mxu0 0.0
        %5035 = vmatpush1.msra.mxu0 0.0
        %5036 = vmatprep.mubr.f32.mxu0 0.0
        %5037 = vmatmul.mubr.f32.gmra.mrb[0].mxu0 %v4970
        %v5038 = vpop.f32.mrb[0].mxu0
        %v5039 = vadd.f32 0.0, %v5038
        %v5040 = vpop.f32.mrb[0].mxu0
        %v5041 = vadd.f32 0.0, %v5040
        %5042 = vdwg.mxu0
        %5046 = vrot.lane.b32.xlu0 %v4936, 17
        %v5047 = vpop.permute.xlu0 %5046
        %5048 = vrot.lane.b32.xlu0 %v4937, 17
        %v5049 = vpop.permute.xlu0 %5048
        %5050 = vrot.lane.b32.xlu0 %v4938, 17
        %v5051 = vpop.permute.xlu0 %5050
        %v5052 = vsel %vm362, %v5047, %v5049
        %v5053 = vsel %vm362, %v5049, %v5051
        %v5057 = vsel %vm278, %v4939, 0
        %5059 = vmatprep.subr.mxu0 %v5053
        %5060 = vmatpush1.msra.mxu0 %v5052
        %5061 = vmatprep.subr.mxu0 0.0
        %5062 = vmatpush1.msra.mxu0 0.0
        %5063 = vmatprep.subr.mxu0 0.0
        %5064 = vmatpush1.msra.mxu0 0.0
        %5065 = vmatprep.subr.mxu0 0.0
        %5066 = vmatpush1.msra.mxu0 0.0
        %5067 = vmatprep.subr.mxu0 0.0
        %5068 = vmatpush1.msra.mxu0 0.0
        %5069 = vmatprep.subr.mxu0 0.0
        %5070 = vmatpush1.msra.mxu0 0.0
        %5071 = vmatprep.subr.mxu0 0.0
        %5072 = vmatpush1.msra.mxu0 0.0
        %5073 = vmatprep.subr.mxu0 0.0
        %5074 = vmatpush1.msra.mxu0 0.0
        %5075 = vmatprep.subr.mxu0 0.0
        %5076 = vmatpush1.msra.mxu0 0.0
        %5077 = vmatprep.subr.mxu0 0.0
        %5078 = vmatpush1.msra.mxu0 0.0
        %5079 = vmatprep.subr.mxu0 0.0
        %5080 = vmatpush1.msra.mxu0 0.0
        %5081 = vmatprep.subr.mxu0 0.0
        %5082 = vmatpush1.msra.mxu0 0.0
        %5083 = vmatprep.subr.mxu0 0.0
        %5084 = vmatpush1.msra.mxu0 0.0
        %5085 = vmatprep.subr.mxu0 0.0
        %5086 = vmatpush1.msra.mxu0 0.0
        %5087 = vmatprep.subr.mxu0 0.0
        %5088 = vmatpush1.msra.mxu0 0.0
        %5089 = vmatprep.subr.mxu0 0.0
        %5090 = vmatpush1.msra.mxu0 0.0
        %5091 = vmatprep.subr.mxu0 0.0
        %5092 = vmatpush1.msra.mxu0 0.0
        %5093 = vmatprep.subr.mxu0 0.0
        %5094 = vmatpush1.msra.mxu0 0.0
        %5095 = vmatprep.subr.mxu0 0.0
        %5096 = vmatpush1.msra.mxu0 0.0
        %5097 = vmatprep.subr.mxu0 0.0
        %5098 = vmatpush1.msra.mxu0 0.0
        %5099 = vmatprep.subr.mxu0 0.0
        %5100 = vmatpush1.msra.mxu0 0.0
        %5101 = vmatprep.subr.mxu0 0.0
        %5102 = vmatpush1.msra.mxu0 0.0
        %5103 = vmatprep.subr.mxu0 0.0
        %5104 = vmatpush1.msra.mxu0 0.0
        %5105 = vmatprep.subr.mxu0 0.0
        %5106 = vmatpush1.msra.mxu0 0.0
        %5107 = vmatprep.subr.mxu0 0.0
        %5108 = vmatpush1.msra.mxu0 0.0
        %5109 = vmatprep.subr.mxu0 0.0
        %5110 = vmatpush1.msra.mxu0 0.0
        %5111 = vmatprep.subr.mxu0 0.0
        %5112 = vmatpush1.msra.mxu0 0.0
        %5113 = vmatprep.subr.mxu0 0.0
        %5114 = vmatpush1.msra.mxu0 0.0
        %5115 = vmatprep.subr.mxu0 0.0
        %5116 = vmatpush1.msra.mxu0 0.0
        %5117 = vmatprep.subr.mxu0 0.0
        %5118 = vmatpush1.msra.mxu0 0.0
        %5119 = vmatprep.subr.mxu0 0.0
        %5120 = vmatpush1.msra.mxu0 0.0
        %5121 = vmatprep.subr.mxu0 0.0
        %5122 = vmatpush1.msra.mxu0 0.0
        %5123 = vmatprep.mubr.f32.mxu0 0.0
        %5124 = vmatmul.mubr.f32.gmra.mrb[0].mxu0 %v5057
        %v5125 = vpop.f32.mrb[0].mxu0
        %v5126 = vadd.f32 %v5039, %v5125
        %v5127 = vpop.f32.mrb[0].mxu0
        %v5128 = vadd.f32 %v5041, %v5127
        %5129 = vdwg.mxu0
        %v5130 = vld [vmem:[%s441] sm:$0xff]
        %v5131 = vld [vmem:[%s441 + $0x8] sm:$0xff]
        %5134 = vrot.lane.b32.xlu0 %v5130, 113
        %v5135 = vpop.permute.xlu0 %5134
        %5136 = vrot.lane.b32.xlu0 %v5131, 113
        %v5137 = vpop.permute.xlu0 %5136
        %v5138 = vsel %vm450, %v5135, %v5137
        %v5142 = vmul.f32 %v4921, %v5135
        %v5143 = vmul.f32 %v4922, %v5138
        %v5144 = vmul.f32 %v4923, %v5137
        %v5145 = vld [vmem:[%s1404] sm:$0xff]
        %5149 = vrot.lane.b32.xlu0 %v5142, 15
        %v5150 = vpop.permute.xlu0 %5149
        %5151 = vrot.lane.b32.xlu0 %v5143, 15
        %v5152 = vpop.permute.xlu0 %5151
        %5153 = vrot.lane.b32.xlu0 %v5144, 15
        %v5154 = vpop.permute.xlu0 %5153
        %v5155 = vsel %vm469, %v5150, %v5152
        %v5156 = vsel %vm469, %v5152, %v5154
        %v5160 = vsel %vm278, %v5145, 0
        %5162 = vmatprep.subr.mxu0 %v5156
        %5163 = vmatpush1.msra.mxu0 %v5155
        %5164 = vmatprep.subr.mxu0 0.0
        %5165 = vmatpush1.msra.mxu0 0.0
        %5166 = vmatprep.subr.mxu0 0.0
        %5167 = vmatpush1.msra.mxu0 0.0
        %5168 = vmatprep.subr.mxu0 0.0
        %5169 = vmatpush1.msra.mxu0 0.0
        %5170 = vmatprep.subr.mxu0 0.0
        %5171 = vmatpush1.msra.mxu0 0.0
        %5172 = vmatprep.subr.mxu0 0.0
        %5173 = vmatpush1.msra.mxu0 0.0
        %5174 = vmatprep.subr.mxu0 0.0
        %5175 = vmatpush1.msra.mxu0 0.0
        %5176 = vmatprep.subr.mxu0 0.0
        %5177 = vmatpush1.msra.mxu0 0.0
        %5178 = vmatprep.subr.mxu0 0.0
        %5179 = vmatpush1.msra.mxu0 0.0
        %5180 = vmatprep.subr.mxu0 0.0
        %5181 = vmatpush1.msra.mxu0 0.0
        %5182 = vmatprep.subr.mxu0 0.0
        %5183 = vmatpush1.msra.mxu0 0.0
        %5184 = vmatprep.subr.mxu0 0.0
        %5185 = vmatpush1.msra.mxu0 0.0
        %5186 = vmatprep.subr.mxu0 0.0
        %5187 = vmatpush1.msra.mxu0 0.0
        %5188 = vmatprep.subr.mxu0 0.0
        %5189 = vmatpush1.msra.mxu0 0.0
        %5190 = vmatprep.subr.mxu0 0.0
        %5191 = vmatpush1.msra.mxu0 0.0
        %5192 = vmatprep.subr.mxu0 0.0
        %5193 = vmatpush1.msra.mxu0 0.0
        %5194 = vmatprep.subr.mxu0 0.0
        %5195 = vmatpush1.msra.mxu0 0.0
        %5196 = vmatprep.subr.mxu0 0.0
        %5197 = vmatpush1.msra.mxu0 0.0
        %5198 = vmatprep.subr.mxu0 0.0
        %5199 = vmatpush1.msra.mxu0 0.0
        %5200 = vmatprep.subr.mxu0 0.0
        %5201 = vmatpush1.msra.mxu0 0.0
        %5202 = vmatprep.subr.mxu0 0.0
        %5203 = vmatpush1.msra.mxu0 0.0
        %5204 = vmatprep.subr.mxu0 0.0
        %5205 = vmatpush1.msra.mxu0 0.0
        %5206 = vmatprep.subr.mxu0 0.0
        %5207 = vmatpush1.msra.mxu0 0.0
        %5208 = vmatprep.subr.mxu0 0.0
        %5209 = vmatpush1.msra.mxu0 0.0
        %5210 = vmatprep.subr.mxu0 0.0
        %5211 = vmatpush1.msra.mxu0 0.0
        %5212 = vmatprep.subr.mxu0 0.0
        %5213 = vmatpush1.msra.mxu0 0.0
        %5214 = vmatprep.subr.mxu0 0.0
        %5215 = vmatpush1.msra.mxu0 0.0
        %5216 = vmatprep.subr.mxu0 0.0
        %5217 = vmatpush1.msra.mxu0 0.0
        %5218 = vmatprep.subr.mxu0 0.0
        %5219 = vmatpush1.msra.mxu0 0.0
        %5220 = vmatprep.subr.mxu0 0.0
        %5221 = vmatpush1.msra.mxu0 0.0
        %5222 = vmatprep.subr.mxu0 0.0
        %5223 = vmatpush1.msra.mxu0 0.0
        %5224 = vmatprep.subr.mxu0 0.0
        %5225 = vmatpush1.msra.mxu0 0.0
        %5226 = vmatprep.mubr.f32.mxu0 0.0
        %5227 = vmatmul.mubr.f32.gmra.mrb[0].mxu0 %v5160
        %v5228 = vpop.f32.mrb[0].mxu0
        %v5229 = vadd.f32 0.0, %v5228
        %v5230 = vpop.f32.mrb[0].mxu0
        %v5231 = vadd.f32 0.0, %v5230
        %5232 = vdwg.mxu0
        %v5233 = vadd.f32 %v5126, %v5229
        %v5234 = vadd.f32 %v5128, %v5231
        %v5235 = vld [vmem:[%s550] sm:$0xff]
        %v5236 = vld [vmem:[%s550 + $0x8] sm:$0xff]
        %5239 = vrot.lane.b32.xlu0 %v5235, 127
        %v5240 = vpop.permute.xlu0 %5239
        %5241 = vrot.lane.b32.xlu0 %v5236, 127
        %v5242 = vpop.permute.xlu0 %5241
        %v5243 = vsel %vm559, %v5240, %v5242
        %v5247 = vmul.f32 %v4921, %v5240
        %v5248 = vmul.f32 %v4922, %v5243
        %v5249 = vmul.f32 %v4923, %v5242
        %v5250 = vld [vmem:[%s1510] sm:$0xff]
        %5254 = vrot.lane.b32.xlu0 %v5247, 1
        %v5255 = vpop.permute.xlu0 %5254
        %5256 = vrot.lane.b32.xlu0 %v5248, 1
        %v5257 = vpop.permute.xlu0 %5256
        %5258 = vrot.lane.b32.xlu0 %v5249, 1
        %v5259 = vpop.permute.xlu0 %5258
        %v5260 = vsel %vm578, %v5255, %v5257
        %v5261 = vsel %vm578, %v5257, %v5259
        %v5265 = vsel %vm278, %v5250, 0
        %5267 = vmatprep.subr.mxu0 %v5261
        %5268 = vmatpush1.msra.mxu0 %v5260
        %5269 = vmatprep.subr.mxu0 0.0
        %5270 = vmatpush1.msra.mxu0 0.0
        %5271 = vmatprep.subr.mxu0 0.0
        %5272 = vmatpush1.msra.mxu0 0.0
        %5273 = vmatprep.subr.mxu0 0.0
        %5274 = vmatpush1.msra.mxu0 0.0
        %5275 = vmatprep.subr.mxu0 0.0
        %5276 = vmatpush1.msra.mxu0 0.0
        %5277 = vmatprep.subr.mxu0 0.0
        %5278 = vmatpush1.msra.mxu0 0.0
        %5279 = vmatprep.subr.mxu0 0.0
        %5280 = vmatpush1.msra.mxu0 0.0
        %5281 = vmatprep.subr.mxu0 0.0
        %5282 = vmatpush1.msra.mxu0 0.0
        %5283 = vmatprep.subr.mxu0 0.0
        %5284 = vmatpush1.msra.mxu0 0.0
        %5285 = vmatprep.subr.mxu0 0.0
        %5286 = vmatpush1.msra.mxu0 0.0
        %5287 = vmatprep.subr.mxu0 0.0
        %5288 = vmatpush1.msra.mxu0 0.0
        %5289 = vmatprep.subr.mxu0 0.0
        %5290 = vmatpush1.msra.mxu0 0.0
        %5291 = vmatprep.subr.mxu0 0.0
        %5292 = vmatpush1.msra.mxu0 0.0
        %5293 = vmatprep.subr.mxu0 0.0
        %5294 = vmatpush1.msra.mxu0 0.0
        %5295 = vmatprep.subr.mxu0 0.0
        %5296 = vmatpush1.msra.mxu0 0.0
        %5297 = vmatprep.subr.mxu0 0.0
        %5298 = vmatpush1.msra.mxu0 0.0
        %5299 = vmatprep.subr.mxu0 0.0
        %5300 = vmatpush1.msra.mxu0 0.0
        %5301 = vmatprep.subr.mxu0 0.0
        %5302 = vmatpush1.msra.mxu0 0.0
        %5303 = vmatprep.subr.mxu0 0.0
        %5304 = vmatpush1.msra.mxu0 0.0
        %5305 = vmatprep.subr.mxu0 0.0
        %5306 = vmatpush1.msra.mxu0 0.0
        %5307 = vmatprep.subr.mxu0 0.0
        %5308 = vmatpush1.msra.mxu0 0.0
        %5309 = vmatprep.subr.mxu0 0.0
        %5310 = vmatpush1.msra.mxu0 0.0
        %5311 = vmatprep.subr.mxu0 0.0
        %5312 = vmatpush1.msra.mxu0 0.0
        %5313 = vmatprep.subr.mxu0 0.0
        %5314 = vmatpush1.msra.mxu0 0.0
        %5315 = vmatprep.subr.mxu0 0.0
        %5316 = vmatpush1.msra.mxu0 0.0
        %5317 = vmatprep.subr.mxu0 0.0
        %5318 = vmatpush1.msra.mxu0 0.0
        %5319 = vmatprep.subr.mxu0 0.0
        %5320 = vmatpush1.msra.mxu0 0.0
        %5321 = vmatprep.subr.mxu0 0.0
        %5322 = vmatpush1.msra.mxu0 0.0
        %5323 = vmatprep.subr.mxu0 0.0
        %5324 = vmatpush1.msra.mxu0 0.0
        %5325 = vmatprep.subr.mxu0 0.0
        %5326 = vmatpush1.msra.mxu0 0.0
        %5327 = vmatprep.subr.mxu0 0.0
        %5328 = vmatpush1.msra.mxu0 0.0
        %5329 = vmatprep.subr.mxu0 0.0
        %5330 = vmatpush1.msra.mxu0 0.0
        %5331 = vmatprep.mubr.f32.mxu0 0.0
        %5332 = vmatmul.mubr.f32.gmra.mrb[0].mxu0 %v5265
        %v5333 = vpop.f32.mrb[0].mxu0
        %v5334 = vadd.f32 0.0, %v5333
        %v5335 = vpop.f32.mrb[0].mxu0
        %v5336 = vadd.f32 0.0, %v5335
        %5337 = vdwg.mxu0
        %v5338 = vadd.f32 %v5233, %v5334
        %v5339 = vadd.f32 %v5234, %v5336
        %v5340 = vld [vmem:[%s659] sm:$0xff]
        %v5341 = vld [vmem:[%s659 + $0x8] sm:$0xff]
        %v5342 = vmul.f32 %v4922, %v5340
        %v5343 = vmul.f32 %v4923, %v5341
        %v5344 = vld [vmem:[%s1605] sm:$0xff]
        %v5346 = vsel %vm278, %v5344, 0
        %5348 = vmatprep.subr.mxu0 %v5343
        %5349 = vmatpush1.msra.mxu0 %v5342
        %5350 = vmatprep.subr.mxu0 0.0
        %5351 = vmatpush1.msra.mxu0 0.0
        %5352 = vmatprep.subr.mxu0 0.0
        %5353 = vmatpush1.msra.mxu0 0.0
        %5354 = vmatprep.subr.mxu0 0.0
        %5355 = vmatpush1.msra.mxu0 0.0
        %5356 = vmatprep.subr.mxu0 0.0
        %5357 = vmatpush1.msra.mxu0 0.0
        %5358 = vmatprep.subr.mxu0 0.0
        %5359 = vmatpush1.msra.mxu0 0.0
        %5360 = vmatprep.subr.mxu0 0.0
        %5361 = vmatpush1.msra.mxu0 0.0
        %5362 = vmatprep.subr.mxu0 0.0
        %5363 = vmatpush1.msra.mxu0 0.0
        %5364 = vmatprep.subr.mxu0 0.0
        %5365 = vmatpush1.msra.mxu0 0.0
        %5366 = vmatprep.subr.mxu0 0.0
        %5367 = vmatpush1.msra.mxu0 0.0
        %5368 = vmatprep.subr.mxu0 0.0
        %5369 = vmatpush1.msra.mxu0 0.0
        %5370 = vmatprep.subr.mxu0 0.0
        %5371 = vmatpush1.msra.mxu0 0.0
        %5372 = vmatprep.subr.mxu0 0.0
        %5373 = vmatpush1.msra.mxu0 0.0
        %5374 = vmatprep.subr.mxu0 0.0
        %5375 = vmatpush1.msra.mxu0 0.0
        %5376 = vmatprep.subr.mxu0 0.0
        %5377 = vmatpush1.msra.mxu0 0.0
        %5378 = vmatprep.subr.mxu0 0.0
        %5379 = vmatpush1.msra.mxu0 0.0
        %5380 = vmatprep.subr.mxu0 0.0
        %5381 = vmatpush1.msra.mxu0 0.0
        %5382 = vmatprep.subr.mxu0 0.0
        %5383 = vmatpush1.msra.mxu0 0.0
        %5384 = vmatprep.subr.mxu0 0.0
        %5385 = vmatpush1.msra.mxu0 0.0
        %5386 = vmatprep.subr.mxu0 0.0
        %5387 = vmatpush1.msra.mxu0 0.0
        %5388 = vmatprep.subr.mxu0 0.0
        %5389 = vmatpush1.msra.mxu0 0.0
        %5390 = vmatprep.subr.mxu0 0.0
        %5391 = vmatpush1.msra.mxu0 0.0
        %5392 = vmatprep.subr.mxu0 0.0
        %5393 = vmatpush1.msra.mxu0 0.0
        %5394 = vmatprep.subr.mxu0 0.0
        %5395 = vmatpush1.msra.mxu0 0.0
        %5396 = vmatprep.subr.mxu0 0.0
        %5397 = vmatpush1.msra.mxu0 0.0
        %5398 = vmatprep.subr.mxu0 0.0
        %5399 = vmatpush1.msra.mxu0 0.0
        %5400 = vmatprep.subr.mxu0 0.0
        %5401 = vmatpush1.msra.mxu0 0.0
        %5402 = vmatprep.subr.mxu0 0.0
        %5403 = vmatpush1.msra.mxu0 0.0
        %5404 = vmatprep.subr.mxu0 0.0
        %5405 = vmatpush1.msra.mxu0 0.0
        %5406 = vmatprep.subr.mxu0 0.0
        %5407 = vmatpush1.msra.mxu0 0.0
        %5408 = vmatprep.subr.mxu0 0.0
        %5409 = vmatpush1.msra.mxu0 0.0
        %5410 = vmatprep.subr.mxu0 0.0
        %5411 = vmatpush1.msra.mxu0 0.0
        %5412 = vmatprep.mubr.f32.mxu0 0.0
        %5413 = vmatmul.mubr.f32.gmra.mrb[0].mxu0 %v5346
        %v5414 = vpop.f32.mrb[0].mxu0
        %v5415 = vadd.f32 0.0, %v5414
        %v5416 = vpop.f32.mrb[0].mxu0
        %v5417 = vadd.f32 0.0, %v5416
        %5418 = vdwg.mxu0
        %v5419 = vadd.f32 %v5338, %v5415
        %v5420 = vadd.f32 %v5339, %v5417
        %v5421 = vld [vmem:[#allocation2 + $0x8] sm:$0xff]
        %v5422 = vld [vmem:[#allocation2 + $0x10] sm:$0xff]
        %v5423 = vld [vmem:[#allocation2 + $0x18] sm:$0xff]
        %v5424 = vld [vmem:[%s745] sm:$0xff]
        %v5425 = vld [vmem:[%s745 + $0x8] sm:$0xff]
        %5428 = vrot.lane.b32.xlu0 %v5424, 1
        %v5429 = vpop.permute.xlu0 %5428
        %5430 = vrot.lane.b32.xlu0 %v5425, 1
        %v5431 = vpop.permute.xlu0 %5430
        %v5432 = vsel %vm578, %v5429, %v5431
        %v5436 = vmul.f32 %v5421, %v5429
        %v5437 = vmul.f32 %v5422, %v5432
        %v5438 = vmul.f32 %v5423, %v5431
        %v5439 = vld [vmem:[%s1701] sm:$0xff]
        %5443 = vrot.lane.b32.xlu0 %v5436, 127
        %v5444 = vpop.permute.xlu0 %5443
        %5445 = vrot.lane.b32.xlu0 %v5437, 127
        %v5446 = vpop.permute.xlu0 %5445
        %5447 = vrot.lane.b32.xlu0 %v5438, 127
        %v5448 = vpop.permute.xlu0 %5447
        %v5449 = vsel %vm559, %v5444, %v5446
        %v5450 = vsel %vm559, %v5446, %v5448
        %v5454 = vsel %vm278, %v5439, 0
        %5456 = vmatprep.subr.mxu0 %v5450
        %5457 = vmatpush1.msra.mxu0 %v5449
        %5458 = vmatprep.subr.mxu0 0.0
        %5459 = vmatpush1.msra.mxu0 0.0
        %5460 = vmatprep.subr.mxu0 0.0
        %5461 = vmatpush1.msra.mxu0 0.0
        %5462 = vmatprep.subr.mxu0 0.0
        %5463 = vmatpush1.msra.mxu0 0.0
        %5464 = vmatprep.subr.mxu0 0.0
        %5465 = vmatpush1.msra.mxu0 0.0
        %5466 = vmatprep.subr.mxu0 0.0
        %5467 = vmatpush1.msra.mxu0 0.0
        %5468 = vmatprep.subr.mxu0 0.0
        %5469 = vmatpush1.msra.mxu0 0.0
        %5470 = vmatprep.subr.mxu0 0.0
        %5471 = vmatpush1.msra.mxu0 0.0
        %5472 = vmatprep.subr.mxu0 0.0
        %5473 = vmatpush1.msra.mxu0 0.0
        %5474 = vmatprep.subr.mxu0 0.0
        %5475 = vmatpush1.msra.mxu0 0.0
        %5476 = vmatprep.subr.mxu0 0.0
        %5477 = vmatpush1.msra.mxu0 0.0
        %5478 = vmatprep.subr.mxu0 0.0
        %5479 = vmatpush1.msra.mxu0 0.0
        %5480 = vmatprep.subr.mxu0 0.0
        %5481 = vmatpush1.msra.mxu0 0.0
        %5482 = vmatprep.subr.mxu0 0.0
        %5483 = vmatpush1.msra.mxu0 0.0
        %5484 = vmatprep.subr.mxu0 0.0
        %5485 = vmatpush1.msra.mxu0 0.0
        %5486 = vmatprep.subr.mxu0 0.0
        %5487 = vmatpush1.msra.mxu0 0.0
        %5488 = vmatprep.subr.mxu0 0.0
        %5489 = vmatpush1.msra.mxu0 0.0
        %5490 = vmatprep.subr.mxu0 0.0
        %5491 = vmatpush1.msra.mxu0 0.0
        %5492 = vmatprep.subr.mxu0 0.0
        %5493 = vmatpush1.msra.mxu0 0.0
        %5494 = vmatprep.subr.mxu0 0.0
        %5495 = vmatpush1.msra.mxu0 0.0
        %5496 = vmatprep.subr.mxu0 0.0
        %5497 = vmatpush1.msra.mxu0 0.0
        %5498 = vmatprep.subr.mxu0 0.0
        %5499 = vmatpush1.msra.mxu0 0.0
        %5500 = vmatprep.subr.mxu0 0.0
        %5501 = vmatpush1.msra.mxu0 0.0
        %5502 = vmatprep.subr.mxu0 0.0
        %5503 = vmatpush1.msra.mxu0 0.0
        %5504 = vmatprep.subr.mxu0 0.0
        %5505 = vmatpush1.msra.mxu0 0.0
        %5506 = vmatprep.subr.mxu0 0.0
        %5507 = vmatpush1.msra.mxu0 0.0
        %5508 = vmatprep.subr.mxu0 0.0
        %5509 = vmatpush1.msra.mxu0 0.0
        %5510 = vmatprep.subr.mxu0 0.0
        %5511 = vmatpush1.msra.mxu0 0.0
        %5512 = vmatprep.subr.mxu0 0.0
        %5513 = vmatpush1.msra.mxu0 0.0
        %5514 = vmatprep.subr.mxu0 0.0
        %5515 = vmatpush1.msra.mxu0 0.0
        %5516 = vmatprep.subr.mxu0 0.0
        %5517 = vmatpush1.msra.mxu0 0.0
        %5518 = vmatprep.subr.mxu0 0.0
        %5519 = vmatpush1.msra.mxu0 0.0
        %5520 = vmatprep.mubr.f32.mxu0 0.0
        %5521 = vmatmul.mubr.f32.gmra.mrb[0].mxu0 %v5454
        %v5522 = vpop.f32.mrb[0].mxu0
        %v5523 = vadd.f32 0.0, %v5522
        %v5524 = vpop.f32.mrb[0].mxu0
        %v5525 = vadd.f32 0.0, %v5524
        %5526 = vdwg.mxu0
        %v5527 = vadd.f32 %v5419, %v5523
        %v5528 = vadd.f32 %v5420, %v5525
        %v5529 = vld [vmem:[%s852] sm:$0xff]
        %v5530 = vld [vmem:[%s852 + $0x8] sm:$0xff]
        %5533 = vrot.lane.b32.xlu0 %v5529, 15
        %v5534 = vpop.permute.xlu0 %5533
        %5535 = vrot.lane.b32.xlu0 %v5530, 15
        %v5536 = vpop.permute.xlu0 %5535
        %v5537 = vsel %vm469, %v5534, %v5536
        %v5541 = vmul.f32 %v5421, %v5534
        %v5542 = vmul.f32 %v5422, %v5537
        %v5543 = vmul.f32 %v5423, %v5536
        %v5544 = vld [vmem:[%s1807] sm:$0xff]
        %5548 = vrot.lane.b32.xlu0 %v5541, 113
        %v5549 = vpop.permute.xlu0 %5548
        %5550 = vrot.lane.b32.xlu0 %v5542, 113
        %v5551 = vpop.permute.xlu0 %5550
        %5552 = vrot.lane.b32.xlu0 %v5543, 113
        %v5553 = vpop.permute.xlu0 %5552
        %v5554 = vsel %vm450, %v5549, %v5551
        %v5555 = vsel %vm450, %v5551, %v5553
        %v5559 = vsel %vm278, %v5544, 0
        %5561 = vmatprep.subr.mxu0 %v5555
        %5562 = vmatpush1.msra.mxu0 %v5554
        %5563 = vmatprep.subr.mxu0 0.0
        %5564 = vmatpush1.msra.mxu0 0.0
        %5565 = vmatprep.subr.mxu0 0.0
        %5566 = vmatpush1.msra.mxu0 0.0
        %5567 = vmatprep.subr.mxu0 0.0
        %5568 = vmatpush1.msra.mxu0 0.0
        %5569 = vmatprep.subr.mxu0 0.0
        %5570 = vmatpush1.msra.mxu0 0.0
        %5571 = vmatprep.subr.mxu0 0.0
        %5572 = vmatpush1.msra.mxu0 0.0
        %5573 = vmatprep.subr.mxu0 0.0
        %5574 = vmatpush1.msra.mxu0 0.0
        %5575 = vmatprep.subr.mxu0 0.0
        %5576 = vmatpush1.msra.mxu0 0.0
        %5577 = vmatprep.subr.mxu0 0.0
        %5578 = vmatpush1.msra.mxu0 0.0
        %5579 = vmatprep.subr.mxu0 0.0
        %5580 = vmatpush1.msra.mxu0 0.0
        %5581 = vmatprep.subr.mxu0 0.0
        %5582 = vmatpush1.msra.mxu0 0.0
        %5583 = vmatprep.subr.mxu0 0.0
        %5584 = vmatpush1.msra.mxu0 0.0
        %5585 = vmatprep.subr.mxu0 0.0
        %5586 = vmatpush1.msra.mxu0 0.0
        %5587 = vmatprep.subr.mxu0 0.0
        %5588 = vmatpush1.msra.mxu0 0.0
        %5589 = vmatprep.subr.mxu0 0.0
        %5590 = vmatpush1.msra.mxu0 0.0
        %5591 = vmatprep.subr.mxu0 0.0
        %5592 = vmatpush1.msra.mxu0 0.0
        %5593 = vmatprep.subr.mxu0 0.0
        %5594 = vmatpush1.msra.mxu0 0.0
        %5595 = vmatprep.subr.mxu0 0.0
        %5596 = vmatpush1.msra.mxu0 0.0
        %5597 = vmatprep.subr.mxu0 0.0
        %5598 = vmatpush1.msra.mxu0 0.0
        %5599 = vmatprep.subr.mxu0 0.0
        %5600 = vmatpush1.msra.mxu0 0.0
        %5601 = vmatprep.subr.mxu0 0.0
        %5602 = vmatpush1.msra.mxu0 0.0
        %5603 = vmatprep.subr.mxu0 0.0
        %5604 = vmatpush1.msra.mxu0 0.0
        %5605 = vmatprep.subr.mxu0 0.0
        %5606 = vmatpush1.msra.mxu0 0.0
        %5607 = vmatprep.subr.mxu0 0.0
        %5608 = vmatpush1.msra.mxu0 0.0
        %5609 = vmatprep.subr.mxu0 0.0
        %5610 = vmatpush1.msra.mxu0 0.0
        %5611 = vmatprep.subr.mxu0 0.0
        %5612 = vmatpush1.msra.mxu0 0.0
        %5613 = vmatprep.subr.mxu0 0.0
        %5614 = vmatpush1.msra.mxu0 0.0
        %5615 = vmatprep.subr.mxu0 0.0
        %5616 = vmatpush1.msra.mxu0 0.0
        %5617 = vmatprep.subr.mxu0 0.0
        %5618 = vmatpush1.msra.mxu0 0.0
        %5619 = vmatprep.subr.mxu0 0.0
        %5620 = vmatpush1.msra.mxu0 0.0
        %5621 = vmatprep.subr.mxu0 0.0
        %5622 = vmatpush1.msra.mxu0 0.0
        %5623 = vmatprep.subr.mxu0 0.0
        %5624 = vmatpush1.msra.mxu0 0.0
        %5625 = vmatprep.mubr.f32.mxu0 0.0
        %5626 = vmatmul.mubr.f32.gmra.mrb[0].mxu0 %v5559
        %v5627 = vpop.f32.mrb[0].mxu0
        %v5628 = vadd.f32 0.0, %v5627
        %v5629 = vpop.f32.mrb[0].mxu0
        %v5630 = vadd.f32 0.0, %v5629
        %5631 = vdwg.mxu0
        %v5632 = vadd.f32 %v5527, %v5628
        %v5633 = vadd.f32 %v5528, %v5630
        %v5634 = vld [vmem:[%s959] sm:$0xff]
        %v5635 = vld [vmem:[%s959 + $0x8] sm:$0xff]
        %5638 = vrot.lane.b32.xlu0 %v5634, 16
        %v5639 = vpop.permute.xlu0 %5638
        %5640 = vrot.lane.b32.xlu0 %v5635, 16
        %v5641 = vpop.permute.xlu0 %5640
        %v5642 = vsel %vm273, %v5639, %v5641
        %v5646 = vmul.f32 %v5421, %v5639
        %v5647 = vmul.f32 %v5422, %v5642
        %v5648 = vmul.f32 %v5423, %v5641
        %v5649 = vld [vmem:[%s1913] sm:$0xff]
        %5653 = vrot.lane.b32.xlu0 %v5646, 112
        %v5654 = vpop.permute.xlu0 %5653
        %5655 = vrot.lane.b32.xlu0 %v5647, 112
        %v5656 = vpop.permute.xlu0 %5655
        %5657 = vrot.lane.b32.xlu0 %v5648, 112
        %v5658 = vpop.permute.xlu0 %5657
        %v5659 = vsel %vm254, %v5654, %v5656
        %v5660 = vsel %vm254, %v5656, %v5658
        %v5664 = vsel %vm278, %v5649, 0
        %5666 = vmatprep.subr.mxu0 %v5660
        %5667 = vmatpush1.msra.mxu0 %v5659
        %5668 = vmatprep.subr.mxu0 0.0
        %5669 = vmatpush1.msra.mxu0 0.0
        %5670 = vmatprep.subr.mxu0 0.0
        %5671 = vmatpush1.msra.mxu0 0.0
        %5672 = vmatprep.subr.mxu0 0.0
        %5673 = vmatpush1.msra.mxu0 0.0
        %5674 = vmatprep.subr.mxu0 0.0
        %5675 = vmatpush1.msra.mxu0 0.0
        %5676 = vmatprep.subr.mxu0 0.0
        %5677 = vmatpush1.msra.mxu0 0.0
        %5678 = vmatprep.subr.mxu0 0.0
        %5679 = vmatpush1.msra.mxu0 0.0
        %5680 = vmatprep.subr.mxu0 0.0
        %5681 = vmatpush1.msra.mxu0 0.0
        %5682 = vmatprep.subr.mxu0 0.0
        %5683 = vmatpush1.msra.mxu0 0.0
        %5684 = vmatprep.subr.mxu0 0.0
        %5685 = vmatpush1.msra.mxu0 0.0
        %5686 = vmatprep.subr.mxu0 0.0
        %5687 = vmatpush1.msra.mxu0 0.0
        %5688 = vmatprep.subr.mxu0 0.0
        %5689 = vmatpush1.msra.mxu0 0.0
        %5690 = vmatprep.subr.mxu0 0.0
        %5691 = vmatpush1.msra.mxu0 0.0
        %5692 = vmatprep.subr.mxu0 0.0
        %5693 = vmatpush1.msra.mxu0 0.0
        %5694 = vmatprep.subr.mxu0 0.0
        %5695 = vmatpush1.msra.mxu0 0.0
        %5696 = vmatprep.subr.mxu0 0.0
        %5697 = vmatpush1.msra.mxu0 0.0
        %5698 = vmatprep.subr.mxu0 0.0
        %5699 = vmatpush1.msra.mxu0 0.0
        %5700 = vmatprep.subr.mxu0 0.0
        %5701 = vmatpush1.msra.mxu0 0.0
        %5702 = vmatprep.subr.mxu0 0.0
        %5703 = vmatpush1.msra.mxu0 0.0
        %5704 = vmatprep.subr.mxu0 0.0
        %5705 = vmatpush1.msra.mxu0 0.0
        %5706 = vmatprep.subr.mxu0 0.0
        %5707 = vmatpush1.msra.mxu0 0.0
        %5708 = vmatprep.subr.mxu0 0.0
        %5709 = vmatpush1.msra.mxu0 0.0
        %5710 = vmatprep.subr.mxu0 0.0
        %5711 = vmatpush1.msra.mxu0 0.0
        %5712 = vmatprep.subr.mxu0 0.0
        %5713 = vmatpush1.msra.mxu0 0.0
        %5714 = vmatprep.subr.mxu0 0.0
        %5715 = vmatpush1.msra.mxu0 0.0
        %5716 = vmatprep.subr.mxu0 0.0
        %5717 = vmatpush1.msra.mxu0 0.0
        %5718 = vmatprep.subr.mxu0 0.0
        %5719 = vmatpush1.msra.mxu0 0.0
        %5720 = vmatprep.subr.mxu0 0.0
        %5721 = vmatpush1.msra.mxu0 0.0
        %5722 = vmatprep.subr.mxu0 0.0
        %5723 = vmatpush1.msra.mxu0 0.0
        %5724 = vmatprep.subr.mxu0 0.0
        %5725 = vmatpush1.msra.mxu0 0.0
        %5726 = vmatprep.subr.mxu0 0.0
        %5727 = vmatpush1.msra.mxu0 0.0
        %5728 = vmatprep.subr.mxu0 0.0
        %5729 = vmatpush1.msra.mxu0 0.0
        %5730 = vmatprep.mubr.f32.mxu0 0.0
        %5731 = vmatmul.mubr.f32.gmra.mrb[0].mxu0 %v5664
        %v5732 = vpop.f32.mrb[0].mxu0
        %v5733 = vadd.f32 0.0, %v5732
        %v5734 = vpop.f32.mrb[0].mxu0
        %v5735 = vadd.f32 0.0, %v5734
        %5736 = vdwg.mxu0
        %v5737 = vadd.f32 %v5632, %v5733
        %v5738 = vadd.f32 %v5633, %v5735
        %v5739 = vld [vmem:[%s1066] sm:$0xff]
        %v5740 = vld [vmem:[%s1066 + $0x8] sm:$0xff]
        %5743 = vrot.lane.b32.xlu0 %v5739, 17
        %v5744 = vpop.permute.xlu0 %5743
        %5745 = vrot.lane.b32.xlu0 %v5740, 17
        %v5746 = vpop.permute.xlu0 %5745
        %v5747 = vsel %vm362, %v5744, %v5746
        %v5751 = vmul.f32 %v5421, %v5744
        %v5752 = vmul.f32 %v5422, %v5747
        %v5753 = vmul.f32 %v5423, %v5746
        %v5754 = vld [vmem:[%s2019] sm:$0xff]
        %5758 = vrot.lane.b32.xlu0 %v5751, 111
        %v5759 = vpop.permute.xlu0 %5758
        %5760 = vrot.lane.b32.xlu0 %v5752, 111
        %v5761 = vpop.permute.xlu0 %5760
        %5762 = vrot.lane.b32.xlu0 %v5753, 111
        %v5763 = vpop.permute.xlu0 %5762
        %v5764 = vsel %vm236, %v5759, %v5761
        %v5765 = vsel %vm236, %v5761, %v5763
        %v5769 = vsel %vm278, %v5754, 0
        %5771 = vmatprep.subr.mxu0 %v5765
        %5772 = vmatpush1.msra.mxu0 %v5764
        %5773 = vmatprep.subr.mxu0 0.0
        %5774 = vmatpush1.msra.mxu0 0.0
        %5775 = vmatprep.subr.mxu0 0.0
        %5776 = vmatpush1.msra.mxu0 0.0
        %5777 = vmatprep.subr.mxu0 0.0
        %5778 = vmatpush1.msra.mxu0 0.0
        %5779 = vmatprep.subr.mxu0 0.0
        %5780 = vmatpush1.msra.mxu0 0.0
        %5781 = vmatprep.subr.mxu0 0.0
        %5782 = vmatpush1.msra.mxu0 0.0
        %5783 = vmatprep.subr.mxu0 0.0
        %5784 = vmatpush1.msra.mxu0 0.0
        %5785 = vmatprep.subr.mxu0 0.0
        %5786 = vmatpush1.msra.mxu0 0.0
        %5787 = vmatprep.subr.mxu0 0.0
        %5788 = vmatpush1.msra.mxu0 0.0
        %5789 = vmatprep.subr.mxu0 0.0
        %5790 = vmatpush1.msra.mxu0 0.0
        %5791 = vmatprep.subr.mxu0 0.0
        %5792 = vmatpush1.msra.mxu0 0.0
        %5793 = vmatprep.subr.mxu0 0.0
        %5794 = vmatpush1.msra.mxu0 0.0
        %5795 = vmatprep.subr.mxu0 0.0
        %5796 = vmatpush1.msra.mxu0 0.0
        %5797 = vmatprep.subr.mxu0 0.0
        %5798 = vmatpush1.msra.mxu0 0.0
        %5799 = vmatprep.subr.mxu0 0.0
        %5800 = vmatpush1.msra.mxu0 0.0
        %5801 = vmatprep.subr.mxu0 0.0
        %5802 = vmatpush1.msra.mxu0 0.0
        %5803 = vmatprep.subr.mxu0 0.0
        %5804 = vmatpush1.msra.mxu0 0.0
        %5805 = vmatprep.subr.mxu0 0.0
        %5806 = vmatpush1.msra.mxu0 0.0
        %5807 = vmatprep.subr.mxu0 0.0
        %5808 = vmatpush1.msra.mxu0 0.0
        %5809 = vmatprep.subr.mxu0 0.0
        %5810 = vmatpush1.msra.mxu0 0.0
        %5811 = vmatprep.subr.mxu0 0.0
        %5812 = vmatpush1.msra.mxu0 0.0
        %5813 = vmatprep.subr.mxu0 0.0
        %5814 = vmatpush1.msra.mxu0 0.0
        %5815 = vmatprep.subr.mxu0 0.0
        %5816 = vmatpush1.msra.mxu0 0.0
        %5817 = vmatprep.subr.mxu0 0.0
        %5818 = vmatpush1.msra.mxu0 0.0
        %5819 = vmatprep.subr.mxu0 0.0
        %5820 = vmatpush1.msra.mxu0 0.0
        %5821 = vmatprep.subr.mxu0 0.0
        %5822 = vmatpush1.msra.mxu0 0.0
        %5823 = vmatprep.subr.mxu0 0.0
        %5824 = vmatpush1.msra.mxu0 0.0
        %5825 = vmatprep.subr.mxu0 0.0
        %5826 = vmatpush1.msra.mxu0 0.0
        %5827 = vmatprep.subr.mxu0 0.0
        %5828 = vmatpush1.msra.mxu0 0.0
        %5829 = vmatprep.subr.mxu0 0.0
        %5830 = vmatpush1.msra.mxu0 0.0
        %5831 = vmatprep.subr.mxu0 0.0
        %5832 = vmatpush1.msra.mxu0 0.0
        %5833 = vmatprep.subr.mxu0 0.0
        %5834 = vmatpush1.msra.mxu0 0.0
        %5835 = vmatprep.mubr.f32.mxu0 0.0
        %5836 = vmatmul.mubr.f32.gmra.mrb[0].mxu0 %v5769
        %v5837 = vpop.f32.mrb[0].mxu0
        %v5838 = vadd.f32 0.0, %v5837
        %v5839 = vpop.f32.mrb[0].mxu0
        %v5840 = vadd.f32 0.0, %v5839
        %5841 = vdwg.mxu0
        %v5842 = vadd.f32 %v5737, %v5838
        %v5843 = vadd.f32 %v5738, %v5840
        %v5844 = vmul.f32 %v5842, 0.041666668
        %v5845 = vmul.f32 %v5843, 0.041666668
        %v5846 = vadd.f32 %v3980, %v5844
        %v5847 = vadd.f32 %v3981, %v5845
        %s5848 = sadd.f32 %s217, 0.125
        %v5849 = vmul.f32 %v5842, 0.125
        %v5850 = vmul.f32 %v5843, 0.125
        %v5851 = vadd.f32 %v214, %v5849
        %v5852 = vadd.f32 %v215, %v5850
        %v5853 = vstv %s5848
        %v5854 = vsel %vm204, %v5853, %v5851
        %v5855 = vsel %vm204, %v5853, %v5852
        %v5856 = vsel %vm205, 1.0, %v5854
        %v5857 = vsel %vm205, 1.0, %v5855
        %5858 = vst [vmem:[#allocation2 + $0x8] sm:$0xff] %v5856
        %5859 = vst [vmem:[#allocation2 + $0x10] sm:$0xff] %v5857
        %v5860 = vld [vmem:[#allocation2] sm:$0xff]
        %v5861 = vld [vmem:[#allocation2 + $0x8] sm:$0xff]
        %v5862 = vld [vmem:[#allocation2 + $0x10] sm:$0xff]
        %v5863 = vld [vmem:[%s3] sm:$0xff]
        %v5864 = vld [vmem:[%s3 + $0x8] sm:$0xff]
        %5867 = vrot.lane.b32.xlu0 %v5863, 111
        %v5868 = vpop.permute.xlu0 %5867
        %5869 = vrot.lane.b32.xlu0 %v5864, 111
        %v5870 = vpop.permute.xlu0 %5869
        %v5871 = vsel %vm236, %v5868, %v5870
        %v5875 = vmul.f32 %v5860, %v5868
        %v5876 = vmul.f32 %v5861, %v5871
        %v5877 = vmul.f32 %v5862, %v5870
        %v5878 = vld [vmem:[%s1] sm:$0xff]
        %v5879 = vld [vmem:[%s245] sm:$0xff]
        %v5880 = vld [vmem:[%s245 + $0x8] sm:$0xff]
        %5883 = vrot.lane.b32.xlu0 %v5879, 112
        %v5884 = vpop.permute.xlu0 %5883
        %5885 = vrot.lane.b32.xlu0 %v5880, 112
        %v5886 = vpop.permute.xlu0 %5885
        %v5887 = vsel %vm254, %v5884, %v5886
        %v5891 = vmul.f32 %v5860, %v5884
        %v5892 = vmul.f32 %v5861, %v5887
        %v5893 = vmul.f32 %v5862, %v5886
        %v5894 = vld [vmem:[%s262] sm:$0xff]
        %5898 = vrot.lane.b32.xlu0 %v5891, 16
        %v5899 = vpop.permute.xlu0 %5898
        %5900 = vrot.lane.b32.xlu0 %v5892, 16
        %v5901 = vpop.permute.xlu0 %5900
        %5902 = vrot.lane.b32.xlu0 %v5893, 16
        %v5903 = vpop.permute.xlu0 %5902
        %v5904 = vsel %vm273, %v5899, %v5901
        %v5905 = vsel %vm273, %v5901, %v5903
        %v5909 = vsel %vm278, %v5894, 0
        %5911 = vmatprep.subr.mxu0 %v5905
        %5912 = vmatpush1.msra.mxu0 %v5904
        %5913 = vmatprep.subr.mxu0 0.0
        %5914 = vmatpush1.msra.mxu0 0.0
        %5915 = vmatprep.subr.mxu0 0.0
        %5916 = vmatpush1.msra.mxu0 0.0
        %5917 = vmatprep.subr.mxu0 0.0
        %5918 = vmatpush1.msra.mxu0 0.0
        %5919 = vmatprep.subr.mxu0 0.0
        %5920 = vmatpush1.msra.mxu0 0.0
        %5921 = vmatprep.subr.mxu0 0.0
        %5922 = vmatpush1.msra.mxu0 0.0
        %5923 = vmatprep.subr.mxu0 0.0
        %5924 = vmatpush1.msra.mxu0 0.0
        %5925 = vmatprep.subr.mxu0 0.0
        %5926 = vmatpush1.msra.mxu0 0.0
        %5927 = vmatprep.subr.mxu0 0.0
        %5928 = vmatpush1.msra.mxu0 0.0
        %5929 = vmatprep.subr.mxu0 0.0
        %5930 = vmatpush1.msra.mxu0 0.0
        %5931 = vmatprep.subr.mxu0 0.0
        %5932 = vmatpush1.msra.mxu0 0.0
        %5933 = vmatprep.subr.mxu0 0.0
        %5934 = vmatpush1.msra.mxu0 0.0
        %5935 = vmatprep.subr.mxu0 0.0
        %5936 = vmatpush1.msra.mxu0 0.0
        %5937 = vmatprep.subr.mxu0 0.0
        %5938 = vmatpush1.msra.mxu0 0.0
        %5939 = vmatprep.subr.mxu0 0.0
        %5940 = vmatpush1.msra.mxu0 0.0
        %5941 = vmatprep.subr.mxu0 0.0
        %5942 = vmatpush1.msra.mxu0 0.0
        %5943 = vmatprep.subr.mxu0 0.0
        %5944 = vmatpush1.msra.mxu0 0.0
        %5945 = vmatprep.subr.mxu0 0.0
        %5946 = vmatpush1.msra.mxu0 0.0
        %5947 = vmatprep.subr.mxu0 0.0
        %5948 = vmatpush1.msra.mxu0 0.0
        %5949 = vmatprep.subr.mxu0 0.0
        %5950 = vmatpush1.msra.mxu0 0.0
        %5951 = vmatprep.subr.mxu0 0.0
        %5952 = vmatpush1.msra.mxu0 0.0
        %5953 = vmatprep.subr.mxu0 0.0
        %5954 = vmatpush1.msra.mxu0 0.0
        %5955 = vmatprep.subr.mxu0 0.0
        %5956 = vmatpush1.msra.mxu0 0.0
        %5957 = vmatprep.subr.mxu0 0.0
        %5958 = vmatpush1.msra.mxu0 0.0
        %5959 = vmatprep.subr.mxu0 0.0
        %5960 = vmatpush1.msra.mxu0 0.0
        %5961 = vmatprep.subr.mxu0 0.0
        %5962 = vmatpush1.msra.mxu0 0.0
        %5963 = vmatprep.subr.mxu0 0.0
        %5964 = vmatpush1.msra.mxu0 0.0
        %5965 = vmatprep.subr.mxu0 0.0
        %5966 = vmatpush1.msra.mxu0 0.0
        %5967 = vmatprep.subr.mxu0 0.0
        %5968 = vmatpush1.msra.mxu0 0.0
        %5969 = vmatprep.subr.mxu0 0.0
        %5970 = vmatpush1.msra.mxu0 0.0
        %5971 = vmatprep.subr.mxu0 0.0
        %5972 = vmatpush1.msra.mxu0 0.0
        %5973 = vmatprep.subr.mxu0 0.0
        %5974 = vmatpush1.msra.mxu0 0.0
        %5975 = vmatprep.mubr.f32.mxu0 0.0
        %5976 = vmatmul.mubr.f32.gmra.mrb[0].mxu0 %v5909
        %v5977 = vpop.f32.mrb[0].mxu0
        %v5978 = vadd.f32 0.0, %v5977
        %v5979 = vpop.f32.mrb[0].mxu0
        %v5980 = vadd.f32 0.0, %v5979
        %5981 = vdwg.mxu0
        %5985 = vrot.lane.b32.xlu0 %v5875, 17
        %v5986 = vpop.permute.xlu0 %5985
        %5987 = vrot.lane.b32.xlu0 %v5876, 17
        %v5988 = vpop.permute.xlu0 %5987
        %5989 = vrot.lane.b32.xlu0 %v5877, 17
        %v5990 = vpop.permute.xlu0 %5989
        %v5991 = vsel %vm362, %v5986, %v5988
        %v5992 = vsel %vm362, %v5988, %v5990
        %v5996 = vsel %vm278, %v5878, 0
        %5998 = vmatprep.subr.mxu0 %v5992
        %5999 = vmatpush1.msra.mxu0 %v5991
        %6000 = vmatprep.subr.mxu0 0.0
        %6001 = vmatpush1.msra.mxu0 0.0
        %6002 = vmatprep.subr.mxu0 0.0
        %6003 = vmatpush1.msra.mxu0 0.0
        %6004 = vmatprep.subr.mxu0 0.0
        %6005 = vmatpush1.msra.mxu0 0.0
        %6006 = vmatprep.subr.mxu0 0.0
        %6007 = vmatpush1.msra.mxu0 0.0
        %6008 = vmatprep.subr.mxu0 0.0
        %6009 = vmatpush1.msra.mxu0 0.0
        %6010 = vmatprep.subr.mxu0 0.0
        %6011 = vmatpush1.msra.mxu0 0.0
        %6012 = vmatprep.subr.mxu0 0.0
        %6013 = vmatpush1.msra.mxu0 0.0
        %6014 = vmatprep.subr.mxu0 0.0
        %6015 = vmatpush1.msra.mxu0 0.0
        %6016 = vmatprep.subr.mxu0 0.0
        %6017 = vmatpush1.msra.mxu0 0.0
        %6018 = vmatprep.subr.mxu0 0.0
        %6019 = vmatpush1.msra.mxu0 0.0
        %6020 = vmatprep.subr.mxu0 0.0
        %6021 = vmatpush1.msra.mxu0 0.0
        %6022 = vmatprep.subr.mxu0 0.0
        %6023 = vmatpush1.msra.mxu0 0.0
        %6024 = vmatprep.subr.mxu0 0.0
        %6025 = vmatpush1.msra.mxu0 0.0
        %6026 = vmatprep.subr.mxu0 0.0
        %6027 = vmatpush1.msra.mxu0 0.0
        %6028 = vmatprep.subr.mxu0 0.0
        %6029 = vmatpush1.msra.mxu0 0.0
        %6030 = vmatprep.subr.mxu0 0.0
        %6031 = vmatpush1.msra.mxu0 0.0
        %6032 = vmatprep.subr.mxu0 0.0
        %6033 = vmatpush1.msra.mxu0 0.0
        %6034 = vmatprep.subr.mxu0 0.0
        %6035 = vmatpush1.msra.mxu0 0.0
        %6036 = vmatprep.subr.mxu0 0.0
        %6037 = vmatpush1.msra.mxu0 0.0
        %6038 = vmatprep.subr.mxu0 0.0
        %6039 = vmatpush1.msra.mxu0 0.0
        %6040 = vmatprep.subr.mxu0 0.0
        %6041 = vmatpush1.msra.mxu0 0.0
        %6042 = vmatprep.subr.mxu0 0.0
        %6043 = vmatpush1.msra.mxu0 0.0
        %6044 = vmatprep.subr.mxu0 0.0
        %6045 = vmatpush1.msra.mxu0 0.0
        %6046 = vmatprep.subr.mxu0 0.0
        %6047 = vmatpush1.msra.mxu0 0.0
        %6048 = vmatprep.subr.mxu0 0.0
        %6049 = vmatpush1.msra.mxu0 0.0
        %6050 = vmatprep.subr.mxu0 0.0
        %6051 = vmatpush1.msra.mxu0 0.0
        %6052 = vmatprep.subr.mxu0 0.0
        %6053 = vmatpush1.msra.mxu0 0.0
        %6054 = vmatprep.subr.mxu0 0.0
        %6055 = vmatpush1.msra.mxu0 0.0
        %6056 = vmatprep.subr.mxu0 0.0
        %6057 = vmatpush1.msra.mxu0 0.0
        %6058 = vmatprep.subr.mxu0 0.0
        %6059 = vmatpush1.msra.mxu0 0.0
        %6060 = vmatprep.subr.mxu0 0.0
        %6061 = vmatpush1.msra.mxu0 0.0
        %6062 = vmatprep.mubr.f32.mxu0 0.0
        %6063 = vmatmul.mubr.f32.gmra.mrb[0].mxu0 %v5996
        %v6064 = vpop.f32.mrb[0].mxu0
        %v6065 = vadd.f32 %v5978, %v6064
        %v6066 = vpop.f32.mrb[0].mxu0
        %v6067 = vadd.f32 %v5980, %v6066
        %6068 = vdwg.mxu0
        %v6069 = vld [vmem:[%s441] sm:$0xff]
        %v6070 = vld [vmem:[%s441 + $0x8] sm:$0xff]
        %6073 = vrot.lane.b32.xlu0 %v6069, 113
        %v6074 = vpop.permute.xlu0 %6073
        %6075 = vrot.lane.b32.xlu0 %v6070, 113
        %v6076 = vpop.permute.xlu0 %6075
        %v6077 = vsel %vm450, %v6074, %v6076
        %v6081 = vmul.f32 %v5860, %v6074
        %v6082 = vmul.f32 %v5861, %v6077
        %v6083 = vmul.f32 %v5862, %v6076
        %v6084 = vld [vmem:[%s458] sm:$0xff]
        %6088 = vrot.lane.b32.xlu0 %v6081, 15
        %v6089 = vpop.permute.xlu0 %6088
        %6090 = vrot.lane.b32.xlu0 %v6082, 15
        %v6091 = vpop.permute.xlu0 %6090
        %6092 = vrot.lane.b32.xlu0 %v6083, 15
        %v6093 = vpop.permute.xlu0 %6092
        %v6094 = vsel %vm469, %v6089, %v6091
        %v6095 = vsel %vm469, %v6091, %v6093
        %v6099 = vsel %vm278, %v6084, 0
        %6101 = vmatprep.subr.mxu0 %v6095
        %6102 = vmatpush1.msra.mxu0 %v6094
        %6103 = vmatprep.subr.mxu0 0.0
        %6104 = vmatpush1.msra.mxu0 0.0
        %6105 = vmatprep.subr.mxu0 0.0
        %6106 = vmatpush1.msra.mxu0 0.0
        %6107 = vmatprep.subr.mxu0 0.0
        %6108 = vmatpush1.msra.mxu0 0.0
        %6109 = vmatprep.subr.mxu0 0.0
        %6110 = vmatpush1.msra.mxu0 0.0
        %6111 = vmatprep.subr.mxu0 0.0
        %6112 = vmatpush1.msra.mxu0 0.0
        %6113 = vmatprep.subr.mxu0 0.0
        %6114 = vmatpush1.msra.mxu0 0.0
        %6115 = vmatprep.subr.mxu0 0.0
        %6116 = vmatpush1.msra.mxu0 0.0
        %6117 = vmatprep.subr.mxu0 0.0
        %6118 = vmatpush1.msra.mxu0 0.0
        %6119 = vmatprep.subr.mxu0 0.0
        %6120 = vmatpush1.msra.mxu0 0.0
        %6121 = vmatprep.subr.mxu0 0.0
        %6122 = vmatpush1.msra.mxu0 0.0
        %6123 = vmatprep.subr.mxu0 0.0
        %6124 = vmatpush1.msra.mxu0 0.0
        %6125 = vmatprep.subr.mxu0 0.0
        %6126 = vmatpush1.msra.mxu0 0.0
        %6127 = vmatprep.subr.mxu0 0.0
        %6128 = vmatpush1.msra.mxu0 0.0
        %6129 = vmatprep.subr.mxu0 0.0
        %6130 = vmatpush1.msra.mxu0 0.0
        %6131 = vmatprep.subr.mxu0 0.0
        %6132 = vmatpush1.msra.mxu0 0.0
        %6133 = vmatprep.subr.mxu0 0.0
        %6134 = vmatpush1.msra.mxu0 0.0
        %6135 = vmatprep.subr.mxu0 0.0
        %6136 = vmatpush1.msra.mxu0 0.0
        %6137 = vmatprep.subr.mxu0 0.0
        %6138 = vmatpush1.msra.mxu0 0.0
        %6139 = vmatprep.subr.mxu0 0.0
        %6140 = vmatpush1.msra.mxu0 0.0
        %6141 = vmatprep.subr.mxu0 0.0
        %6142 = vmatpush1.msra.mxu0 0.0
        %6143 = vmatprep.subr.mxu0 0.0
        %6144 = vmatpush1.msra.mxu0 0.0
        %6145 = vmatprep.subr.mxu0 0.0
        %6146 = vmatpush1.msra.mxu0 0.0
        %6147 = vmatprep.subr.mxu0 0.0
        %6148 = vmatpush1.msra.mxu0 0.0
        %6149 = vmatprep.subr.mxu0 0.0
        %6150 = vmatpush1.msra.mxu0 0.0
        %6151 = vmatprep.subr.mxu0 0.0
        %6152 = vmatpush1.msra.mxu0 0.0
        %6153 = vmatprep.subr.mxu0 0.0
        %6154 = vmatpush1.msra.mxu0 0.0
        %6155 = vmatprep.subr.mxu0 0.0
        %6156 = vmatpush1.msra.mxu0 0.0
        %6157 = vmatprep.subr.mxu0 0.0
        %6158 = vmatpush1.msra.mxu0 0.0
        %6159 = vmatprep.subr.mxu0 0.0
        %6160 = vmatpush1.msra.mxu0 0.0
        %6161 = vmatprep.subr.mxu0 0.0
        %6162 = vmatpush1.msra.mxu0 0.0
        %6163 = vmatprep.subr.mxu0 0.0
        %6164 = vmatpush1.msra.mxu0 0.0
        %6165 = vmatprep.mubr.f32.mxu0 0.0
        %6166 = vmatmul.mubr.f32.gmra.mrb[0].mxu0 %v6099
        %v6167 = vpop.f32.mrb[0].mxu0
        %v6168 = vadd.f32 0.0, %v6167
        %v6169 = vpop.f32.mrb[0].mxu0
        %v6170 = vadd.f32 0.0, %v6169
        %6171 = vdwg.mxu0
        %v6172 = vadd.f32 %v6065, %v6168
        %v6173 = vadd.f32 %v6067, %v6170
        %v6174 = vld [vmem:[%s550] sm:$0xff]
        %v6175 = vld [vmem:[%s550 + $0x8] sm:$0xff]
        %6178 = vrot.lane.b32.xlu0 %v6174, 127
        %v6179 = vpop.permute.xlu0 %6178
        %6180 = vrot.lane.b32.xlu0 %v6175, 127
        %v6181 = vpop.permute.xlu0 %6180
        %v6182 = vsel %vm559, %v6179, %v6181
        %v6186 = vmul.f32 %v5860, %v6179
        %v6187 = vmul.f32 %v5861, %v6182
        %v6188 = vmul.f32 %v5862, %v6181
        %v6189 = vld [vmem:[%s567] sm:$0xff]
        %6193 = vrot.lane.b32.xlu0 %v6186, 1
        %v6194 = vpop.permute.xlu0 %6193
        %6195 = vrot.lane.b32.xlu0 %v6187, 1
        %v6196 = vpop.permute.xlu0 %6195
        %6197 = vrot.lane.b32.xlu0 %v6188, 1
        %v6198 = vpop.permute.xlu0 %6197
        %v6199 = vsel %vm578, %v6194, %v6196
        %v6200 = vsel %vm578, %v6196, %v6198
        %v6204 = vsel %vm278, %v6189, 0
        %6206 = vmatprep.subr.mxu0 %v6200
        %6207 = vmatpush1.msra.mxu0 %v6199
        %6208 = vmatprep.subr.mxu0 0.0
        %6209 = vmatpush1.msra.mxu0 0.0
        %6210 = vmatprep.subr.mxu0 0.0
        %6211 = vmatpush1.msra.mxu0 0.0
        %6212 = vmatprep.subr.mxu0 0.0
        %6213 = vmatpush1.msra.mxu0 0.0
        %6214 = vmatprep.subr.mxu0 0.0
        %6215 = vmatpush1.msra.mxu0 0.0
        %6216 = vmatprep.subr.mxu0 0.0
        %6217 = vmatpush1.msra.mxu0 0.0
        %6218 = vmatprep.subr.mxu0 0.0
        %6219 = vmatpush1.msra.mxu0 0.0
        %6220 = vmatprep.subr.mxu0 0.0
        %6221 = vmatpush1.msra.mxu0 0.0
        %6222 = vmatprep.subr.mxu0 0.0
        %6223 = vmatpush1.msra.mxu0 0.0
        %6224 = vmatprep.subr.mxu0 0.0
        %6225 = vmatpush1.msra.mxu0 0.0
        %6226 = vmatprep.subr.mxu0 0.0
        %6227 = vmatpush1.msra.mxu0 0.0
        %6228 = vmatprep.subr.mxu0 0.0
        %6229 = vmatpush1.msra.mxu0 0.0
        %6230 = vmatprep.subr.mxu0 0.0
        %6231 = vmatpush1.msra.mxu0 0.0
        %6232 = vmatprep.subr.mxu0 0.0
        %6233 = vmatpush1.msra.mxu0 0.0
        %6234 = vmatprep.subr.mxu0 0.0
        %6235 = vmatpush1.msra.mxu0 0.0
        %6236 = vmatprep.subr.mxu0 0.0
        %6237 = vmatpush1.msra.mxu0 0.0
        %6238 = vmatprep.subr.mxu0 0.0
        %6239 = vmatpush1.msra.mxu0 0.0
        %6240 = vmatprep.subr.mxu0 0.0
        %6241 = vmatpush1.msra.mxu0 0.0
        %6242 = vmatprep.subr.mxu0 0.0
        %6243 = vmatpush1.msra.mxu0 0.0
        %6244 = vmatprep.subr.mxu0 0.0
        %6245 = vmatpush1.msra.mxu0 0.0
        %6246 = vmatprep.subr.mxu0 0.0
        %6247 = vmatpush1.msra.mxu0 0.0
        %6248 = vmatprep.subr.mxu0 0.0
        %6249 = vmatpush1.msra.mxu0 0.0
        %6250 = vmatprep.subr.mxu0 0.0
        %6251 = vmatpush1.msra.mxu0 0.0
        %6252 = vmatprep.subr.mxu0 0.0
        %6253 = vmatpush1.msra.mxu0 0.0
        %6254 = vmatprep.subr.mxu0 0.0
        %6255 = vmatpush1.msra.mxu0 0.0
        %6256 = vmatprep.subr.mxu0 0.0
        %6257 = vmatpush1.msra.mxu0 0.0
        %6258 = vmatprep.subr.mxu0 0.0
        %6259 = vmatpush1.msra.mxu0 0.0
        %6260 = vmatprep.subr.mxu0 0.0
        %6261 = vmatpush1.msra.mxu0 0.0
        %6262 = vmatprep.subr.mxu0 0.0
        %6263 = vmatpush1.msra.mxu0 0.0
        %6264 = vmatprep.subr.mxu0 0.0
        %6265 = vmatpush1.msra.mxu0 0.0
        %6266 = vmatprep.subr.mxu0 0.0
        %6267 = vmatpush1.msra.mxu0 0.0
        %6268 = vmatprep.subr.mxu0 0.0
        %6269 = vmatpush1.msra.mxu0 0.0
        %6270 = vmatprep.mubr.f32.mxu0 0.0
        %6271 = vmatmul.mubr.f32.gmra.mrb[0].mxu0 %v6204
        %v6272 = vpop.f32.mrb[0].mxu0
        %v6273 = vadd.f32 0.0, %v6272
        %v6274 = vpop.f32.mrb[0].mxu0
        %v6275 = vadd.f32 0.0, %v6274
        %6276 = vdwg.mxu0
        %v6277 = vadd.f32 %v6172, %v6273
        %v6278 = vadd.f32 %v6173, %v6275
        %v6279 = vld [vmem:[%s659] sm:$0xff]
        %v6280 = vld [vmem:[%s659 + $0x8] sm:$0xff]
        %v6281 = vmul.f32 %v5861, %v6279
        %v6282 = vmul.f32 %v5862, %v6280
        %v6283 = vld [vmem:[%s664] sm:$0xff]
        %v6285 = vsel %vm278, %v6283, 0
        %6287 = vmatprep.subr.mxu0 %v6282
        %6288 = vmatpush1.msra.mxu0 %v6281
        %6289 = vmatprep.subr.mxu0 0.0
        %6290 = vmatpush1.msra.mxu0 0.0
        %6291 = vmatprep.subr.mxu0 0.0
        %6292 = vmatpush1.msra.mxu0 0.0
        %6293 = vmatprep.subr.mxu0 0.0
        %6294 = vmatpush1.msra.mxu0 0.0
        %6295 = vmatprep.subr.mxu0 0.0
        %6296 = vmatpush1.msra.mxu0 0.0
        %6297 = vmatprep.subr.mxu0 0.0
        %6298 = vmatpush1.msra.mxu0 0.0
        %6299 = vmatprep.subr.mxu0 0.0
        %6300 = vmatpush1.msra.mxu0 0.0
        %6301 = vmatprep.subr.mxu0 0.0
        %6302 = vmatpush1.msra.mxu0 0.0
        %6303 = vmatprep.subr.mxu0 0.0
        %6304 = vmatpush1.msra.mxu0 0.0
        %6305 = vmatprep.subr.mxu0 0.0
        %6306 = vmatpush1.msra.mxu0 0.0
        %6307 = vmatprep.subr.mxu0 0.0
        %6308 = vmatpush1.msra.mxu0 0.0
        %6309 = vmatprep.subr.mxu0 0.0
        %6310 = vmatpush1.msra.mxu0 0.0
        %6311 = vmatprep.subr.mxu0 0.0
        %6312 = vmatpush1.msra.mxu0 0.0
        %6313 = vmatprep.subr.mxu0 0.0
        %6314 = vmatpush1.msra.mxu0 0.0
        %6315 = vmatprep.subr.mxu0 0.0
        %6316 = vmatpush1.msra.mxu0 0.0
        %6317 = vmatprep.subr.mxu0 0.0
        %6318 = vmatpush1.msra.mxu0 0.0
        %6319 = vmatprep.subr.mxu0 0.0
        %6320 = vmatpush1.msra.mxu0 0.0
        %6321 = vmatprep.subr.mxu0 0.0
        %6322 = vmatpush1.msra.mxu0 0.0
        %6323 = vmatprep.subr.mxu0 0.0
        %6324 = vmatpush1.msra.mxu0 0.0
        %6325 = vmatprep.subr.mxu0 0.0
        %6326 = vmatpush1.msra.mxu0 0.0
        %6327 = vmatprep.subr.mxu0 0.0
        %6328 = vmatpush1.msra.mxu0 0.0
        %6329 = vmatprep.subr.mxu0 0.0
        %6330 = vmatpush1.msra.mxu0 0.0
        %6331 = vmatprep.subr.mxu0 0.0
        %6332 = vmatpush1.msra.mxu0 0.0
        %6333 = vmatprep.subr.mxu0 0.0
        %6334 = vmatpush1.msra.mxu0 0.0
        %6335 = vmatprep.subr.mxu0 0.0
        %6336 = vmatpush1.msra.mxu0 0.0
        %6337 = vmatprep.subr.mxu0 0.0
        %6338 = vmatpush1.msra.mxu0 0.0
        %6339 = vmatprep.subr.mxu0 0.0
        %6340 = vmatpush1.msra.mxu0 0.0
        %6341 = vmatprep.subr.mxu0 0.0
        %6342 = vmatpush1.msra.mxu0 0.0
        %6343 = vmatprep.subr.mxu0 0.0
        %6344 = vmatpush1.msra.mxu0 0.0
        %6345 = vmatprep.subr.mxu0 0.0
        %6346 = vmatpush1.msra.mxu0 0.0
        %6347 = vmatprep.subr.mxu0 0.0
        %6348 = vmatpush1.msra.mxu0 0.0
        %6349 = vmatprep.subr.mxu0 0.0
        %6350 = vmatpush1.msra.mxu0 0.0
        %6351 = vmatprep.mubr.f32.mxu0 0.0
        %6352 = vmatmul.mubr.f32.gmra.mrb[0].mxu0 %v6285
        %v6353 = vpop.f32.mrb[0].mxu0
        %v6354 = vadd.f32 0.0, %v6353
        %v6355 = vpop.f32.mrb[0].mxu0
        %v6356 = vadd.f32 0.0, %v6355
        %6357 = vdwg.mxu0
        %v6358 = vadd.f32 %v6277, %v6354
        %v6359 = vadd.f32 %v6278, %v6356
        %v6360 = vld [vmem:[#allocation2 + $0x8] sm:$0xff]
        %v6361 = vld [vmem:[#allocation2 + $0x10] sm:$0xff]
        %v6362 = vld [vmem:[#allocation2 + $0x18] sm:$0xff]
        %v6363 = vld [vmem:[%s745] sm:$0xff]
        %v6364 = vld [vmem:[%s745 + $0x8] sm:$0xff]
        %6367 = vrot.lane.b32.xlu0 %v6363, 1
        %v6368 = vpop.permute.xlu0 %6367
        %6369 = vrot.lane.b32.xlu0 %v6364, 1
        %v6370 = vpop.permute.xlu0 %6369
        %v6371 = vsel %vm578, %v6368, %v6370
        %v6375 = vmul.f32 %v6360, %v6368
        %v6376 = vmul.f32 %v6361, %v6371
        %v6377 = vmul.f32 %v6362, %v6370
        %v6378 = vld [vmem:[%s761] sm:$0xff]
        %6382 = vrot.lane.b32.xlu0 %v6375, 127
        %v6383 = vpop.permute.xlu0 %6382
        %6384 = vrot.lane.b32.xlu0 %v6376, 127
        %v6385 = vpop.permute.xlu0 %6384
        %6386 = vrot.lane.b32.xlu0 %v6377, 127
        %v6387 = vpop.permute.xlu0 %6386
        %v6388 = vsel %vm559, %v6383, %v6385
        %v6389 = vsel %vm559, %v6385, %v6387
        %v6393 = vsel %vm278, %v6378, 0
        %6395 = vmatprep.subr.mxu0 %v6389
        %6396 = vmatpush1.msra.mxu0 %v6388
        %6397 = vmatprep.subr.mxu0 0.0
        %6398 = vmatpush1.msra.mxu0 0.0
        %6399 = vmatprep.subr.mxu0 0.0
        %6400 = vmatpush1.msra.mxu0 0.0
        %6401 = vmatprep.subr.mxu0 0.0
        %6402 = vmatpush1.msra.mxu0 0.0
        %6403 = vmatprep.subr.mxu0 0.0
        %6404 = vmatpush1.msra.mxu0 0.0
        %6405 = vmatprep.subr.mxu0 0.0
        %6406 = vmatpush1.msra.mxu0 0.0
        %6407 = vmatprep.subr.mxu0 0.0
        %6408 = vmatpush1.msra.mxu0 0.0
        %6409 = vmatprep.subr.mxu0 0.0
        %6410 = vmatpush1.msra.mxu0 0.0
        %6411 = vmatprep.subr.mxu0 0.0
        %6412 = vmatpush1.msra.mxu0 0.0
        %6413 = vmatprep.subr.mxu0 0.0
        %6414 = vmatpush1.msra.mxu0 0.0
        %6415 = vmatprep.subr.mxu0 0.0
        %6416 = vmatpush1.msra.mxu0 0.0
        %6417 = vmatprep.subr.mxu0 0.0
        %6418 = vmatpush1.msra.mxu0 0.0
        %6419 = vmatprep.subr.mxu0 0.0
        %6420 = vmatpush1.msra.mxu0 0.0
        %6421 = vmatprep.subr.mxu0 0.0
        %6422 = vmatpush1.msra.mxu0 0.0
        %6423 = vmatprep.subr.mxu0 0.0
        %6424 = vmatpush1.msra.mxu0 0.0
        %6425 = vmatprep.subr.mxu0 0.0
        %6426 = vmatpush1.msra.mxu0 0.0
        %6427 = vmatprep.subr.mxu0 0.0
        %6428 = vmatpush1.msra.mxu0 0.0
        %6429 = vmatprep.subr.mxu0 0.0
        %6430 = vmatpush1.msra.mxu0 0.0
        %6431 = vmatprep.subr.mxu0 0.0
        %6432 = vmatpush1.msra.mxu0 0.0
        %6433 = vmatprep.subr.mxu0 0.0
        %6434 = vmatpush1.msra.mxu0 0.0
        %6435 = vmatprep.subr.mxu0 0.0
        %6436 = vmatpush1.msra.mxu0 0.0
        %6437 = vmatprep.subr.mxu0 0.0
        %6438 = vmatpush1.msra.mxu0 0.0
        %6439 = vmatprep.subr.mxu0 0.0
        %6440 = vmatpush1.msra.mxu0 0.0
        %6441 = vmatprep.subr.mxu0 0.0
        %6442 = vmatpush1.msra.mxu0 0.0
        %6443 = vmatprep.subr.mxu0 0.0
        %6444 = vmatpush1.msra.mxu0 0.0
        %6445 = vmatprep.subr.mxu0 0.0
        %6446 = vmatpush1.msra.mxu0 0.0
        %6447 = vmatprep.subr.mxu0 0.0
        %6448 = vmatpush1.msra.mxu0 0.0
        %6449 = vmatprep.subr.mxu0 0.0
        %6450 = vmatpush1.msra.mxu0 0.0
        %6451 = vmatprep.subr.mxu0 0.0
        %6452 = vmatpush1.msra.mxu0 0.0
        %6453 = vmatprep.subr.mxu0 0.0
        %6454 = vmatpush1.msra.mxu0 0.0
        %6455 = vmatprep.subr.mxu0 0.0
        %6456 = vmatpush1.msra.mxu0 0.0
        %6457 = vmatprep.subr.mxu0 0.0
        %6458 = vmatpush1.msra.mxu0 0.0
        %6459 = vmatprep.mubr.f32.mxu0 0.0
        %6460 = vmatmul.mubr.f32.gmra.mrb[0].mxu0 %v6393
        %v6461 = vpop.f32.mrb[0].mxu0
        %v6462 = vadd.f32 0.0, %v6461
        %v6463 = vpop.f32.mrb[0].mxu0
        %v6464 = vadd.f32 0.0, %v6463
        %6465 = vdwg.mxu0
        %v6466 = vadd.f32 %v6358, %v6462
        %v6467 = vadd.f32 %v6359, %v6464
        %v6468 = vld [vmem:[%s852] sm:$0xff]
        %v6469 = vld [vmem:[%s852 + $0x8] sm:$0xff]
        %6472 = vrot.lane.b32.xlu0 %v6468, 15
        %v6473 = vpop.permute.xlu0 %6472
        %6474 = vrot.lane.b32.xlu0 %v6469, 15
        %v6475 = vpop.permute.xlu0 %6474
        %v6476 = vsel %vm469, %v6473, %v6475
        %v6480 = vmul.f32 %v6360, %v6473
        %v6481 = vmul.f32 %v6361, %v6476
        %v6482 = vmul.f32 %v6362, %v6475
        %v6483 = vld [vmem:[%s868] sm:$0xff]
        %6487 = vrot.lane.b32.xlu0 %v6480, 113
        %v6488 = vpop.permute.xlu0 %6487
        %6489 = vrot.lane.b32.xlu0 %v6481, 113
        %v6490 = vpop.permute.xlu0 %6489
        %6491 = vrot.lane.b32.xlu0 %v6482, 113
        %v6492 = vpop.permute.xlu0 %6491
        %v6493 = vsel %vm450, %v6488, %v6490
        %v6494 = vsel %vm450, %v6490, %v6492
        %v6498 = vsel %vm278, %v6483, 0
        %6500 = vmatprep.subr.mxu0 %v6494
        %6501 = vmatpush1.msra.mxu0 %v6493
        %6502 = vmatprep.subr.mxu0 0.0
        %6503 = vmatpush1.msra.mxu0 0.0
        %6504 = vmatprep.subr.mxu0 0.0
        %6505 = vmatpush1.msra.mxu0 0.0
        %6506 = vmatprep.subr.mxu0 0.0
        %6507 = vmatpush1.msra.mxu0 0.0
        %6508 = vmatprep.subr.mxu0 0.0
        %6509 = vmatpush1.msra.mxu0 0.0
        %6510 = vmatprep.subr.mxu0 0.0
        %6511 = vmatpush1.msra.mxu0 0.0
        %6512 = vmatprep.subr.mxu0 0.0
        %6513 = vmatpush1.msra.mxu0 0.0
        %6514 = vmatprep.subr.mxu0 0.0
        %6515 = vmatpush1.msra.mxu0 0.0
        %6516 = vmatprep.subr.mxu0 0.0
        %6517 = vmatpush1.msra.mxu0 0.0
        %6518 = vmatprep.subr.mxu0 0.0
        %6519 = vmatpush1.msra.mxu0 0.0
        %6520 = vmatprep.subr.mxu0 0.0
        %6521 = vmatpush1.msra.mxu0 0.0
        %6522 = vmatprep.subr.mxu0 0.0
        %6523 = vmatpush1.msra.mxu0 0.0
        %6524 = vmatprep.subr.mxu0 0.0
        %6525 = vmatpush1.msra.mxu0 0.0
        %6526 = vmatprep.subr.mxu0 0.0
        %6527 = vmatpush1.msra.mxu0 0.0
        %6528 = vmatprep.subr.mxu0 0.0
        %6529 = vmatpush1.msra.mxu0 0.0
        %6530 = vmatprep.subr.mxu0 0.0
        %6531 = vmatpush1.msra.mxu0 0.0
        %6532 = vmatprep.subr.mxu0 0.0
        %6533 = vmatpush1.msra.mxu0 0.0
        %6534 = vmatprep.subr.mxu0 0.0
        %6535 = vmatpush1.msra.mxu0 0.0
        %6536 = vmatprep.subr.mxu0 0.0
        %6537 = vmatpush1.msra.mxu0 0.0
        %6538 = vmatprep.subr.mxu0 0.0
        %6539 = vmatpush1.msra.mxu0 0.0
        %6540 = vmatprep.subr.mxu0 0.0
        %6541 = vmatpush1.msra.mxu0 0.0
        %6542 = vmatprep.subr.mxu0 0.0
        %6543 = vmatpush1.msra.mxu0 0.0
        %6544 = vmatprep.subr.mxu0 0.0
        %6545 = vmatpush1.msra.mxu0 0.0
        %6546 = vmatprep.subr.mxu0 0.0
        %6547 = vmatpush1.msra.mxu0 0.0
        %6548 = vmatprep.subr.mxu0 0.0
        %6549 = vmatpush1.msra.mxu0 0.0
        %6550 = vmatprep.subr.mxu0 0.0
        %6551 = vmatpush1.msra.mxu0 0.0
        %6552 = vmatprep.subr.mxu0 0.0
        %6553 = vmatpush1.msra.mxu0 0.0
        %6554 = vmatprep.subr.mxu0 0.0
        %6555 = vmatpush1.msra.mxu0 0.0
        %6556 = vmatprep.subr.mxu0 0.0
        %6557 = vmatpush1.msra.mxu0 0.0
        %6558 = vmatprep.subr.mxu0 0.0
        %6559 = vmatpush1.msra.mxu0 0.0
        %6560 = vmatprep.subr.mxu0 0.0
        %6561 = vmatpush1.msra.mxu0 0.0
        %6562 = vmatprep.subr.mxu0 0.0
        %6563 = vmatpush1.msra.mxu0 0.0
        %6564 = vmatprep.mubr.f32.mxu0 0.0
        %6565 = vmatmul.mubr.f32.gmra.mrb[0].mxu0 %v6498
        %v6566 = vpop.f32.mrb[0].mxu0
        %v6567 = vadd.f32 0.0, %v6566
        %v6568 = vpop.f32.mrb[0].mxu0
        %v6569 = vadd.f32 0.0, %v6568
        %6570 = vdwg.mxu0
        %v6571 = vadd.f32 %v6466, %v6567
        %v6572 = vadd.f32 %v6467, %v6569
        %v6573 = vld [vmem:[%s959] sm:$0xff]
        %v6574 = vld [vmem:[%s959 + $0x8] sm:$0xff]
        %6577 = vrot.lane.b32.xlu0 %v6573, 16
        %v6578 = vpop.permute.xlu0 %6577
        %6579 = vrot.lane.b32.xlu0 %v6574, 16
        %v6580 = vpop.permute.xlu0 %6579
        %v6581 = vsel %vm273, %v6578, %v6580
        %v6585 = vmul.f32 %v6360, %v6578
        %v6586 = vmul.f32 %v6361, %v6581
        %v6587 = vmul.f32 %v6362, %v6580
        %v6588 = vld [vmem:[%s975] sm:$0xff]
        %6592 = vrot.lane.b32.xlu0 %v6585, 112
        %v6593 = vpop.permute.xlu0 %6592
        %6594 = vrot.lane.b32.xlu0 %v6586, 112
        %v6595 = vpop.permute.xlu0 %6594
        %6596 = vrot.lane.b32.xlu0 %v6587, 112
        %v6597 = vpop.permute.xlu0 %6596
        %v6598 = vsel %vm254, %v6593, %v6595
        %v6599 = vsel %vm254, %v6595, %v6597
        %v6603 = vsel %vm278, %v6588, 0
        %6605 = vmatprep.subr.mxu0 %v6599
        %6606 = vmatpush1.msra.mxu0 %v6598
        %6607 = vmatprep.subr.mxu0 0.0
        %6608 = vmatpush1.msra.mxu0 0.0
        %6609 = vmatprep.subr.mxu0 0.0
        %6610 = vmatpush1.msra.mxu0 0.0
        %6611 = vmatprep.subr.mxu0 0.0
        %6612 = vmatpush1.msra.mxu0 0.0
        %6613 = vmatprep.subr.mxu0 0.0
        %6614 = vmatpush1.msra.mxu0 0.0
        %6615 = vmatprep.subr.mxu0 0.0
        %6616 = vmatpush1.msra.mxu0 0.0
        %6617 = vmatprep.subr.mxu0 0.0
        %6618 = vmatpush1.msra.mxu0 0.0
        %6619 = vmatprep.subr.mxu0 0.0
        %6620 = vmatpush1.msra.mxu0 0.0
        %6621 = vmatprep.subr.mxu0 0.0
        %6622 = vmatpush1.msra.mxu0 0.0
        %6623 = vmatprep.subr.mxu0 0.0
        %6624 = vmatpush1.msra.mxu0 0.0
        %6625 = vmatprep.subr.mxu0 0.0
        %6626 = vmatpush1.msra.mxu0 0.0
        %6627 = vmatprep.subr.mxu0 0.0
        %6628 = vmatpush1.msra.mxu0 0.0
        %6629 = vmatprep.subr.mxu0 0.0
        %6630 = vmatpush1.msra.mxu0 0.0
        %6631 = vmatprep.subr.mxu0 0.0
        %6632 = vmatpush1.msra.mxu0 0.0
        %6633 = vmatprep.subr.mxu0 0.0
        %6634 = vmatpush1.msra.mxu0 0.0
        %6635 = vmatprep.subr.mxu0 0.0
        %6636 = vmatpush1.msra.mxu0 0.0
        %6637 = vmatprep.subr.mxu0 0.0
        %6638 = vmatpush1.msra.mxu0 0.0
        %6639 = vmatprep.subr.mxu0 0.0
        %6640 = vmatpush1.msra.mxu0 0.0
        %6641 = vmatprep.subr.mxu0 0.0
        %6642 = vmatpush1.msra.mxu0 0.0
        %6643 = vmatprep.subr.mxu0 0.0
        %6644 = vmatpush1.msra.mxu0 0.0
        %6645 = vmatprep.subr.mxu0 0.0
        %6646 = vmatpush1.msra.mxu0 0.0
        %6647 = vmatprep.subr.mxu0 0.0
        %6648 = vmatpush1.msra.mxu0 0.0
        %6649 = vmatprep.subr.mxu0 0.0
        %6650 = vmatpush1.msra.mxu0 0.0
        %6651 = vmatprep.subr.mxu0 0.0
        %6652 = vmatpush1.msra.mxu0 0.0
        %6653 = vmatprep.subr.mxu0 0.0
        %6654 = vmatpush1.msra.mxu0 0.0
        %6655 = vmatprep.subr.mxu0 0.0
        %6656 = vmatpush1.msra.mxu0 0.0
        %6657 = vmatprep.subr.mxu0 0.0
        %6658 = vmatpush1.msra.mxu0 0.0
        %6659 = vmatprep.subr.mxu0 0.0
        %6660 = vmatpush1.msra.mxu0 0.0
        %6661 = vmatprep.subr.mxu0 0.0
        %6662 = vmatpush1.msra.mxu0 0.0
        %6663 = vmatprep.subr.mxu0 0.0
        %6664 = vmatpush1.msra.mxu0 0.0
        %6665 = vmatprep.subr.mxu0 0.0
        %6666 = vmatpush1.msra.mxu0 0.0
        %6667 = vmatprep.subr.mxu0 0.0
        %6668 = vmatpush1.msra.mxu0 0.0
        %6669 = vmatprep.mubr.f32.mxu0 0.0
        %6670 = vmatmul.mubr.f32.gmra.mrb[0].mxu0 %v6603
        %v6671 = vpop.f32.mrb[0].mxu0
        %v6672 = vadd.f32 0.0, %v6671
        %v6673 = vpop.f32.mrb[0].mxu0
        %v6674 = vadd.f32 0.0, %v6673
        %6675 = vdwg.mxu0
        %v6676 = vadd.f32 %v6571, %v6672
        %v6677 = vadd.f32 %v6572, %v6674
        %v6678 = vld [vmem:[%s1066] sm:$0xff]
        %v6679 = vld [vmem:[%s1066 + $0x8] sm:$0xff]
        %6682 = vrot.lane.b32.xlu0 %v6678, 17
        %v6683 = vpop.permute.xlu0 %6682
        %6684 = vrot.lane.b32.xlu0 %v6679, 17
        %v6685 = vpop.permute.xlu0 %6684
        %v6686 = vsel %vm362, %v6683, %v6685
        %v6690 = vmul.f32 %v6360, %v6683
        %v6691 = vmul.f32 %v6361, %v6686
        %v6692 = vmul.f32 %v6362, %v6685
        %v6693 = vld [vmem:[%s1082] sm:$0xff]
        %6697 = vrot.lane.b32.xlu0 %v6690, 111
        %v6698 = vpop.permute.xlu0 %6697
        %6699 = vrot.lane.b32.xlu0 %v6691, 111
        %v6700 = vpop.permute.xlu0 %6699
        %6701 = vrot.lane.b32.xlu0 %v6692, 111
        %v6702 = vpop.permute.xlu0 %6701
        %v6703 = vsel %vm236, %v6698, %v6700
        %v6704 = vsel %vm236, %v6700, %v6702
        %v6708 = vsel %vm278, %v6693, 0
        %6710 = vmatprep.subr.mxu0 %v6704
        %6711 = vmatpush1.msra.mxu0 %v6703
        %6712 = vmatprep.subr.mxu0 0.0
        %6713 = vmatpush1.msra.mxu0 0.0
        %6714 = vmatprep.subr.mxu0 0.0
        %6715 = vmatpush1.msra.mxu0 0.0
        %6716 = vmatprep.subr.mxu0 0.0
        %6717 = vmatpush1.msra.mxu0 0.0
        %6718 = vmatprep.subr.mxu0 0.0
        %6719 = vmatpush1.msra.mxu0 0.0
        %6720 = vmatprep.subr.mxu0 0.0
        %6721 = vmatpush1.msra.mxu0 0.0
        %6722 = vmatprep.subr.mxu0 0.0
        %6723 = vmatpush1.msra.mxu0 0.0
        %6724 = vmatprep.subr.mxu0 0.0
        %6725 = vmatpush1.msra.mxu0 0.0
        %6726 = vmatprep.subr.mxu0 0.0
        %6727 = vmatpush1.msra.mxu0 0.0
        %6728 = vmatprep.subr.mxu0 0.0
        %6729 = vmatpush1.msra.mxu0 0.0
        %6730 = vmatprep.subr.mxu0 0.0
        %6731 = vmatpush1.msra.mxu0 0.0
        %6732 = vmatprep.subr.mxu0 0.0
        %6733 = vmatpush1.msra.mxu0 0.0
        %6734 = vmatprep.subr.mxu0 0.0
        %6735 = vmatpush1.msra.mxu0 0.0
        %6736 = vmatprep.subr.mxu0 0.0
        %6737 = vmatpush1.msra.mxu0 0.0
        %6738 = vmatprep.subr.mxu0 0.0
        %6739 = vmatpush1.msra.mxu0 0.0
        %6740 = vmatprep.subr.mxu0 0.0
        %6741 = vmatpush1.msra.mxu0 0.0
        %6742 = vmatprep.subr.mxu0 0.0
        %6743 = vmatpush1.msra.mxu0 0.0
        %6744 = vmatprep.subr.mxu0 0.0
        %6745 = vmatpush1.msra.mxu0 0.0
        %6746 = vmatprep.subr.mxu0 0.0
        %6747 = vmatpush1.msra.mxu0 0.0
        %6748 = vmatprep.subr.mxu0 0.0
        %6749 = vmatpush1.msra.mxu0 0.0
        %6750 = vmatprep.subr.mxu0 0.0
        %6751 = vmatpush1.msra.mxu0 0.0
        %6752 = vmatprep.subr.mxu0 0.0
        %6753 = vmatpush1.msra.mxu0 0.0
        %6754 = vmatprep.subr.mxu0 0.0
        %6755 = vmatpush1.msra.mxu0 0.0
        %6756 = vmatprep.subr.mxu0 0.0
        %6757 = vmatpush1.msra.mxu0 0.0
        %6758 = vmatprep.subr.mxu0 0.0
        %6759 = vmatpush1.msra.mxu0 0.0
        %6760 = vmatprep.subr.mxu0 0.0
        %6761 = vmatpush1.msra.mxu0 0.0
        %6762 = vmatprep.subr.mxu0 0.0
        %6763 = vmatpush1.msra.mxu0 0.0
        %6764 = vmatprep.subr.mxu0 0.0
        %6765 = vmatpush1.msra.mxu0 0.0
        %6766 = vmatprep.subr.mxu0 0.0
        %6767 = vmatpush1.msra.mxu0 0.0
        %6768 = vmatprep.subr.mxu0 0.0
        %6769 = vmatpush1.msra.mxu0 0.0
        %6770 = vmatprep.subr.mxu0 0.0
        %6771 = vmatpush1.msra.mxu0 0.0
        %6772 = vmatprep.subr.mxu0 0.0
        %6773 = vmatpush1.msra.mxu0 0.0
        %6774 = vmatprep.mubr.f32.mxu0 0.0
        %6775 = vmatmul.mubr.f32.gmra.mrb[0].mxu0 %v6708
        %v6776 = vpop.f32.mrb[0].mxu0
        %v6777 = vadd.f32 0.0, %v6776
        %v6778 = vpop.f32.mrb[0].mxu0
        %v6779 = vadd.f32 0.0, %v6778
        %6780 = vdwg.mxu0
        %v6781 = vadd.f32 %v6676, %v6777
        %v6782 = vadd.f32 %v6677, %v6779
        %v6783 = vmax.f32 %v6781, 0.0
        %v6784 = vmax.f32 %v6782, 0.0
        %v6785 = vsel %vm205, 1.0, %v6783
        %v6786 = vsel %vm205, 1.0, %v6784
        %6787 = vst [vmem:[#allocation2 + $0x8] sm:$0xff] %v6785
        %6788 = vst [vmem:[#allocation2 + $0x10] sm:$0xff] %v6786
        %v6789 = vld [vmem:[#allocation2] sm:$0xff]
        %v6790 = vld [vmem:[#allocation2 + $0x8] sm:$0xff]
        %v6791 = vld [vmem:[#allocation2 + $0x10] sm:$0xff]
        %v6792 = vld [vmem:[%s3] sm:$0xff]
        %v6793 = vld [vmem:[%s3 + $0x8] sm:$0xff]
        %6796 = vrot.lane.b32.xlu0 %v6792, 111
        %v6797 = vpop.permute.xlu0 %6796
        %6798 = vrot.lane.b32.xlu0 %v6793, 111
        %v6799 = vpop.permute.xlu0 %6798
        %v6800 = vsel %vm236, %v6797, %v6799
        %v6804 = vmul.f32 %v6789, %v6797
        %v6805 = vmul.f32 %v6790, %v6800
        %v6806 = vmul.f32 %v6791, %v6799
        %v6807 = vld [vmem:[%s2] sm:$0xff]
        %v6808 = vld [vmem:[%s245] sm:$0xff]
        %v6809 = vld [vmem:[%s245 + $0x8] sm:$0xff]
        %6812 = vrot.lane.b32.xlu0 %v6808, 112
        %v6813 = vpop.permute.xlu0 %6812
        %6814 = vrot.lane.b32.xlu0 %v6809, 112
        %v6815 = vpop.permute.xlu0 %6814
        %v6816 = vsel %vm254, %v6813, %v6815
        %v6820 = vmul.f32 %v6789, %v6813
        %v6821 = vmul.f32 %v6790, %v6816
        %v6822 = vmul.f32 %v6791, %v6815
        %v6823 = vld [vmem:[%s1213] sm:$0xff]
        %6827 = vrot.lane.b32.xlu0 %v6820, 16
        %v6828 = vpop.permute.xlu0 %6827
        %6829 = vrot.lane.b32.xlu0 %v6821, 16
        %v6830 = vpop.permute.xlu0 %6829
        %6831 = vrot.lane.b32.xlu0 %v6822, 16
        %v6832 = vpop.permute.xlu0 %6831
        %v6833 = vsel %vm273, %v6828, %v6830
        %v6834 = vsel %vm273, %v6830, %v6832
        %v6838 = vsel %vm278, %v6823, 0
        %6840 = vmatprep.subr.mxu0 %v6834
        %6841 = vmatpush1.msra.mxu0 %v6833
        %6842 = vmatprep.subr.mxu0 0.0
        %6843 = vmatpush1.msra.mxu0 0.0
        %6844 = vmatprep.subr.mxu0 0.0
        %6845 = vmatpush1.msra.mxu0 0.0
        %6846 = vmatprep.subr.mxu0 0.0
        %6847 = vmatpush1.msra.mxu0 0.0
        %6848 = vmatprep.subr.mxu0 0.0
        %6849 = vmatpush1.msra.mxu0 0.0
        %6850 = vmatprep.subr.mxu0 0.0
        %6851 = vmatpush1.msra.mxu0 0.0
        %6852 = vmatprep.subr.mxu0 0.0
        %6853 = vmatpush1.msra.mxu0 0.0
        %6854 = vmatprep.subr.mxu0 0.0
        %6855 = vmatpush1.msra.mxu0 0.0
        %6856 = vmatprep.subr.mxu0 0.0
        %6857 = vmatpush1.msra.mxu0 0.0
        %6858 = vmatprep.subr.mxu0 0.0
        %6859 = vmatpush1.msra.mxu0 0.0
        %6860 = vmatprep.subr.mxu0 0.0
        %6861 = vmatpush1.msra.mxu0 0.0
        %6862 = vmatprep.subr.mxu0 0.0
        %6863 = vmatpush1.msra.mxu0 0.0
        %6864 = vmatprep.subr.mxu0 0.0
        %6865 = vmatpush1.msra.mxu0 0.0
        %6866 = vmatprep.subr.mxu0 0.0
        %6867 = vmatpush1.msra.mxu0 0.0
        %6868 = vmatprep.subr.mxu0 0.0
        %6869 = vmatpush1.msra.mxu0 0.0
        %6870 = vmatprep.subr.mxu0 0.0
        %6871 = vmatpush1.msra.mxu0 0.0
        %6872 = vmatprep.subr.mxu0 0.0
        %6873 = vmatpush1.msra.mxu0 0.0
        %6874 = vmatprep.subr.mxu0 0.0
        %6875 = vmatpush1.msra.mxu0 0.0
        %6876 = vmatprep.subr.mxu0 0.0
        %6877 = vmatpush1.msra.mxu0 0.0
        %6878 = vmatprep.subr.mxu0 0.0
        %6879 = vmatpush1.msra.mxu0 0.0
        %6880 = vmatprep.subr.mxu0 0.0
        %6881 = vmatpush1.msra.mxu0 0.0
        %6882 = vmatprep.subr.mxu0 0.0
        %6883 = vmatpush1.msra.mxu0 0.0
        %6884 = vmatprep.subr.mxu0 0.0
        %6885 = vmatpush1.msra.mxu0 0.0
        %6886 = vmatprep.subr.mxu0 0.0
        %6887 = vmatpush1.msra.mxu0 0.0
        %6888 = vmatprep.subr.mxu0 0.0
        %6889 = vmatpush1.msra.mxu0 0.0
        %6890 = vmatprep.subr.mxu0 0.0
        %6891 = vmatpush1.msra.mxu0 0.0
        %6892 = vmatprep.subr.mxu0 0.0
        %6893 = vmatpush1.msra.mxu0 0.0
        %6894 = vmatprep.subr.mxu0 0.0
        %6895 = vmatpush1.msra.mxu0 0.0
        %6896 = vmatprep.subr.mxu0 0.0
        %6897 = vmatpush1.msra.mxu0 0.0
        %6898 = vmatprep.subr.mxu0 0.0
        %6899 = vmatpush1.msra.mxu0 0.0
        %6900 = vmatprep.subr.mxu0 0.0
        %6901 = vmatpush1.msra.mxu0 0.0
        %6902 = vmatprep.subr.mxu0 0.0
        %6903 = vmatpush1.msra.mxu0 0.0
        %6904 = vmatprep.mubr.f32.mxu0 0.0
        %6905 = vmatmul.mubr.f32.gmra.mrb[0].mxu0 %v6838
        %v6906 = vpop.f32.mrb[0].mxu0
        %v6907 = vadd.f32 0.0, %v6906
        %v6908 = vpop.f32.mrb[0].mxu0
        %v6909 = vadd.f32 0.0, %v6908
        %6910 = vdwg.mxu0
        %6914 = vrot.lane.b32.xlu0 %v6804, 17
        %v6915 = vpop.permute.xlu0 %6914
        %6916 = vrot.lane.b32.xlu0 %v6805, 17
        %v6917 = vpop.permute.xlu0 %6916
        %6918 = vrot.lane.b32.xlu0 %v6806, 17
        %v6919 = vpop.permute.xlu0 %6918
        %v6920 = vsel %vm362, %v6915, %v6917
        %v6921 = vsel %vm362, %v6917, %v6919
        %v6925 = vsel %vm278, %v6807, 0
        %6927 = vmatprep.subr.mxu0 %v6921
        %6928 = vmatpush1.msra.mxu0 %v6920
        %6929 = vmatprep.subr.mxu0 0.0
        %6930 = vmatpush1.msra.mxu0 0.0
        %6931 = vmatprep.subr.mxu0 0.0
        %6932 = vmatpush1.msra.mxu0 0.0
        %6933 = vmatprep.subr.mxu0 0.0
        %6934 = vmatpush1.msra.mxu0 0.0
        %6935 = vmatprep.subr.mxu0 0.0
        %6936 = vmatpush1.msra.mxu0 0.0
        %6937 = vmatprep.subr.mxu0 0.0
        %6938 = vmatpush1.msra.mxu0 0.0
        %6939 = vmatprep.subr.mxu0 0.0
        %6940 = vmatpush1.msra.mxu0 0.0
        %6941 = vmatprep.subr.mxu0 0.0
        %6942 = vmatpush1.msra.mxu0 0.0
        %6943 = vmatprep.subr.mxu0 0.0
        %6944 = vmatpush1.msra.mxu0 0.0
        %6945 = vmatprep.subr.mxu0 0.0
        %6946 = vmatpush1.msra.mxu0 0.0
        %6947 = vmatprep.subr.mxu0 0.0
        %6948 = vmatpush1.msra.mxu0 0.0
        %6949 = vmatprep.subr.mxu0 0.0
        %6950 = vmatpush1.msra.mxu0 0.0
        %6951 = vmatprep.subr.mxu0 0.0
        %6952 = vmatpush1.msra.mxu0 0.0
        %6953 = vmatprep.subr.mxu0 0.0
        %6954 = vmatpush1.msra.mxu0 0.0
        %6955 = vmatprep.subr.mxu0 0.0
        %6956 = vmatpush1.msra.mxu0 0.0
        %6957 = vmatprep.subr.mxu0 0.0
        %6958 = vmatpush1.msra.mxu0 0.0
        %6959 = vmatprep.subr.mxu0 0.0
        %6960 = vmatpush1.msra.mxu0 0.0
        %6961 = vmatprep.subr.mxu0 0.0
        %6962 = vmatpush1.msra.mxu0 0.0
        %6963 = vmatprep.subr.mxu0 0.0
        %6964 = vmatpush1.msra.mxu0 0.0
        %6965 = vmatprep.subr.mxu0 0.0
        %6966 = vmatpush1.msra.mxu0 0.0
        %6967 = vmatprep.subr.mxu0 0.0
        %6968 = vmatpush1.msra.mxu0 0.0
        %6969 = vmatprep.subr.mxu0 0.0
        %6970 = vmatpush1.msra.mxu0 0.0
        %6971 = vmatprep.subr.mxu0 0.0
        %6972 = vmatpush1.msra.mxu0 0.0
        %6973 = vmatprep.subr.mxu0 0.0
        %6974 = vmatpush1.msra.mxu0 0.0
        %6975 = vmatprep.subr.mxu0 0.0
        %6976 = vmatpush1.msra.mxu0 0.0
        %6977 = vmatprep.subr.mxu0 0.0
        %6978 = vmatpush1.msra.mxu0 0.0
        %6979 = vmatprep.subr.mxu0 0.0
        %6980 = vmatpush1.msra.mxu0 0.0
        %6981 = vmatprep.subr.mxu0 0.0
        %6982 = vmatpush1.msra.mxu0 0.0
        %6983 = vmatprep.subr.mxu0 0.0
        %6984 = vmatpush1.msra.mxu0 0.0
        %6985 = vmatprep.subr.mxu0 0.0
        %6986 = vmatpush1.msra.mxu0 0.0
        %6987 = vmatprep.subr.mxu0 0.0
        %6988 = vmatpush1.msra.mxu0 0.0
        %6989 = vmatprep.subr.mxu0 0.0
        %6990 = vmatpush1.msra.mxu0 0.0
        %6991 = vmatprep.mubr.f32.mxu0 0.0
        %6992 = vmatmul.mubr.f32.gmra.mrb[0].mxu0 %v6925
        %v6993 = vpop.f32.mrb[0].mxu0
        %v6994 = vadd.f32 %v6907, %v6993
        %v6995 = vpop.f32.mrb[0].mxu0
        %v6996 = vadd.f32 %v6909, %v6995
        %6997 = vdwg.mxu0
        %v6998 = vld [vmem:[%s441] sm:$0xff]
        %v6999 = vld [vmem:[%s441 + $0x8] sm:$0xff]
        %7002 = vrot.lane.b32.xlu0 %v6998, 113
        %v7003 = vpop.permute.xlu0 %7002
        %7004 = vrot.lane.b32.xlu0 %v6999, 113
        %v7005 = vpop.permute.xlu0 %7004
        %v7006 = vsel %vm450, %v7003, %v7005
        %v7010 = vmul.f32 %v6789, %v7003
        %v7011 = vmul.f32 %v6790, %v7006
        %v7012 = vmul.f32 %v6791, %v7005
        %v7013 = vld [vmem:[%s1404] sm:$0xff]
        %7017 = vrot.lane.b32.xlu0 %v7010, 15
        %v7018 = vpop.permute.xlu0 %7017
        %7019 = vrot.lane.b32.xlu0 %v7011, 15
        %v7020 = vpop.permute.xlu0 %7019
        %7021 = vrot.lane.b32.xlu0 %v7012, 15
        %v7022 = vpop.permute.xlu0 %7021
        %v7023 = vsel %vm469, %v7018, %v7020
        %v7024 = vsel %vm469, %v7020, %v7022
        %v7028 = vsel %vm278, %v7013, 0
        %7030 = vmatprep.subr.mxu0 %v7024
        %7031 = vmatpush1.msra.mxu0 %v7023
        %7032 = vmatprep.subr.mxu0 0.0
        %7033 = vmatpush1.msra.mxu0 0.0
        %7034 = vmatprep.subr.mxu0 0.0
        %7035 = vmatpush1.msra.mxu0 0.0
        %7036 = vmatprep.subr.mxu0 0.0
        %7037 = vmatpush1.msra.mxu0 0.0
        %7038 = vmatprep.subr.mxu0 0.0
        %7039 = vmatpush1.msra.mxu0 0.0
        %7040 = vmatprep.subr.mxu0 0.0
        %7041 = vmatpush1.msra.mxu0 0.0
        %7042 = vmatprep.subr.mxu0 0.0
        %7043 = vmatpush1.msra.mxu0 0.0
        %7044 = vmatprep.subr.mxu0 0.0
        %7045 = vmatpush1.msra.mxu0 0.0
        %7046 = vmatprep.subr.mxu0 0.0
        %7047 = vmatpush1.msra.mxu0 0.0
        %7048 = vmatprep.subr.mxu0 0.0
        %7049 = vmatpush1.msra.mxu0 0.0
        %7050 = vmatprep.subr.mxu0 0.0
        %7051 = vmatpush1.msra.mxu0 0.0
        %7052 = vmatprep.subr.mxu0 0.0
        %7053 = vmatpush1.msra.mxu0 0.0
        %7054 = vmatprep.subr.mxu0 0.0
        %7055 = vmatpush1.msra.mxu0 0.0
        %7056 = vmatprep.subr.mxu0 0.0
        %7057 = vmatpush1.msra.mxu0 0.0
        %7058 = vmatprep.subr.mxu0 0.0
        %7059 = vmatpush1.msra.mxu0 0.0
        %7060 = vmatprep.subr.mxu0 0.0
        %7061 = vmatpush1.msra.mxu0 0.0
        %7062 = vmatprep.subr.mxu0 0.0
        %7063 = vmatpush1.msra.mxu0 0.0
        %7064 = vmatprep.subr.mxu0 0.0
        %7065 = vmatpush1.msra.mxu0 0.0
        %7066 = vmatprep.subr.mxu0 0.0
        %7067 = vmatpush1.msra.mxu0 0.0
        %7068 = vmatprep.subr.mxu0 0.0
        %7069 = vmatpush1.msra.mxu0 0.0
        %7070 = vmatprep.subr.mxu0 0.0
        %7071 = vmatpush1.msra.mxu0 0.0
        %7072 = vmatprep.subr.mxu0 0.0
        %7073 = vmatpush1.msra.mxu0 0.0
        %7074 = vmatprep.subr.mxu0 0.0
        %7075 = vmatpush1.msra.mxu0 0.0
        %7076 = vmatprep.subr.mxu0 0.0
        %7077 = vmatpush1.msra.mxu0 0.0
        %7078 = vmatprep.subr.mxu0 0.0
        %7079 = vmatpush1.msra.mxu0 0.0
        %7080 = vmatprep.subr.mxu0 0.0
        %7081 = vmatpush1.msra.mxu0 0.0
        %7082 = vmatprep.subr.mxu0 0.0
        %7083 = vmatpush1.msra.mxu0 0.0
        %7084 = vmatprep.subr.mxu0 0.0
        %7085 = vmatpush1.msra.mxu0 0.0
        %7086 = vmatprep.subr.mxu0 0.0
        %7087 = vmatpush1.msra.mxu0 0.0
        %7088 = vmatprep.subr.mxu0 0.0
        %7089 = vmatpush1.msra.mxu0 0.0
        %7090 = vmatprep.subr.mxu0 0.0
        %7091 = vmatpush1.msra.mxu0 0.0
        %7092 = vmatprep.subr.mxu0 0.0
        %7093 = vmatpush1.msra.mxu0 0.0
        %7094 = vmatprep.mubr.f32.mxu0 0.0
        %7095 = vmatmul.mubr.f32.gmra.mrb[0].mxu0 %v7028
        %v7096 = vpop.f32.mrb[0].mxu0
        %v7097 = vadd.f32 0.0, %v7096
        %v7098 = vpop.f32.mrb[0].mxu0
        %v7099 = vadd.f32 0.0, %v7098
        %7100 = vdwg.mxu0
        %v7101 = vadd.f32 %v6994, %v7097
        %v7102 = vadd.f32 %v6996, %v7099
        %v7103 = vld [vmem:[%s550] sm:$0xff]
        %v7104 = vld [vmem:[%s550 + $0x8] sm:$0xff]
        %7107 = vrot.lane.b32.xlu0 %v7103, 127
        %v7108 = vpop.permute.xlu0 %7107
        %7109 = vrot.lane.b32.xlu0 %v7104, 127
        %v7110 = vpop.permute.xlu0 %7109
        %v7111 = vsel %vm559, %v7108, %v7110
        %v7115 = vmul.f32 %v6789, %v7108
        %v7116 = vmul.f32 %v6790, %v7111
        %v7117 = vmul.f32 %v6791, %v7110
        %v7118 = vld [vmem:[%s1510] sm:$0xff]
        %7122 = vrot.lane.b32.xlu0 %v7115, 1
        %v7123 = vpop.permute.xlu0 %7122
        %7124 = vrot.lane.b32.xlu0 %v7116, 1
        %v7125 = vpop.permute.xlu0 %7124
        %7126 = vrot.lane.b32.xlu0 %v7117, 1
        %v7127 = vpop.permute.xlu0 %7126
        %v7128 = vsel %vm578, %v7123, %v7125
        %v7129 = vsel %vm578, %v7125, %v7127
        %v7133 = vsel %vm278, %v7118, 0
        %7135 = vmatprep.subr.mxu0 %v7129
        %7136 = vmatpush1.msra.mxu0 %v7128
        %7137 = vmatprep.subr.mxu0 0.0
        %7138 = vmatpush1.msra.mxu0 0.0
        %7139 = vmatprep.subr.mxu0 0.0
        %7140 = vmatpush1.msra.mxu0 0.0
        %7141 = vmatprep.subr.mxu0 0.0
        %7142 = vmatpush1.msra.mxu0 0.0
        %7143 = vmatprep.subr.mxu0 0.0
        %7144 = vmatpush1.msra.mxu0 0.0
        %7145 = vmatprep.subr.mxu0 0.0
        %7146 = vmatpush1.msra.mxu0 0.0
        %7147 = vmatprep.subr.mxu0 0.0
        %7148 = vmatpush1.msra.mxu0 0.0
        %7149 = vmatprep.subr.mxu0 0.0
        %7150 = vmatpush1.msra.mxu0 0.0
        %7151 = vmatprep.subr.mxu0 0.0
        %7152 = vmatpush1.msra.mxu0 0.0
        %7153 = vmatprep.subr.mxu0 0.0
        %7154 = vmatpush1.msra.mxu0 0.0
        %7155 = vmatprep.subr.mxu0 0.0
        %7156 = vmatpush1.msra.mxu0 0.0
        %7157 = vmatprep.subr.mxu0 0.0
        %7158 = vmatpush1.msra.mxu0 0.0
        %7159 = vmatprep.subr.mxu0 0.0
        %7160 = vmatpush1.msra.mxu0 0.0
        %7161 = vmatprep.subr.mxu0 0.0
        %7162 = vmatpush1.msra.mxu0 0.0
        %7163 = vmatprep.subr.mxu0 0.0
        %7164 = vmatpush1.msra.mxu0 0.0
        %7165 = vmatprep.subr.mxu0 0.0
        %7166 = vmatpush1.msra.mxu0 0.0
        %7167 = vmatprep.subr.mxu0 0.0
        %7168 = vmatpush1.msra.mxu0 0.0
        %7169 = vmatprep.subr.mxu0 0.0
        %7170 = vmatpush1.msra.mxu0 0.0
        %7171 = vmatprep.subr.mxu0 0.0
        %7172 = vmatpush1.msra.mxu0 0.0
        %7173 = vmatprep.subr.mxu0 0.0
        %7174 = vmatpush1.msra.mxu0 0.0
        %7175 = vmatprep.subr.mxu0 0.0
        %7176 = vmatpush1.msra.mxu0 0.0
        %7177 = vmatprep.subr.mxu0 0.0
        %7178 = vmatpush1.msra.mxu0 0.0
        %7179 = vmatprep.subr.mxu0 0.0
        %7180 = vmatpush1.msra.mxu0 0.0
        %7181 = vmatprep.subr.mxu0 0.0
        %7182 = vmatpush1.msra.mxu0 0.0
        %7183 = vmatprep.subr.mxu0 0.0
        %7184 = vmatpush1.msra.mxu0 0.0
        %7185 = vmatprep.subr.mxu0 0.0
        %7186 = vmatpush1.msra.mxu0 0.0
        %7187 = vmatprep.subr.mxu0 0.0
        %7188 = vmatpush1.msra.mxu0 0.0
        %7189 = vmatprep.subr.mxu0 0.0
        %7190 = vmatpush1.msra.mxu0 0.0
        %7191 = vmatprep.subr.mxu0 0.0
        %7192 = vmatpush1.msra.mxu0 0.0
        %7193 = vmatprep.subr.mxu0 0.0
        %7194 = vmatpush1.msra.mxu0 0.0
        %7195 = vmatprep.subr.mxu0 0.0
        %7196 = vmatpush1.msra.mxu0 0.0
        %7197 = vmatprep.subr.mxu0 0.0
        %7198 = vmatpush1.msra.mxu0 0.0
        %7199 = vmatprep.mubr.f32.mxu0 0.0
        %7200 = vmatmul.mubr.f32.gmra.mrb[0].mxu0 %v7133
        %v7201 = vpop.f32.mrb[0].mxu0
        %v7202 = vadd.f32 0.0, %v7201
        %v7203 = vpop.f32.mrb[0].mxu0
        %v7204 = vadd.f32 0.0, %v7203
        %7205 = vdwg.mxu0
        %v7206 = vadd.f32 %v7101, %v7202
        %v7207 = vadd.f32 %v7102, %v7204
        %v7208 = vld [vmem:[%s659] sm:$0xff]
        %v7209 = vld [vmem:[%s659 + $0x8] sm:$0xff]
        %v7210 = vmul.f32 %v6790, %v7208
        %v7211 = vmul.f32 %v6791, %v7209
        %v7212 = vld [vmem:[%s1605] sm:$0xff]
        %v7214 = vsel %vm278, %v7212, 0
        %7216 = vmatprep.subr.mxu0 %v7211
        %7217 = vmatpush1.msra.mxu0 %v7210
        %7218 = vmatprep.subr.mxu0 0.0
        %7219 = vmatpush1.msra.mxu0 0.0
        %7220 = vmatprep.subr.mxu0 0.0
        %7221 = vmatpush1.msra.mxu0 0.0
        %7222 = vmatprep.subr.mxu0 0.0
        %7223 = vmatpush1.msra.mxu0 0.0
        %7224 = vmatprep.subr.mxu0 0.0
        %7225 = vmatpush1.msra.mxu0 0.0
        %7226 = vmatprep.subr.mxu0 0.0
        %7227 = vmatpush1.msra.mxu0 0.0
        %7228 = vmatprep.subr.mxu0 0.0
        %7229 = vmatpush1.msra.mxu0 0.0
        %7230 = vmatprep.subr.mxu0 0.0
        %7231 = vmatpush1.msra.mxu0 0.0
        %7232 = vmatprep.subr.mxu0 0.0
        %7233 = vmatpush1.msra.mxu0 0.0
        %7234 = vmatprep.subr.mxu0 0.0
        %7235 = vmatpush1.msra.mxu0 0.0
        %7236 = vmatprep.subr.mxu0 0.0
        %7237 = vmatpush1.msra.mxu0 0.0
        %7238 = vmatprep.subr.mxu0 0.0
        %7239 = vmatpush1.msra.mxu0 0.0
        %7240 = vmatprep.subr.mxu0 0.0
        %7241 = vmatpush1.msra.mxu0 0.0
        %7242 = vmatprep.subr.mxu0 0.0
        %7243 = vmatpush1.msra.mxu0 0.0
        %7244 = vmatprep.subr.mxu0 0.0
        %7245 = vmatpush1.msra.mxu0 0.0
        %7246 = vmatprep.subr.mxu0 0.0
        %7247 = vmatpush1.msra.mxu0 0.0
        %7248 = vmatprep.subr.mxu0 0.0
        %7249 = vmatpush1.msra.mxu0 0.0
        %7250 = vmatprep.subr.mxu0 0.0
        %7251 = vmatpush1.msra.mxu0 0.0
        %7252 = vmatprep.subr.mxu0 0.0
        %7253 = vmatpush1.msra.mxu0 0.0
        %7254 = vmatprep.subr.mxu0 0.0
        %7255 = vmatpush1.msra.mxu0 0.0
        %7256 = vmatprep.subr.mxu0 0.0
        %7257 = vmatpush1.msra.mxu0 0.0
        %7258 = vmatprep.subr.mxu0 0.0
        %7259 = vmatpush1.msra.mxu0 0.0
        %7260 = vmatprep.subr.mxu0 0.0
        %7261 = vmatpush1.msra.mxu0 0.0
        %7262 = vmatprep.subr.mxu0 0.0
        %7263 = vmatpush1.msra.mxu0 0.0
        %7264 = vmatprep.subr.mxu0 0.0
        %7265 = vmatpush1.msra.mxu0 0.0
        %7266 = vmatprep.subr.mxu0 0.0
        %7267 = vmatpush1.msra.mxu0 0.0
        %7268 = vmatprep.subr.mxu0 0.0
        %7269 = vmatpush1.msra.mxu0 0.0
        %7270 = vmatprep.subr.mxu0 0.0
        %7271 = vmatpush1.msra.mxu0 0.0
        %7272 = vmatprep.subr.mxu0 0.0
        %7273 = vmatpush1.msra.mxu0 0.0
        %7274 = vmatprep.subr.mxu0 0.0
        %7275 = vmatpush1.msra.mxu0 0.0
        %7276 = vmatprep.subr.mxu0 0.0
        %7277 = vmatpush1.msra.mxu0 0.0
        %7278 = vmatprep.subr.mxu0 0.0
        %7279 = vmatpush1.msra.mxu0 0.0
        %7280 = vmatprep.mubr.f32.mxu0 0.0
        %7281 = vmatmul.mubr.f32.gmra.mrb[0].mxu0 %v7214
        %v7282 = vpop.f32.mrb[0].mxu0
        %v7283 = vadd.f32 0.0, %v7282
        %v7284 = vpop.f32.mrb[0].mxu0
        %v7285 = vadd.f32 0.0, %v7284
        %7286 = vdwg.mxu0
        %v7287 = vadd.f32 %v7206, %v7283
        %v7288 = vadd.f32 %v7207, %v7285
        %v7289 = vld [vmem:[#allocation2 + $0x8] sm:$0xff]
        %v7290 = vld [vmem:[#allocation2 + $0x10] sm:$0xff]
        %v7291 = vld [vmem:[#allocation2 + $0x18] sm:$0xff]
        %v7292 = vld [vmem:[%s745] sm:$0xff]
        %v7293 = vld [vmem:[%s745 + $0x8] sm:$0xff]
        %7296 = vrot.lane.b32.xlu0 %v7292, 1
        %v7297 = vpop.permute.xlu0 %7296
        %7298 = vrot.lane.b32.xlu0 %v7293, 1
        %v7299 = vpop.permute.xlu0 %7298
        %v7300 = vsel %vm578, %v7297, %v7299
        %v7304 = vmul.f32 %v7289, %v7297
        %v7305 = vmul.f32 %v7290, %v7300
        %v7306 = vmul.f32 %v7291, %v7299
        %v7307 = vld [vmem:[%s1701] sm:$0xff]
        %7311 = vrot.lane.b32.xlu0 %v7304, 127
        %v7312 = vpop.permute.xlu0 %7311
        %7313 = vrot.lane.b32.xlu0 %v7305, 127
        %v7314 = vpop.permute.xlu0 %7313
        %7315 = vrot.lane.b32.xlu0 %v7306, 127
        %v7316 = vpop.permute.xlu0 %7315
        %v7317 = vsel %vm559, %v7312, %v7314
        %v7318 = vsel %vm559, %v7314, %v7316
        %v7322 = vsel %vm278, %v7307, 0
        %7324 = vmatprep.subr.mxu0 %v7318
        %7325 = vmatpush1.msra.mxu0 %v7317
        %7326 = vmatprep.subr.mxu0 0.0
        %7327 = vmatpush1.msra.mxu0 0.0
        %7328 = vmatprep.subr.mxu0 0.0
        %7329 = vmatpush1.msra.mxu0 0.0
        %7330 = vmatprep.subr.mxu0 0.0
        %7331 = vmatpush1.msra.mxu0 0.0
        %7332 = vmatprep.subr.mxu0 0.0
        %7333 = vmatpush1.msra.mxu0 0.0
        %7334 = vmatprep.subr.mxu0 0.0
        %7335 = vmatpush1.msra.mxu0 0.0
        %7336 = vmatprep.subr.mxu0 0.0
        %7337 = vmatpush1.msra.mxu0 0.0
        %7338 = vmatprep.subr.mxu0 0.0
        %7339 = vmatpush1.msra.mxu0 0.0
        %7340 = vmatprep.subr.mxu0 0.0
        %7341 = vmatpush1.msra.mxu0 0.0
        %7342 = vmatprep.subr.mxu0 0.0
        %7343 = vmatpush1.msra.mxu0 0.0
        %7344 = vmatprep.subr.mxu0 0.0
        %7345 = vmatpush1.msra.mxu0 0.0
        %7346 = vmatprep.subr.mxu0 0.0
        %7347 = vmatpush1.msra.mxu0 0.0
        %7348 = vmatprep.subr.mxu0 0.0
        %7349 = vmatpush1.msra.mxu0 0.0
        %7350 = vmatprep.subr.mxu0 0.0
        %7351 = vmatpush1.msra.mxu0 0.0
        %7352 = vmatprep.subr.mxu0 0.0
        %7353 = vmatpush1.msra.mxu0 0.0
        %7354 = vmatprep.subr.mxu0 0.0
        %7355 = vmatpush1.msra.mxu0 0.0
        %7356 = vmatprep.subr.mxu0 0.0
        %7357 = vmatpush1.msra.mxu0 0.0
        %7358 = vmatprep.subr.mxu0 0.0
        %7359 = vmatpush1.msra.mxu0 0.0
        %7360 = vmatprep.subr.mxu0 0.0
        %7361 = vmatpush1.msra.mxu0 0.0
        %7362 = vmatprep.subr.mxu0 0.0
        %7363 = vmatpush1.msra.mxu0 0.0
        %7364 = vmatprep.subr.mxu0 0.0
        %7365 = vmatpush1.msra.mxu0 0.0
        %7366 = vmatprep.subr.mxu0 0.0
        %7367 = vmatpush1.msra.mxu0 0.0
        %7368 = vmatprep.subr.mxu0 0.0
        %7369 = vmatpush1.msra.mxu0 0.0
        %7370 = vmatprep.subr.mxu0 0.0
        %7371 = vmatpush1.msra.mxu0 0.0
        %7372 = vmatprep.subr.mxu0 0.0
        %7373 = vmatpush1.msra.mxu0 0.0
        %7374 = vmatprep.subr.mxu0 0.0
        %7375 = vmatpush1.msra.mxu0 0.0
        %7376 = vmatprep.subr.mxu0 0.0
        %7377 = vmatpush1.msra.mxu0 0.0
        %7378 = vmatprep.subr.mxu0 0.0
        %7379 = vmatpush1.msra.mxu0 0.0
        %7380 = vmatprep.subr.mxu0 0.0
        %7381 = vmatpush1.msra.mxu0 0.0
        %7382 = vmatprep.subr.mxu0 0.0
        %7383 = vmatpush1.msra.mxu0 0.0
        %7384 = vmatprep.subr.mxu0 0.0
        %7385 = vmatpush1.msra.mxu0 0.0
        %7386 = vmatprep.subr.mxu0 0.0
        %7387 = vmatpush1.msra.mxu0 0.0
        %7388 = vmatprep.mubr.f32.mxu0 0.0
        %7389 = vmatmul.mubr.f32.gmra.mrb[0].mxu0 %v7322
        %v7390 = vpop.f32.mrb[0].mxu0
        %v7391 = vadd.f32 0.0, %v7390
        %v7392 = vpop.f32.mrb[0].mxu0
        %v7393 = vadd.f32 0.0, %v7392
        %7394 = vdwg.mxu0
        %v7395 = vadd.f32 %v7287, %v7391
        %v7396 = vadd.f32 %v7288, %v7393
        %v7397 = vld [vmem:[%s852] sm:$0xff]
        %v7398 = vld [vmem:[%s852 + $0x8] sm:$0xff]
        %7401 = vrot.lane.b32.xlu0 %v7397, 15
        %v7402 = vpop.permute.xlu0 %7401
        %7403 = vrot.lane.b32.xlu0 %v7398, 15
        %v7404 = vpop.permute.xlu0 %7403
        %v7405 = vsel %vm469, %v7402, %v7404
        %v7409 = vmul.f32 %v7289, %v7402
        %v7410 = vmul.f32 %v7290, %v7405
        %v7411 = vmul.f32 %v7291, %v7404
        %v7412 = vld [vmem:[%s1807] sm:$0xff]
        %7416 = vrot.lane.b32.xlu0 %v7409, 113
        %v7417 = vpop.permute.xlu0 %7416
        %7418 = vrot.lane.b32.xlu0 %v7410, 113
        %v7419 = vpop.permute.xlu0 %7418
        %7420 = vrot.lane.b32.xlu0 %v7411, 113
        %v7421 = vpop.permute.xlu0 %7420
        %v7422 = vsel %vm450, %v7417, %v7419
        %v7423 = vsel %vm450, %v7419, %v7421
        %v7427 = vsel %vm278, %v7412, 0
        %7429 = vmatprep.subr.mxu0 %v7423
        %7430 = vmatpush1.msra.mxu0 %v7422
        %7431 = vmatprep.subr.mxu0 0.0
        %7432 = vmatpush1.msra.mxu0 0.0
        %7433 = vmatprep.subr.mxu0 0.0
        %7434 = vmatpush1.msra.mxu0 0.0
        %7435 = vmatprep.subr.mxu0 0.0
        %7436 = vmatpush1.msra.mxu0 0.0
        %7437 = vmatprep.subr.mxu0 0.0
        %7438 = vmatpush1.msra.mxu0 0.0
        %7439 = vmatprep.subr.mxu0 0.0
        %7440 = vmatpush1.msra.mxu0 0.0
        %7441 = vmatprep.subr.mxu0 0.0
        %7442 = vmatpush1.msra.mxu0 0.0
        %7443 = vmatprep.subr.mxu0 0.0
        %7444 = vmatpush1.msra.mxu0 0.0
        %7445 = vmatprep.subr.mxu0 0.0
        %7446 = vmatpush1.msra.mxu0 0.0
        %7447 = vmatprep.subr.mxu0 0.0
        %7448 = vmatpush1.msra.mxu0 0.0
        %7449 = vmatprep.subr.mxu0 0.0
        %7450 = vmatpush1.msra.mxu0 0.0
        %7451 = vmatprep.subr.mxu0 0.0
        %7452 = vmatpush1.msra.mxu0 0.0
        %7453 = vmatprep.subr.mxu0 0.0
        %7454 = vmatpush1.msra.mxu0 0.0
        %7455 = vmatprep.subr.mxu0 0.0
        %7456 = vmatpush1.msra.mxu0 0.0
        %7457 = vmatprep.subr.mxu0 0.0
        %7458 = vmatpush1.msra.mxu0 0.0
        %7459 = vmatprep.subr.mxu0 0.0
        %7460 = vmatpush1.msra.mxu0 0.0
        %7461 = vmatprep.subr.mxu0 0.0
        %7462 = vmatpush1.msra.mxu0 0.0
        %7463 = vmatprep.subr.mxu0 0.0
        %7464 = vmatpush1.msra.mxu0 0.0
        %7465 = vmatprep.subr.mxu0 0.0
        %7466 = vmatpush1.msra.mxu0 0.0
        %7467 = vmatprep.subr.mxu0 0.0
        %7468 = vmatpush1.msra.mxu0 0.0
        %7469 = vmatprep.subr.mxu0 0.0
        %7470 = vmatpush1.msra.mxu0 0.0
        %7471 = vmatprep.subr.mxu0 0.0
        %7472 = vmatpush1.msra.mxu0 0.0
        %7473 = vmatprep.subr.mxu0 0.0
        %7474 = vmatpush1.msra.mxu0 0.0
        %7475 = vmatprep.subr.mxu0 0.0
        %7476 = vmatpush1.msra.mxu0 0.0
        %7477 = vmatprep.subr.mxu0 0.0
        %7478 = vmatpush1.msra.mxu0 0.0
        %7479 = vmatprep.subr.mxu0 0.0
        %7480 = vmatpush1.msra.mxu0 0.0
        %7481 = vmatprep.subr.mxu0 0.0
        %7482 = vmatpush1.msra.mxu0 0.0
        %7483 = vmatprep.subr.mxu0 0.0
        %7484 = vmatpush1.msra.mxu0 0.0
        %7485 = vmatprep.subr.mxu0 0.0
        %7486 = vmatpush1.msra.mxu0 0.0
        %7487 = vmatprep.subr.mxu0 0.0
        %7488 = vmatpush1.msra.mxu0 0.0
        %7489 = vmatprep.subr.mxu0 0.0
        %7490 = vmatpush1.msra.mxu0 0.0
        %7491 = vmatprep.subr.mxu0 0.0
        %7492 = vmatpush1.msra.mxu0 0.0
        %7493 = vmatprep.mubr.f32.mxu0 0.0
        %7494 = vmatmul.mubr.f32.gmra.mrb[0].mxu0 %v7427
        %v7495 = vpop.f32.mrb[0].mxu0
        %v7496 = vadd.f32 0.0, %v7495
        %v7497 = vpop.f32.mrb[0].mxu0
        %v7498 = vadd.f32 0.0, %v7497
        %7499 = vdwg.mxu0
        %v7500 = vadd.f32 %v7395, %v7496
        %v7501 = vadd.f32 %v7396, %v7498
        %v7502 = vld [vmem:[%s959] sm:$0xff]
        %v7503 = vld [vmem:[%s959 + $0x8] sm:$0xff]
        %7506 = vrot.lane.b32.xlu0 %v7502, 16
        %v7507 = vpop.permute.xlu0 %7506
        %7508 = vrot.lane.b32.xlu0 %v7503, 16
        %v7509 = vpop.permute.xlu0 %7508
        %v7510 = vsel %vm273, %v7507, %v7509
        %v7514 = vmul.f32 %v7289, %v7507
        %v7515 = vmul.f32 %v7290, %v7510
        %v7516 = vmul.f32 %v7291, %v7509
        %v7517 = vld [vmem:[%s1913] sm:$0xff]
        %7521 = vrot.lane.b32.xlu0 %v7514, 112
        %v7522 = vpop.permute.xlu0 %7521
        %7523 = vrot.lane.b32.xlu0 %v7515, 112
        %v7524 = vpop.permute.xlu0 %7523
        %7525 = vrot.lane.b32.xlu0 %v7516, 112
        %v7526 = vpop.permute.xlu0 %7525
        %v7527 = vsel %vm254, %v7522, %v7524
        %v7528 = vsel %vm254, %v7524, %v7526
        %v7532 = vsel %vm278, %v7517, 0
        %7534 = vmatprep.subr.mxu0 %v7528
        %7535 = vmatpush1.msra.mxu0 %v7527
        %7536 = vmatprep.subr.mxu0 0.0
        %7537 = vmatpush1.msra.mxu0 0.0
        %7538 = vmatprep.subr.mxu0 0.0
        %7539 = vmatpush1.msra.mxu0 0.0
        %7540 = vmatprep.subr.mxu0 0.0
        %7541 = vmatpush1.msra.mxu0 0.0
        %7542 = vmatprep.subr.mxu0 0.0
        %7543 = vmatpush1.msra.mxu0 0.0
        %7544 = vmatprep.subr.mxu0 0.0
        %7545 = vmatpush1.msra.mxu0 0.0
        %7546 = vmatprep.subr.mxu0 0.0
        %7547 = vmatpush1.msra.mxu0 0.0
        %7548 = vmatprep.subr.mxu0 0.0
        %7549 = vmatpush1.msra.mxu0 0.0
        %7550 = vmatprep.subr.mxu0 0.0
        %7551 = vmatpush1.msra.mxu0 0.0
        %7552 = vmatprep.subr.mxu0 0.0
        %7553 = vmatpush1.msra.mxu0 0.0
        %7554 = vmatprep.subr.mxu0 0.0
        %7555 = vmatpush1.msra.mxu0 0.0
        %7556 = vmatprep.subr.mxu0 0.0
        %7557 = vmatpush1.msra.mxu0 0.0
        %7558 = vmatprep.subr.mxu0 0.0
        %7559 = vmatpush1.msra.mxu0 0.0
        %7560 = vmatprep.subr.mxu0 0.0
        %7561 = vmatpush1.msra.mxu0 0.0
        %7562 = vmatprep.subr.mxu0 0.0
        %7563 = vmatpush1.msra.mxu0 0.0
        %7564 = vmatprep.subr.mxu0 0.0
        %7565 = vmatpush1.msra.mxu0 0.0
        %7566 = vmatprep.subr.mxu0 0.0
        %7567 = vmatpush1.msra.mxu0 0.0
        %7568 = vmatprep.subr.mxu0 0.0
        %7569 = vmatpush1.msra.mxu0 0.0
        %7570 = vmatprep.subr.mxu0 0.0
        %7571 = vmatpush1.msra.mxu0 0.0
        %7572 = vmatprep.subr.mxu0 0.0
        %7573 = vmatpush1.msra.mxu0 0.0
        %7574 = vmatprep.subr.mxu0 0.0
        %7575 = vmatpush1.msra.mxu0 0.0
        %7576 = vmatprep.subr.mxu0 0.0
        %7577 = vmatpush1.msra.mxu0 0.0
        %7578 = vmatprep.subr.mxu0 0.0
        %7579 = vmatpush1.msra.mxu0 0.0
        %7580 = vmatprep.subr.mxu0 0.0
        %7581 = vmatpush1.msra.mxu0 0.0
        %7582 = vmatprep.subr.mxu0 0.0
        %7583 = vmatpush1.msra.mxu0 0.0
        %7584 = vmatprep.subr.mxu0 0.0
        %7585 = vmatpush1.msra.mxu0 0.0
        %7586 = vmatprep.subr.mxu0 0.0
        %7587 = vmatpush1.msra.mxu0 0.0
        %7588 = vmatprep.subr.mxu0 0.0
        %7589 = vmatpush1.msra.mxu0 0.0
        %7590 = vmatprep.subr.mxu0 0.0
        %7591 = vmatpush1.msra.mxu0 0.0
        %7592 = vmatprep.subr.mxu0 0.0
        %7593 = vmatpush1.msra.mxu0 0.0
        %7594 = vmatprep.subr.mxu0 0.0
        %7595 = vmatpush1.msra.mxu0 0.0
        %7596 = vmatprep.subr.mxu0 0.0
        %7597 = vmatpush1.msra.mxu0 0.0
        %7598 = vmatprep.mubr.f32.mxu0 0.0
        %7599 = vmatmul.mubr.f32.gmra.mrb[0].mxu0 %v7532
        %v7600 = vpop.f32.mrb[0].mxu0
        %v7601 = vadd.f32 0.0, %v7600
        %v7602 = vpop.f32.mrb[0].mxu0
        %v7603 = vadd.f32 0.0, %v7602
        %7604 = vdwg.mxu0
        %v7605 = vadd.f32 %v7500, %v7601
        %v7606 = vadd.f32 %v7501, %v7603
        %v7607 = vld [vmem:[%s1066] sm:$0xff]
        %v7608 = vld [vmem:[%s1066 + $0x8] sm:$0xff]
        %7611 = vrot.lane.b32.xlu0 %v7607, 17
        %v7612 = vpop.permute.xlu0 %7611
        %7613 = vrot.lane.b32.xlu0 %v7608, 17
        %v7614 = vpop.permute.xlu0 %7613
        %v7615 = vsel %vm362, %v7612, %v7614
        %v7619 = vmul.f32 %v7289, %v7612
        %v7620 = vmul.f32 %v7290, %v7615
        %v7621 = vmul.f32 %v7291, %v7614
        %v7622 = vld [vmem:[%s2019] sm:$0xff]
        %7626 = vrot.lane.b32.xlu0 %v7619, 111
        %v7627 = vpop.permute.xlu0 %7626
        %7628 = vrot.lane.b32.xlu0 %v7620, 111
        %v7629 = vpop.permute.xlu0 %7628
        %7630 = vrot.lane.b32.xlu0 %v7621, 111
        %v7631 = vpop.permute.xlu0 %7630
        %v7632 = vsel %vm236, %v7627, %v7629
        %v7633 = vsel %vm236, %v7629, %v7631
        %v7637 = vsel %vm278, %v7622, 0
        %7639 = vmatprep.subr.mxu0 %v7633
        %7640 = vmatpush1.msra.mxu0 %v7632
        %7641 = vmatprep.subr.mxu0 0.0
        %7642 = vmatpush1.msra.mxu0 0.0
        %7643 = vmatprep.subr.mxu0 0.0
        %7644 = vmatpush1.msra.mxu0 0.0
        %7645 = vmatprep.subr.mxu0 0.0
        %7646 = vmatpush1.msra.mxu0 0.0
        %7647 = vmatprep.subr.mxu0 0.0
        %7648 = vmatpush1.msra.mxu0 0.0
        %7649 = vmatprep.subr.mxu0 0.0
        %7650 = vmatpush1.msra.mxu0 0.0
        %7651 = vmatprep.subr.mxu0 0.0
        %7652 = vmatpush1.msra.mxu0 0.0
        %7653 = vmatprep.subr.mxu0 0.0
        %7654 = vmatpush1.msra.mxu0 0.0
        %7655 = vmatprep.subr.mxu0 0.0
        %7656 = vmatpush1.msra.mxu0 0.0
        %7657 = vmatprep.subr.mxu0 0.0
        %7658 = vmatpush1.msra.mxu0 0.0
        %7659 = vmatprep.subr.mxu0 0.0
        %7660 = vmatpush1.msra.mxu0 0.0
        %7661 = vmatprep.subr.mxu0 0.0
        %7662 = vmatpush1.msra.mxu0 0.0
        %7663 = vmatprep.subr.mxu0 0.0
        %7664 = vmatpush1.msra.mxu0 0.0
        %7665 = vmatprep.subr.mxu0 0.0
        %7666 = vmatpush1.msra.mxu0 0.0
        %7667 = vmatprep.subr.mxu0 0.0
        %7668 = vmatpush1.msra.mxu0 0.0
        %7669 = vmatprep.subr.mxu0 0.0
        %7670 = vmatpush1.msra.mxu0 0.0
        %7671 = vmatprep.subr.mxu0 0.0
        %7672 = vmatpush1.msra.mxu0 0.0
        %7673 = vmatprep.subr.mxu0 0.0
        %7674 = vmatpush1.msra.mxu0 0.0
        %7675 = vmatprep.subr.mxu0 0.0
        %7676 = vmatpush1.msra.mxu0 0.0
        %7677 = vmatprep.subr.mxu0 0.0
        %7678 = vmatpush1.msra.mxu0 0.0
        %7679 = vmatprep.subr.mxu0 0.0
        %7680 = vmatpush1.msra.mxu0 0.0
        %7681 = vmatprep.subr.mxu0 0.0
        %7682 = vmatpush1.msra.mxu0 0.0
        %7683 = vmatprep.subr.mxu0 0.0
        %7684 = vmatpush1.msra.mxu0 0.0
        %7685 = vmatprep.subr.mxu0 0.0
        %7686 = vmatpush1.msra.mxu0 0.0
        %7687 = vmatprep.subr.mxu0 0.0
        %7688 = vmatpush1.msra.mxu0 0.0
        %7689 = vmatprep.subr.mxu0 0.0
        %7690 = vmatpush1.msra.mxu0 0.0
        %7691 = vmatprep.subr.mxu0 0.0
        %7692 = vmatpush1.msra.mxu0 0.0
        %7693 = vmatprep.subr.mxu0 0.0
        %7694 = vmatpush1.msra.mxu0 0.0
        %7695 = vmatprep.subr.mxu0 0.0
        %7696 = vmatpush1.msra.mxu0 0.0
        %7697 = vmatprep.subr.mxu0 0.0
        %7698 = vmatpush1.msra.mxu0 0.0
        %7699 = vmatprep.subr.mxu0 0.0
        %7700 = vmatpush1.msra.mxu0 0.0
        %7701 = vmatprep.subr.mxu0 0.0
        %7702 = vmatpush1.msra.mxu0 0.0
        %7703 = vmatprep.mubr.f32.mxu0 0.0
        %7704 = vmatmul.mubr.f32.gmra.mrb[0].mxu0 %v7637
        %v7705 = vpop.f32.mrb[0].mxu0
        %v7706 = vadd.f32 0.0, %v7705
        %v7707 = vpop.f32.mrb[0].mxu0
        %v7708 = vadd.f32 0.0, %v7707
        %7709 = vdwg.mxu0
        %v7710 = vadd.f32 %v7605, %v7706
        %v7711 = vadd.f32 %v7606, %v7708
        %v7712 = vmul.f32 %v7710, 0.020833334
        %v7713 = vmul.f32 %v7711, 0.020833334
        %v7714 = vadd.f32 %v5846, %v7712
        %v7715 = vadd.f32 %v5847, %v7713
      $region41: #{ode_block_forward.1} parent=35 // loop_footer
        %s213 = sadd.s32 1, %s209
      $region42: #{ode_block_forward.1} parent=35 // loop_footer_branch
        %208 = sbr.rel target = $region38
      $region43: #{ode_block_forward.1} parent=35 // loop_exit
        _
      %7716 = vst [vmem:[%s197] sm:$0xff] %v214
      %7717 = vst [vmem:[%s197 + $0x8] sm:$0xff] %v215
      %p7718 = scmp.lt.s32.totalorder %s15, 1
      %s7719 = scalar_select %p7718, %s15, 1
      %s7720 = smul.addr %s7719, 2
      %s7721 = smul.addr %s7720, 8
      %s7722 = scalar_lea.vmem %s4, %s7721
      // Predicated region
      $region44: #{ode_block_forward.1} parent=35 // pred_check
        %p7723 = pneg %p122
      $region45: #{ode_block_forward.1} parent=35 // pred_check_branch
        %7725 = sbr.rel (%p7723) target = $region47
      $region46: #{ode_block_forward.1} parent=35 // pred_region
        _
      $region47: #{ode_block_forward.1} parent=35 // pred_fallthru
        _
    $region36: #{ode_block_forward.1} parent=5 // pred_fallthru
      _
    %p7726 = scmp.le.s32.totalorder 2, %s10
    // Predicated region
    $region48: #{ode_block_forward.1} parent=5 // pred_check
      %p7727 = pneg %p7726
    $region49: #{ode_block_forward.1} parent=5 // pred_check_branch
      %7729 = sbr.rel (%p7727) target = $region51
    $region50: #{ode_block_forward.1} parent=5 // pred_region
      %s7730 = ssub.s32 %s10, 2
      // Predicated region
      $region52: #{ode_block_forward.1} parent=50 // pred_check
        %p7731 = pneg %p128
      $region53: #{ode_block_forward.1} parent=50 // pred_check_branch
        %7733 = sbr.rel (%p7731) target = $region55
      $region54: #{ode_block_forward.1} parent=50 // pred_region
        %p7734 = scmp.lt.s32.totalorder %s16, 1
        %s7735 = scalar_select %p7734, %s16, 1
        %s7736 = smul.addr %s7735, 2
        %s7737 = smul.addr %s7736, 8
        %s7738 = scalar_lea.vmem %s4, %s7737
      $region55: #{ode_block_forward.1} parent=50 // pred_fallthru
        _
    $region51: #{ode_block_forward.1} parent=5 // pred_fallthru
      _
  $region6: #{ode_block_forward.1} parent=0 // loop_footer
    %s14 = sadd.s32 1, %s10
  $region7: #{ode_block_forward.1} parent=0 // loop_footer_branch
    %9 = sbr.rel target = $region3
  $region8: #{ode_block_forward.1} parent=0 // loop_exit
    _

</llo_original>
